<compile_context>
chip_gen: v7x
topology: tpu7x:2x2x1
jax: 0.10.0
libtpu: 0.0.40
codegen_flags: <defaults>
</compile_context>

<pallas_src>
import functools

import jax
import jax.numpy as jnp
import numpy as np
from jax import lax
from jax.experimental import pallas as pl
from jax.experimental.pallas import tpu as pltpu

BN_EPS = 1e-5
LRELU_SLOPE = 0.2
VMEM_LIMIT_BYTES = 32 * 1024 * 1024


# ---------------------------------------------------------------------------
# Pallas kernels
# ---------------------------------------------------------------------------
def _conv_bn_lrelu_single_kernel(p_ref, w_ref, g_ref, b_ref, o_ref):
    """Fused conv-matmul + BatchNorm2d + LeakyReLU when the whole M fits one block.

    Scratch-free: stats and normalization are computed on the live f32 matmul
    result (no VMEM round trip).
    """
    y = jnp.dot(w_ref[...], p_ref[...], preferred_element_type=jnp.float32)
    inv_m = 1.0 / float(y.shape[1])
    mean = jnp.sum(y, axis=1, keepdims=True) * inv_m
    var = jnp.sum(y * y, axis=1, keepdims=True) * inv_m - mean * mean
    scale = g_ref[...] * lax.rsqrt(var + BN_EPS)        # fold gamma into rsqrt
    shift = b_ref[...] - mean * scale
    z = y * scale + shift
    o_ref[...] = jnp.maximum(z, LRELU_SLOPE * z).astype(o_ref.dtype)


def _conv_bn_lrelu_kernel(p_ref, w_ref, g_ref, b_ref, o_ref, y_sc, s1_ref, s2_ref):
    """Fused conv-matmul + BatchNorm2d (training stats) + LeakyReLU(0.2).

    p_ref : (K, mblk)          bf16  patch block, streamed over the M grid axis
    w_ref : (Cout, K)          bf16  weights, resident across the grid
    g_ref : (Cout, 1)          f32   BN gamma
    b_ref : (Cout, 1)          f32   BN beta
    o_ref : (Cout, M)          bf16  full output, resident across the grid
    y_sc  : (nblk, Cout, mblk) f32   raw conv results (scratch)
    s1/s2 : (Cout, 1)          f32   running sum / sum-of-squares (scratch)
    """
    nblk, _, mblk = y_sc.shape
    inv_m = 1.0 / float(nblk * mblk)
    i = pl.program_id(0)

    @pl.when(i == 0)
    def _init():
        s1_ref[...] = jnp.zeros_like(s1_ref)
        s2_ref[...] = jnp.zeros_like(s2_ref)

    # Conv as a weight-stationary matmul; bf16 inputs, f32 accumulation (MXU).
    y = jnp.dot(w_ref[...], p_ref[...], preferred_element_type=jnp.float32)

    # Single-pass BN statistics (XLU reduction, overlaps with MXU work).
    s1_ref[...] += jnp.sum(y, axis=1, keepdims=True)
    s2_ref[...] += jnp.sum(y * y, axis=1, keepdims=True)

    # Park the raw conv block in VMEM scratch until the stats are complete.
    y_sc[i] = y

    @pl.when(i == pl.num_programs(0) - 1)
    def _finalize():
        mean = s1_ref[...] * inv_m
        var = s2_ref[...] * inv_m - mean * mean            # biased batch variance
        scale = g_ref[...] * lax.rsqrt(var + BN_EPS)
        shift = b_ref[...] - mean * scale
        for j in range(nblk):                              # static unroll over M blocks
            z = y_sc[j] * scale + shift                    # one FMA per element
            o_ref[:, j * mblk:(j + 1) * mblk] = jnp.maximum(
                z, LRELU_SLOPE * z).astype(o_ref.dtype)


def _final_conv_kernel(p_ref, wmu_ref, wlv_ref, bmu_ref, blv_ref, mu_ref, sig_ref):
    """Final conv (no BN / activation) with pre-split mu / logvar weights."""
    p = p_ref[...]
    mu_ref[...] = (jnp.dot(wmu_ref[...], p, preferred_element_type=jnp.float32)
                   + bmu_ref[...])
    logvar = (jnp.dot(wlv_ref[...], p, preferred_element_type=jnp.float32)
              + blv_ref[...])
    sig_ref[...] = jnp.exp(logvar)


# ---------------------------------------------------------------------------
# pallas_call wrappers
# ---------------------------------------------------------------------------
def _pick_mblk(m, target=2048):
    if m <= target:
        return m
    for cand in (target, 1024, 512, 256, 128):
        if m % cand == 0:
            return cand
    return m


def conv_bn_lrelu_layer(patches, w_t, gamma, beta, *, out_dtype=jnp.bfloat16):
    kdim, m = patches.shape
    cout = w_t.shape[0]
    mblk = _pick_mblk(m)
    nblk = m // mblk

    if nblk == 1:
        # Scratch-free single-block fast path (whole layer fits one VMEM block).
        vmem = pl.BlockSpec(memory_space=pltpu.MemorySpace.VMEM)
        return pl.pallas_call(
            _conv_bn_lrelu_single_kernel,
            out_shape=jax.ShapeDtypeStruct((cout, m), out_dtype),
            in_specs=[vmem] * 4,
            out_specs=vmem,
            compiler_params=pltpu.CompilerParams(vmem_limit_bytes=VMEM_LIMIT_BYTES),
        )(patches, w_t, gamma, beta)

    return pl.pallas_call(
        _conv_bn_lrelu_kernel,
        out_shape=jax.ShapeDtypeStruct((cout, m), out_dtype),
        grid=(nblk,),
        in_specs=[
            pl.BlockSpec((kdim, mblk), lambda i: (0, i)),   # streamed patch blocks
            pl.BlockSpec((cout, kdim), lambda i: (0, 0)),   # resident weights
            pl.BlockSpec((cout, 1), lambda i: (0, 0)),      # gamma
            pl.BlockSpec((cout, 1), lambda i: (0, 0)),      # beta
        ],
        out_specs=pl.BlockSpec((cout, m), lambda i: (0, 0)),  # resident output
        scratch_shapes=[
            pltpu.VMEM((nblk, cout, mblk), jnp.float32),
            pltpu.VMEM((cout, 1), jnp.float32),
            pltpu.VMEM((cout, 1), jnp.float32),
        ],
        compiler_params=pltpu.CompilerParams(
            dimension_semantics=("arbitrary",),
            vmem_limit_bytes=VMEM_LIMIT_BYTES),
    )(patches, w_t, gamma, beta)


def final_conv_layer(patches, w_mu, w_lv, b_mu, b_lv):
    kdim, m = patches.shape
    z = w_mu.shape[0]
    vmem = pl.BlockSpec(memory_space=pltpu.MemorySpace.VMEM)
    return pl.pallas_call(
        _final_conv_kernel,
        out_shape=(jax.ShapeDtypeStruct((z, m), jnp.float32),
                   jax.ShapeDtypeStruct((z, m), jnp.float32)),
        in_specs=[vmem] * 5,
        out_specs=(vmem, vmem),
        compiler_params=pltpu.CompilerParams(vmem_limit_bytes=VMEM_LIMIT_BYTES),
    )(patches, w_mu, w_lv, b_mu, b_lv)


# ---------------------------------------------------------------------------
# Patch extraction: static strided slices (no gather, no 6-D transpose)
# ---------------------------------------------------------------------------
def extract_patches_cm(a_cnhw, k, s, p):
    """a_cnhw: (C, N, H, W) -> patches (C*k*k, N*Ho*Wo), feature order (c, kh, kw)
    which matches w.reshape(Cout, Cin*k*k)."""
    c, n, h, w = a_cnhw.shape
    ho = (h + 2 * p - k) // s + 1
    wo = (w + 2 * p - k) // s + 1
    ap = jnp.pad(a_cnhw, ((0, 0), (0, 0), (p, p), (p, p))) if p else a_cnhw
    taps = []
    for kh in range(k):
        for kw in range(k):
            taps.append(lax.slice(
                ap, (0, 0, kh, kw),
                (c, n, kh + (ho - 1) * s + 1, kw + (wo - 1) * s + 1),
                (1, 1, s, s)))
    pt = jnp.stack(taps, axis=1)                      # (C, k*k, N, Ho, Wo)
    return pt.reshape(c * k * k, n * ho * wo), ho, wo


# ---------------------------------------------------------------------------
# Parameters
# ---------------------------------------------------------------------------
def init_encoder_params(key, im_chan=3, output_chan=32, hidden_dim=16):
    specs = [
        # (cin, cout, k, s, p, final)
        (im_chan,        hidden_dim,      4, 2, 1, False),
        (hidden_dim,     hidden_dim * 2,  4, 2, 1, False),
        (hidden_dim * 2, hidden_dim * 4,  4, 2, 1, False),
        (hidden_dim * 4, hidden_dim * 8,  4, 2, 1, False),
        (hidden_dim * 8, hidden_dim * 8,  4, 2, 1, False),
        (hidden_dim * 8, 2 * output_chan, 4, 1, 0, True),
    ]
    params = []
    for cin, cout, k, s, p, final in specs:
        key, wk, bk = jax.random.split(key, 3)
        fan_in = cin * k * k
        bound = 1.0 / np.sqrt(fan_in)
        w = jax.random.uniform(wk, (cout, cin, k, k), jnp.float32, -bound, bound)  # OIHW
        b = jax.random.uniform(bk, (cout,), jnp.float32, -bound, bound)
        gamma = jnp.ones((cout,), jnp.float32)   # BatchNorm2d default init
        beta = jnp.zeros((cout,), jnp.float32)
        params.append(dict(w=w, b=b, gamma=gamma, beta=beta, k=k, s=s, p=p, final=final))
    return params


def prepare_encoder_params(params, z_dim):
    """Hoist all layout transforms out of the forward pass (done once)."""
    prep = []
    for layer in params:
        k, s, p = layer["k"], layer["s"], layer["p"]
        w = layer["w"]                               # (Cout, Cin, k, k)
        cout = w.shape[0]
        kdim = w.shape[1] * k * k
        if not layer["final"]:
            prep.append(dict(
                k=k, s=s, p=p, cout=cout, final=False,
                # conv bias intentionally dropped: cancelled by BN mean-subtraction
                w_t=w.reshape(cout, kdim).astype(jnp.bfloat16),
                gamma=layer["gamma"].reshape(cout, 1),
                beta=layer["beta"].reshape(cout, 1),
            ))
        else:
            b = layer["b"]
            prep.append(dict(
                k=k, s=s, p=p, cout=cout, final=True,
                w_mu=w[:z_dim].reshape(z_dim, kdim).astype(jnp.bfloat16),
                w_lv=w[z_dim:].reshape(z_dim, kdim).astype(jnp.bfloat16),
                b_mu=b[:z_dim].reshape(z_dim, 1),
                b_lv=b[z_dim:].reshape(z_dim, 1),
            ))
    return prep


# ---------------------------------------------------------------------------
# Encoder forward (Pallas) and pure-JAX f32 reference
# ---------------------------------------------------------------------------
def encoder_forward_pallas(x_nchw, prep):
    # NCHW -> CNHW; bf16 activations between layers.
    a = jnp.transpose(x_nchw, (1, 0, 2, 3)).astype(jnp.bfloat16)
    n = x_nchw.shape[0]
    for layer in prep[:-1]:
        patches, ho, wo = extract_patches_cm(a, layer["k"], layer["s"], layer["p"])
        y = conv_bn_lrelu_layer(patches, layer["w_t"], layer["gamma"], layer["beta"])
        a = y.reshape(layer["cout"], n, ho, wo)

    fl = prep[-1]
    patches, ho, wo = extract_patches_cm(a, fl["k"], fl["s"], fl["p"])
    assert ho == 1 and wo == 1  # 1x1 latent map => flatten order matches NCHW .view()
    mu_t, sig_t = final_conv_layer(patches, fl["w_mu"], fl["w_lv"],
                                   fl["b_mu"], fl["b_lv"])
    # (z, N) -> (N, z); second output is exp(logvar), matching the PyTorch module.
    return mu_t.T, sig_t.T


def encoder_forward_ref(x_nchw, params, z_dim):
    x = x_nchw.astype(jnp.float32)
    for layer in params:
        y = lax.conv_general_dilated(
            x, layer["w"], (layer["s"], layer["s"]),
            [(layer["p"], layer["p"]), (layer["p"], layer["p"])],
            dimension_numbers=("NCHW", "OIHW", "NCHW"),
            precision=lax.Precision.HIGHEST)
        y = y + layer["b"][None, :, None, None]
        if not layer["final"]:
            mean = jnp.mean(y, axis=(0, 2, 3), keepdims=True)
            var = jnp.mean(jnp.square(y - mean), axis=(0, 2, 3), keepdims=True)
            y = (y - mean) * lax.rsqrt(var + BN_EPS)
            y = y * layer["gamma"][None, :, None, None] + layer["beta"][None, :, None, None]
            y = jnp.where(y >= 0, y, LRELU_SLOPE * y)
        x = y
    enc = x.reshape(x.shape[0], -1)
    return enc[:, :z_dim], jnp.exp(enc[:, z_dim:])


if __name__ == "__main__":
    key = jax.random.PRNGKey(0)
    pkey, xkey = jax.random.split(key)

    im_chan, output_chan, hidden_dim = 3, 32, 16
    params = init_encoder_params(pkey, im_chan, output_chan, hidden_dim)
    prep = prepare_encoder_params(params, output_chan)

    # Smallest spatial size consistent with the module: five stride-2 blocks then
    # a 4x4 valid conv -> 128x128 input reaches the 1x1 latent map.
    x = jax.random.normal(xkey, (2, im_chan, 128, 128), jnp.float32)

    fwd = jax.jit(functools.partial(encoder_forward_pallas, prep=prep))
    mu, sigma = fwd(x)
    jax.block_until_ready((mu, sigma))

    # Sanity check against an f32 (HIGHEST precision) reference; the Pallas path
    # runs bf16 on the MXU with f32 accumulation.
    mu_ref, sigma_ref = encoder_forward_ref(x, params, output_chan)
    np.testing.assert_allclose(np.asarray(mu), np.asarray(mu_ref),
                               rtol=1e-1, atol=1e-1)
    np.testing.assert_allclose(np.log(np.asarray(sigma)),
                               np.log(np.asarray(sigma_ref)),
                               rtol=1e-1, atol=1e-1)

    print("KERNEL_OK")
</pallas_src>

<mosaic_0001>
module attributes {stable_mosaic.version = 11 : i64} {
  func.func @_conv_bn_lrelu_kernel(%arg0: i32, %arg1: memref<48x2048xbf16, #tpu.memory_space<vmem>>, %arg2: memref<16x48xbf16, #tpu.memory_space<vmem>>, %arg3: memref<16x1xf32, #tpu.memory_space<vmem>>, %arg4: memref<16x1xf32, #tpu.memory_space<vmem>>, %arg5: memref<16x8192xbf16, #tpu.memory_space<vmem>>, %arg6: memref<4x16x2048xf32, #tpu.memory_space<vmem>>, %arg7: memref<16x1xf32, #tpu.memory_space<vmem>>, %arg8: memref<16x1xf32, #tpu.memory_space<vmem>>) attributes {dimension_semantics = [#tpu.dimension_semantics<arbitrary>], iteration_bounds = array<i64: 4>, scalar_prefetch = 0 : i64, scratch_operands = 3 : i64, tpu.core_type = #tpu.core_type<tc>, window_params = [{transform_indices = @transform_0, window_bounds = array<i64: 48, 2048>}, {pipeline_mode = #tpu.pipeline_mode<synchronous>, transform_indices = @transform_1, window_bounds = array<i64: 16, 48>}, {pipeline_mode = #tpu.pipeline_mode<synchronous>, transform_indices = @transform_2, window_bounds = array<i64: 16, 1>}, {pipeline_mode = #tpu.pipeline_mode<synchronous>, transform_indices = @transform_3, window_bounds = array<i64: 16, 1>}, {pipeline_mode = #tpu.pipeline_mode<synchronous>, transform_indices = @transform_4, window_bounds = array<i64: 16, 8192>}]} {
    %c0_i32 = arith.constant 0 : i32
    %0 = arith.cmpi eq, %arg0, %c0_i32 : i32
    %1 = arith.extui %0 : i1 to i32
    %c0_i32_0 = arith.constant 0 : i32
    %2 = arith.cmpi ne, %1, %c0_i32_0 : i32
    scf.if %2 {
      %cst_17 = arith.constant 0.000000e+00 : f32
      %24 = vector.broadcast %cst_17 : f32 to vector<16x1xf32>
      %c0_18 = arith.constant 0 : index
      %c0_19 = arith.constant 0 : index
      %25 = vector.load %arg7[%c0_18, %c0_19] : memref<16x1xf32, #tpu.memory_space<vmem>>, vector<16x1xf32>
      tpu.vector_store %arg7[%c0_18, %c0_19], %24 {strides = array<i32>} : memref<16x1xf32, #tpu.memory_space<vmem>>, vector<16x1xf32>,
      %cst_20 = arith.constant 0.000000e+00 : f32
      %26 = vector.broadcast %cst_20 : f32 to vector<16x1xf32>
      %c0_21 = arith.constant 0 : index
      %c0_22 = arith.constant 0 : index
      %27 = vector.load %arg8[%c0_21, %c0_22] : memref<16x1xf32, #tpu.memory_space<vmem>>, vector<16x1xf32>
      tpu.vector_store %arg8[%c0_21, %c0_22], %26 {strides = array<i32>} : memref<16x1xf32, #tpu.memory_space<vmem>>, vector<16x1xf32>,
    } else {
    }
    %c0 = arith.constant 0 : index
    %c0_1 = arith.constant 0 : index
    %3 = vector.load %arg2[%c0, %c0_1] : memref<16x48xbf16, #tpu.memory_space<vmem>>, vector<16x48xbf16>
    %c0_2 = arith.constant 0 : index
    %c0_3 = arith.constant 0 : index
    %4 = vector.load %arg1[%c0_2, %c0_3] : memref<48x2048xbf16, #tpu.memory_space<vmem>>, vector<48x2048xbf16>
    %cst = arith.constant dense<0.000000e+00> : vector<16x2048xf32>
    %5 = tpu.matmul %3, %4, %cst {dimension_numbers = #tpu.dot_dimension_numbers<[1], [0], [0], [1], [0, 0, 1, 1], [], []>} : vector<16x48xbf16>, vector<48x2048xbf16>, vector<16x2048xf32> -> vector<16x2048xf32>
    %c0_4 = arith.constant 0 : index
    %c0_5 = arith.constant 0 : index
    %6 = vector.load %arg7[%c0_4, %c0_5] : memref<16x1xf32, #tpu.memory_space<vmem>>, vector<16x1xf32>
    %cst_6 = arith.constant dense<0.000000e+00> : vector<16xf32>
    %7 = vector.multi_reduction <add>, %5, %cst_6 [1] : vector<16x2048xf32> to vector<16xf32>
    %8 = vector.shape_cast %7 : vector<16xf32> to vector<16x1xf32>
    %9 = arith.addf %6, %8 : vector<16x1xf32>
    %c0_7 = arith.constant 0 : index
    %c0_8 = arith.constant 0 : index
    %10 = vector.load %arg7[%c0_7, %c0_8] : memref<16x1xf32, #tpu.memory_space<vmem>>, vector<16x1xf32>
    tpu.vector_store %arg7[%c0_7, %c0_8], %9 {strides = array<i32>} : memref<16x1xf32, #tpu.memory_space<vmem>>, vector<16x1xf32>,
    %c0_9 = arith.constant 0 : index
    %c0_10 = arith.constant 0 : index
    %11 = vector.load %arg8[%c0_9, %c0_10] : memref<16x1xf32, #tpu.memory_space<vmem>>, vector<16x1xf32>
    %12 = arith.mulf %5, %5 : vector<16x2048xf32>
    %cst_11 = arith.constant dense<0.000000e+00> : vector<16xf32>
    %13 = vector.multi_reduction <add>, %12, %cst_11 [1] : vector<16x2048xf32> to vector<16xf32>
    %14 = vector.shape_cast %13 : vector<16xf32> to vector<16x1xf32>
    %15 = arith.addf %11, %14 : vector<16x1xf32>
    %c0_12 = arith.constant 0 : index
    %c0_13 = arith.constant 0 : index
    %16 = vector.load %arg8[%c0_12, %c0_13] : memref<16x1xf32, #tpu.memory_space<vmem>>, vector<16x1xf32>
    tpu.vector_store %arg8[%c0_12, %c0_13], %15 {strides = array<i32>} : memref<16x1xf32, #tpu.memory_space<vmem>>, vector<16x1xf32>,
    %17 = arith.index_cast %arg0 : i32 to index
    %c0_14 = arith.constant 0 : index
    %c0_15 = arith.constant 0 : index
    %18 = vector.load %arg6[%17, %c0_14, %c0_15] : memref<4x16x2048xf32, #tpu.memory_space<vmem>>, vector<1x16x2048xf32>
    %19 = vector.shape_cast %18 : vector<1x16x2048xf32> to vector<16x2048xf32>
    %20 = vector.shape_cast %5 : vector<16x2048xf32> to vector<1x16x2048xf32>
    tpu.vector_store %arg6[%17, %c0_14, %c0_15], %20 {strides = array<i32>} : memref<4x16x2048xf32, #tpu.memory_space<vmem>>, vector<1x16x2048xf32>,
    %c3_i32 = arith.constant 3 : i32
    %21 = arith.cmpi eq, %arg0, %c3_i32 : i32
    %22 = arith.extui %21 : i1 to i32
    %c0_i32_16 = arith.constant 0 : i32
    %23 = arith.cmpi ne, %22, %c0_i32_16 : i32
    scf.if %23 {
      %c0_17 = arith.constant 0 : index
      %c0_18 = arith.constant 0 : index
      %24 = vector.load %arg7[%c0_17, %c0_18] : memref<16x1xf32, #tpu.memory_space<vmem>>, vector<16x1xf32>
      %cst_19 = arith.constant 1.22070313E-4 : f32
      %25 = vector.broadcast %cst_19 : f32 to vector<16x1xf32>
      %26 = arith.mulf %24, %25 : vector<16x1xf32>
      %c0_20 = arith.constant 0 : index
      %c0_21 = arith.constant 0 : index
      %27 = vector.load %arg8[%c0_20, %c0_21] : memref<16x1xf32, #tpu.memory_space<vmem>>, vector<16x1xf32>
      %cst_22 = arith.constant 1.22070313E-4 : f32
      %28 = vector.broadcast %cst_22 : f32 to vector<16x1xf32>
      %29 = arith.mulf %27, %28 : vector<16x1xf32>
      %30 = arith.mulf %26, %26 : vector<16x1xf32>
      %31 = arith.subf %29, %30 : vector<16x1xf32>
      %c0_23 = arith.constant 0 : index
      %c0_24 = arith.constant 0 : index
      %32 = vector.load %arg3[%c0_23, %c0_24] : memref<16x1xf32, #tpu.memory_space<vmem>>, vector<16x1xf32>
      %cst_25 = arith.constant 9.99999974E-6 : f32
      %33 = vector.broadcast %cst_25 : f32 to vector<16x1xf32>
      %34 = arith.addf %31, %33 : vector<16x1xf32>
      %35 = math.rsqrt %34 : vector<16x1xf32>
      %36 = arith.mulf %32, %35 : vector<16x1xf32>
      %c0_26 = arith.constant 0 : index
      %c0_27 = arith.constant 0 : index
      %37 = vector.load %arg4[%c0_26, %c0_27] : memref<16x1xf32, #tpu.memory_space<vmem>>, vector<16x1xf32>
      %38 = arith.mulf %26, %36 : vector<16x1xf32>
      %39 = arith.subf %37, %38 : vector<16x1xf32>
      %c0_28 = arith.constant 0 : index
      %c0_29 = arith.constant 0 : index
      %c0_30 = arith.constant 0 : index
      %40 = vector.load %arg6[%c0_28, %c0_29, %c0_30] : memref<4x16x2048xf32, #tpu.memory_space<vmem>>, vector<1x16x2048xf32>
      %41 = vector.shape_cast %40 : vector<1x16x2048xf32> to vector<16x2048xf32>
      %42 = vector.broadcast %36 : vector<16x1xf32> to vector<16x2048xf32>
      %43 = arith.mulf %41, %42 : vector<16x2048xf32>
      %44 = vector.broadcast %39 : vector<16x1xf32> to vector<16x2048xf32>
      %45 = arith.addf %43, %44 : vector<16x2048xf32>
      %cst_31 = arith.constant 2.000000e-01 : f32
      %46 = vector.broadcast %cst_31 : f32 to vector<16x2048xf32>
      %47 = arith.mulf %46, %45 : vector<16x2048xf32>
      %48 = arith.maximumf %45, %47 : vector<16x2048xf32>
      %49 = arith.truncf %48 : vector<16x2048xf32> to vector<16x2048xbf16>
      %c0_32 = arith.constant 0 : index
      %c0_33 = arith.constant 0 : index
      %50 = vector.load %arg5[%c0_32, %c0_33] : memref<16x8192xbf16, #tpu.memory_space<vmem>>, vector<16x2048xbf16>
      tpu.vector_store %arg5[%c0_32, %c0_33], %49 {strides = array<i32>} : memref<16x8192xbf16, #tpu.memory_space<vmem>>, vector<16x2048xbf16>,
      %c1 = arith.constant 1 : index
      %c0_34 = arith.constant 0 : index
      %c0_35 = arith.constant 0 : index
      %51 = vector.load %arg6[%c1, %c0_34, %c0_35] : memref<4x16x2048xf32, #tpu.memory_space<vmem>>, vector<1x16x2048xf32>
      %52 = vector.shape_cast %51 : vector<1x16x2048xf32> to vector<16x2048xf32>
      %53 = vector.broadcast %36 : vector<16x1xf32> to vector<16x2048xf32>
      %54 = arith.mulf %52, %53 : vector<16x2048xf32>
      %55 = vector.broadcast %39 : vector<16x1xf32> to vector<16x2048xf32>
      %56 = arith.addf %54, %55 : vector<16x2048xf32>
      %cst_36 = arith.constant 2.000000e-01 : f32
      %57 = vector.broadcast %cst_36 : f32 to vector<16x2048xf32>
      %58 = arith.mulf %57, %56 : vector<16x2048xf32>
      %59 = arith.maximumf %56, %58 : vector<16x2048xf32>
      %60 = arith.truncf %59 : vector<16x2048xf32> to vector<16x2048xbf16>
      %c0_37 = arith.constant 0 : index
      %c2048 = arith.constant 2048 : index
      %61 = vector.load %arg5[%c0_37, %c2048] : memref<16x8192xbf16, #tpu.memory_space<vmem>>, vector<16x2048xbf16>
      tpu.vector_store %arg5[%c0_37, %c2048], %60 {strides = array<i32>} : memref<16x8192xbf16, #tpu.memory_space<vmem>>, vector<16x2048xbf16>,
      %c2 = arith.constant 2 : index
      %c0_38 = arith.constant 0 : index
      %c0_39 = arith.constant 0 : index
      %62 = vector.load %arg6[%c2, %c0_38, %c0_39] : memref<4x16x2048xf32, #tpu.memory_space<vmem>>, vector<1x16x2048xf32>
      %63 = vector.shape_cast %62 : vector<1x16x2048xf32> to vector<16x2048xf32>
      %64 = vector.broadcast %36 : vector<16x1xf32> to vector<16x2048xf32>
      %65 = arith.mulf %63, %64 : vector<16x2048xf32>
      %66 = vector.broadcast %39 : vector<16x1xf32> to vector<16x2048xf32>
      %67 = arith.addf %65, %66 : vector<16x2048xf32>
      %cst_40 = arith.constant 2.000000e-01 : f32
      %68 = vector.broadcast %cst_40 : f32 to vector<16x2048xf32>
      %69 = arith.mulf %68, %67 : vector<16x2048xf32>
      %70 = arith.maximumf %67, %69 : vector<16x2048xf32>
      %71 = arith.truncf %70 : vector<16x2048xf32> to vector<16x2048xbf16>
      %c0_41 = arith.constant 0 : index
      %c4096 = arith.constant 4096 : index
      %72 = vector.load %arg5[%c0_41, %c4096] : memref<16x8192xbf16, #tpu.memory_space<vmem>>, vector<16x2048xbf16>
      tpu.vector_store %arg5[%c0_41, %c4096], %71 {strides = array<i32>} : memref<16x8192xbf16, #tpu.memory_space<vmem>>, vector<16x2048xbf16>,
      %c3 = arith.constant 3 : index
      %c0_42 = arith.constant 0 : index
      %c0_43 = arith.constant 0 : index
      %73 = vector.load %arg6[%c3, %c0_42, %c0_43] : memref<4x16x2048xf32, #tpu.memory_space<vmem>>, vector<1x16x2048xf32>
      %74 = vector.shape_cast %73 : vector<1x16x2048xf32> to vector<16x2048xf32>
      %75 = vector.broadcast %36 : vector<16x1xf32> to vector<16x2048xf32>
      %76 = arith.mulf %74, %75 : vector<16x2048xf32>
      %77 = vector.broadcast %39 : vector<16x1xf32> to vector<16x2048xf32>
      %78 = arith.addf %76, %77 : vector<16x2048xf32>
      %cst_44 = arith.constant 2.000000e-01 : f32
      %79 = vector.broadcast %cst_44 : f32 to vector<16x2048xf32>
      %80 = arith.mulf %79, %78 : vector<16x2048xf32>
      %81 = arith.maximumf %78, %80 : vector<16x2048xf32>
      %82 = arith.truncf %81 : vector<16x2048xf32> to vector<16x2048xbf16>
      %c0_45 = arith.constant 0 : index
      %c6144 = arith.constant 6144 : index
      %83 = vector.load %arg5[%c0_45, %c6144] : memref<16x8192xbf16, #tpu.memory_space<vmem>>, vector<16x2048xbf16>
      tpu.vector_store %arg5[%c0_45, %c6144], %82 {strides = array<i32>} : memref<16x8192xbf16, #tpu.memory_space<vmem>>, vector<16x2048xbf16>,
    } else {
    }
    return
  }
  func.func @transform_0(%arg0: i32) -> (i32, i32) {
    %c0_i32 = arith.constant 0 : i32
    %c0_i32_0 = arith.constant 0 : i32
    return %c0_i32, %arg0 : i32, i32
  }
  func.func @transform_1(%arg0: i32) -> (i32, i32) {
    %c0_i32 = arith.constant 0 : i32
    %c0_i32_0 = arith.constant 0 : i32
    %c0_i32_1 = arith.constant 0 : i32
    return %c0_i32, %c0_i32_0 : i32, i32
  }
  func.func @transform_2(%arg0: i32) -> (i32, i32) {
    %c0_i32 = arith.constant 0 : i32
    %c0_i32_0 = arith.constant 0 : i32
    %c0_i32_1 = arith.constant 0 : i32
    return %c0_i32, %c0_i32_0 : i32, i32
  }
  func.func @transform_3(%arg0: i32) -> (i32, i32) {
    %c0_i32 = arith.constant 0 : i32
    %c0_i32_0 = arith.constant 0 : i32
    %c0_i32_1 = arith.constant 0 : i32
    return %c0_i32, %c0_i32_0 : i32, i32
  }
  func.func @transform_4(%arg0: i32) -> (i32, i32) {
    %c0_i32 = arith.constant 0 : i32
    %c0_i32_0 = arith.constant 0 : i32
    %c0_i32_1 = arith.constant 0 : i32
    return %c0_i32, %c0_i32_0 : i32, i32
  }
}

module attributes {stable_mosaic.version = 11 : i64} {
  func.func @_conv_bn_lrelu_single_kernel(%arg0: memref<256x2048xbf16, #tpu.memory_space<vmem>>, %arg1: memref<32x256xbf16, #tpu.memory_space<vmem>>, %arg2: memref<32x1xf32, #tpu.memory_space<vmem>>, %arg3: memref<32x1xf32, #tpu.memory_space<vmem>>, %arg4: memref<32x2048xbf16, #tpu.memory_space<vmem>>) attributes {dimension_semantics = [], scalar_prefetch = 0 : i64, scratch_operands = 0 : i64, tpu.core_type = #tpu.core_type<tc>} {
    %c0 = arith.constant 0 : index
    %c0_0 = arith.constant 0 : index
    %0 = vector.load %arg1[%c0, %c0_0] : memref<32x256xbf16, #tpu.memory_space<vmem>>, vector<32x256xbf16>
    %c0_1 = arith.constant 0 : index
    %c0_2 = arith.constant 0 : index
    %1 = vector.load %arg0[%c0_1, %c0_2] : memref<256x2048xbf16, #tpu.memory_space<vmem>>, vector<256x2048xbf16>
    %cst = arith.constant dense<0.000000e+00> : vector<32x2048xf32>
    %2 = tpu.matmul %0, %1, %cst {dimension_numbers = #tpu.dot_dimension_numbers<[1], [0], [0], [1], [0, 0, 1, 1], [], []>} : vector<32x256xbf16>, vector<256x2048xbf16>, vector<32x2048xf32> -> vector<32x2048xf32>
    %cst_3 = arith.constant dense<0.000000e+00> : vector<32xf32>
    %3 = vector.multi_reduction <add>, %2, %cst_3 [1] : vector<32x2048xf32> to vector<32xf32>
    %4 = vector.shape_cast %3 : vector<32xf32> to vector<32x1xf32>
    %cst_4 = arith.constant 4.8828125E-4 : f32
    %5 = vector.broadcast %cst_4 : f32 to vector<32x1xf32>
    %6 = arith.mulf %4, %5 : vector<32x1xf32>
    %7 = arith.mulf %2, %2 : vector<32x2048xf32>
    %cst_5 = arith.constant dense<0.000000e+00> : vector<32xf32>
    %8 = vector.multi_reduction <add>, %7, %cst_5 [1] : vector<32x2048xf32> to vector<32xf32>
    %9 = vector.shape_cast %8 : vector<32xf32> to vector<32x1xf32>
    %cst_6 = arith.constant 4.8828125E-4 : f32
    %10 = vector.broadcast %cst_6 : f32 to vector<32x1xf32>
    %11 = arith.mulf %9, %10 : vector<32x1xf32>
    %12 = arith.mulf %6, %6 : vector<32x1xf32>
    %13 = arith.subf %11, %12 : vector<32x1xf32>
    %c0_7 = arith.constant 0 : index
    %c0_8 = arith.constant 0 : index
    %14 = vector.load %arg2[%c0_7, %c0_8] : memref<32x1xf32, #tpu.memory_space<vmem>>, vector<32x1xf32>
    %cst_9 = arith.constant 9.99999974E-6 : f32
    %15 = vector.broadcast %cst_9 : f32 to vector<32x1xf32>
    %16 = arith.addf %13, %15 : vector<32x1xf32>
    %17 = math.rsqrt %16 : vector<32x1xf32>
    %18 = arith.mulf %14, %17 : vector<32x1xf32>
    %c0_10 = arith.constant 0 : index
    %c0_11 = arith.constant 0 : index
    %19 = vector.load %arg3[%c0_10, %c0_11] : memref<32x1xf32, #tpu.memory_space<vmem>>, vector<32x1xf32>
    %20 = arith.mulf %6, %18 : vector<32x1xf32>
    %21 = arith.subf %19, %20 : vector<32x1xf32>
    %22 = vector.broadcast %18 : vector<32x1xf32> to vector<32x2048xf32>
    %23 = arith.mulf %2, %22 : vector<32x2048xf32>
    %24 = vector.broadcast %21 : vector<32x1xf32> to vector<32x2048xf32>
    %25 = arith.addf %23, %24 : vector<32x2048xf32>
    %cst_12 = arith.constant 2.000000e-01 : f32
    %26 = vector.broadcast %cst_12 : f32 to vector<32x2048xf32>
    %27 = arith.mulf %26, %25 : vector<32x2048xf32>
    %28 = arith.maximumf %25, %27 : vector<32x2048xf32>
    %29 = arith.truncf %28 : vector<32x2048xf32> to vector<32x2048xbf16>
    %c0_13 = arith.constant 0 : index
    %c0_14 = arith.constant 0 : index
    %30 = vector.load %arg4[%c0_13, %c0_14] : memref<32x2048xbf16, #tpu.memory_space<vmem>>, vector<32x2048xbf16>
    tpu.vector_store %arg4[%c0_13, %c0_14], %29 {strides = array<i32>} : memref<32x2048xbf16, #tpu.memory_space<vmem>>, vector<32x2048xbf16>,
    return
  }
}

module attributes {stable_mosaic.version = 11 : i64} {
  func.func @_conv_bn_lrelu_single_kernel(%arg0: memref<512x512xbf16, #tpu.memory_space<vmem>>, %arg1: memref<64x512xbf16, #tpu.memory_space<vmem>>, %arg2: memref<64x1xf32, #tpu.memory_space<vmem>>, %arg3: memref<64x1xf32, #tpu.memory_space<vmem>>, %arg4: memref<64x512xbf16, #tpu.memory_space<vmem>>) attributes {dimension_semantics = [], scalar_prefetch = 0 : i64, scratch_operands = 0 : i64, tpu.core_type = #tpu.core_type<tc>} {
    %c0 = arith.constant 0 : index
    %c0_0 = arith.constant 0 : index
    %0 = vector.load %arg1[%c0, %c0_0] : memref<64x512xbf16, #tpu.memory_space<vmem>>, vector<64x512xbf16>
    %c0_1 = arith.constant 0 : index
    %c0_2 = arith.constant 0 : index
    %1 = vector.load %arg0[%c0_1, %c0_2] : memref<512x512xbf16, #tpu.memory_space<vmem>>, vector<512x512xbf16>
    %cst = arith.constant dense<0.000000e+00> : vector<64x512xf32>
    %2 = tpu.matmul %0, %1, %cst {dimension_numbers = #tpu.dot_dimension_numbers<[1], [0], [0], [1], [0, 0, 1, 1], [], []>} : vector<64x512xbf16>, vector<512x512xbf16>, vector<64x512xf32> -> vector<64x512xf32>
    %cst_3 = arith.constant dense<0.000000e+00> : vector<64xf32>
    %3 = vector.multi_reduction <add>, %2, %cst_3 [1] : vector<64x512xf32> to vector<64xf32>
    %4 = vector.shape_cast %3 : vector<64xf32> to vector<64x1xf32>
    %cst_4 = arith.constant 0.001953125 : f32
    %5 = vector.broadcast %cst_4 : f32 to vector<64x1xf32>
    %6 = arith.mulf %4, %5 : vector<64x1xf32>
    %7 = arith.mulf %2, %2 : vector<64x512xf32>
    %cst_5 = arith.constant dense<0.000000e+00> : vector<64xf32>
    %8 = vector.multi_reduction <add>, %7, %cst_5 [1] : vector<64x512xf32> to vector<64xf32>
    %9 = vector.shape_cast %8 : vector<64xf32> to vector<64x1xf32>
    %cst_6 = arith.constant 0.001953125 : f32
    %10 = vector.broadcast %cst_6 : f32 to vector<64x1xf32>
    %11 = arith.mulf %9, %10 : vector<64x1xf32>
    %12 = arith.mulf %6, %6 : vector<64x1xf32>
    %13 = arith.subf %11, %12 : vector<64x1xf32>
    %c0_7 = arith.constant 0 : index
    %c0_8 = arith.constant 0 : index
    %14 = vector.load %arg2[%c0_7, %c0_8] : memref<64x1xf32, #tpu.memory_space<vmem>>, vector<64x1xf32>
    %cst_9 = arith.constant 9.99999974E-6 : f32
    %15 = vector.broadcast %cst_9 : f32 to vector<64x1xf32>
    %16 = arith.addf %13, %15 : vector<64x1xf32>
    %17 = math.rsqrt %16 : vector<64x1xf32>
    %18 = arith.mulf %14, %17 : vector<64x1xf32>
    %c0_10 = arith.constant 0 : index
    %c0_11 = arith.constant 0 : index
    %19 = vector.load %arg3[%c0_10, %c0_11] : memref<64x1xf32, #tpu.memory_space<vmem>>, vector<64x1xf32>
    %20 = arith.mulf %6, %18 : vector<64x1xf32>
    %21 = arith.subf %19, %20 : vector<64x1xf32>
    %22 = vector.broadcast %18 : vector<64x1xf32> to vector<64x512xf32>
    %23 = arith.mulf %2, %22 : vector<64x512xf32>
    %24 = vector.broadcast %21 : vector<64x1xf32> to vector<64x512xf32>
    %25 = arith.addf %23, %24 : vector<64x512xf32>
    %cst_12 = arith.constant 2.000000e-01 : f32
    %26 = vector.broadcast %cst_12 : f32 to vector<64x512xf32>
    %27 = arith.mulf %26, %25 : vector<64x512xf32>
    %28 = arith.maximumf %25, %27 : vector<64x512xf32>
    %29 = arith.truncf %28 : vector<64x512xf32> to vector<64x512xbf16>
    %c0_13 = arith.constant 0 : index
    %c0_14 = arith.constant 0 : index
    %30 = vector.load %arg4[%c0_13, %c0_14] : memref<64x512xbf16, #tpu.memory_space<vmem>>, vector<64x512xbf16>
    tpu.vector_store %arg4[%c0_13, %c0_14], %29 {strides = array<i32>} : memref<64x512xbf16, #tpu.memory_space<vmem>>, vector<64x512xbf16>,
    return
  }
}

module attributes {stable_mosaic.version = 11 : i64} {
  func.func @_conv_bn_lrelu_single_kernel(%arg0: memref<1024x128xbf16, #tpu.memory_space<vmem>>, %arg1: memref<128x1024xbf16, #tpu.memory_space<vmem>>, %arg2: memref<128x1xf32, #tpu.memory_space<vmem>>, %arg3: memref<128x1xf32, #tpu.memory_space<vmem>>, %arg4: memref<128x128xbf16, #tpu.memory_space<vmem>>) attributes {dimension_semantics = [], scalar_prefetch = 0 : i64, scratch_operands = 0 : i64, tpu.core_type = #tpu.core_type<tc>} {
    %c0 = arith.constant 0 : index
    %c0_0 = arith.constant 0 : index
    %0 = vector.load %arg1[%c0, %c0_0] : memref<128x1024xbf16, #tpu.memory_space<vmem>>, vector<128x1024xbf16>
    %c0_1 = arith.constant 0 : index
    %c0_2 = arith.constant 0 : index
    %1 = vector.load %arg0[%c0_1, %c0_2] : memref<1024x128xbf16, #tpu.memory_space<vmem>>, vector<1024x128xbf16>
    %cst = arith.constant dense<0.000000e+00> : vector<128x128xf32>
    %2 = tpu.matmul %0, %1, %cst {dimension_numbers = #tpu.dot_dimension_numbers<[1], [0], [0], [1], [0, 0, 1, 1], [], []>} : vector<128x1024xbf16>, vector<1024x128xbf16>, vector<128x128xf32> -> vector<128x128xf32>
    %cst_3 = arith.constant dense<0.000000e+00> : vector<128xf32>
    %3 = vector.multi_reduction <add>, %2, %cst_3 [1] : vector<128x128xf32> to vector<128xf32>
    %4 = vector.shape_cast %3 : vector<128xf32> to vector<128x1xf32>
    %cst_4 = arith.constant 7.812500e-03 : f32
    %5 = vector.broadcast %cst_4 : f32 to vector<128x1xf32>
    %6 = arith.mulf %4, %5 : vector<128x1xf32>
    %7 = arith.mulf %2, %2 : vector<128x128xf32>
    %cst_5 = arith.constant dense<0.000000e+00> : vector<128xf32>
    %8 = vector.multi_reduction <add>, %7, %cst_5 [1] : vector<128x128xf32> to vector<128xf32>
    %9 = vector.shape_cast %8 : vector<128xf32> to vector<128x1xf32>
    %cst_6 = arith.constant 7.812500e-03 : f32
    %10 = vector.broadcast %cst_6 : f32 to vector<128x1xf32>
    %11 = arith.mulf %9, %10 : vector<128x1xf32>
    %12 = arith.mulf %6, %6 : vector<128x1xf32>
    %13 = arith.subf %11, %12 : vector<128x1xf32>
    %c0_7 = arith.constant 0 : index
    %c0_8 = arith.constant 0 : index
    %14 = vector.load %arg2[%c0_7, %c0_8] : memref<128x1xf32, #tpu.memory_space<vmem>>, vector<128x1xf32>
    %cst_9 = arith.constant 9.99999974E-6 : f32
    %15 = vector.broadcast %cst_9 : f32 to vector<128x1xf32>
    %16 = arith.addf %13, %15 : vector<128x1xf32>
    %17 = math.rsqrt %16 : vector<128x1xf32>
    %18 = arith.mulf %14, %17 : vector<128x1xf32>
    %c0_10 = arith.constant 0 : index
    %c0_11 = arith.constant 0 : index
    %19 = vector.load %arg3[%c0_10, %c0_11] : memref<128x1xf32, #tpu.memory_space<vmem>>, vector<128x1xf32>
    %20 = arith.mulf %6, %18 : vector<128x1xf32>
    %21 = arith.subf %19, %20 : vector<128x1xf32>
    %22 = vector.broadcast %18 : vector<128x1xf32> to vector<128x128xf32>
    %23 = arith.mulf %2, %22 : vector<128x128xf32>
    %24 = vector.broadcast %21 : vector<128x1xf32> to vector<128x128xf32>
    %25 = arith.addf %23, %24 : vector<128x128xf32>
    %cst_12 = arith.constant 2.000000e-01 : f32
    %26 = vector.broadcast %cst_12 : f32 to vector<128x128xf32>
    %27 = arith.mulf %26, %25 : vector<128x128xf32>
    %28 = arith.maximumf %25, %27 : vector<128x128xf32>
    %29 = arith.truncf %28 : vector<128x128xf32> to vector<128x128xbf16>
    %c0_13 = arith.constant 0 : index
    %c0_14 = arith.constant 0 : index
    %30 = vector.load %arg4[%c0_13, %c0_14] : memref<128x128xbf16, #tpu.memory_space<vmem>>, vector<128x128xbf16>
    tpu.vector_store %arg4[%c0_13, %c0_14], %29 {strides = array<i32>} : memref<128x128xbf16, #tpu.memory_space<vmem>>, vector<128x128xbf16>,
    return
  }
}

module attributes {stable_mosaic.version = 11 : i64} {
  func.func @_conv_bn_lrelu_single_kernel(%arg0: memref<2048x32xbf16, #tpu.memory_space<vmem>>, %arg1: memref<128x2048xbf16, #tpu.memory_space<vmem>>, %arg2: memref<128x1xf32, #tpu.memory_space<vmem>>, %arg3: memref<128x1xf32, #tpu.memory_space<vmem>>, %arg4: memref<128x32xbf16, #tpu.memory_space<vmem>>) attributes {dimension_semantics = [], scalar_prefetch = 0 : i64, scratch_operands = 0 : i64, tpu.core_type = #tpu.core_type<tc>} {
    %c0 = arith.constant 0 : index
    %c0_0 = arith.constant 0 : index
    %0 = vector.load %arg1[%c0, %c0_0] : memref<128x2048xbf16, #tpu.memory_space<vmem>>, vector<128x2048xbf16>
    %c0_1 = arith.constant 0 : index
    %c0_2 = arith.constant 0 : index
    %1 = vector.load %arg0[%c0_1, %c0_2] : memref<2048x32xbf16, #tpu.memory_space<vmem>>, vector<2048x32xbf16>
    %cst = arith.constant dense<0.000000e+00> : vector<128x32xf32>
    %2 = tpu.matmul %0, %1, %cst {dimension_numbers = #tpu.dot_dimension_numbers<[1], [0], [0], [1], [0, 0, 1, 1], [], []>} : vector<128x2048xbf16>, vector<2048x32xbf16>, vector<128x32xf32> -> vector<128x32xf32>
    %cst_3 = arith.constant dense<0.000000e+00> : vector<128xf32>
    %3 = vector.multi_reduction <add>, %2, %cst_3 [1] : vector<128x32xf32> to vector<128xf32>
    %4 = vector.shape_cast %3 : vector<128xf32> to vector<128x1xf32>
    %cst_4 = arith.constant 3.125000e-02 : f32
    %5 = vector.broadcast %cst_4 : f32 to vector<128x1xf32>
    %6 = arith.mulf %4, %5 : vector<128x1xf32>
    %7 = arith.mulf %2, %2 : vector<128x32xf32>
    %cst_5 = arith.constant dense<0.000000e+00> : vector<128xf32>
    %8 = vector.multi_reduction <add>, %7, %cst_5 [1] : vector<128x32xf32> to vector<128xf32>
    %9 = vector.shape_cast %8 : vector<128xf32> to vector<128x1xf32>
    %cst_6 = arith.constant 3.125000e-02 : f32
    %10 = vector.broadcast %cst_6 : f32 to vector<128x1xf32>
    %11 = arith.mulf %9, %10 : vector<128x1xf32>
    %12 = arith.mulf %6, %6 : vector<128x1xf32>
    %13 = arith.subf %11, %12 : vector<128x1xf32>
    %c0_7 = arith.constant 0 : index
    %c0_8 = arith.constant 0 : index
    %14 = vector.load %arg2[%c0_7, %c0_8] : memref<128x1xf32, #tpu.memory_space<vmem>>, vector<128x1xf32>
    %cst_9 = arith.constant 9.99999974E-6 : f32
    %15 = vector.broadcast %cst_9 : f32 to vector<128x1xf32>
    %16 = arith.addf %13, %15 : vector<128x1xf32>
    %17 = math.rsqrt %16 : vector<128x1xf32>
    %18 = arith.mulf %14, %17 : vector<128x1xf32>
    %c0_10 = arith.constant 0 : index
    %c0_11 = arith.constant 0 : index
    %19 = vector.load %arg3[%c0_10, %c0_11] : memref<128x1xf32, #tpu.memory_space<vmem>>, vector<128x1xf32>
    %20 = arith.mulf %6, %18 : vector<128x1xf32>
    %21 = arith.subf %19, %20 : vector<128x1xf32>
    %22 = vector.broadcast %18 : vector<128x1xf32> to vector<128x32xf32>
    %23 = arith.mulf %2, %22 : vector<128x32xf32>
    %24 = vector.broadcast %21 : vector<128x1xf32> to vector<128x32xf32>
    %25 = arith.addf %23, %24 : vector<128x32xf32>
    %cst_12 = arith.constant 2.000000e-01 : f32
    %26 = vector.broadcast %cst_12 : f32 to vector<128x32xf32>
    %27 = arith.mulf %26, %25 : vector<128x32xf32>
    %28 = arith.maximumf %25, %27 : vector<128x32xf32>
    %29 = arith.truncf %28 : vector<128x32xf32> to vector<128x32xbf16>
    %c0_13 = arith.constant 0 : index
    %c0_14 = arith.constant 0 : index
    %30 = vector.load %arg4[%c0_13, %c0_14] : memref<128x32xbf16, #tpu.memory_space<vmem>>, vector<128x32xbf16>
    tpu.vector_store %arg4[%c0_13, %c0_14], %29 {strides = array<i32>} : memref<128x32xbf16, #tpu.memory_space<vmem>>, vector<128x32xbf16>,
    return
  }
}

module attributes {stable_mosaic.version = 11 : i64} {
  func.func @_final_conv_kernel(%arg0: memref<2048x2xbf16, #tpu.memory_space<vmem>>, %arg1: memref<32x2048xbf16, #tpu.memory_space<vmem>>, %arg2: memref<32x2048xbf16, #tpu.memory_space<vmem>>, %arg3: memref<32x1xf32, #tpu.memory_space<vmem>>, %arg4: memref<32x1xf32, #tpu.memory_space<vmem>>, %arg5: memref<32x2xf32, #tpu.memory_space<vmem>>, %arg6: memref<32x2xf32, #tpu.memory_space<vmem>>) attributes {dimension_semantics = [], scalar_prefetch = 0 : i64, scratch_operands = 0 : i64, tpu.core_type = #tpu.core_type<tc>} {
    %c0 = arith.constant 0 : index
    %c0_0 = arith.constant 0 : index
    %0 = vector.load %arg0[%c0, %c0_0] : memref<2048x2xbf16, #tpu.memory_space<vmem>>, vector<2048x2xbf16>
    %c0_1 = arith.constant 0 : index
    %c0_2 = arith.constant 0 : index
    %1 = vector.load %arg1[%c0_1, %c0_2] : memref<32x2048xbf16, #tpu.memory_space<vmem>>, vector<32x2048xbf16>
    %cst = arith.constant dense<0.000000e+00> : vector<32x2xf32>
    %2 = tpu.matmul %1, %0, %cst {dimension_numbers = #tpu.dot_dimension_numbers<[1], [0], [0], [1], [0, 0, 1, 1], [], []>} : vector<32x2048xbf16>, vector<2048x2xbf16>, vector<32x2xf32> -> vector<32x2xf32>
    %c0_3 = arith.constant 0 : index
    %c0_4 = arith.constant 0 : index
    %3 = vector.load %arg3[%c0_3, %c0_4] : memref<32x1xf32, #tpu.memory_space<vmem>>, vector<32x1xf32>
    %4 = vector.broadcast %3 : vector<32x1xf32> to vector<32x2xf32>
    %5 = arith.addf %2, %4 : vector<32x2xf32>
    %c0_5 = arith.constant 0 : index
    %c0_6 = arith.constant 0 : index
    %6 = vector.load %arg5[%c0_5, %c0_6] : memref<32x2xf32, #tpu.memory_space<vmem>>, vector<32x2xf32>
    tpu.vector_store %arg5[%c0_5, %c0_6], %5 {strides = array<i32>} : memref<32x2xf32, #tpu.memory_space<vmem>>, vector<32x2xf32>,
    %c0_7 = arith.constant 0 : index
    %c0_8 = arith.constant 0 : index
    %7 = vector.load %arg2[%c0_7, %c0_8] : memref<32x2048xbf16, #tpu.memory_space<vmem>>, vector<32x2048xbf16>
    %cst_9 = arith.constant dense<0.000000e+00> : vector<32x2xf32>
    %8 = tpu.matmul %7, %0, %cst_9 {dimension_numbers = #tpu.dot_dimension_numbers<[1], [0], [0], [1], [0, 0, 1, 1], [], []>} : vector<32x2048xbf16>, vector<2048x2xbf16>, vector<32x2xf32> -> vector<32x2xf32>
    %c0_10 = arith.constant 0 : index
    %c0_11 = arith.constant 0 : index
    %9 = vector.load %arg4[%c0_10, %c0_11] : memref<32x1xf32, #tpu.memory_space<vmem>>, vector<32x1xf32>
    %10 = vector.broadcast %9 : vector<32x1xf32> to vector<32x2xf32>
    %11 = arith.addf %8, %10 : vector<32x2xf32>
    %12 = math.exp %11 : vector<32x2xf32>
    %c0_12 = arith.constant 0 : index
    %c0_13 = arith.constant 0 : index
    %13 = vector.load %arg6[%c0_12, %c0_13] : memref<32x2xf32, #tpu.memory_space<vmem>>, vector<32x2xf32>
    tpu.vector_store %arg6[%c0_12, %c0_13], %12 {strides = array<i32>} : memref<32x2xf32, #tpu.memory_space<vmem>>, vector<32x2xf32>,
    return
  }
}

</mosaic_0001>

<llo_original>
// kernel: encoder_forward_pallas.6
$region0: #{encoder_forward_pallas.6}
  #allocation0 [shape = 'u32[]', space=smem, size = 0x4, offset = 0x4, fixed_abs, tag = 'smem constant byte address 0x4 - core index']
  #allocation1 [shape = 'u32[144,128]{1,0:T(1,128)}', space=vmem, size = 0x12000, scoped, tag = 'internal scratch']
  #allocation2 [shape = 'f32[4,16,2048]{2,1,0:T(8,128)}', space=vmem, size = 0x80000, scoped, tag = 'scratch operand']
  #allocation3 [shape = 'f32[16,1]{1,0:T(8,128)}', space=vmem, size = 0x2000, scoped, tag = 'scratch operand']
  #allocation4 [shape = 'f32[16,1]{1,0:T(8,128)}', space=vmem, size = 0x2000, scoped, tag = 'scratch operand']
  %s0 = inlined_call_operand.vmem [shape: bf16[48,8192], index: 0, kind: input, shape index: {}]
  %s1 = inlined_call_operand.vmem [shape: bf16[16,48], index: 1, kind: input, shape index: {}]
  %s2 = inlined_call_operand.vmem [shape: f32[16,1], index: 2, kind: input, shape index: {}]
  %s3 = inlined_call_operand.vmem [shape: f32[16,1], index: 3, kind: input, shape index: {}]
  %s4 = inlined_call_operand.vmem [shape: bf16[16,8192], index: 4, kind: output, shape index: {}]
  %s5 = sld [smem:[#allocation0]]
  $region80: #{encoder_forward_pallas.6} parent=0
    _
  %s7 = ssub.s32 1, %s5
  %s8 = scalar_select 0, %s7, %s5
  $region1: #{encoder_forward_pallas.6} parent=0
    #allocation5 [shape = 'u8[393216]{0}', space=vmem, size = 0x60000, scoped, tag = 'input window, operand 0']
    loop: start=0, step=1, limit=6
    $region2: #{encoder_forward_pallas.6} parent=1 // loop_pre_header
      _
    $region3: #{encoder_forward_pallas.6} parent=1 // loop_header
      %s10 = sphi 0, %s14
      %p11 = scmp.ge.s32.totalorder %s10, 6
      %s20 = sphi 0, %s22
      %s23 = sphi 0, %s20
      %s24 = sphi 0, %s23
      %s40 = sphi 0, %s24
      %s44 = sphi 0, %s44
      %s46 = sphi 0, %s44
      %s47 = sphi 0, %s46
      %s61 = sphi 0, %s47
      %s65 = sphi 0, %s65
      %s67 = sphi 0, %s65
      %s68 = sphi 0, %s67
      %s82 = sphi 0, %s68
      %s86 = sphi 0, %s86
      %s88 = sphi 0, %s86
      %s89 = sphi 0, %s88
      %s103 = sphi 0, %s89
      %s107 = sphi 0, %s107
      %s109 = sphi 0, %s107
      %s110 = sphi 0, %s109
      %s124 = sphi 0, %s110
    $region4: #{encoder_forward_pallas.6} parent=1 // loop_header_branch
      %13 = sbr.rel (%p11) target = $region8
    $region5: #{encoder_forward_pallas.6} parent=1 // loop_body
      %s15 = ssub.s32 %s10, 1
      %s16 = ssub.s32 %s10, 2
      %s17 = sadd.s32 %s10, 1
      %s18 = ssub.s32 %s10, %s17
      %p19 = scmp.eq.s32.totalorder %s18, 0
      %s21 = sadd.s32 %s20, 1
      %s22 = scalar_select %p19, %s20, %s21
      %p25 = pneg %p19
      %p26 = scmp.eq.s32.totalorder %s10, 3
      %p27 = por %p25, %p26
      %p28 = scmp.ne.s32.totalorder %s20, %s23
      %p29 = scmp.eq.s32.totalorder %s10, 0
      %p30 = por %p28, %p29
      %p31 = scmp.ne.s32.totalorder %s20, %s23
      %p32 = scmp.eq.s32.totalorder %s15, 3
      %p33 = por %p31, %p32
      %p34 = scmp.ne.s32.totalorder %s23, %s24
      %p35 = scmp.eq.s32.totalorder %s15, 0
      %p36 = por %p34, %p35
      %p37 = scmp.ne.s32.totalorder %s23, %s24
      %p38 = scmp.eq.s32.totalorder %s16, 3
      %p39 = por %p37, %p38
      %p41 = scmp.ne.s32.totalorder %s24, %s40
      %p42 = scmp.eq.s32.totalorder %s16, 0
      %p43 = por %p41, %p42
      %s45 = sadd.s32 %s44, 1
      %p48 = scmp.eq.s32.totalorder %s10, 3
      %p49 = scmp.ne.s32.totalorder %s44, %s46
      %p50 = scmp.eq.s32.totalorder %s10, 0
      %p51 = por %p49, %p50
      %p52 = scmp.ne.s32.totalorder %s44, %s46
      %p53 = scmp.eq.s32.totalorder %s15, 3
      %p54 = por %p52, %p53
      %p55 = scmp.ne.s32.totalorder %s46, %s47
      %p56 = scmp.eq.s32.totalorder %s15, 0
      %p57 = por %p55, %p56
      %p58 = scmp.ne.s32.totalorder %s46, %s47
      %p59 = scmp.eq.s32.totalorder %s16, 3
      %p60 = por %p58, %p59
      %p62 = scmp.ne.s32.totalorder %s47, %s61
      %p63 = scmp.eq.s32.totalorder %s16, 0
      %p64 = por %p62, %p63
      %s66 = sadd.s32 %s65, 1
      %p69 = scmp.eq.s32.totalorder %s10, 3
      %p70 = scmp.ne.s32.totalorder %s65, %s67
      %p71 = scmp.eq.s32.totalorder %s10, 0
      %p72 = por %p70, %p71
      %p73 = scmp.ne.s32.totalorder %s65, %s67
      %p74 = scmp.eq.s32.totalorder %s15, 3
      %p75 = por %p73, %p74
      %p76 = scmp.ne.s32.totalorder %s67, %s68
      %p77 = scmp.eq.s32.totalorder %s15, 0
      %p78 = por %p76, %p77
      %p79 = scmp.ne.s32.totalorder %s67, %s68
      %p80 = scmp.eq.s32.totalorder %s16, 3
      %p81 = por %p79, %p80
      %p83 = scmp.ne.s32.totalorder %s68, %s82
      %p84 = scmp.eq.s32.totalorder %s16, 0
      %p85 = por %p83, %p84
      %s87 = sadd.s32 %s86, 1
      %p90 = scmp.eq.s32.totalorder %s10, 3
      %p91 = scmp.ne.s32.totalorder %s86, %s88
      %p92 = scmp.eq.s32.totalorder %s10, 0
      %p93 = por %p91, %p92
      %p94 = scmp.ne.s32.totalorder %s86, %s88
      %p95 = scmp.eq.s32.totalorder %s15, 3
      %p96 = por %p94, %p95
      %p97 = scmp.ne.s32.totalorder %s88, %s89
      %p98 = scmp.eq.s32.totalorder %s15, 0
      %p99 = por %p97, %p98
      %p100 = scmp.ne.s32.totalorder %s88, %s89
      %p101 = scmp.eq.s32.totalorder %s16, 3
      %p102 = por %p100, %p101
      %p104 = scmp.ne.s32.totalorder %s89, %s103
      %p105 = scmp.eq.s32.totalorder %s16, 0
      %p106 = por %p104, %p105
      %s108 = sadd.s32 %s107, 1
      %p111 = scmp.eq.s32.totalorder %s10, 3
      %p112 = scmp.ne.s32.totalorder %s107, %s109
      %p113 = scmp.eq.s32.totalorder %s10, 0
      %p114 = por %p112, %p113
      %p115 = scmp.ne.s32.totalorder %s107, %s109
      %p116 = scmp.eq.s32.totalorder %s15, 3
      %p117 = por %p115, %p116
      %p118 = scmp.ne.s32.totalorder %s109, %s110
      %p119 = scmp.eq.s32.totalorder %s15, 0
      %p120 = por %p118, %p119
      %p121 = scmp.ne.s32.totalorder %s109, %s110
      %p122 = scmp.eq.s32.totalorder %s16, 3
      %p123 = por %p121, %p122
      %p125 = scmp.ne.s32.totalorder %s110, %s124
      %p126 = scmp.eq.s32.totalorder %s16, 0
      %p127 = por %p125, %p126
      %p128 = scmp.le.s32.totalorder 1, %s10
      %p129 = scmp.lt.s32.totalorder %s10, 5
      %p130 = pnand %p128, %p129
      %p131 = pneg %p130
      // Predicated region
      $region9: #{encoder_forward_pallas.6} parent=5 // pred_check
        _
      $region10: #{encoder_forward_pallas.6} parent=5 // pred_check_branch
        %133 = sbr.rel (%p130) target = $region12
      $region11: #{encoder_forward_pallas.6} parent=5 // pred_region
        %s134 = ssub.s32 %s10, 1
        // Predicated region
        $region13: #{encoder_forward_pallas.6} parent=11 // pred_check
          %p135 = pneg %p57
        $region14: #{encoder_forward_pallas.6} parent=11 // pred_check_branch
          %137 = sbr.rel (%p135) target = $region16
        $region15: #{encoder_forward_pallas.6} parent=11 // pred_region
          _
        $region16: #{encoder_forward_pallas.6} parent=11 // pred_fallthru
          _
        // Predicated region
        $region17: #{encoder_forward_pallas.6} parent=11 // pred_check
          %p138 = pneg %p78
        $region18: #{encoder_forward_pallas.6} parent=11 // pred_check_branch
          %140 = sbr.rel (%p138) target = $region20
        $region19: #{encoder_forward_pallas.6} parent=11 // pred_region
          _
        $region20: #{encoder_forward_pallas.6} parent=11 // pred_fallthru
          _
        // Predicated region
        $region21: #{encoder_forward_pallas.6} parent=11 // pred_check
          %p141 = pneg %p99
        $region22: #{encoder_forward_pallas.6} parent=11 // pred_check_branch
          %143 = sbr.rel (%p141) target = $region24
        $region23: #{encoder_forward_pallas.6} parent=11 // pred_region
          _
        $region24: #{encoder_forward_pallas.6} parent=11 // pred_fallthru
          _
      $region12: #{encoder_forward_pallas.6} parent=5 // pred_fallthru
        _
      %p144 = scmp.lt.s32.totalorder %s10, 4
      // Predicated region
      $region25: #{encoder_forward_pallas.6} parent=5 // pred_check
        %p145 = pneg %p144
      $region26: #{encoder_forward_pallas.6} parent=5 // pred_check_branch
        %147 = sbr.rel (%p145) target = $region28
      $region27: #{encoder_forward_pallas.6} parent=5 // pred_region
        // Predicated region
        $region29: #{encoder_forward_pallas.6} parent=27 // pred_check
          %p148 = pneg %p30
        $region30: #{encoder_forward_pallas.6} parent=27 // pred_check_branch
          %150 = sbr.rel (%p148) target = $region32
        $region31: #{encoder_forward_pallas.6} parent=27 // pred_region
          %s151 = sand.u32 %s20, 1
          %s152 = sand.u32 %s20, 1
          %s153 = smul.addr %s152, 384
          %s154 = scalar_lea.vmem [#allocation5], %s153
          %s155 = smul.u32 16, %s10
          %s156 = smul.addr %s155, 4
          %s157 = scalar_lea.vmem %s0, %s156
          // Predicated region
          $region33: #{encoder_forward_pallas.6} parent=31 // pred_check
            _
          $region34: #{encoder_forward_pallas.6} parent=31 // pred_check_branch
            %159 = sbr.rel (0) target = $region36
          $region35: #{encoder_forward_pallas.6} parent=31 // pred_region
            // Predicated region
            $region37: #{encoder_forward_pallas.6} parent=35 // pred_check
              _
            $region38: #{encoder_forward_pallas.6} parent=35 // pred_check_branch
              %161 = sbr.rel (0) target = $region40
            $region39: #{encoder_forward_pallas.6} parent=35 // pred_region
              loop: start=0, step=1, limit=1
              $region41: #{encoder_forward_pallas.6} parent=39 // loop_pre_header
                _
              $region42: #{encoder_forward_pallas.6} parent=39 // loop_header
                %s163 = sphi 0, %s167
                %p164 = scmp.ge.s32.totalorder %s163, 1
                %s168 = sphi %s157, %s157
                %s169 = sphi %s154, %s154
              $region43: #{encoder_forward_pallas.6} parent=39 // loop_header_branch
                %166 = sbr.rel (%p164) target = $region47
              $region44: #{encoder_forward_pallas.6} parent=39 // loop_body
                %v170 = vld [vmem:[%s168] sm:$0xff]
                %171 = vst [vmem:[%s169] sm:$0xff] %v170
                %v172 = vld [vmem:[%s168 + $0x8] sm:$0xff]
                %173 = vst [vmem:[%s169 + $0x8] sm:$0xff] %v172
                %v174 = vld [vmem:[%s168 + $0x10] sm:$0xff]
                %175 = vst [vmem:[%s169 + $0x10] sm:$0xff] %v174
                %v176 = vld [vmem:[%s168 + $0x18] sm:$0xff]
                %177 = vst [vmem:[%s169 + $0x18] sm:$0xff] %v176
                %v178 = vld [vmem:[%s168 + $0x20] sm:$0xff]
                %179 = vst [vmem:[%s169 + $0x20] sm:$0xff] %v178
                %v180 = vld [vmem:[%s168 + $0x28] sm:$0xff]
                %181 = vst [vmem:[%s169 + $0x28] sm:$0xff] %v180
                %v182 = vld [vmem:[%s168 + $0x30] sm:$0xff]
                %183 = vst [vmem:[%s169 + $0x30] sm:$0xff] %v182
                %v184 = vld [vmem:[%s168 + $0x38] sm:$0xff]
                %185 = vst [vmem:[%s169 + $0x38] sm:$0xff] %v184
                %v186 = vld [vmem:[%s168 + $0x100] sm:$0xff]
                %187 = vst [vmem:[%s169 + $0x40] sm:$0xff] %v186
                %v188 = vld [vmem:[%s168 + $0x108] sm:$0xff]
                %189 = vst [vmem:[%s169 + $0x48] sm:$0xff] %v188
                %v190 = vld [vmem:[%s168 + $0x110] sm:$0xff]
                %191 = vst [vmem:[%s169 + $0x50] sm:$0xff] %v190
                %v192 = vld [vmem:[%s168 + $0x118] sm:$0xff]
                %193 = vst [vmem:[%s169 + $0x58] sm:$0xff] %v192
                %v194 = vld [vmem:[%s168 + $0x120] sm:$0xff]
                %195 = vst [vmem:[%s169 + $0x60] sm:$0xff] %v194
                %v196 = vld [vmem:[%s168 + $0x128] sm:$0xff]
                %197 = vst [vmem:[%s169 + $0x68] sm:$0xff] %v196
                %v198 = vld [vmem:[%s168 + $0x130] sm:$0xff]
                %199 = vst [vmem:[%s169 + $0x70] sm:$0xff] %v198
                %v200 = vld [vmem:[%s168 + $0x138] sm:$0xff]
                %201 = vst [vmem:[%s169 + $0x78] sm:$0xff] %v200
                %v202 = vld [vmem:[%s168 + $0x200] sm:$0xff]
                %203 = vst [vmem:[%s169 + $0x80] sm:$0xff] %v202
                %v204 = vld [vmem:[%s168 + $0x208] sm:$0xff]
                %205 = vst [vmem:[%s169 + $0x88] sm:$0xff] %v204
                %v206 = vld [vmem:[%s168 + $0x210] sm:$0xff]
                %207 = vst [vmem:[%s169 + $0x90] sm:$0xff] %v206
                %v208 = vld [vmem:[%s168 + $0x218] sm:$0xff]
                %209 = vst [vmem:[%s169 + $0x98] sm:$0xff] %v208
                %v210 = vld [vmem:[%s168 + $0x220] sm:$0xff]
                %211 = vst [vmem:[%s169 + $0xa0] sm:$0xff] %v210
                %v212 = vld [vmem:[%s168 + $0x228] sm:$0xff]
                %213 = vst [vmem:[%s169 + $0xa8] sm:$0xff] %v212
                %v214 = vld [vmem:[%s168 + $0x230] sm:$0xff]
                %215 = vst [vmem:[%s169 + $0xb0] sm:$0xff] %v214
                %v216 = vld [vmem:[%s168 + $0x238] sm:$0xff]
                %217 = vst [vmem:[%s169 + $0xb8] sm:$0xff] %v216
                %v218 = vld [vmem:[%s168 + $0x300] sm:$0xff]
                %219 = vst [vmem:[%s169 + $0xc0] sm:$0xff] %v218
                %v220 = vld [vmem:[%s168 + $0x308] sm:$0xff]
                %221 = vst [vmem:[%s169 + $0xc8] sm:$0xff] %v220
                %v222 = vld [vmem:[%s168 + $0x310] sm:$0xff]
                %223 = vst [vmem:[%s169 + $0xd0] sm:$0xff] %v222
                %v224 = vld [vmem:[%s168 + $0x318] sm:$0xff]
                %225 = vst [vmem:[%s169 + $0xd8] sm:$0xff] %v224
                %v226 = vld [vmem:[%s168 + $0x320] sm:$0xff]
                %227 = vst [vmem:[%s169 + $0xe0] sm:$0xff] %v226
                %v228 = vld [vmem:[%s168 + $0x328] sm:$0xff]
                %229 = vst [vmem:[%s169 + $0xe8] sm:$0xff] %v228
                %v230 = vld [vmem:[%s168 + $0x330] sm:$0xff]
                %231 = vst [vmem:[%s169 + $0xf0] sm:$0xff] %v230
                %v232 = vld [vmem:[%s168 + $0x338] sm:$0xff]
                %233 = vst [vmem:[%s169 + $0xf8] sm:$0xff] %v232
                %v234 = vld [vmem:[%s168 + $0x400] sm:$0xff]
                %235 = vst [vmem:[%s169 + $0x100] sm:$0xff] %v234
                %v236 = vld [vmem:[%s168 + $0x408] sm:$0xff]
                %237 = vst [vmem:[%s169 + $0x108] sm:$0xff] %v236
                %v238 = vld [vmem:[%s168 + $0x410] sm:$0xff]
                %239 = vst [vmem:[%s169 + $0x110] sm:$0xff] %v238
                %v240 = vld [vmem:[%s168 + $0x418] sm:$0xff]
                %241 = vst [vmem:[%s169 + $0x118] sm:$0xff] %v240
                %v242 = vld [vmem:[%s168 + $0x420] sm:$0xff]
                %243 = vst [vmem:[%s169 + $0x120] sm:$0xff] %v242
                %v244 = vld [vmem:[%s168 + $0x428] sm:$0xff]
                %245 = vst [vmem:[%s169 + $0x128] sm:$0xff] %v244
                %v246 = vld [vmem:[%s168 + $0x430] sm:$0xff]
                %247 = vst [vmem:[%s169 + $0x130] sm:$0xff] %v246
                %v248 = vld [vmem:[%s168 + $0x438] sm:$0xff]
                %249 = vst [vmem:[%s169 + $0x138] sm:$0xff] %v248
                %v250 = vld [vmem:[%s168 + $0x500] sm:$0xff]
                %251 = vst [vmem:[%s169 + $0x140] sm:$0xff] %v250
                %v252 = vld [vmem:[%s168 + $0x508] sm:$0xff]
                %253 = vst [vmem:[%s169 + $0x148] sm:$0xff] %v252
                %v254 = vld [vmem:[%s168 + $0x510] sm:$0xff]
                %255 = vst [vmem:[%s169 + $0x150] sm:$0xff] %v254
                %v256 = vld [vmem:[%s168 + $0x518] sm:$0xff]
                %257 = vst [vmem:[%s169 + $0x158] sm:$0xff] %v256
                %v258 = vld [vmem:[%s168 + $0x520] sm:$0xff]
                %259 = vst [vmem:[%s169 + $0x160] sm:$0xff] %v258
                %v260 = vld [vmem:[%s168 + $0x528] sm:$0xff]
                %261 = vst [vmem:[%s169 + $0x168] sm:$0xff] %v260
                %v262 = vld [vmem:[%s168 + $0x530] sm:$0xff]
                %263 = vst [vmem:[%s169 + $0x170] sm:$0xff] %v262
                %v264 = vld [vmem:[%s168 + $0x538] sm:$0xff]
                %265 = vst [vmem:[%s169 + $0x178] sm:$0xff] %v264
              $region45: #{encoder_forward_pallas.6} parent=39 // loop_footer
                %s167 = sadd.s32 1, %s163
              $region46: #{encoder_forward_pallas.6} parent=39 // loop_footer_branch
                %162 = sbr.rel target = $region42
              $region47: #{encoder_forward_pallas.6} parent=39 // loop_exit
                _
            $region40: #{encoder_forward_pallas.6} parent=35 // pred_fallthru
              _
            // Predicated region
            $region48: #{encoder_forward_pallas.6} parent=35 // pred_check
              _
            $region49: #{encoder_forward_pallas.6} parent=35 // pred_check_branch
              %267 = sbr.rel target = $region51
            $region50: #{encoder_forward_pallas.6} parent=35 // pred_region
              _
            $region51: #{encoder_forward_pallas.6} parent=35 // pred_fallthru
              _
          $region36: #{encoder_forward_pallas.6} parent=31 // pred_fallthru
            _
          %268 = vnop
        $region32: #{encoder_forward_pallas.6} parent=27 // pred_fallthru
          _
      $region28: #{encoder_forward_pallas.6} parent=5 // pred_fallthru
        _
      %p269 = scmp.le.s32.totalorder 1, %s10
      %p270 = scmp.lt.s32.totalorder %s10, 5
      %p271 = pnand %p269, %p270
      %p272 = pneg %p271
      // Predicated region
      $region52: #{encoder_forward_pallas.6} parent=5 // pred_check
        _
      $region53: #{encoder_forward_pallas.6} parent=5 // pred_check_branch
        %274 = sbr.rel (%p271) target = $region55
      $region54: #{encoder_forward_pallas.6} parent=5 // pred_region
        %s275 = ssub.s32 %s10, 1
        %s276 = sand.u32 %s23, 1
        %s277 = sand.u32 %s23, 1
        %s278 = smul.addr %s277, 384
        %s279 = scalar_lea.vmem [#allocation5], %s278
        // Predicated region
        $region56: #{encoder_forward_pallas.6} parent=54 // pred_check
          %p280 = pneg %p36
        $region57: #{encoder_forward_pallas.6} parent=54 // pred_check_branch
          %282 = sbr.rel (%p280) target = $region59
        $region58: #{encoder_forward_pallas.6} parent=54 // pred_region
          _
        $region59: #{encoder_forward_pallas.6} parent=54 // pred_fallthru
          _
        %s283 = sand.u32 %s23, 1
        %s284 = sand.u32 %s23, 1
        %s285 = smul.addr %s284, 384
        %s286 = scalar_lea.vmem [#allocation5], %s285
        %p287 = pneg %p36
        %p288 = pneg %p33
        %p289 = pneg %p57
        %p290 = pneg %p54
        %p291 = pneg %p78
        %p292 = pneg %p75
        %p293 = pneg %p99
        %p294 = pneg %p96
        %p295 = pneg %p120
        %p296 = pneg %p117
        %s297 = smul.u32 16, %s15
        %p299 = scmp.eq.s32.totalorder %s15, 0
        // Predicated region
        $region60: #{encoder_forward_pallas.6} parent=54 // pred_check
          %p300 = pneg %p299
        $region61: #{encoder_forward_pallas.6} parent=54 // pred_check_branch
          %302 = sbr.rel (%p300) target = $region63
        $region62: #{encoder_forward_pallas.6} parent=54 // pred_region
          %vm303 = vcmask 7168
          %304 = vst.msk [vmem:[#allocation3] sm:$0xff] %vm303, 0.0
          %305 = vst.msk [vmem:[#allocation3 + $0x8] sm:$0xff] %vm303, 0.0
          %306 = vst.msk [vmem:[#allocation4] sm:$0xff] %vm303, 0.0
          %307 = vst.msk [vmem:[#allocation4 + $0x8] sm:$0xff] %vm303, 0.0
        $region63: #{encoder_forward_pallas.6} parent=54 // pred_fallthru
          _
        %v308 = vld [vmem:[%s1] sm:$0xf]
        %v309 = vld [vmem:[%s1 + $0x4] sm:$0xf]
        %v310 = vld [vmem:[%s279] sm:$0xff]
        %v311 = vld [vmem:[%s279 + $0x8] sm:$0xff]
        %v312 = vld [vmem:[%s279 + $0x10] sm:$0xff]
        %v313 = vld [vmem:[%s279 + $0x18] sm:$0xff]
        %v314 = vld [vmem:[%s279 + $0x20] sm:$0xff]
        %v315 = vld [vmem:[%s279 + $0x28] sm:$0xff]
        %v316 = vld [vmem:[%s279 + $0x30] sm:$0xff]
        %v317 = vld [vmem:[%s279 + $0x38] sm:$0xff]
        %v318 = vld [vmem:[%s279 + $0x40] sm:$0xff]
        %v319 = vld [vmem:[%s279 + $0x48] sm:$0xff]
        %v320 = vld [vmem:[%s279 + $0x50] sm:$0xff]
        %v321 = vld [vmem:[%s279 + $0x58] sm:$0xff]
        %v322 = vld [vmem:[%s279 + $0x60] sm:$0xff]
        %v323 = vld [vmem:[%s279 + $0x68] sm:$0xff]
        %v324 = vld [vmem:[%s279 + $0x70] sm:$0xff]
        %v325 = vld [vmem:[%s279 + $0x78] sm:$0xff]
        %v326 = vld [vmem:[%s279 + $0x80] sm:$0xff]
        %v327 = vld [vmem:[%s279 + $0x88] sm:$0xff]
        %v328 = vld [vmem:[%s279 + $0x90] sm:$0xff]
        %v329 = vld [vmem:[%s279 + $0x98] sm:$0xff]
        %v330 = vld [vmem:[%s279 + $0xa0] sm:$0xff]
        %v331 = vld [vmem:[%s279 + $0xa8] sm:$0xff]
        %v332 = vld [vmem:[%s279 + $0xb0] sm:$0xff]
        %v333 = vld [vmem:[%s279 + $0xb8] sm:$0xff]
        %v334 = vld [vmem:[%s279 + $0xc0] sm:$0xff]
        %v335 = vld [vmem:[%s279 + $0xc8] sm:$0xff]
        %v336 = vld [vmem:[%s279 + $0xd0] sm:$0xff]
        %v337 = vld [vmem:[%s279 + $0xd8] sm:$0xff]
        %v338 = vld [vmem:[%s279 + $0xe0] sm:$0xff]
        %v339 = vld [vmem:[%s279 + $0xe8] sm:$0xff]
        %v340 = vld [vmem:[%s279 + $0xf0] sm:$0xff]
        %v341 = vld [vmem:[%s279 + $0xf8] sm:$0xff]
        %v342 = vld [vmem:[%s279 + $0x100] sm:$0xff]
        %v343 = vld [vmem:[%s279 + $0x108] sm:$0xff]
        %v344 = vld [vmem:[%s279 + $0x110] sm:$0xff]
        %v345 = vld [vmem:[%s279 + $0x118] sm:$0xff]
        %v346 = vld [vmem:[%s279 + $0x120] sm:$0xff]
        %v347 = vld [vmem:[%s279 + $0x128] sm:$0xff]
        %v348 = vld [vmem:[%s279 + $0x130] sm:$0xff]
        %v349 = vld [vmem:[%s279 + $0x138] sm:$0xff]
        %v350 = vld [vmem:[%s279 + $0x140] sm:$0xff]
        %v351 = vld [vmem:[%s279 + $0x148] sm:$0xff]
        %v352 = vld [vmem:[%s279 + $0x150] sm:$0xff]
        %v353 = vld [vmem:[%s279 + $0x158] sm:$0xff]
        %v354 = vld [vmem:[%s279 + $0x160] sm:$0xff]
        %v355 = vld [vmem:[%s279 + $0x168] sm:$0xff]
        %v356 = vld [vmem:[%s279 + $0x170] sm:$0xff]
        %v357 = vld [vmem:[%s279 + $0x178] sm:$0xff]
        %v360 = vunpack.c.l.b16 %v308
        %v361 = vunpack.c.l.b16 %v309
        %v362 = vpack.c.b16 %v361, %v360
        %v411 = vunpack.c.l.b16 %v310
        %v412 = vunpack.c.h.b16 %v310
        %v413 = vunpack.c.l.b16 %v311
        %v414 = vunpack.c.h.b16 %v311
        %v415 = vunpack.c.l.b16 %v312
        %v416 = vunpack.c.h.b16 %v312
        %v417 = vunpack.c.l.b16 %v313
        %v418 = vunpack.c.h.b16 %v313
        %v419 = vunpack.c.l.b16 %v314
        %v420 = vunpack.c.h.b16 %v314
        %v421 = vunpack.c.l.b16 %v315
        %v422 = vunpack.c.h.b16 %v315
        %v423 = vunpack.c.l.b16 %v316
        %v424 = vunpack.c.h.b16 %v316
        %v425 = vunpack.c.l.b16 %v317
        %v426 = vunpack.c.h.b16 %v317
        %v427 = vunpack.c.l.b16 %v318
        %v428 = vunpack.c.h.b16 %v318
        %v429 = vunpack.c.l.b16 %v319
        %v430 = vunpack.c.h.b16 %v319
        %v431 = vunpack.c.l.b16 %v320
        %v432 = vunpack.c.h.b16 %v320
        %v433 = vunpack.c.l.b16 %v321
        %v434 = vunpack.c.h.b16 %v321
        %v435 = vunpack.c.l.b16 %v322
        %v436 = vunpack.c.h.b16 %v322
        %v437 = vunpack.c.l.b16 %v323
        %v438 = vunpack.c.h.b16 %v323
        %v439 = vunpack.c.l.b16 %v324
        %v440 = vunpack.c.h.b16 %v324
        %v441 = vunpack.c.l.b16 %v325
        %v442 = vunpack.c.h.b16 %v325
        %v443 = vunpack.c.l.b16 %v326
        %v444 = vunpack.c.h.b16 %v326
        %v445 = vunpack.c.l.b16 %v327
        %v446 = vunpack.c.h.b16 %v327
        %v447 = vunpack.c.l.b16 %v328
        %v448 = vunpack.c.h.b16 %v328
        %v449 = vunpack.c.l.b16 %v329
        %v450 = vunpack.c.h.b16 %v329
        %v451 = vunpack.c.l.b16 %v330
        %v452 = vunpack.c.h.b16 %v330
        %v453 = vunpack.c.l.b16 %v331
        %v454 = vunpack.c.h.b16 %v331
        %v455 = vunpack.c.l.b16 %v332
        %v456 = vunpack.c.h.b16 %v332
        %v457 = vunpack.c.l.b16 %v333
        %v458 = vunpack.c.h.b16 %v333
        %v459 = vunpack.c.l.b16 %v334
        %v460 = vunpack.c.h.b16 %v334
        %v461 = vunpack.c.l.b16 %v335
        %v462 = vunpack.c.h.b16 %v335
        %v463 = vunpack.c.l.b16 %v336
        %v464 = vunpack.c.h.b16 %v336
        %v465 = vunpack.c.l.b16 %v337
        %v466 = vunpack.c.h.b16 %v337
        %v467 = vunpack.c.l.b16 %v338
        %v468 = vunpack.c.h.b16 %v338
        %v469 = vunpack.c.l.b16 %v339
        %v470 = vunpack.c.h.b16 %v339
        %v471 = vunpack.c.l.b16 %v340
        %v472 = vunpack.c.h.b16 %v340
        %v473 = vunpack.c.l.b16 %v341
        %v474 = vunpack.c.h.b16 %v341
        %v475 = vunpack.c.l.b16 %v342
        %v476 = vunpack.c.h.b16 %v342
        %v477 = vunpack.c.l.b16 %v343
        %v478 = vunpack.c.h.b16 %v343
        %v479 = vunpack.c.l.b16 %v344
        %v480 = vunpack.c.h.b16 %v344
        %v481 = vunpack.c.l.b16 %v345
        %v482 = vunpack.c.h.b16 %v345
        %v483 = vunpack.c.l.b16 %v346
        %v484 = vunpack.c.h.b16 %v346
        %v485 = vunpack.c.l.b16 %v347
        %v486 = vunpack.c.h.b16 %v347
        %v487 = vunpack.c.l.b16 %v348
        %v488 = vunpack.c.h.b16 %v348
        %v489 = vunpack.c.l.b16 %v349
        %v490 = vunpack.c.h.b16 %v349
        %v491 = vunpack.c.l.b16 %v350
        %v492 = vunpack.c.h.b16 %v350
        %v493 = vunpack.c.l.b16 %v351
        %v494 = vunpack.c.h.b16 %v351
        %v495 = vunpack.c.l.b16 %v352
        %v496 = vunpack.c.h.b16 %v352
        %v497 = vunpack.c.l.b16 %v353
        %v498 = vunpack.c.h.b16 %v353
        %v499 = vunpack.c.l.b16 %v354
        %v500 = vunpack.c.h.b16 %v354
        %v501 = vunpack.c.l.b16 %v355
        %v502 = vunpack.c.h.b16 %v355
        %v503 = vunpack.c.l.b16 %v356
        %v504 = vunpack.c.h.b16 %v356
        %v505 = vunpack.c.l.b16 %v357
        %v506 = vunpack.c.h.b16 %v357
        %v507 = vpack.c.b16 %v427, %v411
        %v508 = vpack.c.b16 %v428, %v412
        %v509 = vpack.c.b16 %v429, %v413
        %v510 = vpack.c.b16 %v430, %v414
        %v511 = vpack.c.b16 %v431, %v415
        %v512 = vpack.c.b16 %v432, %v416
        %v513 = vpack.c.b16 %v433, %v417
        %v514 = vpack.c.b16 %v434, %v418
        %v515 = vpack.c.b16 %v435, %v419
        %v516 = vpack.c.b16 %v436, %v420
        %v517 = vpack.c.b16 %v437, %v421
        %v518 = vpack.c.b16 %v438, %v422
        %v519 = vpack.c.b16 %v439, %v423
        %v520 = vpack.c.b16 %v440, %v424
        %v521 = vpack.c.b16 %v441, %v425
        %v522 = vpack.c.b16 %v442, %v426
        %v523 = vpack.c.b16 %v459, %v443
        %v524 = vpack.c.b16 %v460, %v444
        %v525 = vpack.c.b16 %v461, %v445
        %v526 = vpack.c.b16 %v462, %v446
        %v527 = vpack.c.b16 %v463, %v447
        %v528 = vpack.c.b16 %v464, %v448
        %v529 = vpack.c.b16 %v465, %v449
        %v530 = vpack.c.b16 %v466, %v450
        %v531 = vpack.c.b16 %v467, %v451
        %v532 = vpack.c.b16 %v468, %v452
        %v533 = vpack.c.b16 %v469, %v453
        %v534 = vpack.c.b16 %v470, %v454
        %v535 = vpack.c.b16 %v471, %v455
        %v536 = vpack.c.b16 %v472, %v456
        %v537 = vpack.c.b16 %v473, %v457
        %v538 = vpack.c.b16 %v474, %v458
        %v539 = vpack.c.b16 %v491, %v475
        %v540 = vpack.c.b16 %v492, %v476
        %v541 = vpack.c.b16 %v493, %v477
        %v542 = vpack.c.b16 %v494, %v478
        %v543 = vpack.c.b16 %v495, %v479
        %v544 = vpack.c.b16 %v496, %v480
        %v545 = vpack.c.b16 %v497, %v481
        %v546 = vpack.c.b16 %v498, %v482
        %v547 = vpack.c.b16 %v499, %v483
        %v548 = vpack.c.b16 %v500, %v484
        %v549 = vpack.c.b16 %v501, %v485
        %v550 = vpack.c.b16 %v502, %v486
        %v551 = vpack.c.b16 %v503, %v487
        %v552 = vpack.c.b16 %v504, %v488
        %v553 = vpack.c.b16 %v505, %v489
        %v554 = vpack.c.b16 %v506, %v490
        %vm603 = vcmask 392192
        %v605 = vsel %vm603, %v362, 0
        %607 = vmatprep.subr.bf16.mxu0 %v508
        %608 = vmatpush1.bf16.msra.mxu0 %v507
        %609 = vmatprep.subr.bf16.mxu0 %v524
        %610 = vmatpush1.bf16.msra.mxu0 %v523
        %611 = vmatprep.subr.bf16.mxu0 %v540
        %612 = vmatpush1.bf16.msra.mxu0 %v539
        %613 = vmatprep.subr.bf16.mxu0 0
        %614 = vmatpush1.bf16.msra.mxu0 0
        %615 = vmatprep.subr.bf16.mxu0 0
        %616 = vmatpush1.bf16.msra.mxu0 0
        %617 = vmatprep.subr.bf16.mxu0 0
        %618 = vmatpush1.bf16.msra.mxu0 0
        %619 = vmatprep.subr.bf16.mxu0 0
        %620 = vmatpush1.bf16.msra.mxu0 0
        %621 = vmatprep.subr.bf16.mxu0 0
        %622 = vmatpush1.bf16.msra.mxu0 0
        %623 = vmatprep.subr.bf16.mxu0 0
        %624 = vmatpush1.bf16.msra.mxu0 0
        %625 = vmatprep.subr.bf16.mxu0 0
        %626 = vmatpush1.bf16.msra.mxu0 0
        %627 = vmatprep.subr.bf16.mxu0 0
        %628 = vmatpush1.bf16.msra.mxu0 0
        %629 = vmatprep.subr.bf16.mxu0 0
        %630 = vmatpush1.bf16.msra.mxu0 0
        %631 = vmatprep.subr.bf16.mxu0 0
        %632 = vmatpush1.bf16.msra.mxu0 0
        %633 = vmatprep.subr.bf16.mxu0 0
        %634 = vmatpush1.bf16.msra.mxu0 0
        %635 = vmatprep.subr.bf16.mxu0 0
        %636 = vmatpush1.bf16.msra.mxu0 0
        %637 = vmatprep.subr.bf16.mxu0 0
        %638 = vmatpush1.bf16.msra.mxu0 0
        %639 = vmatprep.mubr.bf16.mxu0 0
        %640 = vmatmul.mubr.bf16.gmra.mrb[0].mxu0 %v605
        %v641 = vpop.f32.mrb[0].mxu0
        %v642 = vadd.f32 0.0, %v641
        %v643 = vpop.f32.mrb[0].mxu0
        %v644 = vadd.f32 0.0, %v643
        %v645 = vpop.f32.mrb[0].mxu0
        %v646 = vadd.f32 0.0, %v645
        %v647 = vpop.f32.mrb[0].mxu0
        %v648 = vadd.f32 0.0, %v647
        %649 = vdwg.mxu0
        %650 = vmatprep.subr.bf16.mxu0 %v510
        %651 = vmatpush1.bf16.msra.mxu0 %v509
        %652 = vmatprep.subr.bf16.mxu0 %v526
        %653 = vmatpush1.bf16.msra.mxu0 %v525
        %654 = vmatprep.subr.bf16.mxu0 %v542
        %655 = vmatpush1.bf16.msra.mxu0 %v541
        %656 = vmatprep.subr.bf16.mxu0 0
        %657 = vmatpush1.bf16.msra.mxu0 0
        %658 = vmatprep.subr.bf16.mxu0 0
        %659 = vmatpush1.bf16.msra.mxu0 0
        %660 = vmatprep.subr.bf16.mxu0 0
        %661 = vmatpush1.bf16.msra.mxu0 0
        %662 = vmatprep.subr.bf16.mxu0 0
        %663 = vmatpush1.bf16.msra.mxu0 0
        %664 = vmatprep.subr.bf16.mxu0 0
        %665 = vmatpush1.bf16.msra.mxu0 0
        %666 = vmatprep.subr.bf16.mxu0 0
        %667 = vmatpush1.bf16.msra.mxu0 0
        %668 = vmatprep.subr.bf16.mxu0 0
        %669 = vmatpush1.bf16.msra.mxu0 0
        %670 = vmatprep.subr.bf16.mxu0 0
        %671 = vmatpush1.bf16.msra.mxu0 0
        %672 = vmatprep.subr.bf16.mxu0 0
        %673 = vmatpush1.bf16.msra.mxu0 0
        %674 = vmatprep.subr.bf16.mxu0 0
        %675 = vmatpush1.bf16.msra.mxu0 0
        %676 = vmatprep.subr.bf16.mxu0 0
        %677 = vmatpush1.bf16.msra.mxu0 0
        %678 = vmatprep.subr.bf16.mxu0 0
        %679 = vmatpush1.bf16.msra.mxu0 0
        %680 = vmatprep.subr.bf16.mxu0 0
        %681 = vmatpush1.bf16.msra.mxu0 0
        %682 = vmatprep.mubr.bf16.mxu0 0
        %683 = vmatmul.mubr.bf16.gmra.mrb[0].mxu0 %v605
        %v684 = vpop.f32.mrb[0].mxu0
        %v685 = vadd.f32 0.0, %v684
        %v686 = vpop.f32.mrb[0].mxu0
        %v687 = vadd.f32 0.0, %v686
        %v688 = vpop.f32.mrb[0].mxu0
        %v689 = vadd.f32 0.0, %v688
        %v690 = vpop.f32.mrb[0].mxu0
        %v691 = vadd.f32 0.0, %v690
        %692 = vdwg.mxu0
        %693 = vmatprep.subr.bf16.mxu0 %v512
        %694 = vmatpush1.bf16.msra.mxu0 %v511
        %695 = vmatprep.subr.bf16.mxu0 %v528
        %696 = vmatpush1.bf16.msra.mxu0 %v527
        %697 = vmatprep.subr.bf16.mxu0 %v544
        %698 = vmatpush1.bf16.msra.mxu0 %v543
        %699 = vmatprep.subr.bf16.mxu0 0
        %700 = vmatpush1.bf16.msra.mxu0 0
        %701 = vmatprep.subr.bf16.mxu0 0
        %702 = vmatpush1.bf16.msra.mxu0 0
        %703 = vmatprep.subr.bf16.mxu0 0
        %704 = vmatpush1.bf16.msra.mxu0 0
        %705 = vmatprep.subr.bf16.mxu0 0
        %706 = vmatpush1.bf16.msra.mxu0 0
        %707 = vmatprep.subr.bf16.mxu0 0
        %708 = vmatpush1.bf16.msra.mxu0 0
        %709 = vmatprep.subr.bf16.mxu0 0
        %710 = vmatpush1.bf16.msra.mxu0 0
        %711 = vmatprep.subr.bf16.mxu0 0
        %712 = vmatpush1.bf16.msra.mxu0 0
        %713 = vmatprep.subr.bf16.mxu0 0
        %714 = vmatpush1.bf16.msra.mxu0 0
        %715 = vmatprep.subr.bf16.mxu0 0
        %716 = vmatpush1.bf16.msra.mxu0 0
        %717 = vmatprep.subr.bf16.mxu0 0
        %718 = vmatpush1.bf16.msra.mxu0 0
        %719 = vmatprep.subr.bf16.mxu0 0
        %720 = vmatpush1.bf16.msra.mxu0 0
        %721 = vmatprep.subr.bf16.mxu0 0
        %722 = vmatpush1.bf16.msra.mxu0 0
        %723 = vmatprep.subr.bf16.mxu0 0
        %724 = vmatpush1.bf16.msra.mxu0 0
        %725 = vmatprep.mubr.bf16.mxu0 0
        %726 = vmatmul.mubr.bf16.gmra.mrb[0].mxu0 %v605
        %v727 = vpop.f32.mrb[0].mxu0
        %v728 = vadd.f32 0.0, %v727
        %v729 = vpop.f32.mrb[0].mxu0
        %v730 = vadd.f32 0.0, %v729
        %v731 = vpop.f32.mrb[0].mxu0
        %v732 = vadd.f32 0.0, %v731
        %v733 = vpop.f32.mrb[0].mxu0
        %v734 = vadd.f32 0.0, %v733
        %735 = vdwg.mxu0
        %736 = vmatprep.subr.bf16.mxu0 %v514
        %737 = vmatpush1.bf16.msra.mxu0 %v513
        %738 = vmatprep.subr.bf16.mxu0 %v530
        %739 = vmatpush1.bf16.msra.mxu0 %v529
        %740 = vmatprep.subr.bf16.mxu0 %v546
        %741 = vmatpush1.bf16.msra.mxu0 %v545
        %742 = vmatprep.subr.bf16.mxu0 0
        %743 = vmatpush1.bf16.msra.mxu0 0
        %744 = vmatprep.subr.bf16.mxu0 0
        %745 = vmatpush1.bf16.msra.mxu0 0
        %746 = vmatprep.subr.bf16.mxu0 0
        %747 = vmatpush1.bf16.msra.mxu0 0
        %748 = vmatprep.subr.bf16.mxu0 0
        %749 = vmatpush1.bf16.msra.mxu0 0
        %750 = vmatprep.subr.bf16.mxu0 0
        %751 = vmatpush1.bf16.msra.mxu0 0
        %752 = vmatprep.subr.bf16.mxu0 0
        %753 = vmatpush1.bf16.msra.mxu0 0
        %754 = vmatprep.subr.bf16.mxu0 0
        %755 = vmatpush1.bf16.msra.mxu0 0
        %756 = vmatprep.subr.bf16.mxu0 0
        %757 = vmatpush1.bf16.msra.mxu0 0
        %758 = vmatprep.subr.bf16.mxu0 0
        %759 = vmatpush1.bf16.msra.mxu0 0
        %760 = vmatprep.subr.bf16.mxu0 0
        %761 = vmatpush1.bf16.msra.mxu0 0
        %762 = vmatprep.subr.bf16.mxu0 0
        %763 = vmatpush1.bf16.msra.mxu0 0
        %764 = vmatprep.subr.bf16.mxu0 0
        %765 = vmatpush1.bf16.msra.mxu0 0
        %766 = vmatprep.subr.bf16.mxu0 0
        %767 = vmatpush1.bf16.msra.mxu0 0
        %768 = vmatprep.mubr.bf16.mxu0 0
        %769 = vmatmul.mubr.bf16.gmra.mrb[0].mxu0 %v605
        %v770 = vpop.f32.mrb[0].mxu0
        %v771 = vadd.f32 0.0, %v770
        %v772 = vpop.f32.mrb[0].mxu0
        %v773 = vadd.f32 0.0, %v772
        %v774 = vpop.f32.mrb[0].mxu0
        %v775 = vadd.f32 0.0, %v774
        %v776 = vpop.f32.mrb[0].mxu0
        %v777 = vadd.f32 0.0, %v776
        %778 = vdwg.mxu0
        %779 = vmatprep.subr.bf16.mxu0 %v516
        %780 = vmatpush1.bf16.msra.mxu0 %v515
        %781 = vmatprep.subr.bf16.mxu0 %v532
        %782 = vmatpush1.bf16.msra.mxu0 %v531
        %783 = vmatprep.subr.bf16.mxu0 %v548
        %784 = vmatpush1.bf16.msra.mxu0 %v547
        %785 = vmatprep.subr.bf16.mxu0 0
        %786 = vmatpush1.bf16.msra.mxu0 0
        %787 = vmatprep.subr.bf16.mxu0 0
        %788 = vmatpush1.bf16.msra.mxu0 0
        %789 = vmatprep.subr.bf16.mxu0 0
        %790 = vmatpush1.bf16.msra.mxu0 0
        %791 = vmatprep.subr.bf16.mxu0 0
        %792 = vmatpush1.bf16.msra.mxu0 0
        %793 = vmatprep.subr.bf16.mxu0 0
        %794 = vmatpush1.bf16.msra.mxu0 0
        %795 = vmatprep.subr.bf16.mxu0 0
        %796 = vmatpush1.bf16.msra.mxu0 0
        %797 = vmatprep.subr.bf16.mxu0 0
        %798 = vmatpush1.bf16.msra.mxu0 0
        %799 = vmatprep.subr.bf16.mxu0 0
        %800 = vmatpush1.bf16.msra.mxu0 0
        %801 = vmatprep.subr.bf16.mxu0 0
        %802 = vmatpush1.bf16.msra.mxu0 0
        %803 = vmatprep.subr.bf16.mxu0 0
        %804 = vmatpush1.bf16.msra.mxu0 0
        %805 = vmatprep.subr.bf16.mxu0 0
        %806 = vmatpush1.bf16.msra.mxu0 0
        %807 = vmatprep.subr.bf16.mxu0 0
        %808 = vmatpush1.bf16.msra.mxu0 0
        %809 = vmatprep.subr.bf16.mxu0 0
        %810 = vmatpush1.bf16.msra.mxu0 0
        %811 = vmatprep.mubr.bf16.mxu0 0
        %812 = vmatmul.mubr.bf16.gmra.mrb[0].mxu0 %v605
        %v813 = vpop.f32.mrb[0].mxu0
        %v814 = vadd.f32 0.0, %v813
        %v815 = vpop.f32.mrb[0].mxu0
        %v816 = vadd.f32 0.0, %v815
        %v817 = vpop.f32.mrb[0].mxu0
        %v818 = vadd.f32 0.0, %v817
        %v819 = vpop.f32.mrb[0].mxu0
        %v820 = vadd.f32 0.0, %v819
        %821 = vdwg.mxu0
        %822 = vmatprep.subr.bf16.mxu0 %v518
        %823 = vmatpush1.bf16.msra.mxu0 %v517
        %824 = vmatprep.subr.bf16.mxu0 %v534
        %825 = vmatpush1.bf16.msra.mxu0 %v533
        %826 = vmatprep.subr.bf16.mxu0 %v550
        %827 = vmatpush1.bf16.msra.mxu0 %v549
        %828 = vmatprep.subr.bf16.mxu0 0
        %829 = vmatpush1.bf16.msra.mxu0 0
        %830 = vmatprep.subr.bf16.mxu0 0
        %831 = vmatpush1.bf16.msra.mxu0 0
        %832 = vmatprep.subr.bf16.mxu0 0
        %833 = vmatpush1.bf16.msra.mxu0 0
        %834 = vmatprep.subr.bf16.mxu0 0
        %835 = vmatpush1.bf16.msra.mxu0 0
        %836 = vmatprep.subr.bf16.mxu0 0
        %837 = vmatpush1.bf16.msra.mxu0 0
        %838 = vmatprep.subr.bf16.mxu0 0
        %839 = vmatpush1.bf16.msra.mxu0 0
        %840 = vmatprep.subr.bf16.mxu0 0
        %841 = vmatpush1.bf16.msra.mxu0 0
        %842 = vmatprep.subr.bf16.mxu0 0
        %843 = vmatpush1.bf16.msra.mxu0 0
        %844 = vmatprep.subr.bf16.mxu0 0
        %845 = vmatpush1.bf16.msra.mxu0 0
        %846 = vmatprep.subr.bf16.mxu0 0
        %847 = vmatpush1.bf16.msra.mxu0 0
        %848 = vmatprep.subr.bf16.mxu0 0
        %849 = vmatpush1.bf16.msra.mxu0 0
        %850 = vmatprep.subr.bf16.mxu0 0
        %851 = vmatpush1.bf16.msra.mxu0 0
        %852 = vmatprep.subr.bf16.mxu0 0
        %853 = vmatpush1.bf16.msra.mxu0 0
        %854 = vmatprep.mubr.bf16.mxu0 0
        %855 = vmatmul.mubr.bf16.gmra.mrb[0].mxu0 %v605
        %v856 = vpop.f32.mrb[0].mxu0
        %v857 = vadd.f32 0.0, %v856
        %v858 = vpop.f32.mrb[0].mxu0
        %v859 = vadd.f32 0.0, %v858
        %v860 = vpop.f32.mrb[0].mxu0
        %v861 = vadd.f32 0.0, %v860
        %v862 = vpop.f32.mrb[0].mxu0
        %v863 = vadd.f32 0.0, %v862
        %864 = vdwg.mxu0
        %865 = vmatprep.subr.bf16.mxu0 %v520
        %866 = vmatpush1.bf16.msra.mxu0 %v519
        %867 = vmatprep.subr.bf16.mxu0 %v536
        %868 = vmatpush1.bf16.msra.mxu0 %v535
        %869 = vmatprep.subr.bf16.mxu0 %v552
        %870 = vmatpush1.bf16.msra.mxu0 %v551
        %871 = vmatprep.subr.bf16.mxu0 0
        %872 = vmatpush1.bf16.msra.mxu0 0
        %873 = vmatprep.subr.bf16.mxu0 0
        %874 = vmatpush1.bf16.msra.mxu0 0
        %875 = vmatprep.subr.bf16.mxu0 0
        %876 = vmatpush1.bf16.msra.mxu0 0
        %877 = vmatprep.subr.bf16.mxu0 0
        %878 = vmatpush1.bf16.msra.mxu0 0
        %879 = vmatprep.subr.bf16.mxu0 0
        %880 = vmatpush1.bf16.msra.mxu0 0
        %881 = vmatprep.subr.bf16.mxu0 0
        %882 = vmatpush1.bf16.msra.mxu0 0
        %883 = vmatprep.subr.bf16.mxu0 0
        %884 = vmatpush1.bf16.msra.mxu0 0
        %885 = vmatprep.subr.bf16.mxu0 0
        %886 = vmatpush1.bf16.msra.mxu0 0
        %887 = vmatprep.subr.bf16.mxu0 0
        %888 = vmatpush1.bf16.msra.mxu0 0
        %889 = vmatprep.subr.bf16.mxu0 0
        %890 = vmatpush1.bf16.msra.mxu0 0
        %891 = vmatprep.subr.bf16.mxu0 0
        %892 = vmatpush1.bf16.msra.mxu0 0
        %893 = vmatprep.subr.bf16.mxu0 0
        %894 = vmatpush1.bf16.msra.mxu0 0
        %895 = vmatprep.subr.bf16.mxu0 0
        %896 = vmatpush1.bf16.msra.mxu0 0
        %897 = vmatprep.mubr.bf16.mxu0 0
        %898 = vmatmul.mubr.bf16.gmra.mrb[0].mxu0 %v605
        %v899 = vpop.f32.mrb[0].mxu0
        %v900 = vadd.f32 0.0, %v899
        %v901 = vpop.f32.mrb[0].mxu0
        %v902 = vadd.f32 0.0, %v901
        %v903 = vpop.f32.mrb[0].mxu0
        %v904 = vadd.f32 0.0, %v903
        %v905 = vpop.f32.mrb[0].mxu0
        %v906 = vadd.f32 0.0, %v905
        %907 = vdwg.mxu0
        %908 = vmatprep.subr.bf16.mxu0 %v522
        %909 = vmatpush1.bf16.msra.mxu0 %v521
        %910 = vmatprep.subr.bf16.mxu0 %v538
        %911 = vmatpush1.bf16.msra.mxu0 %v537
        %912 = vmatprep.subr.bf16.mxu0 %v554
        %913 = vmatpush1.bf16.msra.mxu0 %v553
        %914 = vmatprep.subr.bf16.mxu0 0
        %915 = vmatpush1.bf16.msra.mxu0 0
        %916 = vmatprep.subr.bf16.mxu0 0
        %917 = vmatpush1.bf16.msra.mxu0 0
        %918 = vmatprep.subr.bf16.mxu0 0
        %919 = vmatpush1.bf16.msra.mxu0 0
        %920 = vmatprep.subr.bf16.mxu0 0
        %921 = vmatpush1.bf16.msra.mxu0 0
        %922 = vmatprep.subr.bf16.mxu0 0
        %923 = vmatpush1.bf16.msra.mxu0 0
        %924 = vmatprep.subr.bf16.mxu0 0
        %925 = vmatpush1.bf16.msra.mxu0 0
        %926 = vmatprep.subr.bf16.mxu0 0
        %927 = vmatpush1.bf16.msra.mxu0 0
        %928 = vmatprep.subr.bf16.mxu0 0
        %929 = vmatpush1.bf16.msra.mxu0 0
        %930 = vmatprep.subr.bf16.mxu0 0
        %931 = vmatpush1.bf16.msra.mxu0 0
        %932 = vmatprep.subr.bf16.mxu0 0
        %933 = vmatpush1.bf16.msra.mxu0 0
        %934 = vmatprep.subr.bf16.mxu0 0
        %935 = vmatpush1.bf16.msra.mxu0 0
        %936 = vmatprep.subr.bf16.mxu0 0
        %937 = vmatpush1.bf16.msra.mxu0 0
        %938 = vmatprep.subr.bf16.mxu0 0
        %939 = vmatpush1.bf16.msra.mxu0 0
        %940 = vmatprep.mubr.bf16.mxu0 0
        %941 = vmatmul.mubr.bf16.gmra.mrb[0].mxu0 %v605
        %v942 = vpop.f32.mrb[0].mxu0
        %v943 = vadd.f32 0.0, %v942
        %v944 = vpop.f32.mrb[0].mxu0
        %v945 = vadd.f32 0.0, %v944
        %v946 = vpop.f32.mrb[0].mxu0
        %v947 = vadd.f32 0.0, %v946
        %v948 = vpop.f32.mrb[0].mxu0
        %v949 = vadd.f32 0.0, %v948
        %950 = vdwg.mxu0
        %v951 = vld [vmem:[#allocation3] sm:$0xff]
        %v952 = vld [vmem:[#allocation3 + $0x8] sm:$0xff]
        %v953 = vadd.f32 %v642, %v644
        %v954 = vadd.f32 %v953, %v685
        %v955 = vadd.f32 %v954, %v687
        %v956 = vadd.f32 %v955, %v728
        %v957 = vadd.f32 %v956, %v730
        %v958 = vadd.f32 %v957, %v771
        %v959 = vadd.f32 %v958, %v773
        %v960 = vadd.f32 %v959, %v814
        %v961 = vadd.f32 %v960, %v816
        %v962 = vadd.f32 %v961, %v857
        %v963 = vadd.f32 %v962, %v859
        %v964 = vadd.f32 %v963, %v900
        %v965 = vadd.f32 %v964, %v902
        %v966 = vadd.f32 %v965, %v943
        %v967 = vadd.f32 %v966, %v945
        %968 = vadd.xlane.f32.xlu0 %v967
        %v969 = vpop.xlane.xlu0 %968
        %v970 = vadd.f32 %v646, %v648
        %v971 = vadd.f32 %v970, %v689
        %v972 = vadd.f32 %v971, %v691
        %v973 = vadd.f32 %v972, %v732
        %v974 = vadd.f32 %v973, %v734
        %v975 = vadd.f32 %v974, %v775
        %v976 = vadd.f32 %v975, %v777
        %v977 = vadd.f32 %v976, %v818
        %v978 = vadd.f32 %v977, %v820
        %v979 = vadd.f32 %v978, %v861
        %v980 = vadd.f32 %v979, %v863
        %v981 = vadd.f32 %v980, %v904
        %v982 = vadd.f32 %v981, %v906
        %v983 = vadd.f32 %v982, %v947
        %v984 = vadd.f32 %v983, %v949
        %985 = vadd.xlane.f32.xlu0 %v984
        %v986 = vpop.xlane.xlu0 %985
        %v987 = vadd.f32 %v951, %v969
        %v988 = vadd.f32 %v952, %v986
        %vm989 = vcmask 7168
        %990 = vst.msk [vmem:[#allocation3] sm:$0xff] %vm989, %v987
        %991 = vst.msk [vmem:[#allocation3 + $0x8] sm:$0xff] %vm989, %v988
        %v992 = vld [vmem:[#allocation4] sm:$0xff]
        %v993 = vld [vmem:[#allocation4 + $0x8] sm:$0xff]
        %v994 = vmul.f32 %v642, %v642
        %v995 = vmul.f32 %v644, %v644
        %v996 = vmul.f32 %v685, %v685
        %v997 = vmul.f32 %v687, %v687
        %v998 = vmul.f32 %v728, %v728
        %v999 = vmul.f32 %v730, %v730
        %v1000 = vmul.f32 %v771, %v771
        %v1001 = vmul.f32 %v773, %v773
        %v1002 = vmul.f32 %v814, %v814
        %v1003 = vmul.f32 %v816, %v816
        %v1004 = vmul.f32 %v857, %v857
        %v1005 = vmul.f32 %v859, %v859
        %v1006 = vmul.f32 %v900, %v900
        %v1007 = vmul.f32 %v902, %v902
        %v1008 = vmul.f32 %v943, %v943
        %v1009 = vmul.f32 %v945, %v945
        %v1010 = vmul.f32 %v646, %v646
        %v1011 = vmul.f32 %v648, %v648
        %v1012 = vmul.f32 %v689, %v689
        %v1013 = vmul.f32 %v691, %v691
        %v1014 = vmul.f32 %v732, %v732
        %v1015 = vmul.f32 %v734, %v734
        %v1016 = vmul.f32 %v775, %v775
        %v1017 = vmul.f32 %v777, %v777
        %v1018 = vmul.f32 %v818, %v818
        %v1019 = vmul.f32 %v820, %v820
        %v1020 = vmul.f32 %v861, %v861
        %v1021 = vmul.f32 %v863, %v863
        %v1022 = vmul.f32 %v904, %v904
        %v1023 = vmul.f32 %v906, %v906
        %v1024 = vmul.f32 %v947, %v947
        %v1025 = vmul.f32 %v949, %v949
        %v1026 = vadd.f32 %v994, %v995
        %v1027 = vadd.f32 %v1026, %v996
        %v1028 = vadd.f32 %v1027, %v997
        %v1029 = vadd.f32 %v1028, %v998
        %v1030 = vadd.f32 %v1029, %v999
        %v1031 = vadd.f32 %v1030, %v1000
        %v1032 = vadd.f32 %v1031, %v1001
        %v1033 = vadd.f32 %v1032, %v1002
        %v1034 = vadd.f32 %v1033, %v1003
        %v1035 = vadd.f32 %v1034, %v1004
        %v1036 = vadd.f32 %v1035, %v1005
        %v1037 = vadd.f32 %v1036, %v1006
        %v1038 = vadd.f32 %v1037, %v1007
        %v1039 = vadd.f32 %v1038, %v1008
        %v1040 = vadd.f32 %v1039, %v1009
        %1041 = vadd.xlane.f32.xlu0 %v1040
        %v1042 = vpop.xlane.xlu0 %1041
        %v1043 = vadd.f32 %v1010, %v1011
        %v1044 = vadd.f32 %v1043, %v1012
        %v1045 = vadd.f32 %v1044, %v1013
        %v1046 = vadd.f32 %v1045, %v1014
        %v1047 = vadd.f32 %v1046, %v1015
        %v1048 = vadd.f32 %v1047, %v1016
        %v1049 = vadd.f32 %v1048, %v1017
        %v1050 = vadd.f32 %v1049, %v1018
        %v1051 = vadd.f32 %v1050, %v1019
        %v1052 = vadd.f32 %v1051, %v1020
        %v1053 = vadd.f32 %v1052, %v1021
        %v1054 = vadd.f32 %v1053, %v1022
        %v1055 = vadd.f32 %v1054, %v1023
        %v1056 = vadd.f32 %v1055, %v1024
        %v1057 = vadd.f32 %v1056, %v1025
        %1058 = vadd.xlane.f32.xlu0 %v1057
        %v1059 = vpop.xlane.xlu0 %1058
        %v1060 = vadd.f32 %v992, %v1042
        %v1061 = vadd.f32 %v993, %v1059
        %1062 = vst.msk [vmem:[#allocation4] sm:$0xff] %vm989, %v1060
        %1063 = vst.msk [vmem:[#allocation4 + $0x8] sm:$0xff] %vm989, %v1061
        %s1064 = smul.u32 %s15, 32
        %s1065 = smul.addr %s1064, 8
        %s1066 = scalar_lea.vmem [#allocation2], %s1065
        %1067 = vst [vmem:[%s1066] sm:$0xff] %v642
        %1068 = vst [vmem:[%s1066 + $0x8] sm:$0xff] %v644
        %1069 = vst [vmem:[%s1066 + $0x10] sm:$0xff] %v685
        %1070 = vst [vmem:[%s1066 + $0x18] sm:$0xff] %v687
        %1071 = vst [vmem:[%s1066 + $0x20] sm:$0xff] %v728
        %1072 = vst [vmem:[%s1066 + $0x28] sm:$0xff] %v730
        %1073 = vst [vmem:[%s1066 + $0x30] sm:$0xff] %v771
        %1074 = vst [vmem:[%s1066 + $0x38] sm:$0xff] %v773
        %1075 = vst [vmem:[%s1066 + $0x40] sm:$0xff] %v814
        %1076 = vst [vmem:[%s1066 + $0x48] sm:$0xff] %v816
        %1077 = vst [vmem:[%s1066 + $0x50] sm:$0xff] %v857
        %1078 = vst [vmem:[%s1066 + $0x58] sm:$0xff] %v859
        %1079 = vst [vmem:[%s1066 + $0x60] sm:$0xff] %v900
        %1080 = vst [vmem:[%s1066 + $0x68] sm:$0xff] %v902
        %1081 = vst [vmem:[%s1066 + $0x70] sm:$0xff] %v943
        %1082 = vst [vmem:[%s1066 + $0x78] sm:$0xff] %v945
        %1083 = vst [vmem:[%s1066 + $0x80] sm:$0xff] %v646
        %1084 = vst [vmem:[%s1066 + $0x88] sm:$0xff] %v648
        %1085 = vst [vmem:[%s1066 + $0x90] sm:$0xff] %v689
        %1086 = vst [vmem:[%s1066 + $0x98] sm:$0xff] %v691
        %1087 = vst [vmem:[%s1066 + $0xa0] sm:$0xff] %v732
        %1088 = vst [vmem:[%s1066 + $0xa8] sm:$0xff] %v734
        %1089 = vst [vmem:[%s1066 + $0xb0] sm:$0xff] %v775
        %1090 = vst [vmem:[%s1066 + $0xb8] sm:$0xff] %v777
        %1091 = vst [vmem:[%s1066 + $0xc0] sm:$0xff] %v818
        %1092 = vst [vmem:[%s1066 + $0xc8] sm:$0xff] %v820
        %1093 = vst [vmem:[%s1066 + $0xd0] sm:$0xff] %v861
        %1094 = vst [vmem:[%s1066 + $0xd8] sm:$0xff] %v863
        %1095 = vst [vmem:[%s1066 + $0xe0] sm:$0xff] %v904
        %1096 = vst [vmem:[%s1066 + $0xe8] sm:$0xff] %v906
        %1097 = vst [vmem:[%s1066 + $0xf0] sm:$0xff] %v947
        %1098 = vst [vmem:[%s1066 + $0xf8] sm:$0xff] %v949
        %p1099 = scmp.eq.s32.totalorder %s15, 3
        // Predicated region
        $region64: #{encoder_forward_pallas.6} parent=54 // pred_check
          %p1100 = pneg %p1099
        $region65: #{encoder_forward_pallas.6} parent=54 // pred_check_branch
          %1102 = sbr.rel (%p1100) target = $region67
        $region66: #{encoder_forward_pallas.6} parent=54 // pred_region
          %v1103 = vld [vmem:[#allocation3] sm:$0xff]
          %v1104 = vld [vmem:[#allocation3 + $0x8] sm:$0xff]
          %v1105 = vmul.f32 %v1103, 0.00012207031
          %v1106 = vmul.f32 %v1104, 0.00012207031
          %v1107 = vld [vmem:[#allocation4] sm:$0xff]
          %v1108 = vld [vmem:[#allocation4 + $0x8] sm:$0xff]
          %v1109 = vmul.f32 %v1107, 0.00012207031
          %v1110 = vmul.f32 %v1108, 0.00012207031
          %v1111 = vmul.f32 %v1105, %v1105
          %v1112 = vmul.f32 %v1106, %v1106
          %v1113 = vsub.f32 %v1109, %v1111
          %v1114 = vsub.f32 %v1110, %v1112
          %v1115 = vld [vmem:[%s2] sm:$0xff]
          %v1116 = vld [vmem:[%s2 + $0x8] sm:$0xff]
          %v1117 = vadd.f32 %v1113, 1e-05
          %v1118 = vadd.f32 %v1114, 1e-05
          %v1119 = vrsqrt.pop %v1117
          %v1120 = vrsqrt.pop %v1118
          %v1121 = vmul.f32 %v1115, %v1119
          %v1122 = vmul.f32 %v1116, %v1120
          %v1123 = vld [vmem:[%s3] sm:$0xff]
          %v1124 = vld [vmem:[%s3 + $0x8] sm:$0xff]
          %v1125 = vmul.f32 %v1105, %v1121
          %v1126 = vmul.f32 %v1106, %v1122
          %v1127 = vsub.f32 %v1123, %v1125
          %v1128 = vsub.f32 %v1124, %v1126
          %v1129 = vld [vmem:[#allocation2] sm:$0xff]
          %v1130 = vld [vmem:[#allocation2 + $0x8] sm:$0xff]
          %v1131 = vld [vmem:[#allocation2 + $0x10] sm:$0xff]
          %v1132 = vld [vmem:[#allocation2 + $0x18] sm:$0xff]
          %v1133 = vld [vmem:[#allocation2 + $0x20] sm:$0xff]
          %v1134 = vld [vmem:[#allocation2 + $0x28] sm:$0xff]
          %v1135 = vld [vmem:[#allocation2 + $0x30] sm:$0xff]
          %v1136 = vld [vmem:[#allocation2 + $0x38] sm:$0xff]
          %v1137 = vld [vmem:[#allocation2 + $0x40] sm:$0xff]
          %v1138 = vld [vmem:[#allocation2 + $0x48] sm:$0xff]
          %v1139 = vld [vmem:[#allocation2 + $0x50] sm:$0xff]
          %v1140 = vld [vmem:[#allocation2 + $0x58] sm:$0xff]
          %v1141 = vld [vmem:[#allocation2 + $0x60] sm:$0xff]
          %v1142 = vld [vmem:[#allocation2 + $0x68] sm:$0xff]
          %v1143 = vld [vmem:[#allocation2 + $0x70] sm:$0xff]
          %v1144 = vld [vmem:[#allocation2 + $0x78] sm:$0xff]
          %v1145 = vld [vmem:[#allocation2 + $0x80] sm:$0xff]
          %v1146 = vld [vmem:[#allocation2 + $0x88] sm:$0xff]
          %v1147 = vld [vmem:[#allocation2 + $0x90] sm:$0xff]
          %v1148 = vld [vmem:[#allocation2 + $0x98] sm:$0xff]
          %v1149 = vld [vmem:[#allocation2 + $0xa0] sm:$0xff]
          %v1150 = vld [vmem:[#allocation2 + $0xa8] sm:$0xff]
          %v1151 = vld [vmem:[#allocation2 + $0xb0] sm:$0xff]
          %v1152 = vld [vmem:[#allocation2 + $0xb8] sm:$0xff]
          %v1153 = vld [vmem:[#allocation2 + $0xc0] sm:$0xff]
          %v1154 = vld [vmem:[#allocation2 + $0xc8] sm:$0xff]
          %v1155 = vld [vmem:[#allocation2 + $0xd0] sm:$0xff]
          %v1156 = vld [vmem:[#allocation2 + $0xd8] sm:$0xff]
          %v1157 = vld [vmem:[#allocation2 + $0xe0] sm:$0xff]
          %v1158 = vld [vmem:[#allocation2 + $0xe8] sm:$0xff]
          %v1159 = vld [vmem:[#allocation2 + $0xf0] sm:$0xff]
          %v1160 = vld [vmem:[#allocation2 + $0xf8] sm:$0xff]
          %1162 = vset.pattern.permute.xlu0 0
          %1163 = vperm.xlu0 %1162, %v1121
          %v1164 = vpop.permute.xlu0 %1163
          %1167 = vset.pattern.permute.xlu0 0
          %1168 = vperm.xlu0 %1167, %v1122
          %v1169 = vpop.permute.xlu0 %1168
          %v1171 = vmul.f32 %v1129, %v1164
          %v1172 = vmul.f32 %v1130, %v1164
          %v1173 = vmul.f32 %v1131, %v1164
          %v1174 = vmul.f32 %v1132, %v1164
          %v1175 = vmul.f32 %v1133, %v1164
          %v1176 = vmul.f32 %v1134, %v1164
          %v1177 = vmul.f32 %v1135, %v1164
          %v1178 = vmul.f32 %v1136, %v1164
          %v1179 = vmul.f32 %v1137, %v1164
          %v1180 = vmul.f32 %v1138, %v1164
          %v1181 = vmul.f32 %v1139, %v1164
          %v1182 = vmul.f32 %v1140, %v1164
          %v1183 = vmul.f32 %v1141, %v1164
          %v1184 = vmul.f32 %v1142, %v1164
          %v1185 = vmul.f32 %v1143, %v1164
          %v1186 = vmul.f32 %v1144, %v1164
          %v1187 = vmul.f32 %v1145, %v1169
          %v1188 = vmul.f32 %v1146, %v1169
          %v1189 = vmul.f32 %v1147, %v1169
          %v1190 = vmul.f32 %v1148, %v1169
          %v1191 = vmul.f32 %v1149, %v1169
          %v1192 = vmul.f32 %v1150, %v1169
          %v1193 = vmul.f32 %v1151, %v1169
          %v1194 = vmul.f32 %v1152, %v1169
          %v1195 = vmul.f32 %v1153, %v1169
          %v1196 = vmul.f32 %v1154, %v1169
          %v1197 = vmul.f32 %v1155, %v1169
          %v1198 = vmul.f32 %v1156, %v1169
          %v1199 = vmul.f32 %v1157, %v1169
          %v1200 = vmul.f32 %v1158, %v1169
          %v1201 = vmul.f32 %v1159, %v1169
          %v1202 = vmul.f32 %v1160, %v1169
          %1204 = vset.pattern.permute.xlu0 0
          %1205 = vperm.xlu0 %1204, %v1127
          %v1206 = vpop.permute.xlu0 %1205
          %1209 = vset.pattern.permute.xlu0 0
          %1210 = vperm.xlu0 %1209, %v1128
          %v1211 = vpop.permute.xlu0 %1210
          %v1213 = vadd.f32 %v1171, %v1206
          %v1214 = vadd.f32 %v1172, %v1206
          %v1215 = vadd.f32 %v1173, %v1206
          %v1216 = vadd.f32 %v1174, %v1206
          %v1217 = vadd.f32 %v1175, %v1206
          %v1218 = vadd.f32 %v1176, %v1206
          %v1219 = vadd.f32 %v1177, %v1206
          %v1220 = vadd.f32 %v1178, %v1206
          %v1221 = vadd.f32 %v1179, %v1206
          %v1222 = vadd.f32 %v1180, %v1206
          %v1223 = vadd.f32 %v1181, %v1206
          %v1224 = vadd.f32 %v1182, %v1206
          %v1225 = vadd.f32 %v1183, %v1206
          %v1226 = vadd.f32 %v1184, %v1206
          %v1227 = vadd.f32 %v1185, %v1206
          %v1228 = vadd.f32 %v1186, %v1206
          %v1229 = vadd.f32 %v1187, %v1211
          %v1230 = vadd.f32 %v1188, %v1211
          %v1231 = vadd.f32 %v1189, %v1211
          %v1232 = vadd.f32 %v1190, %v1211
          %v1233 = vadd.f32 %v1191, %v1211
          %v1234 = vadd.f32 %v1192, %v1211
          %v1235 = vadd.f32 %v1193, %v1211
          %v1236 = vadd.f32 %v1194, %v1211
          %v1237 = vadd.f32 %v1195, %v1211
          %v1238 = vadd.f32 %v1196, %v1211
          %v1239 = vadd.f32 %v1197, %v1211
          %v1240 = vadd.f32 %v1198, %v1211
          %v1241 = vadd.f32 %v1199, %v1211
          %v1242 = vadd.f32 %v1200, %v1211
          %v1243 = vadd.f32 %v1201, %v1211
          %v1244 = vadd.f32 %v1202, %v1211
          %v1245 = vmul.f32 %v1213, 0.2
          %v1246 = vmul.f32 %v1214, 0.2
          %v1247 = vmul.f32 %v1215, 0.2
          %v1248 = vmul.f32 %v1216, 0.2
          %v1249 = vmul.f32 %v1217, 0.2
          %v1250 = vmul.f32 %v1218, 0.2
          %v1251 = vmul.f32 %v1219, 0.2
          %v1252 = vmul.f32 %v1220, 0.2
          %v1253 = vmul.f32 %v1221, 0.2
          %v1254 = vmul.f32 %v1222, 0.2
          %v1255 = vmul.f32 %v1223, 0.2
          %v1256 = vmul.f32 %v1224, 0.2
          %v1257 = vmul.f32 %v1225, 0.2
          %v1258 = vmul.f32 %v1226, 0.2
          %v1259 = vmul.f32 %v1227, 0.2
          %v1260 = vmul.f32 %v1228, 0.2
          %v1261 = vmul.f32 %v1229, 0.2
          %v1262 = vmul.f32 %v1230, 0.2
          %v1263 = vmul.f32 %v1231, 0.2
          %v1264 = vmul.f32 %v1232, 0.2
          %v1265 = vmul.f32 %v1233, 0.2
          %v1266 = vmul.f32 %v1234, 0.2
          %v1267 = vmul.f32 %v1235, 0.2
          %v1268 = vmul.f32 %v1236, 0.2
          %v1269 = vmul.f32 %v1237, 0.2
          %v1270 = vmul.f32 %v1238, 0.2
          %v1271 = vmul.f32 %v1239, 0.2
          %v1272 = vmul.f32 %v1240, 0.2
          %v1273 = vmul.f32 %v1241, 0.2
          %v1274 = vmul.f32 %v1242, 0.2
          %v1275 = vmul.f32 %v1243, 0.2
          %v1276 = vmul.f32 %v1244, 0.2
          %v1277 = vmax.f32 %v1213, %v1245
          %v1278 = vmax.f32 %v1214, %v1246
          %v1279 = vmax.f32 %v1215, %v1247
          %v1280 = vmax.f32 %v1216, %v1248
          %v1281 = vmax.f32 %v1217, %v1249
          %v1282 = vmax.f32 %v1218, %v1250
          %v1283 = vmax.f32 %v1219, %v1251
          %v1284 = vmax.f32 %v1220, %v1252
          %v1285 = vmax.f32 %v1221, %v1253
          %v1286 = vmax.f32 %v1222, %v1254
          %v1287 = vmax.f32 %v1223, %v1255
          %v1288 = vmax.f32 %v1224, %v1256
          %v1289 = vmax.f32 %v1225, %v1257
          %v1290 = vmax.f32 %v1226, %v1258
          %v1291 = vmax.f32 %v1227, %v1259
          %v1292 = vmax.f32 %v1228, %v1260
          %v1293 = vmax.f32 %v1229, %v1261
          %v1294 = vmax.f32 %v1230, %v1262
          %v1295 = vmax.f32 %v1231, %v1263
          %v1296 = vmax.f32 %v1232, %v1264
          %v1297 = vmax.f32 %v1233, %v1265
          %v1298 = vmax.f32 %v1234, %v1266
          %v1299 = vmax.f32 %v1235, %v1267
          %v1300 = vmax.f32 %v1236, %v1268
          %v1301 = vmax.f32 %v1237, %v1269
          %v1302 = vmax.f32 %v1238, %v1270
          %v1303 = vmax.f32 %v1239, %v1271
          %v1304 = vmax.f32 %v1240, %v1272
          %v1305 = vmax.f32 %v1241, %v1273
          %v1306 = vmax.f32 %v1242, %v1274
          %v1307 = vmax.f32 %v1243, %v1275
          %v1308 = vmax.f32 %v1244, %v1276
          %v1309 = vpack.c.bf16 %v1293, %v1277
          %v1310 = vpack.c.bf16 %v1294, %v1278
          %v1311 = vpack.c.bf16 %v1295, %v1279
          %v1312 = vpack.c.bf16 %v1296, %v1280
          %v1313 = vpack.c.bf16 %v1297, %v1281
          %v1314 = vpack.c.bf16 %v1298, %v1282
          %v1315 = vpack.c.bf16 %v1299, %v1283
          %v1316 = vpack.c.bf16 %v1300, %v1284
          %v1317 = vpack.c.bf16 %v1301, %v1285
          %v1318 = vpack.c.bf16 %v1302, %v1286
          %v1319 = vpack.c.bf16 %v1303, %v1287
          %v1320 = vpack.c.bf16 %v1304, %v1288
          %v1321 = vpack.c.bf16 %v1305, %v1289
          %v1322 = vpack.c.bf16 %v1306, %v1290
          %v1323 = vpack.c.bf16 %v1307, %v1291
          %v1324 = vpack.c.bf16 %v1308, %v1292
          %v1341 = vunpack.c.l.b16 %v1309
          %v1342 = vunpack.c.l.b16 %v1310
          %v1343 = vunpack.c.l.b16 %v1311
          %v1344 = vunpack.c.l.b16 %v1312
          %v1345 = vunpack.c.l.b16 %v1313
          %v1346 = vunpack.c.l.b16 %v1314
          %v1347 = vunpack.c.l.b16 %v1315
          %v1348 = vunpack.c.l.b16 %v1316
          %v1349 = vunpack.c.l.b16 %v1317
          %v1350 = vunpack.c.l.b16 %v1318
          %v1351 = vunpack.c.l.b16 %v1319
          %v1352 = vunpack.c.l.b16 %v1320
          %v1353 = vunpack.c.l.b16 %v1321
          %v1354 = vunpack.c.l.b16 %v1322
          %v1355 = vunpack.c.l.b16 %v1323
          %v1356 = vunpack.c.l.b16 %v1324
          %v1357 = vunpack.c.h.b16 %v1309
          %v1358 = vunpack.c.h.b16 %v1310
          %v1359 = vunpack.c.h.b16 %v1311
          %v1360 = vunpack.c.h.b16 %v1312
          %v1361 = vunpack.c.h.b16 %v1313
          %v1362 = vunpack.c.h.b16 %v1314
          %v1363 = vunpack.c.h.b16 %v1315
          %v1364 = vunpack.c.h.b16 %v1316
          %v1365 = vunpack.c.h.b16 %v1317
          %v1366 = vunpack.c.h.b16 %v1318
          %v1367 = vunpack.c.h.b16 %v1319
          %v1368 = vunpack.c.h.b16 %v1320
          %v1369 = vunpack.c.h.b16 %v1321
          %v1370 = vunpack.c.h.b16 %v1322
          %v1371 = vunpack.c.h.b16 %v1323
          %v1372 = vunpack.c.h.b16 %v1324
          %v1373 = vpack.c.b16 %v1342, %v1341
          %v1374 = vpack.c.b16 %v1344, %v1343
          %v1375 = vpack.c.b16 %v1346, %v1345
          %v1376 = vpack.c.b16 %v1348, %v1347
          %v1377 = vpack.c.b16 %v1350, %v1349
          %v1378 = vpack.c.b16 %v1352, %v1351
          %v1379 = vpack.c.b16 %v1354, %v1353
          %v1380 = vpack.c.b16 %v1356, %v1355
          %v1381 = vpack.c.b16 %v1358, %v1357
          %v1382 = vpack.c.b16 %v1360, %v1359
          %v1383 = vpack.c.b16 %v1362, %v1361
          %v1384 = vpack.c.b16 %v1364, %v1363
          %v1385 = vpack.c.b16 %v1366, %v1365
          %v1386 = vpack.c.b16 %v1368, %v1367
          %v1387 = vpack.c.b16 %v1370, %v1369
          %v1388 = vpack.c.b16 %v1372, %v1371
          %1405 = vst [vmem:[%s4] sm:$0xff] %v1373
          %1406 = vst [vmem:[%s4 + $0x8] sm:$0xff] %v1374
          %1407 = vst [vmem:[%s4 + $0x10] sm:$0xff] %v1375
          %1408 = vst [vmem:[%s4 + $0x18] sm:$0xff] %v1376
          %1409 = vst [vmem:[%s4 + $0x20] sm:$0xff] %v1377
          %1410 = vst [vmem:[%s4 + $0x28] sm:$0xff] %v1378
          %1411 = vst [vmem:[%s4 + $0x30] sm:$0xff] %v1379
          %1412 = vst [vmem:[%s4 + $0x38] sm:$0xff] %v1380
          %1413 = vst [vmem:[%s4 + $0x100] sm:$0xff] %v1381
          %1414 = vst [vmem:[%s4 + $0x108] sm:$0xff] %v1382
          %1415 = vst [vmem:[%s4 + $0x110] sm:$0xff] %v1383
          %1416 = vst [vmem:[%s4 + $0x118] sm:$0xff] %v1384
          %1417 = vst [vmem:[%s4 + $0x120] sm:$0xff] %v1385
          %1418 = vst [vmem:[%s4 + $0x128] sm:$0xff] %v1386
          %1419 = vst [vmem:[%s4 + $0x130] sm:$0xff] %v1387
          %1420 = vst [vmem:[%s4 + $0x138] sm:$0xff] %v1388
          %s1421 = scalar_lea.vmem [#allocation2], 256
          %v1422 = vld [vmem:[%s1421] sm:$0xff]
          %v1423 = vld [vmem:[%s1421 + $0x8] sm:$0xff]
          %v1424 = vld [vmem:[%s1421 + $0x10] sm:$0xff]
          %v1425 = vld [vmem:[%s1421 + $0x18] sm:$0xff]
          %v1426 = vld [vmem:[%s1421 + $0x20] sm:$0xff]
          %v1427 = vld [vmem:[%s1421 + $0x28] sm:$0xff]
          %v1428 = vld [vmem:[%s1421 + $0x30] sm:$0xff]
          %v1429 = vld [vmem:[%s1421 + $0x38] sm:$0xff]
          %v1430 = vld [vmem:[%s1421 + $0x40] sm:$0xff]
          %v1431 = vld [vmem:[%s1421 + $0x48] sm:$0xff]
          %v1432 = vld [vmem:[%s1421 + $0x50] sm:$0xff]
          %v1433 = vld [vmem:[%s1421 + $0x58] sm:$0xff]
          %v1434 = vld [vmem:[%s1421 + $0x60] sm:$0xff]
          %v1435 = vld [vmem:[%s1421 + $0x68] sm:$0xff]
          %v1436 = vld [vmem:[%s1421 + $0x70] sm:$0xff]
          %v1437 = vld [vmem:[%s1421 + $0x78] sm:$0xff]
          %v1438 = vld [vmem:[%s1421 + $0x80] sm:$0xff]
          %v1439 = vld [vmem:[%s1421 + $0x88] sm:$0xff]
          %v1440 = vld [vmem:[%s1421 + $0x90] sm:$0xff]
          %v1441 = vld [vmem:[%s1421 + $0x98] sm:$0xff]
          %v1442 = vld [vmem:[%s1421 + $0xa0] sm:$0xff]
          %v1443 = vld [vmem:[%s1421 + $0xa8] sm:$0xff]
          %v1444 = vld [vmem:[%s1421 + $0xb0] sm:$0xff]
          %v1445 = vld [vmem:[%s1421 + $0xb8] sm:$0xff]
          %v1446 = vld [vmem:[%s1421 + $0xc0] sm:$0xff]
          %v1447 = vld [vmem:[%s1421 + $0xc8] sm:$0xff]
          %v1448 = vld [vmem:[%s1421 + $0xd0] sm:$0xff]
          %v1449 = vld [vmem:[%s1421 + $0xd8] sm:$0xff]
          %v1450 = vld [vmem:[%s1421 + $0xe0] sm:$0xff]
          %v1451 = vld [vmem:[%s1421 + $0xe8] sm:$0xff]
          %v1452 = vld [vmem:[%s1421 + $0xf0] sm:$0xff]
          %v1453 = vld [vmem:[%s1421 + $0xf8] sm:$0xff]
          %v1454 = vmul.f32 %v1422, %v1164
          %v1455 = vmul.f32 %v1423, %v1164
          %v1456 = vmul.f32 %v1424, %v1164
          %v1457 = vmul.f32 %v1425, %v1164
          %v1458 = vmul.f32 %v1426, %v1164
          %v1459 = vmul.f32 %v1427, %v1164
          %v1460 = vmul.f32 %v1428, %v1164
          %v1461 = vmul.f32 %v1429, %v1164
          %v1462 = vmul.f32 %v1430, %v1164
          %v1463 = vmul.f32 %v1431, %v1164
          %v1464 = vmul.f32 %v1432, %v1164
          %v1465 = vmul.f32 %v1433, %v1164
          %v1466 = vmul.f32 %v1434, %v1164
          %v1467 = vmul.f32 %v1435, %v1164
          %v1468 = vmul.f32 %v1436, %v1164
          %v1469 = vmul.f32 %v1437, %v1164
          %v1470 = vmul.f32 %v1438, %v1169
          %v1471 = vmul.f32 %v1439, %v1169
          %v1472 = vmul.f32 %v1440, %v1169
          %v1473 = vmul.f32 %v1441, %v1169
          %v1474 = vmul.f32 %v1442, %v1169
          %v1475 = vmul.f32 %v1443, %v1169
          %v1476 = vmul.f32 %v1444, %v1169
          %v1477 = vmul.f32 %v1445, %v1169
          %v1478 = vmul.f32 %v1446, %v1169
          %v1479 = vmul.f32 %v1447, %v1169
          %v1480 = vmul.f32 %v1448, %v1169
          %v1481 = vmul.f32 %v1449, %v1169
          %v1482 = vmul.f32 %v1450, %v1169
          %v1483 = vmul.f32 %v1451, %v1169
          %v1484 = vmul.f32 %v1452, %v1169
          %v1485 = vmul.f32 %v1453, %v1169
          %v1486 = vadd.f32 %v1454, %v1206
          %v1487 = vadd.f32 %v1455, %v1206
          %v1488 = vadd.f32 %v1456, %v1206
          %v1489 = vadd.f32 %v1457, %v1206
          %v1490 = vadd.f32 %v1458, %v1206
          %v1491 = vadd.f32 %v1459, %v1206
          %v1492 = vadd.f32 %v1460, %v1206
          %v1493 = vadd.f32 %v1461, %v1206
          %v1494 = vadd.f32 %v1462, %v1206
          %v1495 = vadd.f32 %v1463, %v1206
          %v1496 = vadd.f32 %v1464, %v1206
          %v1497 = vadd.f32 %v1465, %v1206
          %v1498 = vadd.f32 %v1466, %v1206
          %v1499 = vadd.f32 %v1467, %v1206
          %v1500 = vadd.f32 %v1468, %v1206
          %v1501 = vadd.f32 %v1469, %v1206
          %v1502 = vadd.f32 %v1470, %v1211
          %v1503 = vadd.f32 %v1471, %v1211
          %v1504 = vadd.f32 %v1472, %v1211
          %v1505 = vadd.f32 %v1473, %v1211
          %v1506 = vadd.f32 %v1474, %v1211
          %v1507 = vadd.f32 %v1475, %v1211
          %v1508 = vadd.f32 %v1476, %v1211
          %v1509 = vadd.f32 %v1477, %v1211
          %v1510 = vadd.f32 %v1478, %v1211
          %v1511 = vadd.f32 %v1479, %v1211
          %v1512 = vadd.f32 %v1480, %v1211
          %v1513 = vadd.f32 %v1481, %v1211
          %v1514 = vadd.f32 %v1482, %v1211
          %v1515 = vadd.f32 %v1483, %v1211
          %v1516 = vadd.f32 %v1484, %v1211
          %v1517 = vadd.f32 %v1485, %v1211
          %v1518 = vmul.f32 %v1486, 0.2
          %v1519 = vmul.f32 %v1487, 0.2
          %v1520 = vmul.f32 %v1488, 0.2
          %v1521 = vmul.f32 %v1489, 0.2
          %v1522 = vmul.f32 %v1490, 0.2
          %v1523 = vmul.f32 %v1491, 0.2
          %v1524 = vmul.f32 %v1492, 0.2
          %v1525 = vmul.f32 %v1493, 0.2
          %v1526 = vmul.f32 %v1494, 0.2
          %v1527 = vmul.f32 %v1495, 0.2
          %v1528 = vmul.f32 %v1496, 0.2
          %v1529 = vmul.f32 %v1497, 0.2
          %v1530 = vmul.f32 %v1498, 0.2
          %v1531 = vmul.f32 %v1499, 0.2
          %v1532 = vmul.f32 %v1500, 0.2
          %v1533 = vmul.f32 %v1501, 0.2
          %v1534 = vmul.f32 %v1502, 0.2
          %v1535 = vmul.f32 %v1503, 0.2
          %v1536 = vmul.f32 %v1504, 0.2
          %v1537 = vmul.f32 %v1505, 0.2
          %v1538 = vmul.f32 %v1506, 0.2
          %v1539 = vmul.f32 %v1507, 0.2
          %v1540 = vmul.f32 %v1508, 0.2
          %v1541 = vmul.f32 %v1509, 0.2
          %v1542 = vmul.f32 %v1510, 0.2
          %v1543 = vmul.f32 %v1511, 0.2
          %v1544 = vmul.f32 %v1512, 0.2
          %v1545 = vmul.f32 %v1513, 0.2
          %v1546 = vmul.f32 %v1514, 0.2
          %v1547 = vmul.f32 %v1515, 0.2
          %v1548 = vmul.f32 %v1516, 0.2
          %v1549 = vmul.f32 %v1517, 0.2
          %v1550 = vmax.f32 %v1486, %v1518
          %v1551 = vmax.f32 %v1487, %v1519
          %v1552 = vmax.f32 %v1488, %v1520
          %v1553 = vmax.f32 %v1489, %v1521
          %v1554 = vmax.f32 %v1490, %v1522
          %v1555 = vmax.f32 %v1491, %v1523
          %v1556 = vmax.f32 %v1492, %v1524
          %v1557 = vmax.f32 %v1493, %v1525
          %v1558 = vmax.f32 %v1494, %v1526
          %v1559 = vmax.f32 %v1495, %v1527
          %v1560 = vmax.f32 %v1496, %v1528
          %v1561 = vmax.f32 %v1497, %v1529
          %v1562 = vmax.f32 %v1498, %v1530
          %v1563 = vmax.f32 %v1499, %v1531
          %v1564 = vmax.f32 %v1500, %v1532
          %v1565 = vmax.f32 %v1501, %v1533
          %v1566 = vmax.f32 %v1502, %v1534
          %v1567 = vmax.f32 %v1503, %v1535
          %v1568 = vmax.f32 %v1504, %v1536
          %v1569 = vmax.f32 %v1505, %v1537
          %v1570 = vmax.f32 %v1506, %v1538
          %v1571 = vmax.f32 %v1507, %v1539
          %v1572 = vmax.f32 %v1508, %v1540
          %v1573 = vmax.f32 %v1509, %v1541
          %v1574 = vmax.f32 %v1510, %v1542
          %v1575 = vmax.f32 %v1511, %v1543
          %v1576 = vmax.f32 %v1512, %v1544
          %v1577 = vmax.f32 %v1513, %v1545
          %v1578 = vmax.f32 %v1514, %v1546
          %v1579 = vmax.f32 %v1515, %v1547
          %v1580 = vmax.f32 %v1516, %v1548
          %v1581 = vmax.f32 %v1517, %v1549
          %v1582 = vpack.c.bf16 %v1566, %v1550
          %v1583 = vpack.c.bf16 %v1567, %v1551
          %v1584 = vpack.c.bf16 %v1568, %v1552
          %v1585 = vpack.c.bf16 %v1569, %v1553
          %v1586 = vpack.c.bf16 %v1570, %v1554
          %v1587 = vpack.c.bf16 %v1571, %v1555
          %v1588 = vpack.c.bf16 %v1572, %v1556
          %v1589 = vpack.c.bf16 %v1573, %v1557
          %v1590 = vpack.c.bf16 %v1574, %v1558
          %v1591 = vpack.c.bf16 %v1575, %v1559
          %v1592 = vpack.c.bf16 %v1576, %v1560
          %v1593 = vpack.c.bf16 %v1577, %v1561
          %v1594 = vpack.c.bf16 %v1578, %v1562
          %v1595 = vpack.c.bf16 %v1579, %v1563
          %v1596 = vpack.c.bf16 %v1580, %v1564
          %v1597 = vpack.c.bf16 %v1581, %v1565
          %v1614 = vunpack.c.l.b16 %v1582
          %v1615 = vunpack.c.l.b16 %v1583
          %v1616 = vunpack.c.l.b16 %v1584
          %v1617 = vunpack.c.l.b16 %v1585
          %v1618 = vunpack.c.l.b16 %v1586
          %v1619 = vunpack.c.l.b16 %v1587
          %v1620 = vunpack.c.l.b16 %v1588
          %v1621 = vunpack.c.l.b16 %v1589
          %v1622 = vunpack.c.l.b16 %v1590
          %v1623 = vunpack.c.l.b16 %v1591
          %v1624 = vunpack.c.l.b16 %v1592
          %v1625 = vunpack.c.l.b16 %v1593
          %v1626 = vunpack.c.l.b16 %v1594
          %v1627 = vunpack.c.l.b16 %v1595
          %v1628 = vunpack.c.l.b16 %v1596
          %v1629 = vunpack.c.l.b16 %v1597
          %v1630 = vunpack.c.h.b16 %v1582
          %v1631 = vunpack.c.h.b16 %v1583
          %v1632 = vunpack.c.h.b16 %v1584
          %v1633 = vunpack.c.h.b16 %v1585
          %v1634 = vunpack.c.h.b16 %v1586
          %v1635 = vunpack.c.h.b16 %v1587
          %v1636 = vunpack.c.h.b16 %v1588
          %v1637 = vunpack.c.h.b16 %v1589
          %v1638 = vunpack.c.h.b16 %v1590
          %v1639 = vunpack.c.h.b16 %v1591
          %v1640 = vunpack.c.h.b16 %v1592
          %v1641 = vunpack.c.h.b16 %v1593
          %v1642 = vunpack.c.h.b16 %v1594
          %v1643 = vunpack.c.h.b16 %v1595
          %v1644 = vunpack.c.h.b16 %v1596
          %v1645 = vunpack.c.h.b16 %v1597
          %v1646 = vpack.c.b16 %v1615, %v1614
          %v1647 = vpack.c.b16 %v1617, %v1616
          %v1648 = vpack.c.b16 %v1619, %v1618
          %v1649 = vpack.c.b16 %v1621, %v1620
          %v1650 = vpack.c.b16 %v1623, %v1622
          %v1651 = vpack.c.b16 %v1625, %v1624
          %v1652 = vpack.c.b16 %v1627, %v1626
          %v1653 = vpack.c.b16 %v1629, %v1628
          %v1654 = vpack.c.b16 %v1631, %v1630
          %v1655 = vpack.c.b16 %v1633, %v1632
          %v1656 = vpack.c.b16 %v1635, %v1634
          %v1657 = vpack.c.b16 %v1637, %v1636
          %v1658 = vpack.c.b16 %v1639, %v1638
          %v1659 = vpack.c.b16 %v1641, %v1640
          %v1660 = vpack.c.b16 %v1643, %v1642
          %v1661 = vpack.c.b16 %v1645, %v1644
          %1678 = vst [vmem:[%s4 + $0x40] sm:$0xff] %v1646
          %1679 = vst [vmem:[%s4 + $0x48] sm:$0xff] %v1647
          %1680 = vst [vmem:[%s4 + $0x50] sm:$0xff] %v1648
          %1681 = vst [vmem:[%s4 + $0x58] sm:$0xff] %v1649
          %1682 = vst [vmem:[%s4 + $0x60] sm:$0xff] %v1650
          %1683 = vst [vmem:[%s4 + $0x68] sm:$0xff] %v1651
          %1684 = vst [vmem:[%s4 + $0x70] sm:$0xff] %v1652
          %1685 = vst [vmem:[%s4 + $0x78] sm:$0xff] %v1653
          %1686 = vst [vmem:[%s4 + $0x140] sm:$0xff] %v1654
          %1687 = vst [vmem:[%s4 + $0x148] sm:$0xff] %v1655
          %1688 = vst [vmem:[%s4 + $0x150] sm:$0xff] %v1656
          %1689 = vst [vmem:[%s4 + $0x158] sm:$0xff] %v1657
          %1690 = vst [vmem:[%s4 + $0x160] sm:$0xff] %v1658
          %1691 = vst [vmem:[%s4 + $0x168] sm:$0xff] %v1659
          %1692 = vst [vmem:[%s4 + $0x170] sm:$0xff] %v1660
          %1693 = vst [vmem:[%s4 + $0x178] sm:$0xff] %v1661
          %s1694 = scalar_lea.vmem [#allocation2], 512
          %v1695 = vld [vmem:[%s1694] sm:$0xff]
          %v1696 = vld [vmem:[%s1694 + $0x8] sm:$0xff]
          %v1697 = vld [vmem:[%s1694 + $0x10] sm:$0xff]
          %v1698 = vld [vmem:[%s1694 + $0x18] sm:$0xff]
          %v1699 = vld [vmem:[%s1694 + $0x20] sm:$0xff]
          %v1700 = vld [vmem:[%s1694 + $0x28] sm:$0xff]
          %v1701 = vld [vmem:[%s1694 + $0x30] sm:$0xff]
          %v1702 = vld [vmem:[%s1694 + $0x38] sm:$0xff]
          %v1703 = vld [vmem:[%s1694 + $0x40] sm:$0xff]
          %v1704 = vld [vmem:[%s1694 + $0x48] sm:$0xff]
          %v1705 = vld [vmem:[%s1694 + $0x50] sm:$0xff]
          %v1706 = vld [vmem:[%s1694 + $0x58] sm:$0xff]
          %v1707 = vld [vmem:[%s1694 + $0x60] sm:$0xff]
          %v1708 = vld [vmem:[%s1694 + $0x68] sm:$0xff]
          %v1709 = vld [vmem:[%s1694 + $0x70] sm:$0xff]
          %v1710 = vld [vmem:[%s1694 + $0x78] sm:$0xff]
          %v1711 = vld [vmem:[%s1694 + $0x80] sm:$0xff]
          %v1712 = vld [vmem:[%s1694 + $0x88] sm:$0xff]
          %v1713 = vld [vmem:[%s1694 + $0x90] sm:$0xff]
          %v1714 = vld [vmem:[%s1694 + $0x98] sm:$0xff]
          %v1715 = vld [vmem:[%s1694 + $0xa0] sm:$0xff]
          %v1716 = vld [vmem:[%s1694 + $0xa8] sm:$0xff]
          %v1717 = vld [vmem:[%s1694 + $0xb0] sm:$0xff]
          %v1718 = vld [vmem:[%s1694 + $0xb8] sm:$0xff]
          %v1719 = vld [vmem:[%s1694 + $0xc0] sm:$0xff]
          %v1720 = vld [vmem:[%s1694 + $0xc8] sm:$0xff]
          %v1721 = vld [vmem:[%s1694 + $0xd0] sm:$0xff]
          %v1722 = vld [vmem:[%s1694 + $0xd8] sm:$0xff]
          %v1723 = vld [vmem:[%s1694 + $0xe0] sm:$0xff]
          %v1724 = vld [vmem:[%s1694 + $0xe8] sm:$0xff]
          %v1725 = vld [vmem:[%s1694 + $0xf0] sm:$0xff]
          %v1726 = vld [vmem:[%s1694 + $0xf8] sm:$0xff]
          %v1727 = vmul.f32 %v1695, %v1164
          %v1728 = vmul.f32 %v1696, %v1164
          %v1729 = vmul.f32 %v1697, %v1164
          %v1730 = vmul.f32 %v1698, %v1164
          %v1731 = vmul.f32 %v1699, %v1164
          %v1732 = vmul.f32 %v1700, %v1164
          %v1733 = vmul.f32 %v1701, %v1164
          %v1734 = vmul.f32 %v1702, %v1164
          %v1735 = vmul.f32 %v1703, %v1164
          %v1736 = vmul.f32 %v1704, %v1164
          %v1737 = vmul.f32 %v1705, %v1164
          %v1738 = vmul.f32 %v1706, %v1164
          %v1739 = vmul.f32 %v1707, %v1164
          %v1740 = vmul.f32 %v1708, %v1164
          %v1741 = vmul.f32 %v1709, %v1164
          %v1742 = vmul.f32 %v1710, %v1164
          %v1743 = vmul.f32 %v1711, %v1169
          %v1744 = vmul.f32 %v1712, %v1169
          %v1745 = vmul.f32 %v1713, %v1169
          %v1746 = vmul.f32 %v1714, %v1169
          %v1747 = vmul.f32 %v1715, %v1169
          %v1748 = vmul.f32 %v1716, %v1169
          %v1749 = vmul.f32 %v1717, %v1169
          %v1750 = vmul.f32 %v1718, %v1169
          %v1751 = vmul.f32 %v1719, %v1169
          %v1752 = vmul.f32 %v1720, %v1169
          %v1753 = vmul.f32 %v1721, %v1169
          %v1754 = vmul.f32 %v1722, %v1169
          %v1755 = vmul.f32 %v1723, %v1169
          %v1756 = vmul.f32 %v1724, %v1169
          %v1757 = vmul.f32 %v1725, %v1169
          %v1758 = vmul.f32 %v1726, %v1169
          %v1759 = vadd.f32 %v1727, %v1206
          %v1760 = vadd.f32 %v1728, %v1206
          %v1761 = vadd.f32 %v1729, %v1206
          %v1762 = vadd.f32 %v1730, %v1206
          %v1763 = vadd.f32 %v1731, %v1206
          %v1764 = vadd.f32 %v1732, %v1206
          %v1765 = vadd.f32 %v1733, %v1206
          %v1766 = vadd.f32 %v1734, %v1206
          %v1767 = vadd.f32 %v1735, %v1206
          %v1768 = vadd.f32 %v1736, %v1206
          %v1769 = vadd.f32 %v1737, %v1206
          %v1770 = vadd.f32 %v1738, %v1206
          %v1771 = vadd.f32 %v1739, %v1206
          %v1772 = vadd.f32 %v1740, %v1206
          %v1773 = vadd.f32 %v1741, %v1206
          %v1774 = vadd.f32 %v1742, %v1206
          %v1775 = vadd.f32 %v1743, %v1211
          %v1776 = vadd.f32 %v1744, %v1211
          %v1777 = vadd.f32 %v1745, %v1211
          %v1778 = vadd.f32 %v1746, %v1211
          %v1779 = vadd.f32 %v1747, %v1211
          %v1780 = vadd.f32 %v1748, %v1211
          %v1781 = vadd.f32 %v1749, %v1211
          %v1782 = vadd.f32 %v1750, %v1211
          %v1783 = vadd.f32 %v1751, %v1211
          %v1784 = vadd.f32 %v1752, %v1211
          %v1785 = vadd.f32 %v1753, %v1211
          %v1786 = vadd.f32 %v1754, %v1211
          %v1787 = vadd.f32 %v1755, %v1211
          %v1788 = vadd.f32 %v1756, %v1211
          %v1789 = vadd.f32 %v1757, %v1211
          %v1790 = vadd.f32 %v1758, %v1211
          %v1791 = vmul.f32 %v1759, 0.2
          %v1792 = vmul.f32 %v1760, 0.2
          %v1793 = vmul.f32 %v1761, 0.2
          %v1794 = vmul.f32 %v1762, 0.2
          %v1795 = vmul.f32 %v1763, 0.2
          %v1796 = vmul.f32 %v1764, 0.2
          %v1797 = vmul.f32 %v1765, 0.2
          %v1798 = vmul.f32 %v1766, 0.2
          %v1799 = vmul.f32 %v1767, 0.2
          %v1800 = vmul.f32 %v1768, 0.2
          %v1801 = vmul.f32 %v1769, 0.2
          %v1802 = vmul.f32 %v1770, 0.2
          %v1803 = vmul.f32 %v1771, 0.2
          %v1804 = vmul.f32 %v1772, 0.2
          %v1805 = vmul.f32 %v1773, 0.2
          %v1806 = vmul.f32 %v1774, 0.2
          %v1807 = vmul.f32 %v1775, 0.2
          %v1808 = vmul.f32 %v1776, 0.2
          %v1809 = vmul.f32 %v1777, 0.2
          %v1810 = vmul.f32 %v1778, 0.2
          %v1811 = vmul.f32 %v1779, 0.2
          %v1812 = vmul.f32 %v1780, 0.2
          %v1813 = vmul.f32 %v1781, 0.2
          %v1814 = vmul.f32 %v1782, 0.2
          %v1815 = vmul.f32 %v1783, 0.2
          %v1816 = vmul.f32 %v1784, 0.2
          %v1817 = vmul.f32 %v1785, 0.2
          %v1818 = vmul.f32 %v1786, 0.2
          %v1819 = vmul.f32 %v1787, 0.2
          %v1820 = vmul.f32 %v1788, 0.2
          %v1821 = vmul.f32 %v1789, 0.2
          %v1822 = vmul.f32 %v1790, 0.2
          %v1823 = vmax.f32 %v1759, %v1791
          %v1824 = vmax.f32 %v1760, %v1792
          %v1825 = vmax.f32 %v1761, %v1793
          %v1826 = vmax.f32 %v1762, %v1794
          %v1827 = vmax.f32 %v1763, %v1795
          %v1828 = vmax.f32 %v1764, %v1796
          %v1829 = vmax.f32 %v1765, %v1797
          %v1830 = vmax.f32 %v1766, %v1798
          %v1831 = vmax.f32 %v1767, %v1799
          %v1832 = vmax.f32 %v1768, %v1800
          %v1833 = vmax.f32 %v1769, %v1801
          %v1834 = vmax.f32 %v1770, %v1802
          %v1835 = vmax.f32 %v1771, %v1803
          %v1836 = vmax.f32 %v1772, %v1804
          %v1837 = vmax.f32 %v1773, %v1805
          %v1838 = vmax.f32 %v1774, %v1806
          %v1839 = vmax.f32 %v1775, %v1807
          %v1840 = vmax.f32 %v1776, %v1808
          %v1841 = vmax.f32 %v1777, %v1809
          %v1842 = vmax.f32 %v1778, %v1810
          %v1843 = vmax.f32 %v1779, %v1811
          %v1844 = vmax.f32 %v1780, %v1812
          %v1845 = vmax.f32 %v1781, %v1813
          %v1846 = vmax.f32 %v1782, %v1814
          %v1847 = vmax.f32 %v1783, %v1815
          %v1848 = vmax.f32 %v1784, %v1816
          %v1849 = vmax.f32 %v1785, %v1817
          %v1850 = vmax.f32 %v1786, %v1818
          %v1851 = vmax.f32 %v1787, %v1819
          %v1852 = vmax.f32 %v1788, %v1820
          %v1853 = vmax.f32 %v1789, %v1821
          %v1854 = vmax.f32 %v1790, %v1822
          %v1855 = vpack.c.bf16 %v1839, %v1823
          %v1856 = vpack.c.bf16 %v1840, %v1824
          %v1857 = vpack.c.bf16 %v1841, %v1825
          %v1858 = vpack.c.bf16 %v1842, %v1826
          %v1859 = vpack.c.bf16 %v1843, %v1827
          %v1860 = vpack.c.bf16 %v1844, %v1828
          %v1861 = vpack.c.bf16 %v1845, %v1829
          %v1862 = vpack.c.bf16 %v1846, %v1830
          %v1863 = vpack.c.bf16 %v1847, %v1831
          %v1864 = vpack.c.bf16 %v1848, %v1832
          %v1865 = vpack.c.bf16 %v1849, %v1833
          %v1866 = vpack.c.bf16 %v1850, %v1834
          %v1867 = vpack.c.bf16 %v1851, %v1835
          %v1868 = vpack.c.bf16 %v1852, %v1836
          %v1869 = vpack.c.bf16 %v1853, %v1837
          %v1870 = vpack.c.bf16 %v1854, %v1838
          %v1887 = vunpack.c.l.b16 %v1855
          %v1888 = vunpack.c.l.b16 %v1856
          %v1889 = vunpack.c.l.b16 %v1857
          %v1890 = vunpack.c.l.b16 %v1858
          %v1891 = vunpack.c.l.b16 %v1859
          %v1892 = vunpack.c.l.b16 %v1860
          %v1893 = vunpack.c.l.b16 %v1861
          %v1894 = vunpack.c.l.b16 %v1862
          %v1895 = vunpack.c.l.b16 %v1863
          %v1896 = vunpack.c.l.b16 %v1864
          %v1897 = vunpack.c.l.b16 %v1865
          %v1898 = vunpack.c.l.b16 %v1866
          %v1899 = vunpack.c.l.b16 %v1867
          %v1900 = vunpack.c.l.b16 %v1868
          %v1901 = vunpack.c.l.b16 %v1869
          %v1902 = vunpack.c.l.b16 %v1870
          %v1903 = vunpack.c.h.b16 %v1855
          %v1904 = vunpack.c.h.b16 %v1856
          %v1905 = vunpack.c.h.b16 %v1857
          %v1906 = vunpack.c.h.b16 %v1858
          %v1907 = vunpack.c.h.b16 %v1859
          %v1908 = vunpack.c.h.b16 %v1860
          %v1909 = vunpack.c.h.b16 %v1861
          %v1910 = vunpack.c.h.b16 %v1862
          %v1911 = vunpack.c.h.b16 %v1863
          %v1912 = vunpack.c.h.b16 %v1864
          %v1913 = vunpack.c.h.b16 %v1865
          %v1914 = vunpack.c.h.b16 %v1866
          %v1915 = vunpack.c.h.b16 %v1867
          %v1916 = vunpack.c.h.b16 %v1868
          %v1917 = vunpack.c.h.b16 %v1869
          %v1918 = vunpack.c.h.b16 %v1870
          %v1919 = vpack.c.b16 %v1888, %v1887
          %v1920 = vpack.c.b16 %v1890, %v1889
          %v1921 = vpack.c.b16 %v1892, %v1891
          %v1922 = vpack.c.b16 %v1894, %v1893
          %v1923 = vpack.c.b16 %v1896, %v1895
          %v1924 = vpack.c.b16 %v1898, %v1897
          %v1925 = vpack.c.b16 %v1900, %v1899
          %v1926 = vpack.c.b16 %v1902, %v1901
          %v1927 = vpack.c.b16 %v1904, %v1903
          %v1928 = vpack.c.b16 %v1906, %v1905
          %v1929 = vpack.c.b16 %v1908, %v1907
          %v1930 = vpack.c.b16 %v1910, %v1909
          %v1931 = vpack.c.b16 %v1912, %v1911
          %v1932 = vpack.c.b16 %v1914, %v1913
          %v1933 = vpack.c.b16 %v1916, %v1915
          %v1934 = vpack.c.b16 %v1918, %v1917
          %1951 = vst [vmem:[%s4 + $0x80] sm:$0xff] %v1919
          %1952 = vst [vmem:[%s4 + $0x88] sm:$0xff] %v1920
          %1953 = vst [vmem:[%s4 + $0x90] sm:$0xff] %v1921
          %1954 = vst [vmem:[%s4 + $0x98] sm:$0xff] %v1922
          %1955 = vst [vmem:[%s4 + $0xa0] sm:$0xff] %v1923
          %1956 = vst [vmem:[%s4 + $0xa8] sm:$0xff] %v1924
          %1957 = vst [vmem:[%s4 + $0xb0] sm:$0xff] %v1925
          %1958 = vst [vmem:[%s4 + $0xb8] sm:$0xff] %v1926
          %1959 = vst [vmem:[%s4 + $0x180] sm:$0xff] %v1927
          %1960 = vst [vmem:[%s4 + $0x188] sm:$0xff] %v1928
          %1961 = vst [vmem:[%s4 + $0x190] sm:$0xff] %v1929
          %1962 = vst [vmem:[%s4 + $0x198] sm:$0xff] %v1930
          %1963 = vst [vmem:[%s4 + $0x1a0] sm:$0xff] %v1931
          %1964 = vst [vmem:[%s4 + $0x1a8] sm:$0xff] %v1932
          %1965 = vst [vmem:[%s4 + $0x1b0] sm:$0xff] %v1933
          %1966 = vst [vmem:[%s4 + $0x1b8] sm:$0xff] %v1934
          %s1967 = scalar_lea.vmem [#allocation2], 768
          %v1968 = vld [vmem:[%s1967] sm:$0xff]
          %v1969 = vld [vmem:[%s1967 + $0x8] sm:$0xff]
          %v1970 = vld [vmem:[%s1967 + $0x10] sm:$0xff]
          %v1971 = vld [vmem:[%s1967 + $0x18] sm:$0xff]
          %v1972 = vld [vmem:[%s1967 + $0x20] sm:$0xff]
          %v1973 = vld [vmem:[%s1967 + $0x28] sm:$0xff]
          %v1974 = vld [vmem:[%s1967 + $0x30] sm:$0xff]
          %v1975 = vld [vmem:[%s1967 + $0x38] sm:$0xff]
          %v1976 = vld [vmem:[%s1967 + $0x40] sm:$0xff]
          %v1977 = vld [vmem:[%s1967 + $0x48] sm:$0xff]
          %v1978 = vld [vmem:[%s1967 + $0x50] sm:$0xff]
          %v1979 = vld [vmem:[%s1967 + $0x58] sm:$0xff]
          %v1980 = vld [vmem:[%s1967 + $0x60] sm:$0xff]
          %v1981 = vld [vmem:[%s1967 + $0x68] sm:$0xff]
          %v1982 = vld [vmem:[%s1967 + $0x70] sm:$0xff]
          %v1983 = vld [vmem:[%s1967 + $0x78] sm:$0xff]
          %v1984 = vld [vmem:[%s1967 + $0x80] sm:$0xff]
          %v1985 = vld [vmem:[%s1967 + $0x88] sm:$0xff]
          %v1986 = vld [vmem:[%s1967 + $0x90] sm:$0xff]
          %v1987 = vld [vmem:[%s1967 + $0x98] sm:$0xff]
          %v1988 = vld [vmem:[%s1967 + $0xa0] sm:$0xff]
          %v1989 = vld [vmem:[%s1967 + $0xa8] sm:$0xff]
          %v1990 = vld [vmem:[%s1967 + $0xb0] sm:$0xff]
          %v1991 = vld [vmem:[%s1967 + $0xb8] sm:$0xff]
          %v1992 = vld [vmem:[%s1967 + $0xc0] sm:$0xff]
          %v1993 = vld [vmem:[%s1967 + $0xc8] sm:$0xff]
          %v1994 = vld [vmem:[%s1967 + $0xd0] sm:$0xff]
          %v1995 = vld [vmem:[%s1967 + $0xd8] sm:$0xff]
          %v1996 = vld [vmem:[%s1967 + $0xe0] sm:$0xff]
          %v1997 = vld [vmem:[%s1967 + $0xe8] sm:$0xff]
          %v1998 = vld [vmem:[%s1967 + $0xf0] sm:$0xff]
          %v1999 = vld [vmem:[%s1967 + $0xf8] sm:$0xff]
          %v2000 = vmul.f32 %v1968, %v1164
          %v2001 = vmul.f32 %v1969, %v1164
          %v2002 = vmul.f32 %v1970, %v1164
          %v2003 = vmul.f32 %v1971, %v1164
          %v2004 = vmul.f32 %v1972, %v1164
          %v2005 = vmul.f32 %v1973, %v1164
          %v2006 = vmul.f32 %v1974, %v1164
          %v2007 = vmul.f32 %v1975, %v1164
          %v2008 = vmul.f32 %v1976, %v1164
          %v2009 = vmul.f32 %v1977, %v1164
          %v2010 = vmul.f32 %v1978, %v1164
          %v2011 = vmul.f32 %v1979, %v1164
          %v2012 = vmul.f32 %v1980, %v1164
          %v2013 = vmul.f32 %v1981, %v1164
          %v2014 = vmul.f32 %v1982, %v1164
          %v2015 = vmul.f32 %v1983, %v1164
          %v2016 = vmul.f32 %v1984, %v1169
          %v2017 = vmul.f32 %v1985, %v1169
          %v2018 = vmul.f32 %v1986, %v1169
          %v2019 = vmul.f32 %v1987, %v1169
          %v2020 = vmul.f32 %v1988, %v1169
          %v2021 = vmul.f32 %v1989, %v1169
          %v2022 = vmul.f32 %v1990, %v1169
          %v2023 = vmul.f32 %v1991, %v1169
          %v2024 = vmul.f32 %v1992, %v1169
          %v2025 = vmul.f32 %v1993, %v1169
          %v2026 = vmul.f32 %v1994, %v1169
          %v2027 = vmul.f32 %v1995, %v1169
          %v2028 = vmul.f32 %v1996, %v1169
          %v2029 = vmul.f32 %v1997, %v1169
          %v2030 = vmul.f32 %v1998, %v1169
          %v2031 = vmul.f32 %v1999, %v1169
          %v2032 = vadd.f32 %v2000, %v1206
          %v2033 = vadd.f32 %v2001, %v1206
          %v2034 = vadd.f32 %v2002, %v1206
          %v2035 = vadd.f32 %v2003, %v1206
          %v2036 = vadd.f32 %v2004, %v1206
          %v2037 = vadd.f32 %v2005, %v1206
          %v2038 = vadd.f32 %v2006, %v1206
          %v2039 = vadd.f32 %v2007, %v1206
          %v2040 = vadd.f32 %v2008, %v1206
          %v2041 = vadd.f32 %v2009, %v1206
          %v2042 = vadd.f32 %v2010, %v1206
          %v2043 = vadd.f32 %v2011, %v1206
          %v2044 = vadd.f32 %v2012, %v1206
          %v2045 = vadd.f32 %v2013, %v1206
          %v2046 = vadd.f32 %v2014, %v1206
          %v2047 = vadd.f32 %v2015, %v1206
          %v2048 = vadd.f32 %v2016, %v1211
          %v2049 = vadd.f32 %v2017, %v1211
          %v2050 = vadd.f32 %v2018, %v1211
          %v2051 = vadd.f32 %v2019, %v1211
          %v2052 = vadd.f32 %v2020, %v1211
          %v2053 = vadd.f32 %v2021, %v1211
          %v2054 = vadd.f32 %v2022, %v1211
          %v2055 = vadd.f32 %v2023, %v1211
          %v2056 = vadd.f32 %v2024, %v1211
          %v2057 = vadd.f32 %v2025, %v1211
          %v2058 = vadd.f32 %v2026, %v1211
          %v2059 = vadd.f32 %v2027, %v1211
          %v2060 = vadd.f32 %v2028, %v1211
          %v2061 = vadd.f32 %v2029, %v1211
          %v2062 = vadd.f32 %v2030, %v1211
          %v2063 = vadd.f32 %v2031, %v1211
          %v2064 = vmul.f32 %v2032, 0.2
          %v2065 = vmul.f32 %v2033, 0.2
          %v2066 = vmul.f32 %v2034, 0.2
          %v2067 = vmul.f32 %v2035, 0.2
          %v2068 = vmul.f32 %v2036, 0.2
          %v2069 = vmul.f32 %v2037, 0.2
          %v2070 = vmul.f32 %v2038, 0.2
          %v2071 = vmul.f32 %v2039, 0.2
          %v2072 = vmul.f32 %v2040, 0.2
          %v2073 = vmul.f32 %v2041, 0.2
          %v2074 = vmul.f32 %v2042, 0.2
          %v2075 = vmul.f32 %v2043, 0.2
          %v2076 = vmul.f32 %v2044, 0.2
          %v2077 = vmul.f32 %v2045, 0.2
          %v2078 = vmul.f32 %v2046, 0.2
          %v2079 = vmul.f32 %v2047, 0.2
          %v2080 = vmul.f32 %v2048, 0.2
          %v2081 = vmul.f32 %v2049, 0.2
          %v2082 = vmul.f32 %v2050, 0.2
          %v2083 = vmul.f32 %v2051, 0.2
          %v2084 = vmul.f32 %v2052, 0.2
          %v2085 = vmul.f32 %v2053, 0.2
          %v2086 = vmul.f32 %v2054, 0.2
          %v2087 = vmul.f32 %v2055, 0.2
          %v2088 = vmul.f32 %v2056, 0.2
          %v2089 = vmul.f32 %v2057, 0.2
          %v2090 = vmul.f32 %v2058, 0.2
          %v2091 = vmul.f32 %v2059, 0.2
          %v2092 = vmul.f32 %v2060, 0.2
          %v2093 = vmul.f32 %v2061, 0.2
          %v2094 = vmul.f32 %v2062, 0.2
          %v2095 = vmul.f32 %v2063, 0.2
          %v2096 = vmax.f32 %v2032, %v2064
          %v2097 = vmax.f32 %v2033, %v2065
          %v2098 = vmax.f32 %v2034, %v2066
          %v2099 = vmax.f32 %v2035, %v2067
          %v2100 = vmax.f32 %v2036, %v2068
          %v2101 = vmax.f32 %v2037, %v2069
          %v2102 = vmax.f32 %v2038, %v2070
          %v2103 = vmax.f32 %v2039, %v2071
          %v2104 = vmax.f32 %v2040, %v2072
          %v2105 = vmax.f32 %v2041, %v2073
          %v2106 = vmax.f32 %v2042, %v2074
          %v2107 = vmax.f32 %v2043, %v2075
          %v2108 = vmax.f32 %v2044, %v2076
          %v2109 = vmax.f32 %v2045, %v2077
          %v2110 = vmax.f32 %v2046, %v2078
          %v2111 = vmax.f32 %v2047, %v2079
          %v2112 = vmax.f32 %v2048, %v2080
          %v2113 = vmax.f32 %v2049, %v2081
          %v2114 = vmax.f32 %v2050, %v2082
          %v2115 = vmax.f32 %v2051, %v2083
          %v2116 = vmax.f32 %v2052, %v2084
          %v2117 = vmax.f32 %v2053, %v2085
          %v2118 = vmax.f32 %v2054, %v2086
          %v2119 = vmax.f32 %v2055, %v2087
          %v2120 = vmax.f32 %v2056, %v2088
          %v2121 = vmax.f32 %v2057, %v2089
          %v2122 = vmax.f32 %v2058, %v2090
          %v2123 = vmax.f32 %v2059, %v2091
          %v2124 = vmax.f32 %v2060, %v2092
          %v2125 = vmax.f32 %v2061, %v2093
          %v2126 = vmax.f32 %v2062, %v2094
          %v2127 = vmax.f32 %v2063, %v2095
          %v2128 = vpack.c.bf16 %v2112, %v2096
          %v2129 = vpack.c.bf16 %v2113, %v2097
          %v2130 = vpack.c.bf16 %v2114, %v2098
          %v2131 = vpack.c.bf16 %v2115, %v2099
          %v2132 = vpack.c.bf16 %v2116, %v2100
          %v2133 = vpack.c.bf16 %v2117, %v2101
          %v2134 = vpack.c.bf16 %v2118, %v2102
          %v2135 = vpack.c.bf16 %v2119, %v2103
          %v2136 = vpack.c.bf16 %v2120, %v2104
          %v2137 = vpack.c.bf16 %v2121, %v2105
          %v2138 = vpack.c.bf16 %v2122, %v2106
          %v2139 = vpack.c.bf16 %v2123, %v2107
          %v2140 = vpack.c.bf16 %v2124, %v2108
          %v2141 = vpack.c.bf16 %v2125, %v2109
          %v2142 = vpack.c.bf16 %v2126, %v2110
          %v2143 = vpack.c.bf16 %v2127, %v2111
          %v2160 = vunpack.c.l.b16 %v2128
          %v2161 = vunpack.c.l.b16 %v2129
          %v2162 = vunpack.c.l.b16 %v2130
          %v2163 = vunpack.c.l.b16 %v2131
          %v2164 = vunpack.c.l.b16 %v2132
          %v2165 = vunpack.c.l.b16 %v2133
          %v2166 = vunpack.c.l.b16 %v2134
          %v2167 = vunpack.c.l.b16 %v2135
          %v2168 = vunpack.c.l.b16 %v2136
          %v2169 = vunpack.c.l.b16 %v2137
          %v2170 = vunpack.c.l.b16 %v2138
          %v2171 = vunpack.c.l.b16 %v2139
          %v2172 = vunpack.c.l.b16 %v2140
          %v2173 = vunpack.c.l.b16 %v2141
          %v2174 = vunpack.c.l.b16 %v2142
          %v2175 = vunpack.c.l.b16 %v2143
          %v2176 = vunpack.c.h.b16 %v2128
          %v2177 = vunpack.c.h.b16 %v2129
          %v2178 = vunpack.c.h.b16 %v2130
          %v2179 = vunpack.c.h.b16 %v2131
          %v2180 = vunpack.c.h.b16 %v2132
          %v2181 = vunpack.c.h.b16 %v2133
          %v2182 = vunpack.c.h.b16 %v2134
          %v2183 = vunpack.c.h.b16 %v2135
          %v2184 = vunpack.c.h.b16 %v2136
          %v2185 = vunpack.c.h.b16 %v2137
          %v2186 = vunpack.c.h.b16 %v2138
          %v2187 = vunpack.c.h.b16 %v2139
          %v2188 = vunpack.c.h.b16 %v2140
          %v2189 = vunpack.c.h.b16 %v2141
          %v2190 = vunpack.c.h.b16 %v2142
          %v2191 = vunpack.c.h.b16 %v2143
          %v2192 = vpack.c.b16 %v2161, %v2160
          %v2193 = vpack.c.b16 %v2163, %v2162
          %v2194 = vpack.c.b16 %v2165, %v2164
          %v2195 = vpack.c.b16 %v2167, %v2166
          %v2196 = vpack.c.b16 %v2169, %v2168
          %v2197 = vpack.c.b16 %v2171, %v2170
          %v2198 = vpack.c.b16 %v2173, %v2172
          %v2199 = vpack.c.b16 %v2175, %v2174
          %v2200 = vpack.c.b16 %v2177, %v2176
          %v2201 = vpack.c.b16 %v2179, %v2178
          %v2202 = vpack.c.b16 %v2181, %v2180
          %v2203 = vpack.c.b16 %v2183, %v2182
          %v2204 = vpack.c.b16 %v2185, %v2184
          %v2205 = vpack.c.b16 %v2187, %v2186
          %v2206 = vpack.c.b16 %v2189, %v2188
          %v2207 = vpack.c.b16 %v2191, %v2190
          %2224 = vst [vmem:[%s4 + $0xc0] sm:$0xff] %v2192
          %2225 = vst [vmem:[%s4 + $0xc8] sm:$0xff] %v2193
          %2226 = vst [vmem:[%s4 + $0xd0] sm:$0xff] %v2194
          %2227 = vst [vmem:[%s4 + $0xd8] sm:$0xff] %v2195
          %2228 = vst [vmem:[%s4 + $0xe0] sm:$0xff] %v2196
          %2229 = vst [vmem:[%s4 + $0xe8] sm:$0xff] %v2197
          %2230 = vst [vmem:[%s4 + $0xf0] sm:$0xff] %v2198
          %2231 = vst [vmem:[%s4 + $0xf8] sm:$0xff] %v2199
          %2232 = vst [vmem:[%s4 + $0x1c0] sm:$0xff] %v2200
          %2233 = vst [vmem:[%s4 + $0x1c8] sm:$0xff] %v2201
          %2234 = vst [vmem:[%s4 + $0x1d0] sm:$0xff] %v2202
          %2235 = vst [vmem:[%s4 + $0x1d8] sm:$0xff] %v2203
          %2236 = vst [vmem:[%s4 + $0x1e0] sm:$0xff] %v2204
          %2237 = vst [vmem:[%s4 + $0x1e8] sm:$0xff] %v2205
          %2238 = vst [vmem:[%s4 + $0x1f0] sm:$0xff] %v2206
          %2239 = vst [vmem:[%s4 + $0x1f8] sm:$0xff] %v2207
        $region67: #{encoder_forward_pallas.6} parent=54 // pred_fallthru
          _
        // Predicated region
        $region68: #{encoder_forward_pallas.6} parent=54 // pred_check
          %p2240 = pneg %p117
        $region69: #{encoder_forward_pallas.6} parent=54 // pred_check_branch
          %2242 = sbr.rel (%p2240) target = $region71
        $region70: #{encoder_forward_pallas.6} parent=54 // pred_region
          _
        $region71: #{encoder_forward_pallas.6} parent=54 // pred_fallthru
          _
        // Predicated region
        $region72: #{encoder_forward_pallas.6} parent=54 // pred_check
          %p2243 = pneg %p117
        $region73: #{encoder_forward_pallas.6} parent=54 // pred_check_branch
          %2245 = sbr.rel (%p2243) target = $region75
        $region74: #{encoder_forward_pallas.6} parent=54 // pred_region
          _
        $region75: #{encoder_forward_pallas.6} parent=54 // pred_fallthru
          _
      $region55: #{encoder_forward_pallas.6} parent=5 // pred_fallthru
        _
      %p2246 = scmp.le.s32.totalorder 2, %s10
      // Predicated region
      $region76: #{encoder_forward_pallas.6} parent=5 // pred_check
        %p2247 = pneg %p2246
      $region77: #{encoder_forward_pallas.6} parent=5 // pred_check_branch
        %2249 = sbr.rel (%p2247) target = $region79
      $region78: #{encoder_forward_pallas.6} parent=5 // pred_region
        %s2250 = ssub.s32 %s10, 2
      $region79: #{encoder_forward_pallas.6} parent=5 // pred_fallthru
        _
    $region6: #{encoder_forward_pallas.6} parent=1 // loop_footer
      %s14 = sadd.s32 1, %s10
    $region7: #{encoder_forward_pallas.6} parent=1 // loop_footer_branch
      %9 = sbr.rel target = $region3
    $region8: #{encoder_forward_pallas.6} parent=1 // loop_exit
      _

// kernel: encoder_forward_pallas.7
$region0: #{encoder_forward_pallas.7}
  #allocation0 [shape = 'u32[]', space=smem, size = 0x4, offset = 0x4, fixed_abs, tag = 'smem constant byte address 0x4 - core index']
  #allocation1 [shape = 'u32[144,128]{1,0:T(1,128)}', space=vmem, size = 0x12000, scoped, tag = 'internal scratch']
  %s0 = inlined_call_operand.vmem [shape: bf16[256,2048], index: 0, kind: input, shape index: {}]
  %s1 = inlined_call_operand.vmem [shape: bf16[32,256], index: 1, kind: input, shape index: {}]
  %s2 = inlined_call_operand.vmem [shape: f32[32,1], index: 2, kind: input, shape index: {}]
  %s3 = inlined_call_operand.vmem [shape: f32[32,1], index: 3, kind: input, shape index: {}]
  %s4 = inlined_call_operand.vmem [shape: bf16[32,2048], index: 4, kind: output, shape index: {}]
  %s5 = sld [smem:[#allocation0]]
  $region26: #{encoder_forward_pallas.7} parent=0
    _
  %s7 = ssub.s32 1, %s5
  %s8 = scalar_select 0, %s7, %s5
  // Predicated region
  $region2: #{encoder_forward_pallas.7} parent=0 // pred_check
    _
  $region3: #{encoder_forward_pallas.7} parent=0 // pred_check_branch
    %10 = sbr.rel (0) target = $region5
  $region4: #{encoder_forward_pallas.7} parent=0 // pred_region
    _
  $region5: #{encoder_forward_pallas.7} parent=0 // pred_fallthru
    _
  // Predicated region
  $region6: #{encoder_forward_pallas.7} parent=0 // pred_check
    _
  $region7: #{encoder_forward_pallas.7} parent=0 // pred_check_branch
    %12 = sbr.rel (0) target = $region9
  $region8: #{encoder_forward_pallas.7} parent=0 // pred_region
    _
  $region9: #{encoder_forward_pallas.7} parent=0 // pred_fallthru
    _
  // Predicated region
  $region10: #{encoder_forward_pallas.7} parent=0 // pred_check
    _
  $region11: #{encoder_forward_pallas.7} parent=0 // pred_check_branch
    %14 = sbr.rel (0) target = $region13
  $region12: #{encoder_forward_pallas.7} parent=0 // pred_region
    _
  $region13: #{encoder_forward_pallas.7} parent=0 // pred_fallthru
    _
  // Predicated region
  $region14: #{encoder_forward_pallas.7} parent=0 // pred_check
    _
  $region15: #{encoder_forward_pallas.7} parent=0 // pred_check_branch
    %16 = sbr.rel (0) target = $region17
  $region16: #{encoder_forward_pallas.7} parent=0 // pred_region
    _
  $region17: #{encoder_forward_pallas.7} parent=0 // pred_fallthru
    _
  %v17 = vld [vmem:[%s1] sm:$0xff]
  %v18 = vld [vmem:[%s1 + $0x8] sm:$0xff]
  %v19 = vld [vmem:[%s1 + $0x10] sm:$0xff]
  %v20 = vld [vmem:[%s1 + $0x18] sm:$0xff]
  %v21 = vld [vmem:[%s0] sm:$0xff]
  %v22 = vld [vmem:[%s0 + $0x8] sm:$0xff]
  %v23 = vld [vmem:[%s0 + $0x10] sm:$0xff]
  %v24 = vld [vmem:[%s0 + $0x18] sm:$0xff]
  %v25 = vld [vmem:[%s0 + $0x20] sm:$0xff]
  %v26 = vld [vmem:[%s0 + $0x28] sm:$0xff]
  %v27 = vld [vmem:[%s0 + $0x30] sm:$0xff]
  %v28 = vld [vmem:[%s0 + $0x38] sm:$0xff]
  %v29 = vld [vmem:[%s0 + $0x40] sm:$0xff]
  %v30 = vld [vmem:[%s0 + $0x48] sm:$0xff]
  %v31 = vld [vmem:[%s0 + $0x50] sm:$0xff]
  %v32 = vld [vmem:[%s0 + $0x58] sm:$0xff]
  %v33 = vld [vmem:[%s0 + $0x60] sm:$0xff]
  %v34 = vld [vmem:[%s0 + $0x68] sm:$0xff]
  %v35 = vld [vmem:[%s0 + $0x70] sm:$0xff]
  %v36 = vld [vmem:[%s0 + $0x78] sm:$0xff]
  %v37 = vld [vmem:[%s0 + $0x80] sm:$0xff]
  %v38 = vld [vmem:[%s0 + $0x88] sm:$0xff]
  %v39 = vld [vmem:[%s0 + $0x90] sm:$0xff]
  %v40 = vld [vmem:[%s0 + $0x98] sm:$0xff]
  %v41 = vld [vmem:[%s0 + $0xa0] sm:$0xff]
  %v42 = vld [vmem:[%s0 + $0xa8] sm:$0xff]
  %v43 = vld [vmem:[%s0 + $0xb0] sm:$0xff]
  %v44 = vld [vmem:[%s0 + $0xb8] sm:$0xff]
  %v45 = vld [vmem:[%s0 + $0xc0] sm:$0xff]
  %v46 = vld [vmem:[%s0 + $0xc8] sm:$0xff]
  %v47 = vld [vmem:[%s0 + $0xd0] sm:$0xff]
  %v48 = vld [vmem:[%s0 + $0xd8] sm:$0xff]
  %v49 = vld [vmem:[%s0 + $0xe0] sm:$0xff]
  %v50 = vld [vmem:[%s0 + $0xe8] sm:$0xff]
  %v51 = vld [vmem:[%s0 + $0xf0] sm:$0xff]
  %v52 = vld [vmem:[%s0 + $0xf8] sm:$0xff]
  %v53 = vld [vmem:[%s0 + $0x100] sm:$0xff]
  %v54 = vld [vmem:[%s0 + $0x108] sm:$0xff]
  %v55 = vld [vmem:[%s0 + $0x110] sm:$0xff]
  %v56 = vld [vmem:[%s0 + $0x118] sm:$0xff]
  %v57 = vld [vmem:[%s0 + $0x120] sm:$0xff]
  %v58 = vld [vmem:[%s0 + $0x128] sm:$0xff]
  %v59 = vld [vmem:[%s0 + $0x130] sm:$0xff]
  %v60 = vld [vmem:[%s0 + $0x138] sm:$0xff]
  %v61 = vld [vmem:[%s0 + $0x140] sm:$0xff]
  %v62 = vld [vmem:[%s0 + $0x148] sm:$0xff]
  %v63 = vld [vmem:[%s0 + $0x150] sm:$0xff]
  %v64 = vld [vmem:[%s0 + $0x158] sm:$0xff]
  %v65 = vld [vmem:[%s0 + $0x160] sm:$0xff]
  %v66 = vld [vmem:[%s0 + $0x168] sm:$0xff]
  %v67 = vld [vmem:[%s0 + $0x170] sm:$0xff]
  %v68 = vld [vmem:[%s0 + $0x178] sm:$0xff]
  %v69 = vld [vmem:[%s0 + $0x180] sm:$0xff]
  %v70 = vld [vmem:[%s0 + $0x188] sm:$0xff]
  %v71 = vld [vmem:[%s0 + $0x190] sm:$0xff]
  %v72 = vld [vmem:[%s0 + $0x198] sm:$0xff]
  %v73 = vld [vmem:[%s0 + $0x1a0] sm:$0xff]
  %v74 = vld [vmem:[%s0 + $0x1a8] sm:$0xff]
  %v75 = vld [vmem:[%s0 + $0x1b0] sm:$0xff]
  %v76 = vld [vmem:[%s0 + $0x1b8] sm:$0xff]
  %v77 = vld [vmem:[%s0 + $0x1c0] sm:$0xff]
  %v78 = vld [vmem:[%s0 + $0x1c8] sm:$0xff]
  %v79 = vld [vmem:[%s0 + $0x1d0] sm:$0xff]
  %v80 = vld [vmem:[%s0 + $0x1d8] sm:$0xff]
  %v81 = vld [vmem:[%s0 + $0x1e0] sm:$0xff]
  %v82 = vld [vmem:[%s0 + $0x1e8] sm:$0xff]
  %v83 = vld [vmem:[%s0 + $0x1f0] sm:$0xff]
  %v84 = vld [vmem:[%s0 + $0x1f8] sm:$0xff]
  %v85 = vld [vmem:[%s0 + $0x200] sm:$0xff]
  %v86 = vld [vmem:[%s0 + $0x208] sm:$0xff]
  %v87 = vld [vmem:[%s0 + $0x210] sm:$0xff]
  %v88 = vld [vmem:[%s0 + $0x218] sm:$0xff]
  %v89 = vld [vmem:[%s0 + $0x220] sm:$0xff]
  %v90 = vld [vmem:[%s0 + $0x228] sm:$0xff]
  %v91 = vld [vmem:[%s0 + $0x230] sm:$0xff]
  %v92 = vld [vmem:[%s0 + $0x238] sm:$0xff]
  %v93 = vld [vmem:[%s0 + $0x240] sm:$0xff]
  %v94 = vld [vmem:[%s0 + $0x248] sm:$0xff]
  %v95 = vld [vmem:[%s0 + $0x250] sm:$0xff]
  %v96 = vld [vmem:[%s0 + $0x258] sm:$0xff]
  %v97 = vld [vmem:[%s0 + $0x260] sm:$0xff]
  %v98 = vld [vmem:[%s0 + $0x268] sm:$0xff]
  %v99 = vld [vmem:[%s0 + $0x270] sm:$0xff]
  %v100 = vld [vmem:[%s0 + $0x278] sm:$0xff]
  %v101 = vld [vmem:[%s0 + $0x280] sm:$0xff]
  %v102 = vld [vmem:[%s0 + $0x288] sm:$0xff]
  %v103 = vld [vmem:[%s0 + $0x290] sm:$0xff]
  %v104 = vld [vmem:[%s0 + $0x298] sm:$0xff]
  %v105 = vld [vmem:[%s0 + $0x2a0] sm:$0xff]
  %v106 = vld [vmem:[%s0 + $0x2a8] sm:$0xff]
  %v107 = vld [vmem:[%s0 + $0x2b0] sm:$0xff]
  %v108 = vld [vmem:[%s0 + $0x2b8] sm:$0xff]
  %v109 = vld [vmem:[%s0 + $0x2c0] sm:$0xff]
  %v110 = vld [vmem:[%s0 + $0x2c8] sm:$0xff]
  %v111 = vld [vmem:[%s0 + $0x2d0] sm:$0xff]
  %v112 = vld [vmem:[%s0 + $0x2d8] sm:$0xff]
  %v113 = vld [vmem:[%s0 + $0x2e0] sm:$0xff]
  %v114 = vld [vmem:[%s0 + $0x2e8] sm:$0xff]
  %v115 = vld [vmem:[%s0 + $0x2f0] sm:$0xff]
  %v116 = vld [vmem:[%s0 + $0x2f8] sm:$0xff]
  %v117 = vld [vmem:[%s0 + $0x300] sm:$0xff]
  %v118 = vld [vmem:[%s0 + $0x308] sm:$0xff]
  %v119 = vld [vmem:[%s0 + $0x310] sm:$0xff]
  %v120 = vld [vmem:[%s0 + $0x318] sm:$0xff]
  %v121 = vld [vmem:[%s0 + $0x320] sm:$0xff]
  %v122 = vld [vmem:[%s0 + $0x328] sm:$0xff]
  %v123 = vld [vmem:[%s0 + $0x330] sm:$0xff]
  %v124 = vld [vmem:[%s0 + $0x338] sm:$0xff]
  %v125 = vld [vmem:[%s0 + $0x340] sm:$0xff]
  %v126 = vld [vmem:[%s0 + $0x348] sm:$0xff]
  %v127 = vld [vmem:[%s0 + $0x350] sm:$0xff]
  %v128 = vld [vmem:[%s0 + $0x358] sm:$0xff]
  %v129 = vld [vmem:[%s0 + $0x360] sm:$0xff]
  %v130 = vld [vmem:[%s0 + $0x368] sm:$0xff]
  %v131 = vld [vmem:[%s0 + $0x370] sm:$0xff]
  %v132 = vld [vmem:[%s0 + $0x378] sm:$0xff]
  %v133 = vld [vmem:[%s0 + $0x380] sm:$0xff]
  %v134 = vld [vmem:[%s0 + $0x388] sm:$0xff]
  %v135 = vld [vmem:[%s0 + $0x390] sm:$0xff]
  %v136 = vld [vmem:[%s0 + $0x398] sm:$0xff]
  %v137 = vld [vmem:[%s0 + $0x3a0] sm:$0xff]
  %v138 = vld [vmem:[%s0 + $0x3a8] sm:$0xff]
  %v139 = vld [vmem:[%s0 + $0x3b0] sm:$0xff]
  %v140 = vld [vmem:[%s0 + $0x3b8] sm:$0xff]
  %v141 = vld [vmem:[%s0 + $0x3c0] sm:$0xff]
  %v142 = vld [vmem:[%s0 + $0x3c8] sm:$0xff]
  %v143 = vld [vmem:[%s0 + $0x3d0] sm:$0xff]
  %v144 = vld [vmem:[%s0 + $0x3d8] sm:$0xff]
  %v145 = vld [vmem:[%s0 + $0x3e0] sm:$0xff]
  %v146 = vld [vmem:[%s0 + $0x3e8] sm:$0xff]
  %v147 = vld [vmem:[%s0 + $0x3f0] sm:$0xff]
  %v148 = vld [vmem:[%s0 + $0x3f8] sm:$0xff]
  %v149 = vld [vmem:[%s0 + $0x400] sm:$0xff]
  %v150 = vld [vmem:[%s0 + $0x408] sm:$0xff]
  %v151 = vld [vmem:[%s0 + $0x410] sm:$0xff]
  %v152 = vld [vmem:[%s0 + $0x418] sm:$0xff]
  %v153 = vld [vmem:[%s0 + $0x420] sm:$0xff]
  %v154 = vld [vmem:[%s0 + $0x428] sm:$0xff]
  %v155 = vld [vmem:[%s0 + $0x430] sm:$0xff]
  %v156 = vld [vmem:[%s0 + $0x438] sm:$0xff]
  %v157 = vld [vmem:[%s0 + $0x440] sm:$0xff]
  %v158 = vld [vmem:[%s0 + $0x448] sm:$0xff]
  %v159 = vld [vmem:[%s0 + $0x450] sm:$0xff]
  %v160 = vld [vmem:[%s0 + $0x458] sm:$0xff]
  %v161 = vld [vmem:[%s0 + $0x460] sm:$0xff]
  %v162 = vld [vmem:[%s0 + $0x468] sm:$0xff]
  %v163 = vld [vmem:[%s0 + $0x470] sm:$0xff]
  %v164 = vld [vmem:[%s0 + $0x478] sm:$0xff]
  %v165 = vld [vmem:[%s0 + $0x480] sm:$0xff]
  %v166 = vld [vmem:[%s0 + $0x488] sm:$0xff]
  %v167 = vld [vmem:[%s0 + $0x490] sm:$0xff]
  %v168 = vld [vmem:[%s0 + $0x498] sm:$0xff]
  %v169 = vld [vmem:[%s0 + $0x4a0] sm:$0xff]
  %v170 = vld [vmem:[%s0 + $0x4a8] sm:$0xff]
  %v171 = vld [vmem:[%s0 + $0x4b0] sm:$0xff]
  %v172 = vld [vmem:[%s0 + $0x4b8] sm:$0xff]
  %v173 = vld [vmem:[%s0 + $0x4c0] sm:$0xff]
  %v174 = vld [vmem:[%s0 + $0x4c8] sm:$0xff]
  %v175 = vld [vmem:[%s0 + $0x4d0] sm:$0xff]
  %v176 = vld [vmem:[%s0 + $0x4d8] sm:$0xff]
  %v177 = vld [vmem:[%s0 + $0x4e0] sm:$0xff]
  %v178 = vld [vmem:[%s0 + $0x4e8] sm:$0xff]
  %v179 = vld [vmem:[%s0 + $0x4f0] sm:$0xff]
  %v180 = vld [vmem:[%s0 + $0x4f8] sm:$0xff]
  %v181 = vld [vmem:[%s0 + $0x500] sm:$0xff]
  %v182 = vld [vmem:[%s0 + $0x508] sm:$0xff]
  %v183 = vld [vmem:[%s0 + $0x510] sm:$0xff]
  %v184 = vld [vmem:[%s0 + $0x518] sm:$0xff]
  %v185 = vld [vmem:[%s0 + $0x520] sm:$0xff]
  %v186 = vld [vmem:[%s0 + $0x528] sm:$0xff]
  %v187 = vld [vmem:[%s0 + $0x530] sm:$0xff]
  %v188 = vld [vmem:[%s0 + $0x538] sm:$0xff]
  %v189 = vld [vmem:[%s0 + $0x540] sm:$0xff]
  %v190 = vld [vmem:[%s0 + $0x548] sm:$0xff]
  %v191 = vld [vmem:[%s0 + $0x550] sm:$0xff]
  %v192 = vld [vmem:[%s0 + $0x558] sm:$0xff]
  %v193 = vld [vmem:[%s0 + $0x560] sm:$0xff]
  %v194 = vld [vmem:[%s0 + $0x568] sm:$0xff]
  %v195 = vld [vmem:[%s0 + $0x570] sm:$0xff]
  %v196 = vld [vmem:[%s0 + $0x578] sm:$0xff]
  %v197 = vld [vmem:[%s0 + $0x580] sm:$0xff]
  %v198 = vld [vmem:[%s0 + $0x588] sm:$0xff]
  %v199 = vld [vmem:[%s0 + $0x590] sm:$0xff]
  %v200 = vld [vmem:[%s0 + $0x598] sm:$0xff]
  %v201 = vld [vmem:[%s0 + $0x5a0] sm:$0xff]
  %v202 = vld [vmem:[%s0 + $0x5a8] sm:$0xff]
  %v203 = vld [vmem:[%s0 + $0x5b0] sm:$0xff]
  %v204 = vld [vmem:[%s0 + $0x5b8] sm:$0xff]
  %v205 = vld [vmem:[%s0 + $0x5c0] sm:$0xff]
  %v206 = vld [vmem:[%s0 + $0x5c8] sm:$0xff]
  %v207 = vld [vmem:[%s0 + $0x5d0] sm:$0xff]
  %v208 = vld [vmem:[%s0 + $0x5d8] sm:$0xff]
  %v209 = vld [vmem:[%s0 + $0x5e0] sm:$0xff]
  %v210 = vld [vmem:[%s0 + $0x5e8] sm:$0xff]
  %v211 = vld [vmem:[%s0 + $0x5f0] sm:$0xff]
  %v212 = vld [vmem:[%s0 + $0x5f8] sm:$0xff]
  %v213 = vld [vmem:[%s0 + $0x600] sm:$0xff]
  %v214 = vld [vmem:[%s0 + $0x608] sm:$0xff]
  %v215 = vld [vmem:[%s0 + $0x610] sm:$0xff]
  %v216 = vld [vmem:[%s0 + $0x618] sm:$0xff]
  %v217 = vld [vmem:[%s0 + $0x620] sm:$0xff]
  %v218 = vld [vmem:[%s0 + $0x628] sm:$0xff]
  %v219 = vld [vmem:[%s0 + $0x630] sm:$0xff]
  %v220 = vld [vmem:[%s0 + $0x638] sm:$0xff]
  %v221 = vld [vmem:[%s0 + $0x640] sm:$0xff]
  %v222 = vld [vmem:[%s0 + $0x648] sm:$0xff]
  %v223 = vld [vmem:[%s0 + $0x650] sm:$0xff]
  %v224 = vld [vmem:[%s0 + $0x658] sm:$0xff]
  %v225 = vld [vmem:[%s0 + $0x660] sm:$0xff]
  %v226 = vld [vmem:[%s0 + $0x668] sm:$0xff]
  %v227 = vld [vmem:[%s0 + $0x670] sm:$0xff]
  %v228 = vld [vmem:[%s0 + $0x678] sm:$0xff]
  %v229 = vld [vmem:[%s0 + $0x680] sm:$0xff]
  %v230 = vld [vmem:[%s0 + $0x688] sm:$0xff]
  %v231 = vld [vmem:[%s0 + $0x690] sm:$0xff]
  %v232 = vld [vmem:[%s0 + $0x698] sm:$0xff]
  %v233 = vld [vmem:[%s0 + $0x6a0] sm:$0xff]
  %v234 = vld [vmem:[%s0 + $0x6a8] sm:$0xff]
  %v235 = vld [vmem:[%s0 + $0x6b0] sm:$0xff]
  %v236 = vld [vmem:[%s0 + $0x6b8] sm:$0xff]
  %v237 = vld [vmem:[%s0 + $0x6c0] sm:$0xff]
  %v238 = vld [vmem:[%s0 + $0x6c8] sm:$0xff]
  %v239 = vld [vmem:[%s0 + $0x6d0] sm:$0xff]
  %v240 = vld [vmem:[%s0 + $0x6d8] sm:$0xff]
  %v241 = vld [vmem:[%s0 + $0x6e0] sm:$0xff]
  %v242 = vld [vmem:[%s0 + $0x6e8] sm:$0xff]
  %v243 = vld [vmem:[%s0 + $0x6f0] sm:$0xff]
  %v244 = vld [vmem:[%s0 + $0x6f8] sm:$0xff]
  %v245 = vld [vmem:[%s0 + $0x700] sm:$0xff]
  %v246 = vld [vmem:[%s0 + $0x708] sm:$0xff]
  %v247 = vld [vmem:[%s0 + $0x710] sm:$0xff]
  %v248 = vld [vmem:[%s0 + $0x718] sm:$0xff]
  %v249 = vld [vmem:[%s0 + $0x720] sm:$0xff]
  %v250 = vld [vmem:[%s0 + $0x728] sm:$0xff]
  %v251 = vld [vmem:[%s0 + $0x730] sm:$0xff]
  %v252 = vld [vmem:[%s0 + $0x738] sm:$0xff]
  %v253 = vld [vmem:[%s0 + $0x740] sm:$0xff]
  %v254 = vld [vmem:[%s0 + $0x748] sm:$0xff]
  %v255 = vld [vmem:[%s0 + $0x750] sm:$0xff]
  %v256 = vld [vmem:[%s0 + $0x758] sm:$0xff]
  %v257 = vld [vmem:[%s0 + $0x760] sm:$0xff]
  %v258 = vld [vmem:[%s0 + $0x768] sm:$0xff]
  %v259 = vld [vmem:[%s0 + $0x770] sm:$0xff]
  %v260 = vld [vmem:[%s0 + $0x778] sm:$0xff]
  %v261 = vld [vmem:[%s0 + $0x780] sm:$0xff]
  %v262 = vld [vmem:[%s0 + $0x788] sm:$0xff]
  %v263 = vld [vmem:[%s0 + $0x790] sm:$0xff]
  %v264 = vld [vmem:[%s0 + $0x798] sm:$0xff]
  %v265 = vld [vmem:[%s0 + $0x7a0] sm:$0xff]
  %v266 = vld [vmem:[%s0 + $0x7a8] sm:$0xff]
  %v267 = vld [vmem:[%s0 + $0x7b0] sm:$0xff]
  %v268 = vld [vmem:[%s0 + $0x7b8] sm:$0xff]
  %v269 = vld [vmem:[%s0 + $0x7c0] sm:$0xff]
  %v270 = vld [vmem:[%s0 + $0x7c8] sm:$0xff]
  %v271 = vld [vmem:[%s0 + $0x7d0] sm:$0xff]
  %v272 = vld [vmem:[%s0 + $0x7d8] sm:$0xff]
  %v273 = vld [vmem:[%s0 + $0x7e0] sm:$0xff]
  %v274 = vld [vmem:[%s0 + $0x7e8] sm:$0xff]
  %v275 = vld [vmem:[%s0 + $0x7f0] sm:$0xff]
  %v276 = vld [vmem:[%s0 + $0x7f8] sm:$0xff]
  %v281 = vunpack.c.l.b16 %v17
  %v282 = vunpack.c.h.b16 %v17
  %v283 = vunpack.c.l.b16 %v18
  %v284 = vunpack.c.h.b16 %v18
  %v285 = vunpack.c.l.b16 %v19
  %v286 = vunpack.c.h.b16 %v19
  %v287 = vunpack.c.l.b16 %v20
  %v288 = vunpack.c.h.b16 %v20
  %v289 = vpack.c.b16 %v283, %v281
  %v290 = vpack.c.b16 %v284, %v282
  %v291 = vpack.c.b16 %v287, %v285
  %v292 = vpack.c.b16 %v288, %v286
  %v553 = vunpack.c.l.b16 %v21
  %v554 = vunpack.c.h.b16 %v21
  %v555 = vunpack.c.l.b16 %v22
  %v556 = vunpack.c.h.b16 %v22
  %v557 = vunpack.c.l.b16 %v23
  %v558 = vunpack.c.h.b16 %v23
  %v559 = vunpack.c.l.b16 %v24
  %v560 = vunpack.c.h.b16 %v24
  %v561 = vunpack.c.l.b16 %v25
  %v562 = vunpack.c.h.b16 %v25
  %v563 = vunpack.c.l.b16 %v26
  %v564 = vunpack.c.h.b16 %v26
  %v565 = vunpack.c.l.b16 %v27
  %v566 = vunpack.c.h.b16 %v27
  %v567 = vunpack.c.l.b16 %v28
  %v568 = vunpack.c.h.b16 %v28
  %v569 = vunpack.c.l.b16 %v29
  %v570 = vunpack.c.h.b16 %v29
  %v571 = vunpack.c.l.b16 %v30
  %v572 = vunpack.c.h.b16 %v30
  %v573 = vunpack.c.l.b16 %v31
  %v574 = vunpack.c.h.b16 %v31
  %v575 = vunpack.c.l.b16 %v32
  %v576 = vunpack.c.h.b16 %v32
  %v577 = vunpack.c.l.b16 %v33
  %v578 = vunpack.c.h.b16 %v33
  %v579 = vunpack.c.l.b16 %v34
  %v580 = vunpack.c.h.b16 %v34
  %v581 = vunpack.c.l.b16 %v35
  %v582 = vunpack.c.h.b16 %v35
  %v583 = vunpack.c.l.b16 %v36
  %v584 = vunpack.c.h.b16 %v36
  %v585 = vunpack.c.l.b16 %v37
  %v586 = vunpack.c.h.b16 %v37
  %v587 = vunpack.c.l.b16 %v38
  %v588 = vunpack.c.h.b16 %v38
  %v589 = vunpack.c.l.b16 %v39
  %v590 = vunpack.c.h.b16 %v39
  %v591 = vunpack.c.l.b16 %v40
  %v592 = vunpack.c.h.b16 %v40
  %v593 = vunpack.c.l.b16 %v41
  %v594 = vunpack.c.h.b16 %v41
  %v595 = vunpack.c.l.b16 %v42
  %v596 = vunpack.c.h.b16 %v42
  %v597 = vunpack.c.l.b16 %v43
  %v598 = vunpack.c.h.b16 %v43
  %v599 = vunpack.c.l.b16 %v44
  %v600 = vunpack.c.h.b16 %v44
  %v601 = vunpack.c.l.b16 %v45
  %v602 = vunpack.c.h.b16 %v45
  %v603 = vunpack.c.l.b16 %v46
  %v604 = vunpack.c.h.b16 %v46
  %v605 = vunpack.c.l.b16 %v47
  %v606 = vunpack.c.h.b16 %v47
  %v607 = vunpack.c.l.b16 %v48
  %v608 = vunpack.c.h.b16 %v48
  %v609 = vunpack.c.l.b16 %v49
  %v610 = vunpack.c.h.b16 %v49
  %v611 = vunpack.c.l.b16 %v50
  %v612 = vunpack.c.h.b16 %v50
  %v613 = vunpack.c.l.b16 %v51
  %v614 = vunpack.c.h.b16 %v51
  %v615 = vunpack.c.l.b16 %v52
  %v616 = vunpack.c.h.b16 %v52
  %v617 = vunpack.c.l.b16 %v53
  %v618 = vunpack.c.h.b16 %v53
  %v619 = vunpack.c.l.b16 %v54
  %v620 = vunpack.c.h.b16 %v54
  %v621 = vunpack.c.l.b16 %v55
  %v622 = vunpack.c.h.b16 %v55
  %v623 = vunpack.c.l.b16 %v56
  %v624 = vunpack.c.h.b16 %v56
  %v625 = vunpack.c.l.b16 %v57
  %v626 = vunpack.c.h.b16 %v57
  %v627 = vunpack.c.l.b16 %v58
  %v628 = vunpack.c.h.b16 %v58
  %v629 = vunpack.c.l.b16 %v59
  %v630 = vunpack.c.h.b16 %v59
  %v631 = vunpack.c.l.b16 %v60
  %v632 = vunpack.c.h.b16 %v60
  %v633 = vunpack.c.l.b16 %v61
  %v634 = vunpack.c.h.b16 %v61
  %v635 = vunpack.c.l.b16 %v62
  %v636 = vunpack.c.h.b16 %v62
  %v637 = vunpack.c.l.b16 %v63
  %v638 = vunpack.c.h.b16 %v63
  %v639 = vunpack.c.l.b16 %v64
  %v640 = vunpack.c.h.b16 %v64
  %v641 = vunpack.c.l.b16 %v65
  %v642 = vunpack.c.h.b16 %v65
  %v643 = vunpack.c.l.b16 %v66
  %v644 = vunpack.c.h.b16 %v66
  %v645 = vunpack.c.l.b16 %v67
  %v646 = vunpack.c.h.b16 %v67
  %v647 = vunpack.c.l.b16 %v68
  %v648 = vunpack.c.h.b16 %v68
  %v649 = vunpack.c.l.b16 %v69
  %v650 = vunpack.c.h.b16 %v69
  %v651 = vunpack.c.l.b16 %v70
  %v652 = vunpack.c.h.b16 %v70
  %v653 = vunpack.c.l.b16 %v71
  %v654 = vunpack.c.h.b16 %v71
  %v655 = vunpack.c.l.b16 %v72
  %v656 = vunpack.c.h.b16 %v72
  %v657 = vunpack.c.l.b16 %v73
  %v658 = vunpack.c.h.b16 %v73
  %v659 = vunpack.c.l.b16 %v74
  %v660 = vunpack.c.h.b16 %v74
  %v661 = vunpack.c.l.b16 %v75
  %v662 = vunpack.c.h.b16 %v75
  %v663 = vunpack.c.l.b16 %v76
  %v664 = vunpack.c.h.b16 %v76
  %v665 = vunpack.c.l.b16 %v77
  %v666 = vunpack.c.h.b16 %v77
  %v667 = vunpack.c.l.b16 %v78
  %v668 = vunpack.c.h.b16 %v78
  %v669 = vunpack.c.l.b16 %v79
  %v670 = vunpack.c.h.b16 %v79
  %v671 = vunpack.c.l.b16 %v80
  %v672 = vunpack.c.h.b16 %v80
  %v673 = vunpack.c.l.b16 %v81
  %v674 = vunpack.c.h.b16 %v81
  %v675 = vunpack.c.l.b16 %v82
  %v676 = vunpack.c.h.b16 %v82
  %v677 = vunpack.c.l.b16 %v83
  %v678 = vunpack.c.h.b16 %v83
  %v679 = vunpack.c.l.b16 %v84
  %v680 = vunpack.c.h.b16 %v84
  %v681 = vunpack.c.l.b16 %v85
  %v682 = vunpack.c.h.b16 %v85
  %v683 = vunpack.c.l.b16 %v86
  %v684 = vunpack.c.h.b16 %v86
  %v685 = vunpack.c.l.b16 %v87
  %v686 = vunpack.c.h.b16 %v87
  %v687 = vunpack.c.l.b16 %v88
  %v688 = vunpack.c.h.b16 %v88
  %v689 = vunpack.c.l.b16 %v89
  %v690 = vunpack.c.h.b16 %v89
  %v691 = vunpack.c.l.b16 %v90
  %v692 = vunpack.c.h.b16 %v90
  %v693 = vunpack.c.l.b16 %v91
  %v694 = vunpack.c.h.b16 %v91
  %v695 = vunpack.c.l.b16 %v92
  %v696 = vunpack.c.h.b16 %v92
  %v697 = vunpack.c.l.b16 %v93
  %v698 = vunpack.c.h.b16 %v93
  %v699 = vunpack.c.l.b16 %v94
  %v700 = vunpack.c.h.b16 %v94
  %v701 = vunpack.c.l.b16 %v95
  %v702 = vunpack.c.h.b16 %v95
  %v703 = vunpack.c.l.b16 %v96
  %v704 = vunpack.c.h.b16 %v96
  %v705 = vunpack.c.l.b16 %v97
  %v706 = vunpack.c.h.b16 %v97
  %v707 = vunpack.c.l.b16 %v98
  %v708 = vunpack.c.h.b16 %v98
  %v709 = vunpack.c.l.b16 %v99
  %v710 = vunpack.c.h.b16 %v99
  %v711 = vunpack.c.l.b16 %v100
  %v712 = vunpack.c.h.b16 %v100
  %v713 = vunpack.c.l.b16 %v101
  %v714 = vunpack.c.h.b16 %v101
  %v715 = vunpack.c.l.b16 %v102
  %v716 = vunpack.c.h.b16 %v102
  %v717 = vunpack.c.l.b16 %v103
  %v718 = vunpack.c.h.b16 %v103
  %v719 = vunpack.c.l.b16 %v104
  %v720 = vunpack.c.h.b16 %v104
  %v721 = vunpack.c.l.b16 %v105
  %v722 = vunpack.c.h.b16 %v105
  %v723 = vunpack.c.l.b16 %v106
  %v724 = vunpack.c.h.b16 %v106
  %v725 = vunpack.c.l.b16 %v107
  %v726 = vunpack.c.h.b16 %v107
  %v727 = vunpack.c.l.b16 %v108
  %v728 = vunpack.c.h.b16 %v108
  %v729 = vunpack.c.l.b16 %v109
  %v730 = vunpack.c.h.b16 %v109
  %v731 = vunpack.c.l.b16 %v110
  %v732 = vunpack.c.h.b16 %v110
  %v733 = vunpack.c.l.b16 %v111
  %v734 = vunpack.c.h.b16 %v111
  %v735 = vunpack.c.l.b16 %v112
  %v736 = vunpack.c.h.b16 %v112
  %v737 = vunpack.c.l.b16 %v113
  %v738 = vunpack.c.h.b16 %v113
  %v739 = vunpack.c.l.b16 %v114
  %v740 = vunpack.c.h.b16 %v114
  %v741 = vunpack.c.l.b16 %v115
  %v742 = vunpack.c.h.b16 %v115
  %v743 = vunpack.c.l.b16 %v116
  %v744 = vunpack.c.h.b16 %v116
  %v745 = vunpack.c.l.b16 %v117
  %v746 = vunpack.c.h.b16 %v117
  %v747 = vunpack.c.l.b16 %v118
  %v748 = vunpack.c.h.b16 %v118
  %v749 = vunpack.c.l.b16 %v119
  %v750 = vunpack.c.h.b16 %v119
  %v751 = vunpack.c.l.b16 %v120
  %v752 = vunpack.c.h.b16 %v120
  %v753 = vunpack.c.l.b16 %v121
  %v754 = vunpack.c.h.b16 %v121
  %v755 = vunpack.c.l.b16 %v122
  %v756 = vunpack.c.h.b16 %v122
  %v757 = vunpack.c.l.b16 %v123
  %v758 = vunpack.c.h.b16 %v123
  %v759 = vunpack.c.l.b16 %v124
  %v760 = vunpack.c.h.b16 %v124
  %v761 = vunpack.c.l.b16 %v125
  %v762 = vunpack.c.h.b16 %v125
  %v763 = vunpack.c.l.b16 %v126
  %v764 = vunpack.c.h.b16 %v126
  %v765 = vunpack.c.l.b16 %v127
  %v766 = vunpack.c.h.b16 %v127
  %v767 = vunpack.c.l.b16 %v128
  %v768 = vunpack.c.h.b16 %v128
  %v769 = vunpack.c.l.b16 %v129
  %v770 = vunpack.c.h.b16 %v129
  %v771 = vunpack.c.l.b16 %v130
  %v772 = vunpack.c.h.b16 %v130
  %v773 = vunpack.c.l.b16 %v131
  %v774 = vunpack.c.h.b16 %v131
  %v775 = vunpack.c.l.b16 %v132
  %v776 = vunpack.c.h.b16 %v132
  %v777 = vunpack.c.l.b16 %v133
  %v778 = vunpack.c.h.b16 %v133
  %v779 = vunpack.c.l.b16 %v134
  %v780 = vunpack.c.h.b16 %v134
  %v781 = vunpack.c.l.b16 %v135
  %v782 = vunpack.c.h.b16 %v135
  %v783 = vunpack.c.l.b16 %v136
  %v784 = vunpack.c.h.b16 %v136
  %v785 = vunpack.c.l.b16 %v137
  %v786 = vunpack.c.h.b16 %v137
  %v787 = vunpack.c.l.b16 %v138
  %v788 = vunpack.c.h.b16 %v138
  %v789 = vunpack.c.l.b16 %v139
  %v790 = vunpack.c.h.b16 %v139
  %v791 = vunpack.c.l.b16 %v140
  %v792 = vunpack.c.h.b16 %v140
  %v793 = vunpack.c.l.b16 %v141
  %v794 = vunpack.c.h.b16 %v141
  %v795 = vunpack.c.l.b16 %v142
  %v796 = vunpack.c.h.b16 %v142
  %v797 = vunpack.c.l.b16 %v143
  %v798 = vunpack.c.h.b16 %v143
  %v799 = vunpack.c.l.b16 %v144
  %v800 = vunpack.c.h.b16 %v144
  %v801 = vunpack.c.l.b16 %v145
  %v802 = vunpack.c.h.b16 %v145
  %v803 = vunpack.c.l.b16 %v146
  %v804 = vunpack.c.h.b16 %v146
  %v805 = vunpack.c.l.b16 %v147
  %v806 = vunpack.c.h.b16 %v147
  %v807 = vunpack.c.l.b16 %v148
  %v808 = vunpack.c.h.b16 %v148
  %v809 = vunpack.c.l.b16 %v149
  %v810 = vunpack.c.h.b16 %v149
  %v811 = vunpack.c.l.b16 %v150
  %v812 = vunpack.c.h.b16 %v150
  %v813 = vunpack.c.l.b16 %v151
  %v814 = vunpack.c.h.b16 %v151
  %v815 = vunpack.c.l.b16 %v152
  %v816 = vunpack.c.h.b16 %v152
  %v817 = vunpack.c.l.b16 %v153
  %v818 = vunpack.c.h.b16 %v153
  %v819 = vunpack.c.l.b16 %v154
  %v820 = vunpack.c.h.b16 %v154
  %v821 = vunpack.c.l.b16 %v155
  %v822 = vunpack.c.h.b16 %v155
  %v823 = vunpack.c.l.b16 %v156
  %v824 = vunpack.c.h.b16 %v156
  %v825 = vunpack.c.l.b16 %v157
  %v826 = vunpack.c.h.b16 %v157
  %v827 = vunpack.c.l.b16 %v158
  %v828 = vunpack.c.h.b16 %v158
  %v829 = vunpack.c.l.b16 %v159
  %v830 = vunpack.c.h.b16 %v159
  %v831 = vunpack.c.l.b16 %v160
  %v832 = vunpack.c.h.b16 %v160
  %v833 = vunpack.c.l.b16 %v161
  %v834 = vunpack.c.h.b16 %v161
  %v835 = vunpack.c.l.b16 %v162
  %v836 = vunpack.c.h.b16 %v162
  %v837 = vunpack.c.l.b16 %v163
  %v838 = vunpack.c.h.b16 %v163
  %v839 = vunpack.c.l.b16 %v164
  %v840 = vunpack.c.h.b16 %v164
  %v841 = vunpack.c.l.b16 %v165
  %v842 = vunpack.c.h.b16 %v165
  %v843 = vunpack.c.l.b16 %v166
  %v844 = vunpack.c.h.b16 %v166
  %v845 = vunpack.c.l.b16 %v167
  %v846 = vunpack.c.h.b16 %v167
  %v847 = vunpack.c.l.b16 %v168
  %v848 = vunpack.c.h.b16 %v168
  %v849 = vunpack.c.l.b16 %v169
  %v850 = vunpack.c.h.b16 %v169
  %v851 = vunpack.c.l.b16 %v170
  %v852 = vunpack.c.h.b16 %v170
  %v853 = vunpack.c.l.b16 %v171
  %v854 = vunpack.c.h.b16 %v171
  %v855 = vunpack.c.l.b16 %v172
  %v856 = vunpack.c.h.b16 %v172
  %v857 = vunpack.c.l.b16 %v173
  %v858 = vunpack.c.h.b16 %v173
  %v859 = vunpack.c.l.b16 %v174
  %v860 = vunpack.c.h.b16 %v174
  %v861 = vunpack.c.l.b16 %v175
  %v862 = vunpack.c.h.b16 %v175
  %v863 = vunpack.c.l.b16 %v176
  %v864 = vunpack.c.h.b16 %v176
  %v865 = vunpack.c.l.b16 %v177
  %v866 = vunpack.c.h.b16 %v177
  %v867 = vunpack.c.l.b16 %v178
  %v868 = vunpack.c.h.b16 %v178
  %v869 = vunpack.c.l.b16 %v179
  %v870 = vunpack.c.h.b16 %v179
  %v871 = vunpack.c.l.b16 %v180
  %v872 = vunpack.c.h.b16 %v180
  %v873 = vunpack.c.l.b16 %v181
  %v874 = vunpack.c.h.b16 %v181
  %v875 = vunpack.c.l.b16 %v182
  %v876 = vunpack.c.h.b16 %v182
  %v877 = vunpack.c.l.b16 %v183
  %v878 = vunpack.c.h.b16 %v183
  %v879 = vunpack.c.l.b16 %v184
  %v880 = vunpack.c.h.b16 %v184
  %v881 = vunpack.c.l.b16 %v185
  %v882 = vunpack.c.h.b16 %v185
  %v883 = vunpack.c.l.b16 %v186
  %v884 = vunpack.c.h.b16 %v186
  %v885 = vunpack.c.l.b16 %v187
  %v886 = vunpack.c.h.b16 %v187
  %v887 = vunpack.c.l.b16 %v188
  %v888 = vunpack.c.h.b16 %v188
  %v889 = vunpack.c.l.b16 %v189
  %v890 = vunpack.c.h.b16 %v189
  %v891 = vunpack.c.l.b16 %v190
  %v892 = vunpack.c.h.b16 %v190
  %v893 = vunpack.c.l.b16 %v191
  %v894 = vunpack.c.h.b16 %v191
  %v895 = vunpack.c.l.b16 %v192
  %v896 = vunpack.c.h.b16 %v192
  %v897 = vunpack.c.l.b16 %v193
  %v898 = vunpack.c.h.b16 %v193
  %v899 = vunpack.c.l.b16 %v194
  %v900 = vunpack.c.h.b16 %v194
  %v901 = vunpack.c.l.b16 %v195
  %v902 = vunpack.c.h.b16 %v195
  %v903 = vunpack.c.l.b16 %v196
  %v904 = vunpack.c.h.b16 %v196
  %v905 = vunpack.c.l.b16 %v197
  %v906 = vunpack.c.h.b16 %v197
  %v907 = vunpack.c.l.b16 %v198
  %v908 = vunpack.c.h.b16 %v198
  %v909 = vunpack.c.l.b16 %v199
  %v910 = vunpack.c.h.b16 %v199
  %v911 = vunpack.c.l.b16 %v200
  %v912 = vunpack.c.h.b16 %v200
  %v913 = vunpack.c.l.b16 %v201
  %v914 = vunpack.c.h.b16 %v201
  %v915 = vunpack.c.l.b16 %v202
  %v916 = vunpack.c.h.b16 %v202
  %v917 = vunpack.c.l.b16 %v203
  %v918 = vunpack.c.h.b16 %v203
  %v919 = vunpack.c.l.b16 %v204
  %v920 = vunpack.c.h.b16 %v204
  %v921 = vunpack.c.l.b16 %v205
  %v922 = vunpack.c.h.b16 %v205
  %v923 = vunpack.c.l.b16 %v206
  %v924 = vunpack.c.h.b16 %v206
  %v925 = vunpack.c.l.b16 %v207
  %v926 = vunpack.c.h.b16 %v207
  %v927 = vunpack.c.l.b16 %v208
  %v928 = vunpack.c.h.b16 %v208
  %v929 = vunpack.c.l.b16 %v209
  %v930 = vunpack.c.h.b16 %v209
  %v931 = vunpack.c.l.b16 %v210
  %v932 = vunpack.c.h.b16 %v210
  %v933 = vunpack.c.l.b16 %v211
  %v934 = vunpack.c.h.b16 %v211
  %v935 = vunpack.c.l.b16 %v212
  %v936 = vunpack.c.h.b16 %v212
  %v937 = vunpack.c.l.b16 %v213
  %v938 = vunpack.c.h.b16 %v213
  %v939 = vunpack.c.l.b16 %v214
  %v940 = vunpack.c.h.b16 %v214
  %v941 = vunpack.c.l.b16 %v215
  %v942 = vunpack.c.h.b16 %v215
  %v943 = vunpack.c.l.b16 %v216
  %v944 = vunpack.c.h.b16 %v216
  %v945 = vunpack.c.l.b16 %v217
  %v946 = vunpack.c.h.b16 %v217
  %v947 = vunpack.c.l.b16 %v218
  %v948 = vunpack.c.h.b16 %v218
  %v949 = vunpack.c.l.b16 %v219
  %v950 = vunpack.c.h.b16 %v219
  %v951 = vunpack.c.l.b16 %v220
  %v952 = vunpack.c.h.b16 %v220
  %v953 = vunpack.c.l.b16 %v221
  %v954 = vunpack.c.h.b16 %v221
  %v955 = vunpack.c.l.b16 %v222
  %v956 = vunpack.c.h.b16 %v222
  %v957 = vunpack.c.l.b16 %v223
  %v958 = vunpack.c.h.b16 %v223
  %v959 = vunpack.c.l.b16 %v224
  %v960 = vunpack.c.h.b16 %v224
  %v961 = vunpack.c.l.b16 %v225
  %v962 = vunpack.c.h.b16 %v225
  %v963 = vunpack.c.l.b16 %v226
  %v964 = vunpack.c.h.b16 %v226
  %v965 = vunpack.c.l.b16 %v227
  %v966 = vunpack.c.h.b16 %v227
  %v967 = vunpack.c.l.b16 %v228
  %v968 = vunpack.c.h.b16 %v228
  %v969 = vunpack.c.l.b16 %v229
  %v970 = vunpack.c.h.b16 %v229
  %v971 = vunpack.c.l.b16 %v230
  %v972 = vunpack.c.h.b16 %v230
  %v973 = vunpack.c.l.b16 %v231
  %v974 = vunpack.c.h.b16 %v231
  %v975 = vunpack.c.l.b16 %v232
  %v976 = vunpack.c.h.b16 %v232
  %v977 = vunpack.c.l.b16 %v233
  %v978 = vunpack.c.h.b16 %v233
  %v979 = vunpack.c.l.b16 %v234
  %v980 = vunpack.c.h.b16 %v234
  %v981 = vunpack.c.l.b16 %v235
  %v982 = vunpack.c.h.b16 %v235
  %v983 = vunpack.c.l.b16 %v236
  %v984 = vunpack.c.h.b16 %v236
  %v985 = vunpack.c.l.b16 %v237
  %v986 = vunpack.c.h.b16 %v237
  %v987 = vunpack.c.l.b16 %v238
  %v988 = vunpack.c.h.b16 %v238
  %v989 = vunpack.c.l.b16 %v239
  %v990 = vunpack.c.h.b16 %v239
  %v991 = vunpack.c.l.b16 %v240
  %v992 = vunpack.c.h.b16 %v240
  %v993 = vunpack.c.l.b16 %v241
  %v994 = vunpack.c.h.b16 %v241
  %v995 = vunpack.c.l.b16 %v242
  %v996 = vunpack.c.h.b16 %v242
  %v997 = vunpack.c.l.b16 %v243
  %v998 = vunpack.c.h.b16 %v243
  %v999 = vunpack.c.l.b16 %v244
  %v1000 = vunpack.c.h.b16 %v244
  %v1001 = vunpack.c.l.b16 %v245
  %v1002 = vunpack.c.h.b16 %v245
  %v1003 = vunpack.c.l.b16 %v246
  %v1004 = vunpack.c.h.b16 %v246
  %v1005 = vunpack.c.l.b16 %v247
  %v1006 = vunpack.c.h.b16 %v247
  %v1007 = vunpack.c.l.b16 %v248
  %v1008 = vunpack.c.h.b16 %v248
  %v1009 = vunpack.c.l.b16 %v249
  %v1010 = vunpack.c.h.b16 %v249
  %v1011 = vunpack.c.l.b16 %v250
  %v1012 = vunpack.c.h.b16 %v250
  %v1013 = vunpack.c.l.b16 %v251
  %v1014 = vunpack.c.h.b16 %v251
  %v1015 = vunpack.c.l.b16 %v252
  %v1016 = vunpack.c.h.b16 %v252
  %v1017 = vunpack.c.l.b16 %v253
  %v1018 = vunpack.c.h.b16 %v253
  %v1019 = vunpack.c.l.b16 %v254
  %v1020 = vunpack.c.h.b16 %v254
  %v1021 = vunpack.c.l.b16 %v255
  %v1022 = vunpack.c.h.b16 %v255
  %v1023 = vunpack.c.l.b16 %v256
  %v1024 = vunpack.c.h.b16 %v256
  %v1025 = vunpack.c.l.b16 %v257
  %v1026 = vunpack.c.h.b16 %v257
  %v1027 = vunpack.c.l.b16 %v258
  %v1028 = vunpack.c.h.b16 %v258
  %v1029 = vunpack.c.l.b16 %v259
  %v1030 = vunpack.c.h.b16 %v259
  %v1031 = vunpack.c.l.b16 %v260
  %v1032 = vunpack.c.h.b16 %v260
  %v1033 = vunpack.c.l.b16 %v261
  %v1034 = vunpack.c.h.b16 %v261
  %v1035 = vunpack.c.l.b16 %v262
  %v1036 = vunpack.c.h.b16 %v262
  %v1037 = vunpack.c.l.b16 %v263
  %v1038 = vunpack.c.h.b16 %v263
  %v1039 = vunpack.c.l.b16 %v264
  %v1040 = vunpack.c.h.b16 %v264
  %v1041 = vunpack.c.l.b16 %v265
  %v1042 = vunpack.c.h.b16 %v265
  %v1043 = vunpack.c.l.b16 %v266
  %v1044 = vunpack.c.h.b16 %v266
  %v1045 = vunpack.c.l.b16 %v267
  %v1046 = vunpack.c.h.b16 %v267
  %v1047 = vunpack.c.l.b16 %v268
  %v1048 = vunpack.c.h.b16 %v268
  %v1049 = vunpack.c.l.b16 %v269
  %v1050 = vunpack.c.h.b16 %v269
  %v1051 = vunpack.c.l.b16 %v270
  %v1052 = vunpack.c.h.b16 %v270
  %v1053 = vunpack.c.l.b16 %v271
  %v1054 = vunpack.c.h.b16 %v271
  %v1055 = vunpack.c.l.b16 %v272
  %v1056 = vunpack.c.h.b16 %v272
  %v1057 = vunpack.c.l.b16 %v273
  %v1058 = vunpack.c.h.b16 %v273
  %v1059 = vunpack.c.l.b16 %v274
  %v1060 = vunpack.c.h.b16 %v274
  %v1061 = vunpack.c.l.b16 %v275
  %v1062 = vunpack.c.h.b16 %v275
  %v1063 = vunpack.c.l.b16 %v276
  %v1064 = vunpack.c.h.b16 %v276
  %v1065 = vpack.c.b16 %v569, %v553
  %v1066 = vpack.c.b16 %v570, %v554
  %v1067 = vpack.c.b16 %v571, %v555
  %v1068 = vpack.c.b16 %v572, %v556
  %v1069 = vpack.c.b16 %v573, %v557
  %v1070 = vpack.c.b16 %v574, %v558
  %v1071 = vpack.c.b16 %v575, %v559
  %v1072 = vpack.c.b16 %v576, %v560
  %v1073 = vpack.c.b16 %v577, %v561
  %v1074 = vpack.c.b16 %v578, %v562
  %v1075 = vpack.c.b16 %v579, %v563
  %v1076 = vpack.c.b16 %v580, %v564
  %v1077 = vpack.c.b16 %v581, %v565
  %v1078 = vpack.c.b16 %v582, %v566
  %v1079 = vpack.c.b16 %v583, %v567
  %v1080 = vpack.c.b16 %v584, %v568
  %v1081 = vpack.c.b16 %v601, %v585
  %v1082 = vpack.c.b16 %v602, %v586
  %v1083 = vpack.c.b16 %v603, %v587
  %v1084 = vpack.c.b16 %v604, %v588
  %v1085 = vpack.c.b16 %v605, %v589
  %v1086 = vpack.c.b16 %v606, %v590
  %v1087 = vpack.c.b16 %v607, %v591
  %v1088 = vpack.c.b16 %v608, %v592
  %v1089 = vpack.c.b16 %v609, %v593
  %v1090 = vpack.c.b16 %v610, %v594
  %v1091 = vpack.c.b16 %v611, %v595
  %v1092 = vpack.c.b16 %v612, %v596
  %v1093 = vpack.c.b16 %v613, %v597
  %v1094 = vpack.c.b16 %v614, %v598
  %v1095 = vpack.c.b16 %v615, %v599
  %v1096 = vpack.c.b16 %v616, %v600
  %v1097 = vpack.c.b16 %v633, %v617
  %v1098 = vpack.c.b16 %v634, %v618
  %v1099 = vpack.c.b16 %v635, %v619
  %v1100 = vpack.c.b16 %v636, %v620
  %v1101 = vpack.c.b16 %v637, %v621
  %v1102 = vpack.c.b16 %v638, %v622
  %v1103 = vpack.c.b16 %v639, %v623
  %v1104 = vpack.c.b16 %v640, %v624
  %v1105 = vpack.c.b16 %v641, %v625
  %v1106 = vpack.c.b16 %v642, %v626
  %v1107 = vpack.c.b16 %v643, %v627
  %v1108 = vpack.c.b16 %v644, %v628
  %v1109 = vpack.c.b16 %v645, %v629
  %v1110 = vpack.c.b16 %v646, %v630
  %v1111 = vpack.c.b16 %v647, %v631
  %v1112 = vpack.c.b16 %v648, %v632
  %v1113 = vpack.c.b16 %v665, %v649
  %v1114 = vpack.c.b16 %v666, %v650
  %v1115 = vpack.c.b16 %v667, %v651
  %v1116 = vpack.c.b16 %v668, %v652
  %v1117 = vpack.c.b16 %v669, %v653
  %v1118 = vpack.c.b16 %v670, %v654
  %v1119 = vpack.c.b16 %v671, %v655
  %v1120 = vpack.c.b16 %v672, %v656
  %v1121 = vpack.c.b16 %v673, %v657
  %v1122 = vpack.c.b16 %v674, %v658
  %v1123 = vpack.c.b16 %v675, %v659
  %v1124 = vpack.c.b16 %v676, %v660
  %v1125 = vpack.c.b16 %v677, %v661
  %v1126 = vpack.c.b16 %v678, %v662
  %v1127 = vpack.c.b16 %v679, %v663
  %v1128 = vpack.c.b16 %v680, %v664
  %v1129 = vpack.c.b16 %v697, %v681
  %v1130 = vpack.c.b16 %v698, %v682
  %v1131 = vpack.c.b16 %v699, %v683
  %v1132 = vpack.c.b16 %v700, %v684
  %v1133 = vpack.c.b16 %v701, %v685
  %v1134 = vpack.c.b16 %v702, %v686
  %v1135 = vpack.c.b16 %v703, %v687
  %v1136 = vpack.c.b16 %v704, %v688
  %v1137 = vpack.c.b16 %v705, %v689
  %v1138 = vpack.c.b16 %v706, %v690
  %v1139 = vpack.c.b16 %v707, %v691
  %v1140 = vpack.c.b16 %v708, %v692
  %v1141 = vpack.c.b16 %v709, %v693
  %v1142 = vpack.c.b16 %v710, %v694
  %v1143 = vpack.c.b16 %v711, %v695
  %v1144 = vpack.c.b16 %v712, %v696
  %v1145 = vpack.c.b16 %v729, %v713
  %v1146 = vpack.c.b16 %v730, %v714
  %v1147 = vpack.c.b16 %v731, %v715
  %v1148 = vpack.c.b16 %v732, %v716
  %v1149 = vpack.c.b16 %v733, %v717
  %v1150 = vpack.c.b16 %v734, %v718
  %v1151 = vpack.c.b16 %v735, %v719
  %v1152 = vpack.c.b16 %v736, %v720
  %v1153 = vpack.c.b16 %v737, %v721
  %v1154 = vpack.c.b16 %v738, %v722
  %v1155 = vpack.c.b16 %v739, %v723
  %v1156 = vpack.c.b16 %v740, %v724
  %v1157 = vpack.c.b16 %v741, %v725
  %v1158 = vpack.c.b16 %v742, %v726
  %v1159 = vpack.c.b16 %v743, %v727
  %v1160 = vpack.c.b16 %v744, %v728
  %v1161 = vpack.c.b16 %v761, %v745
  %v1162 = vpack.c.b16 %v762, %v746
  %v1163 = vpack.c.b16 %v763, %v747
  %v1164 = vpack.c.b16 %v764, %v748
  %v1165 = vpack.c.b16 %v765, %v749
  %v1166 = vpack.c.b16 %v766, %v750
  %v1167 = vpack.c.b16 %v767, %v751
  %v1168 = vpack.c.b16 %v768, %v752
  %v1169 = vpack.c.b16 %v769, %v753
  %v1170 = vpack.c.b16 %v770, %v754
  %v1171 = vpack.c.b16 %v771, %v755
  %v1172 = vpack.c.b16 %v772, %v756
  %v1173 = vpack.c.b16 %v773, %v757
  %v1174 = vpack.c.b16 %v774, %v758
  %v1175 = vpack.c.b16 %v775, %v759
  %v1176 = vpack.c.b16 %v776, %v760
  %v1177 = vpack.c.b16 %v793, %v777
  %v1178 = vpack.c.b16 %v794, %v778
  %v1179 = vpack.c.b16 %v795, %v779
  %v1180 = vpack.c.b16 %v796, %v780
  %v1181 = vpack.c.b16 %v797, %v781
  %v1182 = vpack.c.b16 %v798, %v782
  %v1183 = vpack.c.b16 %v799, %v783
  %v1184 = vpack.c.b16 %v800, %v784
  %v1185 = vpack.c.b16 %v801, %v785
  %v1186 = vpack.c.b16 %v802, %v786
  %v1187 = vpack.c.b16 %v803, %v787
  %v1188 = vpack.c.b16 %v804, %v788
  %v1189 = vpack.c.b16 %v805, %v789
  %v1190 = vpack.c.b16 %v806, %v790
  %v1191 = vpack.c.b16 %v807, %v791
  %v1192 = vpack.c.b16 %v808, %v792
  %v1193 = vpack.c.b16 %v825, %v809
  %v1194 = vpack.c.b16 %v826, %v810
  %v1195 = vpack.c.b16 %v827, %v811
  %v1196 = vpack.c.b16 %v828, %v812
  %v1197 = vpack.c.b16 %v829, %v813
  %v1198 = vpack.c.b16 %v830, %v814
  %v1199 = vpack.c.b16 %v831, %v815
  %v1200 = vpack.c.b16 %v832, %v816
  %v1201 = vpack.c.b16 %v833, %v817
  %v1202 = vpack.c.b16 %v834, %v818
  %v1203 = vpack.c.b16 %v835, %v819
  %v1204 = vpack.c.b16 %v836, %v820
  %v1205 = vpack.c.b16 %v837, %v821
  %v1206 = vpack.c.b16 %v838, %v822
  %v1207 = vpack.c.b16 %v839, %v823
  %v1208 = vpack.c.b16 %v840, %v824
  %v1209 = vpack.c.b16 %v857, %v841
  %v1210 = vpack.c.b16 %v858, %v842
  %v1211 = vpack.c.b16 %v859, %v843
  %v1212 = vpack.c.b16 %v860, %v844
  %v1213 = vpack.c.b16 %v861, %v845
  %v1214 = vpack.c.b16 %v862, %v846
  %v1215 = vpack.c.b16 %v863, %v847
  %v1216 = vpack.c.b16 %v864, %v848
  %v1217 = vpack.c.b16 %v865, %v849
  %v1218 = vpack.c.b16 %v866, %v850
  %v1219 = vpack.c.b16 %v867, %v851
  %v1220 = vpack.c.b16 %v868, %v852
  %v1221 = vpack.c.b16 %v869, %v853
  %v1222 = vpack.c.b16 %v870, %v854
  %v1223 = vpack.c.b16 %v871, %v855
  %v1224 = vpack.c.b16 %v872, %v856
  %v1225 = vpack.c.b16 %v889, %v873
  %v1226 = vpack.c.b16 %v890, %v874
  %v1227 = vpack.c.b16 %v891, %v875
  %v1228 = vpack.c.b16 %v892, %v876
  %v1229 = vpack.c.b16 %v893, %v877
  %v1230 = vpack.c.b16 %v894, %v878
  %v1231 = vpack.c.b16 %v895, %v879
  %v1232 = vpack.c.b16 %v896, %v880
  %v1233 = vpack.c.b16 %v897, %v881
  %v1234 = vpack.c.b16 %v898, %v882
  %v1235 = vpack.c.b16 %v899, %v883
  %v1236 = vpack.c.b16 %v900, %v884
  %v1237 = vpack.c.b16 %v901, %v885
  %v1238 = vpack.c.b16 %v902, %v886
  %v1239 = vpack.c.b16 %v903, %v887
  %v1240 = vpack.c.b16 %v904, %v888
  %v1241 = vpack.c.b16 %v921, %v905
  %v1242 = vpack.c.b16 %v922, %v906
  %v1243 = vpack.c.b16 %v923, %v907
  %v1244 = vpack.c.b16 %v924, %v908
  %v1245 = vpack.c.b16 %v925, %v909
  %v1246 = vpack.c.b16 %v926, %v910
  %v1247 = vpack.c.b16 %v927, %v911
  %v1248 = vpack.c.b16 %v928, %v912
  %v1249 = vpack.c.b16 %v929, %v913
  %v1250 = vpack.c.b16 %v930, %v914
  %v1251 = vpack.c.b16 %v931, %v915
  %v1252 = vpack.c.b16 %v932, %v916
  %v1253 = vpack.c.b16 %v933, %v917
  %v1254 = vpack.c.b16 %v934, %v918
  %v1255 = vpack.c.b16 %v935, %v919
  %v1256 = vpack.c.b16 %v936, %v920
  %v1257 = vpack.c.b16 %v953, %v937
  %v1258 = vpack.c.b16 %v954, %v938
  %v1259 = vpack.c.b16 %v955, %v939
  %v1260 = vpack.c.b16 %v956, %v940
  %v1261 = vpack.c.b16 %v957, %v941
  %v1262 = vpack.c.b16 %v958, %v942
  %v1263 = vpack.c.b16 %v959, %v943
  %v1264 = vpack.c.b16 %v960, %v944
  %v1265 = vpack.c.b16 %v961, %v945
  %v1266 = vpack.c.b16 %v962, %v946
  %v1267 = vpack.c.b16 %v963, %v947
  %v1268 = vpack.c.b16 %v964, %v948
  %v1269 = vpack.c.b16 %v965, %v949
  %v1270 = vpack.c.b16 %v966, %v950
  %v1271 = vpack.c.b16 %v967, %v951
  %v1272 = vpack.c.b16 %v968, %v952
  %v1273 = vpack.c.b16 %v985, %v969
  %v1274 = vpack.c.b16 %v986, %v970
  %v1275 = vpack.c.b16 %v987, %v971
  %v1276 = vpack.c.b16 %v988, %v972
  %v1277 = vpack.c.b16 %v989, %v973
  %v1278 = vpack.c.b16 %v990, %v974
  %v1279 = vpack.c.b16 %v991, %v975
  %v1280 = vpack.c.b16 %v992, %v976
  %v1281 = vpack.c.b16 %v993, %v977
  %v1282 = vpack.c.b16 %v994, %v978
  %v1283 = vpack.c.b16 %v995, %v979
  %v1284 = vpack.c.b16 %v996, %v980
  %v1285 = vpack.c.b16 %v997, %v981
  %v1286 = vpack.c.b16 %v998, %v982
  %v1287 = vpack.c.b16 %v999, %v983
  %v1288 = vpack.c.b16 %v1000, %v984
  %v1289 = vpack.c.b16 %v1017, %v1001
  %v1290 = vpack.c.b16 %v1018, %v1002
  %v1291 = vpack.c.b16 %v1019, %v1003
  %v1292 = vpack.c.b16 %v1020, %v1004
  %v1293 = vpack.c.b16 %v1021, %v1005
  %v1294 = vpack.c.b16 %v1022, %v1006
  %v1295 = vpack.c.b16 %v1023, %v1007
  %v1296 = vpack.c.b16 %v1024, %v1008
  %v1297 = vpack.c.b16 %v1025, %v1009
  %v1298 = vpack.c.b16 %v1026, %v1010
  %v1299 = vpack.c.b16 %v1027, %v1011
  %v1300 = vpack.c.b16 %v1028, %v1012
  %v1301 = vpack.c.b16 %v1029, %v1013
  %v1302 = vpack.c.b16 %v1030, %v1014
  %v1303 = vpack.c.b16 %v1031, %v1015
  %v1304 = vpack.c.b16 %v1032, %v1016
  %v1305 = vpack.c.b16 %v1049, %v1033
  %v1306 = vpack.c.b16 %v1050, %v1034
  %v1307 = vpack.c.b16 %v1051, %v1035
  %v1308 = vpack.c.b16 %v1052, %v1036
  %v1309 = vpack.c.b16 %v1053, %v1037
  %v1310 = vpack.c.b16 %v1054, %v1038
  %v1311 = vpack.c.b16 %v1055, %v1039
  %v1312 = vpack.c.b16 %v1056, %v1040
  %v1313 = vpack.c.b16 %v1057, %v1041
  %v1314 = vpack.c.b16 %v1058, %v1042
  %v1315 = vpack.c.b16 %v1059, %v1043
  %v1316 = vpack.c.b16 %v1060, %v1044
  %v1317 = vpack.c.b16 %v1061, %v1045
  %v1318 = vpack.c.b16 %v1062, %v1046
  %v1319 = vpack.c.b16 %v1063, %v1047
  %v1320 = vpack.c.b16 %v1064, %v1048
  %1577 = vmatprep.subr.bf16.mxu0 %v1066
  %1578 = vmatpush1.bf16.msra.mxu0 %v1065
  %1579 = vmatprep.subr.bf16.mxu0 %v1082
  %1580 = vmatpush1.bf16.msra.mxu0 %v1081
  %1581 = vmatprep.subr.bf16.mxu0 %v1098
  %1582 = vmatpush1.bf16.msra.mxu0 %v1097
  %1583 = vmatprep.subr.bf16.mxu0 %v1114
  %1584 = vmatpush1.bf16.msra.mxu0 %v1113
  %1585 = vmatprep.subr.bf16.mxu0 %v1130
  %1586 = vmatpush1.bf16.msra.mxu0 %v1129
  %1587 = vmatprep.subr.bf16.mxu0 %v1146
  %1588 = vmatpush1.bf16.msra.mxu0 %v1145
  %1589 = vmatprep.subr.bf16.mxu0 %v1162
  %1590 = vmatpush1.bf16.msra.mxu0 %v1161
  %1591 = vmatprep.subr.bf16.mxu0 %v1178
  %1592 = vmatpush1.bf16.msra.mxu0 %v1177
  %1593 = vmatprep.subr.bf16.mxu0 %v1194
  %1594 = vmatpush1.bf16.msra.mxu0 %v1193
  %1595 = vmatprep.subr.bf16.mxu0 %v1210
  %1596 = vmatpush1.bf16.msra.mxu0 %v1209
  %1597 = vmatprep.subr.bf16.mxu0 %v1226
  %1598 = vmatpush1.bf16.msra.mxu0 %v1225
  %1599 = vmatprep.subr.bf16.mxu0 %v1242
  %1600 = vmatpush1.bf16.msra.mxu0 %v1241
  %1601 = vmatprep.subr.bf16.mxu0 %v1258
  %1602 = vmatpush1.bf16.msra.mxu0 %v1257
  %1603 = vmatprep.subr.bf16.mxu0 %v1274
  %1604 = vmatpush1.bf16.msra.mxu0 %v1273
  %1605 = vmatprep.subr.bf16.mxu0 %v1290
  %1606 = vmatpush1.bf16.msra.mxu0 %v1289
  %1607 = vmatprep.subr.bf16.mxu0 %v1306
  %1608 = vmatpush1.bf16.msra.mxu0 %v1305
  %1609 = vmatprep.mubr.bf16.mxu0 %v290
  %1610 = vmatmul.mubr.bf16.gmra.mrb[0].mxu0 %v289
  %v1611 = vpop.f32.mrb[0].mxu0
  %v1612 = vadd.f32 0.0, %v1611
  %v1613 = vpop.f32.mrb[0].mxu0
  %v1614 = vadd.f32 0.0, %v1613
  %v1615 = vpop.f32.mrb[0].mxu0
  %v1616 = vadd.f32 0.0, %v1615
  %v1617 = vpop.f32.mrb[0].mxu0
  %v1618 = vadd.f32 0.0, %v1617
  %1619 = vmatprep.mubr.bf16.mxu0 %v292
  %1620 = vmatmul.mubr.bf16.gmra.mrb[0].mxu0 %v291
  %v1621 = vpop.f32.mrb[0].mxu0
  %v1622 = vadd.f32 0.0, %v1621
  %v1623 = vpop.f32.mrb[0].mxu0
  %v1624 = vadd.f32 0.0, %v1623
  %v1625 = vpop.f32.mrb[0].mxu0
  %v1626 = vadd.f32 0.0, %v1625
  %v1627 = vpop.f32.mrb[0].mxu0
  %v1628 = vadd.f32 0.0, %v1627
  %1629 = vdwg.mxu0
  %1630 = vmatprep.subr.bf16.mxu0 %v1068
  %1631 = vmatpush1.bf16.msra.mxu0 %v1067
  %1632 = vmatprep.subr.bf16.mxu0 %v1084
  %1633 = vmatpush1.bf16.msra.mxu0 %v1083
  %1634 = vmatprep.subr.bf16.mxu0 %v1100
  %1635 = vmatpush1.bf16.msra.mxu0 %v1099
  %1636 = vmatprep.subr.bf16.mxu0 %v1116
  %1637 = vmatpush1.bf16.msra.mxu0 %v1115
  %1638 = vmatprep.subr.bf16.mxu0 %v1132
  %1639 = vmatpush1.bf16.msra.mxu0 %v1131
  %1640 = vmatprep.subr.bf16.mxu0 %v1148
  %1641 = vmatpush1.bf16.msra.mxu0 %v1147
  %1642 = vmatprep.subr.bf16.mxu0 %v1164
  %1643 = vmatpush1.bf16.msra.mxu0 %v1163
  %1644 = vmatprep.subr.bf16.mxu0 %v1180
  %1645 = vmatpush1.bf16.msra.mxu0 %v1179
  %1646 = vmatprep.subr.bf16.mxu0 %v1196
  %1647 = vmatpush1.bf16.msra.mxu0 %v1195
  %1648 = vmatprep.subr.bf16.mxu0 %v1212
  %1649 = vmatpush1.bf16.msra.mxu0 %v1211
  %1650 = vmatprep.subr.bf16.mxu0 %v1228
  %1651 = vmatpush1.bf16.msra.mxu0 %v1227
  %1652 = vmatprep.subr.bf16.mxu0 %v1244
  %1653 = vmatpush1.bf16.msra.mxu0 %v1243
  %1654 = vmatprep.subr.bf16.mxu0 %v1260
  %1655 = vmatpush1.bf16.msra.mxu0 %v1259
  %1656 = vmatprep.subr.bf16.mxu0 %v1276
  %1657 = vmatpush1.bf16.msra.mxu0 %v1275
  %1658 = vmatprep.subr.bf16.mxu0 %v1292
  %1659 = vmatpush1.bf16.msra.mxu0 %v1291
  %1660 = vmatprep.subr.bf16.mxu0 %v1308
  %1661 = vmatpush1.bf16.msra.mxu0 %v1307
  %1662 = vmatprep.mubr.bf16.mxu0 %v290
  %1663 = vmatmul.mubr.bf16.gmra.mrb[0].mxu0 %v289
  %v1664 = vpop.f32.mrb[0].mxu0
  %v1665 = vadd.f32 0.0, %v1664
  %v1666 = vpop.f32.mrb[0].mxu0
  %v1667 = vadd.f32 0.0, %v1666
  %v1668 = vpop.f32.mrb[0].mxu0
  %v1669 = vadd.f32 0.0, %v1668
  %v1670 = vpop.f32.mrb[0].mxu0
  %v1671 = vadd.f32 0.0, %v1670
  %1672 = vmatprep.mubr.bf16.mxu0 %v292
  %1673 = vmatmul.mubr.bf16.gmra.mrb[0].mxu0 %v291
  %v1674 = vpop.f32.mrb[0].mxu0
  %v1675 = vadd.f32 0.0, %v1674
  %v1676 = vpop.f32.mrb[0].mxu0
  %v1677 = vadd.f32 0.0, %v1676
  %v1678 = vpop.f32.mrb[0].mxu0
  %v1679 = vadd.f32 0.0, %v1678
  %v1680 = vpop.f32.mrb[0].mxu0
  %v1681 = vadd.f32 0.0, %v1680
  %1682 = vdwg.mxu0
  %1683 = vmatprep.subr.bf16.mxu0 %v1070
  %1684 = vmatpush1.bf16.msra.mxu0 %v1069
  %1685 = vmatprep.subr.bf16.mxu0 %v1086
  %1686 = vmatpush1.bf16.msra.mxu0 %v1085
  %1687 = vmatprep.subr.bf16.mxu0 %v1102
  %1688 = vmatpush1.bf16.msra.mxu0 %v1101
  %1689 = vmatprep.subr.bf16.mxu0 %v1118
  %1690 = vmatpush1.bf16.msra.mxu0 %v1117
  %1691 = vmatprep.subr.bf16.mxu0 %v1134
  %1692 = vmatpush1.bf16.msra.mxu0 %v1133
  %1693 = vmatprep.subr.bf16.mxu0 %v1150
  %1694 = vmatpush1.bf16.msra.mxu0 %v1149
  %1695 = vmatprep.subr.bf16.mxu0 %v1166
  %1696 = vmatpush1.bf16.msra.mxu0 %v1165
  %1697 = vmatprep.subr.bf16.mxu0 %v1182
  %1698 = vmatpush1.bf16.msra.mxu0 %v1181
  %1699 = vmatprep.subr.bf16.mxu0 %v1198
  %1700 = vmatpush1.bf16.msra.mxu0 %v1197
  %1701 = vmatprep.subr.bf16.mxu0 %v1214
  %1702 = vmatpush1.bf16.msra.mxu0 %v1213
  %1703 = vmatprep.subr.bf16.mxu0 %v1230
  %1704 = vmatpush1.bf16.msra.mxu0 %v1229
  %1705 = vmatprep.subr.bf16.mxu0 %v1246
  %1706 = vmatpush1.bf16.msra.mxu0 %v1245
  %1707 = vmatprep.subr.bf16.mxu0 %v1262
  %1708 = vmatpush1.bf16.msra.mxu0 %v1261
  %1709 = vmatprep.subr.bf16.mxu0 %v1278
  %1710 = vmatpush1.bf16.msra.mxu0 %v1277
  %1711 = vmatprep.subr.bf16.mxu0 %v1294
  %1712 = vmatpush1.bf16.msra.mxu0 %v1293
  %1713 = vmatprep.subr.bf16.mxu0 %v1310
  %1714 = vmatpush1.bf16.msra.mxu0 %v1309
  %1715 = vmatprep.mubr.bf16.mxu0 %v290
  %1716 = vmatmul.mubr.bf16.gmra.mrb[0].mxu0 %v289
  %v1717 = vpop.f32.mrb[0].mxu0
  %v1718 = vadd.f32 0.0, %v1717
  %v1719 = vpop.f32.mrb[0].mxu0
  %v1720 = vadd.f32 0.0, %v1719
  %v1721 = vpop.f32.mrb[0].mxu0
  %v1722 = vadd.f32 0.0, %v1721
  %v1723 = vpop.f32.mrb[0].mxu0
  %v1724 = vadd.f32 0.0, %v1723
  %1725 = vmatprep.mubr.bf16.mxu0 %v292
  %1726 = vmatmul.mubr.bf16.gmra.mrb[0].mxu0 %v291
  %v1727 = vpop.f32.mrb[0].mxu0
  %v1728 = vadd.f32 0.0, %v1727
  %v1729 = vpop.f32.mrb[0].mxu0
  %v1730 = vadd.f32 0.0, %v1729
  %v1731 = vpop.f32.mrb[0].mxu0
  %v1732 = vadd.f32 0.0, %v1731
  %v1733 = vpop.f32.mrb[0].mxu0
  %v1734 = vadd.f32 0.0, %v1733
  %1735 = vdwg.mxu0
  %1736 = vmatprep.subr.bf16.mxu0 %v1072
  %1737 = vmatpush1.bf16.msra.mxu0 %v1071
  %1738 = vmatprep.subr.bf16.mxu0 %v1088
  %1739 = vmatpush1.bf16.msra.mxu0 %v1087
  %1740 = vmatprep.subr.bf16.mxu0 %v1104
  %1741 = vmatpush1.bf16.msra.mxu0 %v1103
  %1742 = vmatprep.subr.bf16.mxu0 %v1120
  %1743 = vmatpush1.bf16.msra.mxu0 %v1119
  %1744 = vmatprep.subr.bf16.mxu0 %v1136
  %1745 = vmatpush1.bf16.msra.mxu0 %v1135
  %1746 = vmatprep.subr.bf16.mxu0 %v1152
  %1747 = vmatpush1.bf16.msra.mxu0 %v1151
  %1748 = vmatprep.subr.bf16.mxu0 %v1168
  %1749 = vmatpush1.bf16.msra.mxu0 %v1167
  %1750 = vmatprep.subr.bf16.mxu0 %v1184
  %1751 = vmatpush1.bf16.msra.mxu0 %v1183
  %1752 = vmatprep.subr.bf16.mxu0 %v1200
  %1753 = vmatpush1.bf16.msra.mxu0 %v1199
  %1754 = vmatprep.subr.bf16.mxu0 %v1216
  %1755 = vmatpush1.bf16.msra.mxu0 %v1215
  %1756 = vmatprep.subr.bf16.mxu0 %v1232
  %1757 = vmatpush1.bf16.msra.mxu0 %v1231
  %1758 = vmatprep.subr.bf16.mxu0 %v1248
  %1759 = vmatpush1.bf16.msra.mxu0 %v1247
  %1760 = vmatprep.subr.bf16.mxu0 %v1264
  %1761 = vmatpush1.bf16.msra.mxu0 %v1263
  %1762 = vmatprep.subr.bf16.mxu0 %v1280
  %1763 = vmatpush1.bf16.msra.mxu0 %v1279
  %1764 = vmatprep.subr.bf16.mxu0 %v1296
  %1765 = vmatpush1.bf16.msra.mxu0 %v1295
  %1766 = vmatprep.subr.bf16.mxu0 %v1312
  %1767 = vmatpush1.bf16.msra.mxu0 %v1311
  %1768 = vmatprep.mubr.bf16.mxu0 %v290
  %1769 = vmatmul.mubr.bf16.gmra.mrb[0].mxu0 %v289
  %v1770 = vpop.f32.mrb[0].mxu0
  %v1771 = vadd.f32 0.0, %v1770
  %v1772 = vpop.f32.mrb[0].mxu0
  %v1773 = vadd.f32 0.0, %v1772
  %v1774 = vpop.f32.mrb[0].mxu0
  %v1775 = vadd.f32 0.0, %v1774
  %v1776 = vpop.f32.mrb[0].mxu0
  %v1777 = vadd.f32 0.0, %v1776
  %1778 = vmatprep.mubr.bf16.mxu0 %v292
  %1779 = vmatmul.mubr.bf16.gmra.mrb[0].mxu0 %v291
  %v1780 = vpop.f32.mrb[0].mxu0
  %v1781 = vadd.f32 0.0, %v1780
  %v1782 = vpop.f32.mrb[0].mxu0
  %v1783 = vadd.f32 0.0, %v1782
  %v1784 = vpop.f32.mrb[0].mxu0
  %v1785 = vadd.f32 0.0, %v1784
  %v1786 = vpop.f32.mrb[0].mxu0
  %v1787 = vadd.f32 0.0, %v1786
  %1788 = vdwg.mxu0
  %1789 = vmatprep.subr.bf16.mxu0 %v1074
  %1790 = vmatpush1.bf16.msra.mxu0 %v1073
  %1791 = vmatprep.subr.bf16.mxu0 %v1090
  %1792 = vmatpush1.bf16.msra.mxu0 %v1089
  %1793 = vmatprep.subr.bf16.mxu0 %v1106
  %1794 = vmatpush1.bf16.msra.mxu0 %v1105
  %1795 = vmatprep.subr.bf16.mxu0 %v1122
  %1796 = vmatpush1.bf16.msra.mxu0 %v1121
  %1797 = vmatprep.subr.bf16.mxu0 %v1138
  %1798 = vmatpush1.bf16.msra.mxu0 %v1137
  %1799 = vmatprep.subr.bf16.mxu0 %v1154
  %1800 = vmatpush1.bf16.msra.mxu0 %v1153
  %1801 = vmatprep.subr.bf16.mxu0 %v1170
  %1802 = vmatpush1.bf16.msra.mxu0 %v1169
  %1803 = vmatprep.subr.bf16.mxu0 %v1186
  %1804 = vmatpush1.bf16.msra.mxu0 %v1185
  %1805 = vmatprep.subr.bf16.mxu0 %v1202
  %1806 = vmatpush1.bf16.msra.mxu0 %v1201
  %1807 = vmatprep.subr.bf16.mxu0 %v1218
  %1808 = vmatpush1.bf16.msra.mxu0 %v1217
  %1809 = vmatprep.subr.bf16.mxu0 %v1234
  %1810 = vmatpush1.bf16.msra.mxu0 %v1233
  %1811 = vmatprep.subr.bf16.mxu0 %v1250
  %1812 = vmatpush1.bf16.msra.mxu0 %v1249
  %1813 = vmatprep.subr.bf16.mxu0 %v1266
  %1814 = vmatpush1.bf16.msra.mxu0 %v1265
  %1815 = vmatprep.subr.bf16.mxu0 %v1282
  %1816 = vmatpush1.bf16.msra.mxu0 %v1281
  %1817 = vmatprep.subr.bf16.mxu0 %v1298
  %1818 = vmatpush1.bf16.msra.mxu0 %v1297
  %1819 = vmatprep.subr.bf16.mxu0 %v1314
  %1820 = vmatpush1.bf16.msra.mxu0 %v1313
  %1821 = vmatprep.mubr.bf16.mxu0 %v290
  %1822 = vmatmul.mubr.bf16.gmra.mrb[0].mxu0 %v289
  %v1823 = vpop.f32.mrb[0].mxu0
  %v1824 = vadd.f32 0.0, %v1823
  %v1825 = vpop.f32.mrb[0].mxu0
  %v1826 = vadd.f32 0.0, %v1825
  %v1827 = vpop.f32.mrb[0].mxu0
  %v1828 = vadd.f32 0.0, %v1827
  %v1829 = vpop.f32.mrb[0].mxu0
  %v1830 = vadd.f32 0.0, %v1829
  %1831 = vmatprep.mubr.bf16.mxu0 %v292
  %1832 = vmatmul.mubr.bf16.gmra.mrb[0].mxu0 %v291
  %v1833 = vpop.f32.mrb[0].mxu0
  %v1834 = vadd.f32 0.0, %v1833
  %v1835 = vpop.f32.mrb[0].mxu0
  %v1836 = vadd.f32 0.0, %v1835
  %v1837 = vpop.f32.mrb[0].mxu0
  %v1838 = vadd.f32 0.0, %v1837
  %v1839 = vpop.f32.mrb[0].mxu0
  %v1840 = vadd.f32 0.0, %v1839
  %1841 = vdwg.mxu0
  %1842 = vmatprep.subr.bf16.mxu0 %v1076
  %1843 = vmatpush1.bf16.msra.mxu0 %v1075
  %1844 = vmatprep.subr.bf16.mxu0 %v1092
  %1845 = vmatpush1.bf16.msra.mxu0 %v1091
  %1846 = vmatprep.subr.bf16.mxu0 %v1108
  %1847 = vmatpush1.bf16.msra.mxu0 %v1107
  %1848 = vmatprep.subr.bf16.mxu0 %v1124
  %1849 = vmatpush1.bf16.msra.mxu0 %v1123
  %1850 = vmatprep.subr.bf16.mxu0 %v1140
  %1851 = vmatpush1.bf16.msra.mxu0 %v1139
  %1852 = vmatprep.subr.bf16.mxu0 %v1156
  %1853 = vmatpush1.bf16.msra.mxu0 %v1155
  %1854 = vmatprep.subr.bf16.mxu0 %v1172
  %1855 = vmatpush1.bf16.msra.mxu0 %v1171
  %1856 = vmatprep.subr.bf16.mxu0 %v1188
  %1857 = vmatpush1.bf16.msra.mxu0 %v1187
  %1858 = vmatprep.subr.bf16.mxu0 %v1204
  %1859 = vmatpush1.bf16.msra.mxu0 %v1203
  %1860 = vmatprep.subr.bf16.mxu0 %v1220
  %1861 = vmatpush1.bf16.msra.mxu0 %v1219
  %1862 = vmatprep.subr.bf16.mxu0 %v1236
  %1863 = vmatpush1.bf16.msra.mxu0 %v1235
  %1864 = vmatprep.subr.bf16.mxu0 %v1252
  %1865 = vmatpush1.bf16.msra.mxu0 %v1251
  %1866 = vmatprep.subr.bf16.mxu0 %v1268
  %1867 = vmatpush1.bf16.msra.mxu0 %v1267
  %1868 = vmatprep.subr.bf16.mxu0 %v1284
  %1869 = vmatpush1.bf16.msra.mxu0 %v1283
  %1870 = vmatprep.subr.bf16.mxu0 %v1300
  %1871 = vmatpush1.bf16.msra.mxu0 %v1299
  %1872 = vmatprep.subr.bf16.mxu0 %v1316
  %1873 = vmatpush1.bf16.msra.mxu0 %v1315
  %1874 = vmatprep.mubr.bf16.mxu0 %v290
  %1875 = vmatmul.mubr.bf16.gmra.mrb[0].mxu0 %v289
  %v1876 = vpop.f32.mrb[0].mxu0
  %v1877 = vadd.f32 0.0, %v1876
  %v1878 = vpop.f32.mrb[0].mxu0
  %v1879 = vadd.f32 0.0, %v1878
  %v1880 = vpop.f32.mrb[0].mxu0
  %v1881 = vadd.f32 0.0, %v1880
  %v1882 = vpop.f32.mrb[0].mxu0
  %v1883 = vadd.f32 0.0, %v1882
  %1884 = vmatprep.mubr.bf16.mxu0 %v292
  %1885 = vmatmul.mubr.bf16.gmra.mrb[0].mxu0 %v291
  %v1886 = vpop.f32.mrb[0].mxu0
  %v1887 = vadd.f32 0.0, %v1886
  %v1888 = vpop.f32.mrb[0].mxu0
  %v1889 = vadd.f32 0.0, %v1888
  %v1890 = vpop.f32.mrb[0].mxu0
  %v1891 = vadd.f32 0.0, %v1890
  %v1892 = vpop.f32.mrb[0].mxu0
  %v1893 = vadd.f32 0.0, %v1892
  %1894 = vdwg.mxu0
  %1895 = vmatprep.subr.bf16.mxu0 %v1078
  %1896 = vmatpush1.bf16.msra.mxu0 %v1077
  %1897 = vmatprep.subr.bf16.mxu0 %v1094
  %1898 = vmatpush1.bf16.msra.mxu0 %v1093
  %1899 = vmatprep.subr.bf16.mxu0 %v1110
  %1900 = vmatpush1.bf16.msra.mxu0 %v1109
  %1901 = vmatprep.subr.bf16.mxu0 %v1126
  %1902 = vmatpush1.bf16.msra.mxu0 %v1125
  %1903 = vmatprep.subr.bf16.mxu0 %v1142
  %1904 = vmatpush1.bf16.msra.mxu0 %v1141
  %1905 = vmatprep.subr.bf16.mxu0 %v1158
  %1906 = vmatpush1.bf16.msra.mxu0 %v1157
  %1907 = vmatprep.subr.bf16.mxu0 %v1174
  %1908 = vmatpush1.bf16.msra.mxu0 %v1173
  %1909 = vmatprep.subr.bf16.mxu0 %v1190
  %1910 = vmatpush1.bf16.msra.mxu0 %v1189
  %1911 = vmatprep.subr.bf16.mxu0 %v1206
  %1912 = vmatpush1.bf16.msra.mxu0 %v1205
  %1913 = vmatprep.subr.bf16.mxu0 %v1222
  %1914 = vmatpush1.bf16.msra.mxu0 %v1221
  %1915 = vmatprep.subr.bf16.mxu0 %v1238
  %1916 = vmatpush1.bf16.msra.mxu0 %v1237
  %1917 = vmatprep.subr.bf16.mxu0 %v1254
  %1918 = vmatpush1.bf16.msra.mxu0 %v1253
  %1919 = vmatprep.subr.bf16.mxu0 %v1270
  %1920 = vmatpush1.bf16.msra.mxu0 %v1269
  %1921 = vmatprep.subr.bf16.mxu0 %v1286
  %1922 = vmatpush1.bf16.msra.mxu0 %v1285
  %1923 = vmatprep.subr.bf16.mxu0 %v1302
  %1924 = vmatpush1.bf16.msra.mxu0 %v1301
  %1925 = vmatprep.subr.bf16.mxu0 %v1318
  %1926 = vmatpush1.bf16.msra.mxu0 %v1317
  %1927 = vmatprep.mubr.bf16.mxu0 %v290
  %1928 = vmatmul.mubr.bf16.gmra.mrb[0].mxu0 %v289
  %v1929 = vpop.f32.mrb[0].mxu0
  %v1930 = vadd.f32 0.0, %v1929
  %v1931 = vpop.f32.mrb[0].mxu0
  %v1932 = vadd.f32 0.0, %v1931
  %v1933 = vpop.f32.mrb[0].mxu0
  %v1934 = vadd.f32 0.0, %v1933
  %v1935 = vpop.f32.mrb[0].mxu0
  %v1936 = vadd.f32 0.0, %v1935
  %1937 = vmatprep.mubr.bf16.mxu0 %v292
  %1938 = vmatmul.mubr.bf16.gmra.mrb[0].mxu0 %v291
  %v1939 = vpop.f32.mrb[0].mxu0
  %v1940 = vadd.f32 0.0, %v1939
  %v1941 = vpop.f32.mrb[0].mxu0
  %v1942 = vadd.f32 0.0, %v1941
  %v1943 = vpop.f32.mrb[0].mxu0
  %v1944 = vadd.f32 0.0, %v1943
  %v1945 = vpop.f32.mrb[0].mxu0
  %v1946 = vadd.f32 0.0, %v1945
  %1947 = vdwg.mxu0
  %1948 = vmatprep.subr.bf16.mxu0 %v1080
  %1949 = vmatpush1.bf16.msra.mxu0 %v1079
  %1950 = vmatprep.subr.bf16.mxu0 %v1096
  %1951 = vmatpush1.bf16.msra.mxu0 %v1095
  %1952 = vmatprep.subr.bf16.mxu0 %v1112
  %1953 = vmatpush1.bf16.msra.mxu0 %v1111
  %1954 = vmatprep.subr.bf16.mxu0 %v1128
  %1955 = vmatpush1.bf16.msra.mxu0 %v1127
  %1956 = vmatprep.subr.bf16.mxu0 %v1144
  %1957 = vmatpush1.bf16.msra.mxu0 %v1143
  %1958 = vmatprep.subr.bf16.mxu0 %v1160
  %1959 = vmatpush1.bf16.msra.mxu0 %v1159
  %1960 = vmatprep.subr.bf16.mxu0 %v1176
  %1961 = vmatpush1.bf16.msra.mxu0 %v1175
  %1962 = vmatprep.subr.bf16.mxu0 %v1192
  %1963 = vmatpush1.bf16.msra.mxu0 %v1191
  %1964 = vmatprep.subr.bf16.mxu0 %v1208
  %1965 = vmatpush1.bf16.msra.mxu0 %v1207
  %1966 = vmatprep.subr.bf16.mxu0 %v1224
  %1967 = vmatpush1.bf16.msra.mxu0 %v1223
  %1968 = vmatprep.subr.bf16.mxu0 %v1240
  %1969 = vmatpush1.bf16.msra.mxu0 %v1239
  %1970 = vmatprep.subr.bf16.mxu0 %v1256
  %1971 = vmatpush1.bf16.msra.mxu0 %v1255
  %1972 = vmatprep.subr.bf16.mxu0 %v1272
  %1973 = vmatpush1.bf16.msra.mxu0 %v1271
  %1974 = vmatprep.subr.bf16.mxu0 %v1288
  %1975 = vmatpush1.bf16.msra.mxu0 %v1287
  %1976 = vmatprep.subr.bf16.mxu0 %v1304
  %1977 = vmatpush1.bf16.msra.mxu0 %v1303
  %1978 = vmatprep.subr.bf16.mxu0 %v1320
  %1979 = vmatpush1.bf16.msra.mxu0 %v1319
  %1980 = vmatprep.mubr.bf16.mxu0 %v290
  %1981 = vmatmul.mubr.bf16.gmra.mrb[0].mxu0 %v289
  %v1982 = vpop.f32.mrb[0].mxu0
  %v1983 = vadd.f32 0.0, %v1982
  %v1984 = vpop.f32.mrb[0].mxu0
  %v1985 = vadd.f32 0.0, %v1984
  %v1986 = vpop.f32.mrb[0].mxu0
  %v1987 = vadd.f32 0.0, %v1986
  %v1988 = vpop.f32.mrb[0].mxu0
  %v1989 = vadd.f32 0.0, %v1988
  %1990 = vmatprep.mubr.bf16.mxu0 %v292
  %1991 = vmatmul.mubr.bf16.gmra.mrb[0].mxu0 %v291
  %v1992 = vpop.f32.mrb[0].mxu0
  %v1993 = vadd.f32 0.0, %v1992
  %v1994 = vpop.f32.mrb[0].mxu0
  %v1995 = vadd.f32 0.0, %v1994
  %v1996 = vpop.f32.mrb[0].mxu0
  %v1997 = vadd.f32 0.0, %v1996
  %v1998 = vpop.f32.mrb[0].mxu0
  %v1999 = vadd.f32 0.0, %v1998
  %2000 = vdwg.mxu0
  %v2001 = vadd.f32 %v1612, %v1614
  %v2002 = vadd.f32 %v2001, %v1665
  %v2003 = vadd.f32 %v2002, %v1667
  %v2004 = vadd.f32 %v2003, %v1718
  %v2005 = vadd.f32 %v2004, %v1720
  %v2006 = vadd.f32 %v2005, %v1771
  %v2007 = vadd.f32 %v2006, %v1773
  %v2008 = vadd.f32 %v2007, %v1824
  %v2009 = vadd.f32 %v2008, %v1826
  %v2010 = vadd.f32 %v2009, %v1877
  %v2011 = vadd.f32 %v2010, %v1879
  %v2012 = vadd.f32 %v2011, %v1930
  %v2013 = vadd.f32 %v2012, %v1932
  %v2014 = vadd.f32 %v2013, %v1983
  %v2015 = vadd.f32 %v2014, %v1985
  %2016 = vadd.xlane.f32.xlu0 %v2015
  %v2017 = vpop.xlane.xlu0 %2016
  %v2018 = vadd.f32 %v1616, %v1618
  %v2019 = vadd.f32 %v2018, %v1669
  %v2020 = vadd.f32 %v2019, %v1671
  %v2021 = vadd.f32 %v2020, %v1722
  %v2022 = vadd.f32 %v2021, %v1724
  %v2023 = vadd.f32 %v2022, %v1775
  %v2024 = vadd.f32 %v2023, %v1777
  %v2025 = vadd.f32 %v2024, %v1828
  %v2026 = vadd.f32 %v2025, %v1830
  %v2027 = vadd.f32 %v2026, %v1881
  %v2028 = vadd.f32 %v2027, %v1883
  %v2029 = vadd.f32 %v2028, %v1934
  %v2030 = vadd.f32 %v2029, %v1936
  %v2031 = vadd.f32 %v2030, %v1987
  %v2032 = vadd.f32 %v2031, %v1989
  %2033 = vadd.xlane.f32.xlu0 %v2032
  %v2034 = vpop.xlane.xlu0 %2033
  %v2035 = vadd.f32 %v1622, %v1624
  %v2036 = vadd.f32 %v2035, %v1675
  %v2037 = vadd.f32 %v2036, %v1677
  %v2038 = vadd.f32 %v2037, %v1728
  %v2039 = vadd.f32 %v2038, %v1730
  %v2040 = vadd.f32 %v2039, %v1781
  %v2041 = vadd.f32 %v2040, %v1783
  %v2042 = vadd.f32 %v2041, %v1834
  %v2043 = vadd.f32 %v2042, %v1836
  %v2044 = vadd.f32 %v2043, %v1887
  %v2045 = vadd.f32 %v2044, %v1889
  %v2046 = vadd.f32 %v2045, %v1940
  %v2047 = vadd.f32 %v2046, %v1942
  %v2048 = vadd.f32 %v2047, %v1993
  %v2049 = vadd.f32 %v2048, %v1995
  %2050 = vadd.xlane.f32.xlu0 %v2049
  %v2051 = vpop.xlane.xlu0 %2050
  %v2052 = vadd.f32 %v1626, %v1628
  %v2053 = vadd.f32 %v2052, %v1679
  %v2054 = vadd.f32 %v2053, %v1681
  %v2055 = vadd.f32 %v2054, %v1732
  %v2056 = vadd.f32 %v2055, %v1734
  %v2057 = vadd.f32 %v2056, %v1785
  %v2058 = vadd.f32 %v2057, %v1787
  %v2059 = vadd.f32 %v2058, %v1838
  %v2060 = vadd.f32 %v2059, %v1840
  %v2061 = vadd.f32 %v2060, %v1891
  %v2062 = vadd.f32 %v2061, %v1893
  %v2063 = vadd.f32 %v2062, %v1944
  %v2064 = vadd.f32 %v2063, %v1946
  %v2065 = vadd.f32 %v2064, %v1997
  %v2066 = vadd.f32 %v2065, %v1999
  %2067 = vadd.xlane.f32.xlu0 %v2066
  %v2068 = vpop.xlane.xlu0 %2067
  %v2069 = vmul.f32 %v2017, 0.00048828125
  %v2070 = vmul.f32 %v2034, 0.00048828125
  %v2071 = vmul.f32 %v2051, 0.00048828125
  %v2072 = vmul.f32 %v2068, 0.00048828125
  %v2073 = vmul.f32 %v1612, %v1612
  %v2074 = vmul.f32 %v1614, %v1614
  %v2075 = vmul.f32 %v1665, %v1665
  %v2076 = vmul.f32 %v1667, %v1667
  %v2077 = vmul.f32 %v1718, %v1718
  %v2078 = vmul.f32 %v1720, %v1720
  %v2079 = vmul.f32 %v1771, %v1771
  %v2080 = vmul.f32 %v1773, %v1773
  %v2081 = vmul.f32 %v1824, %v1824
  %v2082 = vmul.f32 %v1826, %v1826
  %v2083 = vmul.f32 %v1877, %v1877
  %v2084 = vmul.f32 %v1879, %v1879
  %v2085 = vmul.f32 %v1930, %v1930
  %v2086 = vmul.f32 %v1932, %v1932
  %v2087 = vmul.f32 %v1983, %v1983
  %v2088 = vmul.f32 %v1985, %v1985
  %v2089 = vmul.f32 %v1616, %v1616
  %v2090 = vmul.f32 %v1618, %v1618
  %v2091 = vmul.f32 %v1669, %v1669
  %v2092 = vmul.f32 %v1671, %v1671
  %v2093 = vmul.f32 %v1722, %v1722
  %v2094 = vmul.f32 %v1724, %v1724
  %v2095 = vmul.f32 %v1775, %v1775
  %v2096 = vmul.f32 %v1777, %v1777
  %v2097 = vmul.f32 %v1828, %v1828
  %v2098 = vmul.f32 %v1830, %v1830
  %v2099 = vmul.f32 %v1881, %v1881
  %v2100 = vmul.f32 %v1883, %v1883
  %v2101 = vmul.f32 %v1934, %v1934
  %v2102 = vmul.f32 %v1936, %v1936
  %v2103 = vmul.f32 %v1987, %v1987
  %v2104 = vmul.f32 %v1989, %v1989
  %v2105 = vmul.f32 %v1622, %v1622
  %v2106 = vmul.f32 %v1624, %v1624
  %v2107 = vmul.f32 %v1675, %v1675
  %v2108 = vmul.f32 %v1677, %v1677
  %v2109 = vmul.f32 %v1728, %v1728
  %v2110 = vmul.f32 %v1730, %v1730
  %v2111 = vmul.f32 %v1781, %v1781
  %v2112 = vmul.f32 %v1783, %v1783
  %v2113 = vmul.f32 %v1834, %v1834
  %v2114 = vmul.f32 %v1836, %v1836
  %v2115 = vmul.f32 %v1887, %v1887
  %v2116 = vmul.f32 %v1889, %v1889
  %v2117 = vmul.f32 %v1940, %v1940
  %v2118 = vmul.f32 %v1942, %v1942
  %v2119 = vmul.f32 %v1993, %v1993
  %v2120 = vmul.f32 %v1995, %v1995
  %v2121 = vmul.f32 %v1626, %v1626
  %v2122 = vmul.f32 %v1628, %v1628
  %v2123 = vmul.f32 %v1679, %v1679
  %v2124 = vmul.f32 %v1681, %v1681
  %v2125 = vmul.f32 %v1732, %v1732
  %v2126 = vmul.f32 %v1734, %v1734
  %v2127 = vmul.f32 %v1785, %v1785
  %v2128 = vmul.f32 %v1787, %v1787
  %v2129 = vmul.f32 %v1838, %v1838
  %v2130 = vmul.f32 %v1840, %v1840
  %v2131 = vmul.f32 %v1891, %v1891
  %v2132 = vmul.f32 %v1893, %v1893
  %v2133 = vmul.f32 %v1944, %v1944
  %v2134 = vmul.f32 %v1946, %v1946
  %v2135 = vmul.f32 %v1997, %v1997
  %v2136 = vmul.f32 %v1999, %v1999
  %v2137 = vadd.f32 %v2073, %v2074
  %v2138 = vadd.f32 %v2137, %v2075
  %v2139 = vadd.f32 %v2138, %v2076
  %v2140 = vadd.f32 %v2139, %v2077
  %v2141 = vadd.f32 %v2140, %v2078
  %v2142 = vadd.f32 %v2141, %v2079
  %v2143 = vadd.f32 %v2142, %v2080
  %v2144 = vadd.f32 %v2143, %v2081
  %v2145 = vadd.f32 %v2144, %v2082
  %v2146 = vadd.f32 %v2145, %v2083
  %v2147 = vadd.f32 %v2146, %v2084
  %v2148 = vadd.f32 %v2147, %v2085
  %v2149 = vadd.f32 %v2148, %v2086
  %v2150 = vadd.f32 %v2149, %v2087
  %v2151 = vadd.f32 %v2150, %v2088
  %2152 = vadd.xlane.f32.xlu0 %v2151
  %v2153 = vpop.xlane.xlu0 %2152
  %v2154 = vadd.f32 %v2089, %v2090
  %v2155 = vadd.f32 %v2154, %v2091
  %v2156 = vadd.f32 %v2155, %v2092
  %v2157 = vadd.f32 %v2156, %v2093
  %v2158 = vadd.f32 %v2157, %v2094
  %v2159 = vadd.f32 %v2158, %v2095
  %v2160 = vadd.f32 %v2159, %v2096
  %v2161 = vadd.f32 %v2160, %v2097
  %v2162 = vadd.f32 %v2161, %v2098
  %v2163 = vadd.f32 %v2162, %v2099
  %v2164 = vadd.f32 %v2163, %v2100
  %v2165 = vadd.f32 %v2164, %v2101
  %v2166 = vadd.f32 %v2165, %v2102
  %v2167 = vadd.f32 %v2166, %v2103
  %v2168 = vadd.f32 %v2167, %v2104
  %2169 = vadd.xlane.f32.xlu0 %v2168
  %v2170 = vpop.xlane.xlu0 %2169
  %v2171 = vadd.f32 %v2105, %v2106
  %v2172 = vadd.f32 %v2171, %v2107
  %v2173 = vadd.f32 %v2172, %v2108
  %v2174 = vadd.f32 %v2173, %v2109
  %v2175 = vadd.f32 %v2174, %v2110
  %v2176 = vadd.f32 %v2175, %v2111
  %v2177 = vadd.f32 %v2176, %v2112
  %v2178 = vadd.f32 %v2177, %v2113
  %v2179 = vadd.f32 %v2178, %v2114
  %v2180 = vadd.f32 %v2179, %v2115
  %v2181 = vadd.f32 %v2180, %v2116
  %v2182 = vadd.f32 %v2181, %v2117
  %v2183 = vadd.f32 %v2182, %v2118
  %v2184 = vadd.f32 %v2183, %v2119
  %v2185 = vadd.f32 %v2184, %v2120
  %2186 = vadd.xlane.f32.xlu0 %v2185
  %v2187 = vpop.xlane.xlu0 %2186
  %v2188 = vadd.f32 %v2121, %v2122
  %v2189 = vadd.f32 %v2188, %v2123
  %v2190 = vadd.f32 %v2189, %v2124
  %v2191 = vadd.f32 %v2190, %v2125
  %v2192 = vadd.f32 %v2191, %v2126
  %v2193 = vadd.f32 %v2192, %v2127
  %v2194 = vadd.f32 %v2193, %v2128
  %v2195 = vadd.f32 %v2194, %v2129
  %v2196 = vadd.f32 %v2195, %v2130
  %v2197 = vadd.f32 %v2196, %v2131
  %v2198 = vadd.f32 %v2197, %v2132
  %v2199 = vadd.f32 %v2198, %v2133
  %v2200 = vadd.f32 %v2199, %v2134
  %v2201 = vadd.f32 %v2200, %v2135
  %v2202 = vadd.f32 %v2201, %v2136
  %2203 = vadd.xlane.f32.xlu0 %v2202
  %v2204 = vpop.xlane.xlu0 %2203
  %v2205 = vmul.f32 %v2153, 0.00048828125
  %v2206 = vmul.f32 %v2170, 0.00048828125
  %v2207 = vmul.f32 %v2187, 0.00048828125
  %v2208 = vmul.f32 %v2204, 0.00048828125
  %v2209 = vmul.f32 %v2069, %v2069
  %v2210 = vmul.f32 %v2070, %v2070
  %v2211 = vmul.f32 %v2071, %v2071
  %v2212 = vmul.f32 %v2072, %v2072
  %v2213 = vsub.f32 %v2205, %v2209
  %v2214 = vsub.f32 %v2206, %v2210
  %v2215 = vsub.f32 %v2207, %v2211
  %v2216 = vsub.f32 %v2208, %v2212
  %v2217 = vld [vmem:[%s2] sm:$0xff]
  %v2218 = vld [vmem:[%s2 + $0x8] sm:$0xff]
  %v2219 = vld [vmem:[%s2 + $0x10] sm:$0xff]
  %v2220 = vld [vmem:[%s2 + $0x18] sm:$0xff]
  %v2221 = vadd.f32 %v2213, 1e-05
  %v2222 = vadd.f32 %v2214, 1e-05
  %v2223 = vadd.f32 %v2215, 1e-05
  %v2224 = vadd.f32 %v2216, 1e-05
  %v2225 = vrsqrt.pop %v2221
  %v2226 = vrsqrt.pop %v2222
  %v2227 = vrsqrt.pop %v2223
  %v2228 = vrsqrt.pop %v2224
  %v2229 = vmul.f32 %v2217, %v2225
  %v2230 = vmul.f32 %v2218, %v2226
  %v2231 = vmul.f32 %v2219, %v2227
  %v2232 = vmul.f32 %v2220, %v2228
  %v2233 = vld [vmem:[%s3] sm:$0xff]
  %v2234 = vld [vmem:[%s3 + $0x8] sm:$0xff]
  %v2235 = vld [vmem:[%s3 + $0x10] sm:$0xff]
  %v2236 = vld [vmem:[%s3 + $0x18] sm:$0xff]
  %v2237 = vmul.f32 %v2069, %v2229
  %v2238 = vmul.f32 %v2070, %v2230
  %v2239 = vmul.f32 %v2071, %v2231
  %v2240 = vmul.f32 %v2072, %v2232
  %v2241 = vsub.f32 %v2233, %v2237
  %v2242 = vsub.f32 %v2234, %v2238
  %v2243 = vsub.f32 %v2235, %v2239
  %v2244 = vsub.f32 %v2236, %v2240
  %2246 = vset.pattern.permute.xlu0 0
  %2247 = vperm.xlu0 %2246, %v2229
  %v2248 = vpop.permute.xlu0 %2247
  %2251 = vset.pattern.permute.xlu0 0
  %2252 = vperm.xlu0 %2251, %v2230
  %v2253 = vpop.permute.xlu0 %2252
  %2256 = vset.pattern.permute.xlu0 0
  %2257 = vperm.xlu0 %2256, %v2231
  %v2258 = vpop.permute.xlu0 %2257
  %2261 = vset.pattern.permute.xlu0 0
  %2262 = vperm.xlu0 %2261, %v2232
  %v2263 = vpop.permute.xlu0 %2262
  %v2265 = vmul.f32 %v1612, %v2248
  %v2266 = vmul.f32 %v1614, %v2248
  %v2267 = vmul.f32 %v1665, %v2248
  %v2268 = vmul.f32 %v1667, %v2248
  %v2269 = vmul.f32 %v1718, %v2248
  %v2270 = vmul.f32 %v1720, %v2248
  %v2271 = vmul.f32 %v1771, %v2248
  %v2272 = vmul.f32 %v1773, %v2248
  %v2273 = vmul.f32 %v1824, %v2248
  %v2274 = vmul.f32 %v1826, %v2248
  %v2275 = vmul.f32 %v1877, %v2248
  %v2276 = vmul.f32 %v1879, %v2248
  %v2277 = vmul.f32 %v1930, %v2248
  %v2278 = vmul.f32 %v1932, %v2248
  %v2279 = vmul.f32 %v1983, %v2248
  %v2280 = vmul.f32 %v1985, %v2248
  %v2281 = vmul.f32 %v1616, %v2253
  %v2282 = vmul.f32 %v1618, %v2253
  %v2283 = vmul.f32 %v1669, %v2253
  %v2284 = vmul.f32 %v1671, %v2253
  %v2285 = vmul.f32 %v1722, %v2253
  %v2286 = vmul.f32 %v1724, %v2253
  %v2287 = vmul.f32 %v1775, %v2253
  %v2288 = vmul.f32 %v1777, %v2253
  %v2289 = vmul.f32 %v1828, %v2253
  %v2290 = vmul.f32 %v1830, %v2253
  %v2291 = vmul.f32 %v1881, %v2253
  %v2292 = vmul.f32 %v1883, %v2253
  %v2293 = vmul.f32 %v1934, %v2253
  %v2294 = vmul.f32 %v1936, %v2253
  %v2295 = vmul.f32 %v1987, %v2253
  %v2296 = vmul.f32 %v1989, %v2253
  %v2297 = vmul.f32 %v1622, %v2258
  %v2298 = vmul.f32 %v1624, %v2258
  %v2299 = vmul.f32 %v1675, %v2258
  %v2300 = vmul.f32 %v1677, %v2258
  %v2301 = vmul.f32 %v1728, %v2258
  %v2302 = vmul.f32 %v1730, %v2258
  %v2303 = vmul.f32 %v1781, %v2258
  %v2304 = vmul.f32 %v1783, %v2258
  %v2305 = vmul.f32 %v1834, %v2258
  %v2306 = vmul.f32 %v1836, %v2258
  %v2307 = vmul.f32 %v1887, %v2258
  %v2308 = vmul.f32 %v1889, %v2258
  %v2309 = vmul.f32 %v1940, %v2258
  %v2310 = vmul.f32 %v1942, %v2258
  %v2311 = vmul.f32 %v1993, %v2258
  %v2312 = vmul.f32 %v1995, %v2258
  %v2313 = vmul.f32 %v1626, %v2263
  %v2314 = vmul.f32 %v1628, %v2263
  %v2315 = vmul.f32 %v1679, %v2263
  %v2316 = vmul.f32 %v1681, %v2263
  %v2317 = vmul.f32 %v1732, %v2263
  %v2318 = vmul.f32 %v1734, %v2263
  %v2319 = vmul.f32 %v1785, %v2263
  %v2320 = vmul.f32 %v1787, %v2263
  %v2321 = vmul.f32 %v1838, %v2263
  %v2322 = vmul.f32 %v1840, %v2263
  %v2323 = vmul.f32 %v1891, %v2263
  %v2324 = vmul.f32 %v1893, %v2263
  %v2325 = vmul.f32 %v1944, %v2263
  %v2326 = vmul.f32 %v1946, %v2263
  %v2327 = vmul.f32 %v1997, %v2263
  %v2328 = vmul.f32 %v1999, %v2263
  %2330 = vset.pattern.permute.xlu0 0
  %2331 = vperm.xlu0 %2330, %v2241
  %v2332 = vpop.permute.xlu0 %2331
  %2335 = vset.pattern.permute.xlu0 0
  %2336 = vperm.xlu0 %2335, %v2242
  %v2337 = vpop.permute.xlu0 %2336
  %2340 = vset.pattern.permute.xlu0 0
  %2341 = vperm.xlu0 %2340, %v2243
  %v2342 = vpop.permute.xlu0 %2341
  %2345 = vset.pattern.permute.xlu0 0
  %2346 = vperm.xlu0 %2345, %v2244
  %v2347 = vpop.permute.xlu0 %2346
  %v2349 = vadd.f32 %v2265, %v2332
  %v2350 = vadd.f32 %v2266, %v2332
  %v2351 = vadd.f32 %v2267, %v2332
  %v2352 = vadd.f32 %v2268, %v2332
  %v2353 = vadd.f32 %v2269, %v2332
  %v2354 = vadd.f32 %v2270, %v2332
  %v2355 = vadd.f32 %v2271, %v2332
  %v2356 = vadd.f32 %v2272, %v2332
  %v2357 = vadd.f32 %v2273, %v2332
  %v2358 = vadd.f32 %v2274, %v2332
  %v2359 = vadd.f32 %v2275, %v2332
  %v2360 = vadd.f32 %v2276, %v2332
  %v2361 = vadd.f32 %v2277, %v2332
  %v2362 = vadd.f32 %v2278, %v2332
  %v2363 = vadd.f32 %v2279, %v2332
  %v2364 = vadd.f32 %v2280, %v2332
  %v2365 = vadd.f32 %v2281, %v2337
  %v2366 = vadd.f32 %v2282, %v2337
  %v2367 = vadd.f32 %v2283, %v2337
  %v2368 = vadd.f32 %v2284, %v2337
  %v2369 = vadd.f32 %v2285, %v2337
  %v2370 = vadd.f32 %v2286, %v2337
  %v2371 = vadd.f32 %v2287, %v2337
  %v2372 = vadd.f32 %v2288, %v2337
  %v2373 = vadd.f32 %v2289, %v2337
  %v2374 = vadd.f32 %v2290, %v2337
  %v2375 = vadd.f32 %v2291, %v2337
  %v2376 = vadd.f32 %v2292, %v2337
  %v2377 = vadd.f32 %v2293, %v2337
  %v2378 = vadd.f32 %v2294, %v2337
  %v2379 = vadd.f32 %v2295, %v2337
  %v2380 = vadd.f32 %v2296, %v2337
  %v2381 = vadd.f32 %v2297, %v2342
  %v2382 = vadd.f32 %v2298, %v2342
  %v2383 = vadd.f32 %v2299, %v2342
  %v2384 = vadd.f32 %v2300, %v2342
  %v2385 = vadd.f32 %v2301, %v2342
  %v2386 = vadd.f32 %v2302, %v2342
  %v2387 = vadd.f32 %v2303, %v2342
  %v2388 = vadd.f32 %v2304, %v2342
  %v2389 = vadd.f32 %v2305, %v2342
  %v2390 = vadd.f32 %v2306, %v2342
  %v2391 = vadd.f32 %v2307, %v2342
  %v2392 = vadd.f32 %v2308, %v2342
  %v2393 = vadd.f32 %v2309, %v2342
  %v2394 = vadd.f32 %v2310, %v2342
  %v2395 = vadd.f32 %v2311, %v2342
  %v2396 = vadd.f32 %v2312, %v2342
  %v2397 = vadd.f32 %v2313, %v2347
  %v2398 = vadd.f32 %v2314, %v2347
  %v2399 = vadd.f32 %v2315, %v2347
  %v2400 = vadd.f32 %v2316, %v2347
  %v2401 = vadd.f32 %v2317, %v2347
  %v2402 = vadd.f32 %v2318, %v2347
  %v2403 = vadd.f32 %v2319, %v2347
  %v2404 = vadd.f32 %v2320, %v2347
  %v2405 = vadd.f32 %v2321, %v2347
  %v2406 = vadd.f32 %v2322, %v2347
  %v2407 = vadd.f32 %v2323, %v2347
  %v2408 = vadd.f32 %v2324, %v2347
  %v2409 = vadd.f32 %v2325, %v2347
  %v2410 = vadd.f32 %v2326, %v2347
  %v2411 = vadd.f32 %v2327, %v2347
  %v2412 = vadd.f32 %v2328, %v2347
  %v2413 = vmul.f32 %v2349, 0.2
  %v2414 = vmul.f32 %v2350, 0.2
  %v2415 = vmul.f32 %v2351, 0.2
  %v2416 = vmul.f32 %v2352, 0.2
  %v2417 = vmul.f32 %v2353, 0.2
  %v2418 = vmul.f32 %v2354, 0.2
  %v2419 = vmul.f32 %v2355, 0.2
  %v2420 = vmul.f32 %v2356, 0.2
  %v2421 = vmul.f32 %v2357, 0.2
  %v2422 = vmul.f32 %v2358, 0.2
  %v2423 = vmul.f32 %v2359, 0.2
  %v2424 = vmul.f32 %v2360, 0.2
  %v2425 = vmul.f32 %v2361, 0.2
  %v2426 = vmul.f32 %v2362, 0.2
  %v2427 = vmul.f32 %v2363, 0.2
  %v2428 = vmul.f32 %v2364, 0.2
  %v2429 = vmul.f32 %v2365, 0.2
  %v2430 = vmul.f32 %v2366, 0.2
  %v2431 = vmul.f32 %v2367, 0.2
  %v2432 = vmul.f32 %v2368, 0.2
  %v2433 = vmul.f32 %v2369, 0.2
  %v2434 = vmul.f32 %v2370, 0.2
  %v2435 = vmul.f32 %v2371, 0.2
  %v2436 = vmul.f32 %v2372, 0.2
  %v2437 = vmul.f32 %v2373, 0.2
  %v2438 = vmul.f32 %v2374, 0.2
  %v2439 = vmul.f32 %v2375, 0.2
  %v2440 = vmul.f32 %v2376, 0.2
  %v2441 = vmul.f32 %v2377, 0.2
  %v2442 = vmul.f32 %v2378, 0.2
  %v2443 = vmul.f32 %v2379, 0.2
  %v2444 = vmul.f32 %v2380, 0.2
  %v2445 = vmul.f32 %v2381, 0.2
  %v2446 = vmul.f32 %v2382, 0.2
  %v2447 = vmul.f32 %v2383, 0.2
  %v2448 = vmul.f32 %v2384, 0.2
  %v2449 = vmul.f32 %v2385, 0.2
  %v2450 = vmul.f32 %v2386, 0.2
  %v2451 = vmul.f32 %v2387, 0.2
  %v2452 = vmul.f32 %v2388, 0.2
  %v2453 = vmul.f32 %v2389, 0.2
  %v2454 = vmul.f32 %v2390, 0.2
  %v2455 = vmul.f32 %v2391, 0.2
  %v2456 = vmul.f32 %v2392, 0.2
  %v2457 = vmul.f32 %v2393, 0.2
  %v2458 = vmul.f32 %v2394, 0.2
  %v2459 = vmul.f32 %v2395, 0.2
  %v2460 = vmul.f32 %v2396, 0.2
  %v2461 = vmul.f32 %v2397, 0.2
  %v2462 = vmul.f32 %v2398, 0.2
  %v2463 = vmul.f32 %v2399, 0.2
  %v2464 = vmul.f32 %v2400, 0.2
  %v2465 = vmul.f32 %v2401, 0.2
  %v2466 = vmul.f32 %v2402, 0.2
  %v2467 = vmul.f32 %v2403, 0.2
  %v2468 = vmul.f32 %v2404, 0.2
  %v2469 = vmul.f32 %v2405, 0.2
  %v2470 = vmul.f32 %v2406, 0.2
  %v2471 = vmul.f32 %v2407, 0.2
  %v2472 = vmul.f32 %v2408, 0.2
  %v2473 = vmul.f32 %v2409, 0.2
  %v2474 = vmul.f32 %v2410, 0.2
  %v2475 = vmul.f32 %v2411, 0.2
  %v2476 = vmul.f32 %v2412, 0.2
  %v2477 = vmax.f32 %v2349, %v2413
  %v2478 = vmax.f32 %v2350, %v2414
  %v2479 = vmax.f32 %v2351, %v2415
  %v2480 = vmax.f32 %v2352, %v2416
  %v2481 = vmax.f32 %v2353, %v2417
  %v2482 = vmax.f32 %v2354, %v2418
  %v2483 = vmax.f32 %v2355, %v2419
  %v2484 = vmax.f32 %v2356, %v2420
  %v2485 = vmax.f32 %v2357, %v2421
  %v2486 = vmax.f32 %v2358, %v2422
  %v2487 = vmax.f32 %v2359, %v2423
  %v2488 = vmax.f32 %v2360, %v2424
  %v2489 = vmax.f32 %v2361, %v2425
  %v2490 = vmax.f32 %v2362, %v2426
  %v2491 = vmax.f32 %v2363, %v2427
  %v2492 = vmax.f32 %v2364, %v2428
  %v2493 = vmax.f32 %v2365, %v2429
  %v2494 = vmax.f32 %v2366, %v2430
  %v2495 = vmax.f32 %v2367, %v2431
  %v2496 = vmax.f32 %v2368, %v2432
  %v2497 = vmax.f32 %v2369, %v2433
  %v2498 = vmax.f32 %v2370, %v2434
  %v2499 = vmax.f32 %v2371, %v2435
  %v2500 = vmax.f32 %v2372, %v2436
  %v2501 = vmax.f32 %v2373, %v2437
  %v2502 = vmax.f32 %v2374, %v2438
  %v2503 = vmax.f32 %v2375, %v2439
  %v2504 = vmax.f32 %v2376, %v2440
  %v2505 = vmax.f32 %v2377, %v2441
  %v2506 = vmax.f32 %v2378, %v2442
  %v2507 = vmax.f32 %v2379, %v2443
  %v2508 = vmax.f32 %v2380, %v2444
  %v2509 = vmax.f32 %v2381, %v2445
  %v2510 = vmax.f32 %v2382, %v2446
  %v2511 = vmax.f32 %v2383, %v2447
  %v2512 = vmax.f32 %v2384, %v2448
  %v2513 = vmax.f32 %v2385, %v2449
  %v2514 = vmax.f32 %v2386, %v2450
  %v2515 = vmax.f32 %v2387, %v2451
  %v2516 = vmax.f32 %v2388, %v2452
  %v2517 = vmax.f32 %v2389, %v2453
  %v2518 = vmax.f32 %v2390, %v2454
  %v2519 = vmax.f32 %v2391, %v2455
  %v2520 = vmax.f32 %v2392, %v2456
  %v2521 = vmax.f32 %v2393, %v2457
  %v2522 = vmax.f32 %v2394, %v2458
  %v2523 = vmax.f32 %v2395, %v2459
  %v2524 = vmax.f32 %v2396, %v2460
  %v2525 = vmax.f32 %v2397, %v2461
  %v2526 = vmax.f32 %v2398, %v2462
  %v2527 = vmax.f32 %v2399, %v2463
  %v2528 = vmax.f32 %v2400, %v2464
  %v2529 = vmax.f32 %v2401, %v2465
  %v2530 = vmax.f32 %v2402, %v2466
  %v2531 = vmax.f32 %v2403, %v2467
  %v2532 = vmax.f32 %v2404, %v2468
  %v2533 = vmax.f32 %v2405, %v2469
  %v2534 = vmax.f32 %v2406, %v2470
  %v2535 = vmax.f32 %v2407, %v2471
  %v2536 = vmax.f32 %v2408, %v2472
  %v2537 = vmax.f32 %v2409, %v2473
  %v2538 = vmax.f32 %v2410, %v2474
  %v2539 = vmax.f32 %v2411, %v2475
  %v2540 = vmax.f32 %v2412, %v2476
  %v2541 = vpack.c.bf16 %v2493, %v2477
  %v2542 = vpack.c.bf16 %v2494, %v2478
  %v2543 = vpack.c.bf16 %v2495, %v2479
  %v2544 = vpack.c.bf16 %v2496, %v2480
  %v2545 = vpack.c.bf16 %v2497, %v2481
  %v2546 = vpack.c.bf16 %v2498, %v2482
  %v2547 = vpack.c.bf16 %v2499, %v2483
  %v2548 = vpack.c.bf16 %v2500, %v2484
  %v2549 = vpack.c.bf16 %v2501, %v2485
  %v2550 = vpack.c.bf16 %v2502, %v2486
  %v2551 = vpack.c.bf16 %v2503, %v2487
  %v2552 = vpack.c.bf16 %v2504, %v2488
  %v2553 = vpack.c.bf16 %v2505, %v2489
  %v2554 = vpack.c.bf16 %v2506, %v2490
  %v2555 = vpack.c.bf16 %v2507, %v2491
  %v2556 = vpack.c.bf16 %v2508, %v2492
  %v2557 = vpack.c.bf16 %v2525, %v2509
  %v2558 = vpack.c.bf16 %v2526, %v2510
  %v2559 = vpack.c.bf16 %v2527, %v2511
  %v2560 = vpack.c.bf16 %v2528, %v2512
  %v2561 = vpack.c.bf16 %v2529, %v2513
  %v2562 = vpack.c.bf16 %v2530, %v2514
  %v2563 = vpack.c.bf16 %v2531, %v2515
  %v2564 = vpack.c.bf16 %v2532, %v2516
  %v2565 = vpack.c.bf16 %v2533, %v2517
  %v2566 = vpack.c.bf16 %v2534, %v2518
  %v2567 = vpack.c.bf16 %v2535, %v2519
  %v2568 = vpack.c.bf16 %v2536, %v2520
  %v2569 = vpack.c.bf16 %v2537, %v2521
  %v2570 = vpack.c.bf16 %v2538, %v2522
  %v2571 = vpack.c.bf16 %v2539, %v2523
  %v2572 = vpack.c.bf16 %v2540, %v2524
  %v2605 = vunpack.c.l.b16 %v2541
  %v2606 = vunpack.c.l.b16 %v2542
  %v2607 = vunpack.c.l.b16 %v2543
  %v2608 = vunpack.c.l.b16 %v2544
  %v2609 = vunpack.c.l.b16 %v2545
  %v2610 = vunpack.c.l.b16 %v2546
  %v2611 = vunpack.c.l.b16 %v2547
  %v2612 = vunpack.c.l.b16 %v2548
  %v2613 = vunpack.c.l.b16 %v2549
  %v2614 = vunpack.c.l.b16 %v2550
  %v2615 = vunpack.c.l.b16 %v2551
  %v2616 = vunpack.c.l.b16 %v2552
  %v2617 = vunpack.c.l.b16 %v2553
  %v2618 = vunpack.c.l.b16 %v2554
  %v2619 = vunpack.c.l.b16 %v2555
  %v2620 = vunpack.c.l.b16 %v2556
  %v2621 = vunpack.c.h.b16 %v2541
  %v2622 = vunpack.c.h.b16 %v2542
  %v2623 = vunpack.c.h.b16 %v2543
  %v2624 = vunpack.c.h.b16 %v2544
  %v2625 = vunpack.c.h.b16 %v2545
  %v2626 = vunpack.c.h.b16 %v2546
  %v2627 = vunpack.c.h.b16 %v2547
  %v2628 = vunpack.c.h.b16 %v2548
  %v2629 = vunpack.c.h.b16 %v2549
  %v2630 = vunpack.c.h.b16 %v2550
  %v2631 = vunpack.c.h.b16 %v2551
  %v2632 = vunpack.c.h.b16 %v2552
  %v2633 = vunpack.c.h.b16 %v2553
  %v2634 = vunpack.c.h.b16 %v2554
  %v2635 = vunpack.c.h.b16 %v2555
  %v2636 = vunpack.c.h.b16 %v2556
  %v2637 = vunpack.c.l.b16 %v2557
  %v2638 = vunpack.c.l.b16 %v2558
  %v2639 = vunpack.c.l.b16 %v2559
  %v2640 = vunpack.c.l.b16 %v2560
  %v2641 = vunpack.c.l.b16 %v2561
  %v2642 = vunpack.c.l.b16 %v2562
  %v2643 = vunpack.c.l.b16 %v2563
  %v2644 = vunpack.c.l.b16 %v2564
  %v2645 = vunpack.c.l.b16 %v2565
  %v2646 = vunpack.c.l.b16 %v2566
  %v2647 = vunpack.c.l.b16 %v2567
  %v2648 = vunpack.c.l.b16 %v2568
  %v2649 = vunpack.c.l.b16 %v2569
  %v2650 = vunpack.c.l.b16 %v2570
  %v2651 = vunpack.c.l.b16 %v2571
  %v2652 = vunpack.c.l.b16 %v2572
  %v2653 = vunpack.c.h.b16 %v2557
  %v2654 = vunpack.c.h.b16 %v2558
  %v2655 = vunpack.c.h.b16 %v2559
  %v2656 = vunpack.c.h.b16 %v2560
  %v2657 = vunpack.c.h.b16 %v2561
  %v2658 = vunpack.c.h.b16 %v2562
  %v2659 = vunpack.c.h.b16 %v2563
  %v2660 = vunpack.c.h.b16 %v2564
  %v2661 = vunpack.c.h.b16 %v2565
  %v2662 = vunpack.c.h.b16 %v2566
  %v2663 = vunpack.c.h.b16 %v2567
  %v2664 = vunpack.c.h.b16 %v2568
  %v2665 = vunpack.c.h.b16 %v2569
  %v2666 = vunpack.c.h.b16 %v2570
  %v2667 = vunpack.c.h.b16 %v2571
  %v2668 = vunpack.c.h.b16 %v2572
  %v2669 = vpack.c.b16 %v2606, %v2605
  %v2670 = vpack.c.b16 %v2608, %v2607
  %v2671 = vpack.c.b16 %v2610, %v2609
  %v2672 = vpack.c.b16 %v2612, %v2611
  %v2673 = vpack.c.b16 %v2614, %v2613
  %v2674 = vpack.c.b16 %v2616, %v2615
  %v2675 = vpack.c.b16 %v2618, %v2617
  %v2676 = vpack.c.b16 %v2620, %v2619
  %v2677 = vpack.c.b16 %v2622, %v2621
  %v2678 = vpack.c.b16 %v2624, %v2623
  %v2679 = vpack.c.b16 %v2626, %v2625
  %v2680 = vpack.c.b16 %v2628, %v2627
  %v2681 = vpack.c.b16 %v2630, %v2629
  %v2682 = vpack.c.b16 %v2632, %v2631
  %v2683 = vpack.c.b16 %v2634, %v2633
  %v2684 = vpack.c.b16 %v2636, %v2635
  %v2685 = vpack.c.b16 %v2638, %v2637
  %v2686 = vpack.c.b16 %v2640, %v2639
  %v2687 = vpack.c.b16 %v2642, %v2641
  %v2688 = vpack.c.b16 %v2644, %v2643
  %v2689 = vpack.c.b16 %v2646, %v2645
  %v2690 = vpack.c.b16 %v2648, %v2647
  %v2691 = vpack.c.b16 %v2650, %v2649
  %v2692 = vpack.c.b16 %v2652, %v2651
  %v2693 = vpack.c.b16 %v2654, %v2653
  %v2694 = vpack.c.b16 %v2656, %v2655
  %v2695 = vpack.c.b16 %v2658, %v2657
  %v2696 = vpack.c.b16 %v2660, %v2659
  %v2697 = vpack.c.b16 %v2662, %v2661
  %v2698 = vpack.c.b16 %v2664, %v2663
  %v2699 = vpack.c.b16 %v2666, %v2665
  %v2700 = vpack.c.b16 %v2668, %v2667
  %2733 = vst [vmem:[%s4] sm:$0xff] %v2669
  %2734 = vst [vmem:[%s4 + $0x8] sm:$0xff] %v2670
  %2735 = vst [vmem:[%s4 + $0x10] sm:$0xff] %v2671
  %2736 = vst [vmem:[%s4 + $0x18] sm:$0xff] %v2672
  %2737 = vst [vmem:[%s4 + $0x20] sm:$0xff] %v2673
  %2738 = vst [vmem:[%s4 + $0x28] sm:$0xff] %v2674
  %2739 = vst [vmem:[%s4 + $0x30] sm:$0xff] %v2675
  %2740 = vst [vmem:[%s4 + $0x38] sm:$0xff] %v2676
  %2741 = vst [vmem:[%s4 + $0x40] sm:$0xff] %v2677
  %2742 = vst [vmem:[%s4 + $0x48] sm:$0xff] %v2678
  %2743 = vst [vmem:[%s4 + $0x50] sm:$0xff] %v2679
  %2744 = vst [vmem:[%s4 + $0x58] sm:$0xff] %v2680
  %2745 = vst [vmem:[%s4 + $0x60] sm:$0xff] %v2681
  %2746 = vst [vmem:[%s4 + $0x68] sm:$0xff] %v2682
  %2747 = vst [vmem:[%s4 + $0x70] sm:$0xff] %v2683
  %2748 = vst [vmem:[%s4 + $0x78] sm:$0xff] %v2684
  %2749 = vst [vmem:[%s4 + $0x80] sm:$0xff] %v2685
  %2750 = vst [vmem:[%s4 + $0x88] sm:$0xff] %v2686
  %2751 = vst [vmem:[%s4 + $0x90] sm:$0xff] %v2687
  %2752 = vst [vmem:[%s4 + $0x98] sm:$0xff] %v2688
  %2753 = vst [vmem:[%s4 + $0xa0] sm:$0xff] %v2689
  %2754 = vst [vmem:[%s4 + $0xa8] sm:$0xff] %v2690
  %2755 = vst [vmem:[%s4 + $0xb0] sm:$0xff] %v2691
  %2756 = vst [vmem:[%s4 + $0xb8] sm:$0xff] %v2692
  %2757 = vst [vmem:[%s4 + $0xc0] sm:$0xff] %v2693
  %2758 = vst [vmem:[%s4 + $0xc8] sm:$0xff] %v2694
  %2759 = vst [vmem:[%s4 + $0xd0] sm:$0xff] %v2695
  %2760 = vst [vmem:[%s4 + $0xd8] sm:$0xff] %v2696
  %2761 = vst [vmem:[%s4 + $0xe0] sm:$0xff] %v2697
  %2762 = vst [vmem:[%s4 + $0xe8] sm:$0xff] %v2698
  %2763 = vst [vmem:[%s4 + $0xf0] sm:$0xff] %v2699
  %2764 = vst [vmem:[%s4 + $0xf8] sm:$0xff] %v2700
  // Predicated region
  $region18: #{encoder_forward_pallas.7} parent=0 // pred_check
    _
  $region19: #{encoder_forward_pallas.7} parent=0 // pred_check_branch
    %2766 = sbr.rel (0) target = $region21
  $region20: #{encoder_forward_pallas.7} parent=0 // pred_region
    _
  $region21: #{encoder_forward_pallas.7} parent=0 // pred_fallthru
    _
  // Predicated region
  $region22: #{encoder_forward_pallas.7} parent=0 // pred_check
    _
  $region23: #{encoder_forward_pallas.7} parent=0 // pred_check_branch
    %2768 = sbr.rel (0) target = $region25
  $region24: #{encoder_forward_pallas.7} parent=0 // pred_region
    _
  $region25: #{encoder_forward_pallas.7} parent=0 // pred_fallthru
    _

// kernel: encoder_forward_pallas.8
$region0: #{encoder_forward_pallas.8}
  #allocation0 [shape = 'u32[]', space=smem, size = 0x4, offset = 0x4, fixed_abs, tag = 'smem constant byte address 0x4 - core index']
  #allocation1 [shape = 'u32[144,128]{1,0:T(1,128)}', space=vmem, size = 0x12000, scoped, tag = 'internal scratch']
  %s0 = inlined_call_operand.vmem [shape: bf16[512,512], index: 0, kind: input, shape index: {}]
  %s1 = inlined_call_operand.vmem [shape: bf16[64,512], index: 1, kind: input, shape index: {}]
  %s2 = inlined_call_operand.vmem [shape: f32[64,1], index: 2, kind: input, shape index: {}]
  %s3 = inlined_call_operand.vmem [shape: f32[64,1], index: 3, kind: input, shape index: {}]
  %s4 = inlined_call_operand.vmem [shape: bf16[64,512], index: 4, kind: output, shape index: {}]
  %s5 = sld [smem:[#allocation0]]
  $region26: #{encoder_forward_pallas.8} parent=0
    _
  %s7 = ssub.s32 1, %s5
  %s8 = scalar_select 0, %s7, %s5
  // Predicated region
  $region2: #{encoder_forward_pallas.8} parent=0 // pred_check
    _
  $region3: #{encoder_forward_pallas.8} parent=0 // pred_check_branch
    %10 = sbr.rel (0) target = $region5
  $region4: #{encoder_forward_pallas.8} parent=0 // pred_region
    _
  $region5: #{encoder_forward_pallas.8} parent=0 // pred_fallthru
    _
  // Predicated region
  $region6: #{encoder_forward_pallas.8} parent=0 // pred_check
    _
  $region7: #{encoder_forward_pallas.8} parent=0 // pred_check_branch
    %12 = sbr.rel (0) target = $region9
  $region8: #{encoder_forward_pallas.8} parent=0 // pred_region
    _
  $region9: #{encoder_forward_pallas.8} parent=0 // pred_fallthru
    _
  // Predicated region
  $region10: #{encoder_forward_pallas.8} parent=0 // pred_check
    _
  $region11: #{encoder_forward_pallas.8} parent=0 // pred_check_branch
    %14 = sbr.rel (0) target = $region13
  $region12: #{encoder_forward_pallas.8} parent=0 // pred_region
    _
  $region13: #{encoder_forward_pallas.8} parent=0 // pred_fallthru
    _
  // Predicated region
  $region14: #{encoder_forward_pallas.8} parent=0 // pred_check
    _
  $region15: #{encoder_forward_pallas.8} parent=0 // pred_check_branch
    %16 = sbr.rel (0) target = $region17
  $region16: #{encoder_forward_pallas.8} parent=0 // pred_region
    _
  $region17: #{encoder_forward_pallas.8} parent=0 // pred_fallthru
    _
  %v17 = vld [vmem:[%s1] sm:$0xff]
  %v18 = vld [vmem:[%s1 + $0x8] sm:$0xff]
  %v19 = vld [vmem:[%s1 + $0x10] sm:$0xff]
  %v20 = vld [vmem:[%s1 + $0x18] sm:$0xff]
  %v21 = vld [vmem:[%s1 + $0x20] sm:$0xff]
  %v22 = vld [vmem:[%s1 + $0x28] sm:$0xff]
  %v23 = vld [vmem:[%s1 + $0x30] sm:$0xff]
  %v24 = vld [vmem:[%s1 + $0x38] sm:$0xff]
  %v25 = vld [vmem:[%s1 + $0x40] sm:$0xff]
  %v26 = vld [vmem:[%s1 + $0x48] sm:$0xff]
  %v27 = vld [vmem:[%s1 + $0x50] sm:$0xff]
  %v28 = vld [vmem:[%s1 + $0x58] sm:$0xff]
  %v29 = vld [vmem:[%s1 + $0x60] sm:$0xff]
  %v30 = vld [vmem:[%s1 + $0x68] sm:$0xff]
  %v31 = vld [vmem:[%s1 + $0x70] sm:$0xff]
  %v32 = vld [vmem:[%s1 + $0x78] sm:$0xff]
  %v33 = vld [vmem:[%s0] sm:$0xff]
  %v34 = vld [vmem:[%s0 + $0x8] sm:$0xff]
  %v35 = vld [vmem:[%s0 + $0x10] sm:$0xff]
  %v36 = vld [vmem:[%s0 + $0x18] sm:$0xff]
  %v37 = vld [vmem:[%s0 + $0x20] sm:$0xff]
  %v38 = vld [vmem:[%s0 + $0x28] sm:$0xff]
  %v39 = vld [vmem:[%s0 + $0x30] sm:$0xff]
  %v40 = vld [vmem:[%s0 + $0x38] sm:$0xff]
  %v41 = vld [vmem:[%s0 + $0x40] sm:$0xff]
  %v42 = vld [vmem:[%s0 + $0x48] sm:$0xff]
  %v43 = vld [vmem:[%s0 + $0x50] sm:$0xff]
  %v44 = vld [vmem:[%s0 + $0x58] sm:$0xff]
  %v45 = vld [vmem:[%s0 + $0x60] sm:$0xff]
  %v46 = vld [vmem:[%s0 + $0x68] sm:$0xff]
  %v47 = vld [vmem:[%s0 + $0x70] sm:$0xff]
  %v48 = vld [vmem:[%s0 + $0x78] sm:$0xff]
  %v49 = vld [vmem:[%s0 + $0x80] sm:$0xff]
  %v50 = vld [vmem:[%s0 + $0x88] sm:$0xff]
  %v51 = vld [vmem:[%s0 + $0x90] sm:$0xff]
  %v52 = vld [vmem:[%s0 + $0x98] sm:$0xff]
  %v53 = vld [vmem:[%s0 + $0xa0] sm:$0xff]
  %v54 = vld [vmem:[%s0 + $0xa8] sm:$0xff]
  %v55 = vld [vmem:[%s0 + $0xb0] sm:$0xff]
  %v56 = vld [vmem:[%s0 + $0xb8] sm:$0xff]
  %v57 = vld [vmem:[%s0 + $0xc0] sm:$0xff]
  %v58 = vld [vmem:[%s0 + $0xc8] sm:$0xff]
  %v59 = vld [vmem:[%s0 + $0xd0] sm:$0xff]
  %v60 = vld [vmem:[%s0 + $0xd8] sm:$0xff]
  %v61 = vld [vmem:[%s0 + $0xe0] sm:$0xff]
  %v62 = vld [vmem:[%s0 + $0xe8] sm:$0xff]
  %v63 = vld [vmem:[%s0 + $0xf0] sm:$0xff]
  %v64 = vld [vmem:[%s0 + $0xf8] sm:$0xff]
  %v65 = vld [vmem:[%s0 + $0x100] sm:$0xff]
  %v66 = vld [vmem:[%s0 + $0x108] sm:$0xff]
  %v67 = vld [vmem:[%s0 + $0x110] sm:$0xff]
  %v68 = vld [vmem:[%s0 + $0x118] sm:$0xff]
  %v69 = vld [vmem:[%s0 + $0x120] sm:$0xff]
  %v70 = vld [vmem:[%s0 + $0x128] sm:$0xff]
  %v71 = vld [vmem:[%s0 + $0x130] sm:$0xff]
  %v72 = vld [vmem:[%s0 + $0x138] sm:$0xff]
  %v73 = vld [vmem:[%s0 + $0x140] sm:$0xff]
  %v74 = vld [vmem:[%s0 + $0x148] sm:$0xff]
  %v75 = vld [vmem:[%s0 + $0x150] sm:$0xff]
  %v76 = vld [vmem:[%s0 + $0x158] sm:$0xff]
  %v77 = vld [vmem:[%s0 + $0x160] sm:$0xff]
  %v78 = vld [vmem:[%s0 + $0x168] sm:$0xff]
  %v79 = vld [vmem:[%s0 + $0x170] sm:$0xff]
  %v80 = vld [vmem:[%s0 + $0x178] sm:$0xff]
  %v81 = vld [vmem:[%s0 + $0x180] sm:$0xff]
  %v82 = vld [vmem:[%s0 + $0x188] sm:$0xff]
  %v83 = vld [vmem:[%s0 + $0x190] sm:$0xff]
  %v84 = vld [vmem:[%s0 + $0x198] sm:$0xff]
  %v85 = vld [vmem:[%s0 + $0x1a0] sm:$0xff]
  %v86 = vld [vmem:[%s0 + $0x1a8] sm:$0xff]
  %v87 = vld [vmem:[%s0 + $0x1b0] sm:$0xff]
  %v88 = vld [vmem:[%s0 + $0x1b8] sm:$0xff]
  %v89 = vld [vmem:[%s0 + $0x1c0] sm:$0xff]
  %v90 = vld [vmem:[%s0 + $0x1c8] sm:$0xff]
  %v91 = vld [vmem:[%s0 + $0x1d0] sm:$0xff]
  %v92 = vld [vmem:[%s0 + $0x1d8] sm:$0xff]
  %v93 = vld [vmem:[%s0 + $0x1e0] sm:$0xff]
  %v94 = vld [vmem:[%s0 + $0x1e8] sm:$0xff]
  %v95 = vld [vmem:[%s0 + $0x1f0] sm:$0xff]
  %v96 = vld [vmem:[%s0 + $0x1f8] sm:$0xff]
  %v97 = vld [vmem:[%s0 + $0x200] sm:$0xff]
  %v98 = vld [vmem:[%s0 + $0x208] sm:$0xff]
  %v99 = vld [vmem:[%s0 + $0x210] sm:$0xff]
  %v100 = vld [vmem:[%s0 + $0x218] sm:$0xff]
  %v101 = vld [vmem:[%s0 + $0x220] sm:$0xff]
  %v102 = vld [vmem:[%s0 + $0x228] sm:$0xff]
  %v103 = vld [vmem:[%s0 + $0x230] sm:$0xff]
  %v104 = vld [vmem:[%s0 + $0x238] sm:$0xff]
  %v105 = vld [vmem:[%s0 + $0x240] sm:$0xff]
  %v106 = vld [vmem:[%s0 + $0x248] sm:$0xff]
  %v107 = vld [vmem:[%s0 + $0x250] sm:$0xff]
  %v108 = vld [vmem:[%s0 + $0x258] sm:$0xff]
  %v109 = vld [vmem:[%s0 + $0x260] sm:$0xff]
  %v110 = vld [vmem:[%s0 + $0x268] sm:$0xff]
  %v111 = vld [vmem:[%s0 + $0x270] sm:$0xff]
  %v112 = vld [vmem:[%s0 + $0x278] sm:$0xff]
  %v113 = vld [vmem:[%s0 + $0x280] sm:$0xff]
  %v114 = vld [vmem:[%s0 + $0x288] sm:$0xff]
  %v115 = vld [vmem:[%s0 + $0x290] sm:$0xff]
  %v116 = vld [vmem:[%s0 + $0x298] sm:$0xff]
  %v117 = vld [vmem:[%s0 + $0x2a0] sm:$0xff]
  %v118 = vld [vmem:[%s0 + $0x2a8] sm:$0xff]
  %v119 = vld [vmem:[%s0 + $0x2b0] sm:$0xff]
  %v120 = vld [vmem:[%s0 + $0x2b8] sm:$0xff]
  %v121 = vld [vmem:[%s0 + $0x2c0] sm:$0xff]
  %v122 = vld [vmem:[%s0 + $0x2c8] sm:$0xff]
  %v123 = vld [vmem:[%s0 + $0x2d0] sm:$0xff]
  %v124 = vld [vmem:[%s0 + $0x2d8] sm:$0xff]
  %v125 = vld [vmem:[%s0 + $0x2e0] sm:$0xff]
  %v126 = vld [vmem:[%s0 + $0x2e8] sm:$0xff]
  %v127 = vld [vmem:[%s0 + $0x2f0] sm:$0xff]
  %v128 = vld [vmem:[%s0 + $0x2f8] sm:$0xff]
  %v129 = vld [vmem:[%s0 + $0x300] sm:$0xff]
  %v130 = vld [vmem:[%s0 + $0x308] sm:$0xff]
  %v131 = vld [vmem:[%s0 + $0x310] sm:$0xff]
  %v132 = vld [vmem:[%s0 + $0x318] sm:$0xff]
  %v133 = vld [vmem:[%s0 + $0x320] sm:$0xff]
  %v134 = vld [vmem:[%s0 + $0x328] sm:$0xff]
  %v135 = vld [vmem:[%s0 + $0x330] sm:$0xff]
  %v136 = vld [vmem:[%s0 + $0x338] sm:$0xff]
  %v137 = vld [vmem:[%s0 + $0x340] sm:$0xff]
  %v138 = vld [vmem:[%s0 + $0x348] sm:$0xff]
  %v139 = vld [vmem:[%s0 + $0x350] sm:$0xff]
  %v140 = vld [vmem:[%s0 + $0x358] sm:$0xff]
  %v141 = vld [vmem:[%s0 + $0x360] sm:$0xff]
  %v142 = vld [vmem:[%s0 + $0x368] sm:$0xff]
  %v143 = vld [vmem:[%s0 + $0x370] sm:$0xff]
  %v144 = vld [vmem:[%s0 + $0x378] sm:$0xff]
  %v145 = vld [vmem:[%s0 + $0x380] sm:$0xff]
  %v146 = vld [vmem:[%s0 + $0x388] sm:$0xff]
  %v147 = vld [vmem:[%s0 + $0x390] sm:$0xff]
  %v148 = vld [vmem:[%s0 + $0x398] sm:$0xff]
  %v149 = vld [vmem:[%s0 + $0x3a0] sm:$0xff]
  %v150 = vld [vmem:[%s0 + $0x3a8] sm:$0xff]
  %v151 = vld [vmem:[%s0 + $0x3b0] sm:$0xff]
  %v152 = vld [vmem:[%s0 + $0x3b8] sm:$0xff]
  %v153 = vld [vmem:[%s0 + $0x3c0] sm:$0xff]
  %v154 = vld [vmem:[%s0 + $0x3c8] sm:$0xff]
  %v155 = vld [vmem:[%s0 + $0x3d0] sm:$0xff]
  %v156 = vld [vmem:[%s0 + $0x3d8] sm:$0xff]
  %v157 = vld [vmem:[%s0 + $0x3e0] sm:$0xff]
  %v158 = vld [vmem:[%s0 + $0x3e8] sm:$0xff]
  %v159 = vld [vmem:[%s0 + $0x3f0] sm:$0xff]
  %v160 = vld [vmem:[%s0 + $0x3f8] sm:$0xff]
  %v177 = vunpack.c.l.b16 %v17
  %v178 = vunpack.c.h.b16 %v17
  %v179 = vunpack.c.l.b16 %v18
  %v180 = vunpack.c.h.b16 %v18
  %v181 = vunpack.c.l.b16 %v19
  %v182 = vunpack.c.h.b16 %v19
  %v183 = vunpack.c.l.b16 %v20
  %v184 = vunpack.c.h.b16 %v20
  %v185 = vunpack.c.l.b16 %v21
  %v186 = vunpack.c.h.b16 %v21
  %v187 = vunpack.c.l.b16 %v22
  %v188 = vunpack.c.h.b16 %v22
  %v189 = vunpack.c.l.b16 %v23
  %v190 = vunpack.c.h.b16 %v23
  %v191 = vunpack.c.l.b16 %v24
  %v192 = vunpack.c.h.b16 %v24
  %v193 = vunpack.c.l.b16 %v25
  %v194 = vunpack.c.h.b16 %v25
  %v195 = vunpack.c.l.b16 %v26
  %v196 = vunpack.c.h.b16 %v26
  %v197 = vunpack.c.l.b16 %v27
  %v198 = vunpack.c.h.b16 %v27
  %v199 = vunpack.c.l.b16 %v28
  %v200 = vunpack.c.h.b16 %v28
  %v201 = vunpack.c.l.b16 %v29
  %v202 = vunpack.c.h.b16 %v29
  %v203 = vunpack.c.l.b16 %v30
  %v204 = vunpack.c.h.b16 %v30
  %v205 = vunpack.c.l.b16 %v31
  %v206 = vunpack.c.h.b16 %v31
  %v207 = vunpack.c.l.b16 %v32
  %v208 = vunpack.c.h.b16 %v32
  %v209 = vpack.c.b16 %v181, %v177
  %v210 = vpack.c.b16 %v182, %v178
  %v211 = vpack.c.b16 %v183, %v179
  %v212 = vpack.c.b16 %v184, %v180
  %v213 = vpack.c.b16 %v189, %v185
  %v214 = vpack.c.b16 %v190, %v186
  %v215 = vpack.c.b16 %v191, %v187
  %v216 = vpack.c.b16 %v192, %v188
  %v217 = vpack.c.b16 %v197, %v193
  %v218 = vpack.c.b16 %v198, %v194
  %v219 = vpack.c.b16 %v199, %v195
  %v220 = vpack.c.b16 %v200, %v196
  %v221 = vpack.c.b16 %v205, %v201
  %v222 = vpack.c.b16 %v206, %v202
  %v223 = vpack.c.b16 %v207, %v203
  %v224 = vpack.c.b16 %v208, %v204
  %v369 = vunpack.c.l.b16 %v33
  %v370 = vunpack.c.h.b16 %v33
  %v371 = vunpack.c.l.b16 %v34
  %v372 = vunpack.c.h.b16 %v34
  %v373 = vunpack.c.l.b16 %v35
  %v374 = vunpack.c.h.b16 %v35
  %v375 = vunpack.c.l.b16 %v36
  %v376 = vunpack.c.h.b16 %v36
  %v377 = vunpack.c.l.b16 %v37
  %v378 = vunpack.c.h.b16 %v37
  %v379 = vunpack.c.l.b16 %v38
  %v380 = vunpack.c.h.b16 %v38
  %v381 = vunpack.c.l.b16 %v39
  %v382 = vunpack.c.h.b16 %v39
  %v383 = vunpack.c.l.b16 %v40
  %v384 = vunpack.c.h.b16 %v40
  %v385 = vunpack.c.l.b16 %v41
  %v386 = vunpack.c.h.b16 %v41
  %v387 = vunpack.c.l.b16 %v42
  %v388 = vunpack.c.h.b16 %v42
  %v389 = vunpack.c.l.b16 %v43
  %v390 = vunpack.c.h.b16 %v43
  %v391 = vunpack.c.l.b16 %v44
  %v392 = vunpack.c.h.b16 %v44
  %v393 = vunpack.c.l.b16 %v45
  %v394 = vunpack.c.h.b16 %v45
  %v395 = vunpack.c.l.b16 %v46
  %v396 = vunpack.c.h.b16 %v46
  %v397 = vunpack.c.l.b16 %v47
  %v398 = vunpack.c.h.b16 %v47
  %v399 = vunpack.c.l.b16 %v48
  %v400 = vunpack.c.h.b16 %v48
  %v401 = vunpack.c.l.b16 %v49
  %v402 = vunpack.c.h.b16 %v49
  %v403 = vunpack.c.l.b16 %v50
  %v404 = vunpack.c.h.b16 %v50
  %v405 = vunpack.c.l.b16 %v51
  %v406 = vunpack.c.h.b16 %v51
  %v407 = vunpack.c.l.b16 %v52
  %v408 = vunpack.c.h.b16 %v52
  %v409 = vunpack.c.l.b16 %v53
  %v410 = vunpack.c.h.b16 %v53
  %v411 = vunpack.c.l.b16 %v54
  %v412 = vunpack.c.h.b16 %v54
  %v413 = vunpack.c.l.b16 %v55
  %v414 = vunpack.c.h.b16 %v55
  %v415 = vunpack.c.l.b16 %v56
  %v416 = vunpack.c.h.b16 %v56
  %v417 = vunpack.c.l.b16 %v57
  %v418 = vunpack.c.h.b16 %v57
  %v419 = vunpack.c.l.b16 %v58
  %v420 = vunpack.c.h.b16 %v58
  %v421 = vunpack.c.l.b16 %v59
  %v422 = vunpack.c.h.b16 %v59
  %v423 = vunpack.c.l.b16 %v60
  %v424 = vunpack.c.h.b16 %v60
  %v425 = vunpack.c.l.b16 %v61
  %v426 = vunpack.c.h.b16 %v61
  %v427 = vunpack.c.l.b16 %v62
  %v428 = vunpack.c.h.b16 %v62
  %v429 = vunpack.c.l.b16 %v63
  %v430 = vunpack.c.h.b16 %v63
  %v431 = vunpack.c.l.b16 %v64
  %v432 = vunpack.c.h.b16 %v64
  %v433 = vunpack.c.l.b16 %v65
  %v434 = vunpack.c.h.b16 %v65
  %v435 = vunpack.c.l.b16 %v66
  %v436 = vunpack.c.h.b16 %v66
  %v437 = vunpack.c.l.b16 %v67
  %v438 = vunpack.c.h.b16 %v67
  %v439 = vunpack.c.l.b16 %v68
  %v440 = vunpack.c.h.b16 %v68
  %v441 = vunpack.c.l.b16 %v69
  %v442 = vunpack.c.h.b16 %v69
  %v443 = vunpack.c.l.b16 %v70
  %v444 = vunpack.c.h.b16 %v70
  %v445 = vunpack.c.l.b16 %v71
  %v446 = vunpack.c.h.b16 %v71
  %v447 = vunpack.c.l.b16 %v72
  %v448 = vunpack.c.h.b16 %v72
  %v449 = vunpack.c.l.b16 %v73
  %v450 = vunpack.c.h.b16 %v73
  %v451 = vunpack.c.l.b16 %v74
  %v452 = vunpack.c.h.b16 %v74
  %v453 = vunpack.c.l.b16 %v75
  %v454 = vunpack.c.h.b16 %v75
  %v455 = vunpack.c.l.b16 %v76
  %v456 = vunpack.c.h.b16 %v76
  %v457 = vunpack.c.l.b16 %v77
  %v458 = vunpack.c.h.b16 %v77
  %v459 = vunpack.c.l.b16 %v78
  %v460 = vunpack.c.h.b16 %v78
  %v461 = vunpack.c.l.b16 %v79
  %v462 = vunpack.c.h.b16 %v79
  %v463 = vunpack.c.l.b16 %v80
  %v464 = vunpack.c.h.b16 %v80
  %v465 = vunpack.c.l.b16 %v81
  %v466 = vunpack.c.h.b16 %v81
  %v467 = vunpack.c.l.b16 %v82
  %v468 = vunpack.c.h.b16 %v82
  %v469 = vunpack.c.l.b16 %v83
  %v470 = vunpack.c.h.b16 %v83
  %v471 = vunpack.c.l.b16 %v84
  %v472 = vunpack.c.h.b16 %v84
  %v473 = vunpack.c.l.b16 %v85
  %v474 = vunpack.c.h.b16 %v85
  %v475 = vunpack.c.l.b16 %v86
  %v476 = vunpack.c.h.b16 %v86
  %v477 = vunpack.c.l.b16 %v87
  %v478 = vunpack.c.h.b16 %v87
  %v479 = vunpack.c.l.b16 %v88
  %v480 = vunpack.c.h.b16 %v88
  %v481 = vunpack.c.l.b16 %v89
  %v482 = vunpack.c.h.b16 %v89
  %v483 = vunpack.c.l.b16 %v90
  %v484 = vunpack.c.h.b16 %v90
  %v485 = vunpack.c.l.b16 %v91
  %v486 = vunpack.c.h.b16 %v91
  %v487 = vunpack.c.l.b16 %v92
  %v488 = vunpack.c.h.b16 %v92
  %v489 = vunpack.c.l.b16 %v93
  %v490 = vunpack.c.h.b16 %v93
  %v491 = vunpack.c.l.b16 %v94
  %v492 = vunpack.c.h.b16 %v94
  %v493 = vunpack.c.l.b16 %v95
  %v494 = vunpack.c.h.b16 %v95
  %v495 = vunpack.c.l.b16 %v96
  %v496 = vunpack.c.h.b16 %v96
  %v497 = vunpack.c.l.b16 %v97
  %v498 = vunpack.c.h.b16 %v97
  %v499 = vunpack.c.l.b16 %v98
  %v500 = vunpack.c.h.b16 %v98
  %v501 = vunpack.c.l.b16 %v99
  %v502 = vunpack.c.h.b16 %v99
  %v503 = vunpack.c.l.b16 %v100
  %v504 = vunpack.c.h.b16 %v100
  %v505 = vunpack.c.l.b16 %v101
  %v506 = vunpack.c.h.b16 %v101
  %v507 = vunpack.c.l.b16 %v102
  %v508 = vunpack.c.h.b16 %v102
  %v509 = vunpack.c.l.b16 %v103
  %v510 = vunpack.c.h.b16 %v103
  %v511 = vunpack.c.l.b16 %v104
  %v512 = vunpack.c.h.b16 %v104
  %v513 = vunpack.c.l.b16 %v105
  %v514 = vunpack.c.h.b16 %v105
  %v515 = vunpack.c.l.b16 %v106
  %v516 = vunpack.c.h.b16 %v106
  %v517 = vunpack.c.l.b16 %v107
  %v518 = vunpack.c.h.b16 %v107
  %v519 = vunpack.c.l.b16 %v108
  %v520 = vunpack.c.h.b16 %v108
  %v521 = vunpack.c.l.b16 %v109
  %v522 = vunpack.c.h.b16 %v109
  %v523 = vunpack.c.l.b16 %v110
  %v524 = vunpack.c.h.b16 %v110
  %v525 = vunpack.c.l.b16 %v111
  %v526 = vunpack.c.h.b16 %v111
  %v527 = vunpack.c.l.b16 %v112
  %v528 = vunpack.c.h.b16 %v112
  %v529 = vunpack.c.l.b16 %v113
  %v530 = vunpack.c.h.b16 %v113
  %v531 = vunpack.c.l.b16 %v114
  %v532 = vunpack.c.h.b16 %v114
  %v533 = vunpack.c.l.b16 %v115
  %v534 = vunpack.c.h.b16 %v115
  %v535 = vunpack.c.l.b16 %v116
  %v536 = vunpack.c.h.b16 %v116
  %v537 = vunpack.c.l.b16 %v117
  %v538 = vunpack.c.h.b16 %v117
  %v539 = vunpack.c.l.b16 %v118
  %v540 = vunpack.c.h.b16 %v118
  %v541 = vunpack.c.l.b16 %v119
  %v542 = vunpack.c.h.b16 %v119
  %v543 = vunpack.c.l.b16 %v120
  %v544 = vunpack.c.h.b16 %v120
  %v545 = vunpack.c.l.b16 %v121
  %v546 = vunpack.c.h.b16 %v121
  %v547 = vunpack.c.l.b16 %v122
  %v548 = vunpack.c.h.b16 %v122
  %v549 = vunpack.c.l.b16 %v123
  %v550 = vunpack.c.h.b16 %v123
  %v551 = vunpack.c.l.b16 %v124
  %v552 = vunpack.c.h.b16 %v124
  %v553 = vunpack.c.l.b16 %v125
  %v554 = vunpack.c.h.b16 %v125
  %v555 = vunpack.c.l.b16 %v126
  %v556 = vunpack.c.h.b16 %v126
  %v557 = vunpack.c.l.b16 %v127
  %v558 = vunpack.c.h.b16 %v127
  %v559 = vunpack.c.l.b16 %v128
  %v560 = vunpack.c.h.b16 %v128
  %v561 = vunpack.c.l.b16 %v129
  %v562 = vunpack.c.h.b16 %v129
  %v563 = vunpack.c.l.b16 %v130
  %v564 = vunpack.c.h.b16 %v130
  %v565 = vunpack.c.l.b16 %v131
  %v566 = vunpack.c.h.b16 %v131
  %v567 = vunpack.c.l.b16 %v132
  %v568 = vunpack.c.h.b16 %v132
  %v569 = vunpack.c.l.b16 %v133
  %v570 = vunpack.c.h.b16 %v133
  %v571 = vunpack.c.l.b16 %v134
  %v572 = vunpack.c.h.b16 %v134
  %v573 = vunpack.c.l.b16 %v135
  %v574 = vunpack.c.h.b16 %v135
  %v575 = vunpack.c.l.b16 %v136
  %v576 = vunpack.c.h.b16 %v136
  %v577 = vunpack.c.l.b16 %v137
  %v578 = vunpack.c.h.b16 %v137
  %v579 = vunpack.c.l.b16 %v138
  %v580 = vunpack.c.h.b16 %v138
  %v581 = vunpack.c.l.b16 %v139
  %v582 = vunpack.c.h.b16 %v139
  %v583 = vunpack.c.l.b16 %v140
  %v584 = vunpack.c.h.b16 %v140
  %v585 = vunpack.c.l.b16 %v141
  %v586 = vunpack.c.h.b16 %v141
  %v587 = vunpack.c.l.b16 %v142
  %v588 = vunpack.c.h.b16 %v142
  %v589 = vunpack.c.l.b16 %v143
  %v590 = vunpack.c.h.b16 %v143
  %v591 = vunpack.c.l.b16 %v144
  %v592 = vunpack.c.h.b16 %v144
  %v593 = vunpack.c.l.b16 %v145
  %v594 = vunpack.c.h.b16 %v145
  %v595 = vunpack.c.l.b16 %v146
  %v596 = vunpack.c.h.b16 %v146
  %v597 = vunpack.c.l.b16 %v147
  %v598 = vunpack.c.h.b16 %v147
  %v599 = vunpack.c.l.b16 %v148
  %v600 = vunpack.c.h.b16 %v148
  %v601 = vunpack.c.l.b16 %v149
  %v602 = vunpack.c.h.b16 %v149
  %v603 = vunpack.c.l.b16 %v150
  %v604 = vunpack.c.h.b16 %v150
  %v605 = vunpack.c.l.b16 %v151
  %v606 = vunpack.c.h.b16 %v151
  %v607 = vunpack.c.l.b16 %v152
  %v608 = vunpack.c.h.b16 %v152
  %v609 = vunpack.c.l.b16 %v153
  %v610 = vunpack.c.h.b16 %v153
  %v611 = vunpack.c.l.b16 %v154
  %v612 = vunpack.c.h.b16 %v154
  %v613 = vunpack.c.l.b16 %v155
  %v614 = vunpack.c.h.b16 %v155
  %v615 = vunpack.c.l.b16 %v156
  %v616 = vunpack.c.h.b16 %v156
  %v617 = vunpack.c.l.b16 %v157
  %v618 = vunpack.c.h.b16 %v157
  %v619 = vunpack.c.l.b16 %v158
  %v620 = vunpack.c.h.b16 %v158
  %v621 = vunpack.c.l.b16 %v159
  %v622 = vunpack.c.h.b16 %v159
  %v623 = vunpack.c.l.b16 %v160
  %v624 = vunpack.c.h.b16 %v160
  %v625 = vpack.c.b16 %v373, %v369
  %v626 = vpack.c.b16 %v374, %v370
  %v627 = vpack.c.b16 %v375, %v371
  %v628 = vpack.c.b16 %v376, %v372
  %v629 = vpack.c.b16 %v381, %v377
  %v630 = vpack.c.b16 %v382, %v378
  %v631 = vpack.c.b16 %v383, %v379
  %v632 = vpack.c.b16 %v384, %v380
  %v633 = vpack.c.b16 %v389, %v385
  %v634 = vpack.c.b16 %v390, %v386
  %v635 = vpack.c.b16 %v391, %v387
  %v636 = vpack.c.b16 %v392, %v388
  %v637 = vpack.c.b16 %v397, %v393
  %v638 = vpack.c.b16 %v398, %v394
  %v639 = vpack.c.b16 %v399, %v395
  %v640 = vpack.c.b16 %v400, %v396
  %v641 = vpack.c.b16 %v405, %v401
  %v642 = vpack.c.b16 %v406, %v402
  %v643 = vpack.c.b16 %v407, %v403
  %v644 = vpack.c.b16 %v408, %v404
  %v645 = vpack.c.b16 %v413, %v409
  %v646 = vpack.c.b16 %v414, %v410
  %v647 = vpack.c.b16 %v415, %v411
  %v648 = vpack.c.b16 %v416, %v412
  %v649 = vpack.c.b16 %v421, %v417
  %v650 = vpack.c.b16 %v422, %v418
  %v651 = vpack.c.b16 %v423, %v419
  %v652 = vpack.c.b16 %v424, %v420
  %v653 = vpack.c.b16 %v429, %v425
  %v654 = vpack.c.b16 %v430, %v426
  %v655 = vpack.c.b16 %v431, %v427
  %v656 = vpack.c.b16 %v432, %v428
  %v657 = vpack.c.b16 %v437, %v433
  %v658 = vpack.c.b16 %v438, %v434
  %v659 = vpack.c.b16 %v439, %v435
  %v660 = vpack.c.b16 %v440, %v436
  %v661 = vpack.c.b16 %v445, %v441
  %v662 = vpack.c.b16 %v446, %v442
  %v663 = vpack.c.b16 %v447, %v443
  %v664 = vpack.c.b16 %v448, %v444
  %v665 = vpack.c.b16 %v453, %v449
  %v666 = vpack.c.b16 %v454, %v450
  %v667 = vpack.c.b16 %v455, %v451
  %v668 = vpack.c.b16 %v456, %v452
  %v669 = vpack.c.b16 %v461, %v457
  %v670 = vpack.c.b16 %v462, %v458
  %v671 = vpack.c.b16 %v463, %v459
  %v672 = vpack.c.b16 %v464, %v460
  %v673 = vpack.c.b16 %v469, %v465
  %v674 = vpack.c.b16 %v470, %v466
  %v675 = vpack.c.b16 %v471, %v467
  %v676 = vpack.c.b16 %v472, %v468
  %v677 = vpack.c.b16 %v477, %v473
  %v678 = vpack.c.b16 %v478, %v474
  %v679 = vpack.c.b16 %v479, %v475
  %v680 = vpack.c.b16 %v480, %v476
  %v681 = vpack.c.b16 %v485, %v481
  %v682 = vpack.c.b16 %v486, %v482
  %v683 = vpack.c.b16 %v487, %v483
  %v684 = vpack.c.b16 %v488, %v484
  %v685 = vpack.c.b16 %v493, %v489
  %v686 = vpack.c.b16 %v494, %v490
  %v687 = vpack.c.b16 %v495, %v491
  %v688 = vpack.c.b16 %v496, %v492
  %v689 = vpack.c.b16 %v501, %v497
  %v690 = vpack.c.b16 %v502, %v498
  %v691 = vpack.c.b16 %v503, %v499
  %v692 = vpack.c.b16 %v504, %v500
  %v693 = vpack.c.b16 %v509, %v505
  %v694 = vpack.c.b16 %v510, %v506
  %v695 = vpack.c.b16 %v511, %v507
  %v696 = vpack.c.b16 %v512, %v508
  %v697 = vpack.c.b16 %v517, %v513
  %v698 = vpack.c.b16 %v518, %v514
  %v699 = vpack.c.b16 %v519, %v515
  %v700 = vpack.c.b16 %v520, %v516
  %v701 = vpack.c.b16 %v525, %v521
  %v702 = vpack.c.b16 %v526, %v522
  %v703 = vpack.c.b16 %v527, %v523
  %v704 = vpack.c.b16 %v528, %v524
  %v705 = vpack.c.b16 %v533, %v529
  %v706 = vpack.c.b16 %v534, %v530
  %v707 = vpack.c.b16 %v535, %v531
  %v708 = vpack.c.b16 %v536, %v532
  %v709 = vpack.c.b16 %v541, %v537
  %v710 = vpack.c.b16 %v542, %v538
  %v711 = vpack.c.b16 %v543, %v539
  %v712 = vpack.c.b16 %v544, %v540
  %v713 = vpack.c.b16 %v549, %v545
  %v714 = vpack.c.b16 %v550, %v546
  %v715 = vpack.c.b16 %v551, %v547
  %v716 = vpack.c.b16 %v552, %v548
  %v717 = vpack.c.b16 %v557, %v553
  %v718 = vpack.c.b16 %v558, %v554
  %v719 = vpack.c.b16 %v559, %v555
  %v720 = vpack.c.b16 %v560, %v556
  %v721 = vpack.c.b16 %v565, %v561
  %v722 = vpack.c.b16 %v566, %v562
  %v723 = vpack.c.b16 %v567, %v563
  %v724 = vpack.c.b16 %v568, %v564
  %v725 = vpack.c.b16 %v573, %v569
  %v726 = vpack.c.b16 %v574, %v570
  %v727 = vpack.c.b16 %v575, %v571
  %v728 = vpack.c.b16 %v576, %v572
  %v729 = vpack.c.b16 %v581, %v577
  %v730 = vpack.c.b16 %v582, %v578
  %v731 = vpack.c.b16 %v583, %v579
  %v732 = vpack.c.b16 %v584, %v580
  %v733 = vpack.c.b16 %v589, %v585
  %v734 = vpack.c.b16 %v590, %v586
  %v735 = vpack.c.b16 %v591, %v587
  %v736 = vpack.c.b16 %v592, %v588
  %v737 = vpack.c.b16 %v597, %v593
  %v738 = vpack.c.b16 %v598, %v594
  %v739 = vpack.c.b16 %v599, %v595
  %v740 = vpack.c.b16 %v600, %v596
  %v741 = vpack.c.b16 %v605, %v601
  %v742 = vpack.c.b16 %v606, %v602
  %v743 = vpack.c.b16 %v607, %v603
  %v744 = vpack.c.b16 %v608, %v604
  %v745 = vpack.c.b16 %v613, %v609
  %v746 = vpack.c.b16 %v614, %v610
  %v747 = vpack.c.b16 %v615, %v611
  %v748 = vpack.c.b16 %v616, %v612
  %v749 = vpack.c.b16 %v621, %v617
  %v750 = vpack.c.b16 %v622, %v618
  %v751 = vpack.c.b16 %v623, %v619
  %v752 = vpack.c.b16 %v624, %v620
  %881 = vmatprep.subr.bf16.mxu0 %v626
  %882 = vmatpush1.bf16.msra.mxu0 %v625
  %883 = vmatprep.subr.bf16.mxu0 %v630
  %884 = vmatpush1.bf16.msra.mxu0 %v629
  %885 = vmatprep.subr.bf16.mxu0 %v634
  %886 = vmatpush1.bf16.msra.mxu0 %v633
  %887 = vmatprep.subr.bf16.mxu0 %v638
  %888 = vmatpush1.bf16.msra.mxu0 %v637
  %889 = vmatprep.subr.bf16.mxu0 %v642
  %890 = vmatpush1.bf16.msra.mxu0 %v641
  %891 = vmatprep.subr.bf16.mxu0 %v646
  %892 = vmatpush1.bf16.msra.mxu0 %v645
  %893 = vmatprep.subr.bf16.mxu0 %v650
  %894 = vmatpush1.bf16.msra.mxu0 %v649
  %895 = vmatprep.subr.bf16.mxu0 %v654
  %896 = vmatpush1.bf16.msra.mxu0 %v653
  %897 = vmatprep.subr.bf16.mxu0 %v658
  %898 = vmatpush1.bf16.msra.mxu0 %v657
  %899 = vmatprep.subr.bf16.mxu0 %v662
  %900 = vmatpush1.bf16.msra.mxu0 %v661
  %901 = vmatprep.subr.bf16.mxu0 %v666
  %902 = vmatpush1.bf16.msra.mxu0 %v665
  %903 = vmatprep.subr.bf16.mxu0 %v670
  %904 = vmatpush1.bf16.msra.mxu0 %v669
  %905 = vmatprep.subr.bf16.mxu0 %v674
  %906 = vmatpush1.bf16.msra.mxu0 %v673
  %907 = vmatprep.subr.bf16.mxu0 %v678
  %908 = vmatpush1.bf16.msra.mxu0 %v677
  %909 = vmatprep.subr.bf16.mxu0 %v682
  %910 = vmatpush1.bf16.msra.mxu0 %v681
  %911 = vmatprep.subr.bf16.mxu0 %v686
  %912 = vmatpush1.bf16.msra.mxu0 %v685
  %913 = vmatprep.mubr.bf16.mxu0 %v210
  %914 = vmatmul.mubr.bf16.gmra.mrb[0].mxu0 %v209
  %v915 = vpop.f32.mrb[0].mxu0
  %v916 = vadd.f32 0.0, %v915
  %v917 = vpop.f32.mrb[0].mxu0
  %v918 = vadd.f32 0.0, %v917
  %v919 = vpop.f32.mrb[0].mxu0
  %v920 = vadd.f32 0.0, %v919
  %v921 = vpop.f32.mrb[0].mxu0
  %v922 = vadd.f32 0.0, %v921
  %923 = vmatprep.mubr.bf16.mxu0 %v214
  %924 = vmatmul.mubr.bf16.gmra.mrb[0].mxu0 %v213
  %v925 = vpop.f32.mrb[0].mxu0
  %v926 = vadd.f32 0.0, %v925
  %v927 = vpop.f32.mrb[0].mxu0
  %v928 = vadd.f32 0.0, %v927
  %v929 = vpop.f32.mrb[0].mxu0
  %v930 = vadd.f32 0.0, %v929
  %v931 = vpop.f32.mrb[0].mxu0
  %v932 = vadd.f32 0.0, %v931
  %933 = vmatprep.mubr.bf16.mxu0 %v218
  %934 = vmatmul.mubr.bf16.gmra.mrb[0].mxu0 %v217
  %v935 = vpop.f32.mrb[0].mxu0
  %v936 = vadd.f32 0.0, %v935
  %v937 = vpop.f32.mrb[0].mxu0
  %v938 = vadd.f32 0.0, %v937
  %v939 = vpop.f32.mrb[0].mxu0
  %v940 = vadd.f32 0.0, %v939
  %v941 = vpop.f32.mrb[0].mxu0
  %v942 = vadd.f32 0.0, %v941
  %943 = vmatprep.mubr.bf16.mxu0 %v222
  %944 = vmatmul.mubr.bf16.gmra.mrb[0].mxu0 %v221
  %v945 = vpop.f32.mrb[0].mxu0
  %v946 = vadd.f32 0.0, %v945
  %v947 = vpop.f32.mrb[0].mxu0
  %v948 = vadd.f32 0.0, %v947
  %v949 = vpop.f32.mrb[0].mxu0
  %v950 = vadd.f32 0.0, %v949
  %v951 = vpop.f32.mrb[0].mxu0
  %v952 = vadd.f32 0.0, %v951
  %953 = vdwg.mxu0
  %954 = vmatprep.subr.bf16.mxu0 %v690
  %955 = vmatpush1.bf16.msra.mxu0 %v689
  %956 = vmatprep.subr.bf16.mxu0 %v694
  %957 = vmatpush1.bf16.msra.mxu0 %v693
  %958 = vmatprep.subr.bf16.mxu0 %v698
  %959 = vmatpush1.bf16.msra.mxu0 %v697
  %960 = vmatprep.subr.bf16.mxu0 %v702
  %961 = vmatpush1.bf16.msra.mxu0 %v701
  %962 = vmatprep.subr.bf16.mxu0 %v706
  %963 = vmatpush1.bf16.msra.mxu0 %v705
  %964 = vmatprep.subr.bf16.mxu0 %v710
  %965 = vmatpush1.bf16.msra.mxu0 %v709
  %966 = vmatprep.subr.bf16.mxu0 %v714
  %967 = vmatpush1.bf16.msra.mxu0 %v713
  %968 = vmatprep.subr.bf16.mxu0 %v718
  %969 = vmatpush1.bf16.msra.mxu0 %v717
  %970 = vmatprep.subr.bf16.mxu0 %v722
  %971 = vmatpush1.bf16.msra.mxu0 %v721
  %972 = vmatprep.subr.bf16.mxu0 %v726
  %973 = vmatpush1.bf16.msra.mxu0 %v725
  %974 = vmatprep.subr.bf16.mxu0 %v730
  %975 = vmatpush1.bf16.msra.mxu0 %v729
  %976 = vmatprep.subr.bf16.mxu0 %v734
  %977 = vmatpush1.bf16.msra.mxu0 %v733
  %978 = vmatprep.subr.bf16.mxu0 %v738
  %979 = vmatpush1.bf16.msra.mxu0 %v737
  %980 = vmatprep.subr.bf16.mxu0 %v742
  %981 = vmatpush1.bf16.msra.mxu0 %v741
  %982 = vmatprep.subr.bf16.mxu0 %v746
  %983 = vmatpush1.bf16.msra.mxu0 %v745
  %984 = vmatprep.subr.bf16.mxu0 %v750
  %985 = vmatpush1.bf16.msra.mxu0 %v749
  %986 = vmatprep.mubr.bf16.mxu0 %v212
  %987 = vmatmul.mubr.bf16.gmra.mrb[0].mxu0 %v211
  %v988 = vpop.f32.mrb[0].mxu0
  %v989 = vadd.f32 %v916, %v988
  %v990 = vpop.f32.mrb[0].mxu0
  %v991 = vadd.f32 %v918, %v990
  %v992 = vpop.f32.mrb[0].mxu0
  %v993 = vadd.f32 %v920, %v992
  %v994 = vpop.f32.mrb[0].mxu0
  %v995 = vadd.f32 %v922, %v994
  %996 = vmatprep.mubr.bf16.mxu0 %v216
  %997 = vmatmul.mubr.bf16.gmra.mrb[0].mxu0 %v215
  %v998 = vpop.f32.mrb[0].mxu0
  %v999 = vadd.f32 %v926, %v998
  %v1000 = vpop.f32.mrb[0].mxu0
  %v1001 = vadd.f32 %v928, %v1000
  %v1002 = vpop.f32.mrb[0].mxu0
  %v1003 = vadd.f32 %v930, %v1002
  %v1004 = vpop.f32.mrb[0].mxu0
  %v1005 = vadd.f32 %v932, %v1004
  %1006 = vmatprep.mubr.bf16.mxu0 %v220
  %1007 = vmatmul.mubr.bf16.gmra.mrb[0].mxu0 %v219
  %v1008 = vpop.f32.mrb[0].mxu0
  %v1009 = vadd.f32 %v936, %v1008
  %v1010 = vpop.f32.mrb[0].mxu0
  %v1011 = vadd.f32 %v938, %v1010
  %v1012 = vpop.f32.mrb[0].mxu0
  %v1013 = vadd.f32 %v940, %v1012
  %v1014 = vpop.f32.mrb[0].mxu0
  %v1015 = vadd.f32 %v942, %v1014
  %1016 = vmatprep.mubr.bf16.mxu0 %v224
  %1017 = vmatmul.mubr.bf16.gmra.mrb[0].mxu0 %v223
  %v1018 = vpop.f32.mrb[0].mxu0
  %v1019 = vadd.f32 %v946, %v1018
  %v1020 = vpop.f32.mrb[0].mxu0
  %v1021 = vadd.f32 %v948, %v1020
  %v1022 = vpop.f32.mrb[0].mxu0
  %v1023 = vadd.f32 %v950, %v1022
  %v1024 = vpop.f32.mrb[0].mxu0
  %v1025 = vadd.f32 %v952, %v1024
  %1026 = vdwg.mxu0
  %1027 = vmatprep.subr.bf16.mxu0 %v628
  %1028 = vmatpush1.bf16.msra.mxu0 %v627
  %1029 = vmatprep.subr.bf16.mxu0 %v632
  %1030 = vmatpush1.bf16.msra.mxu0 %v631
  %1031 = vmatprep.subr.bf16.mxu0 %v636
  %1032 = vmatpush1.bf16.msra.mxu0 %v635
  %1033 = vmatprep.subr.bf16.mxu0 %v640
  %1034 = vmatpush1.bf16.msra.mxu0 %v639
  %1035 = vmatprep.subr.bf16.mxu0 %v644
  %1036 = vmatpush1.bf16.msra.mxu0 %v643
  %1037 = vmatprep.subr.bf16.mxu0 %v648
  %1038 = vmatpush1.bf16.msra.mxu0 %v647
  %1039 = vmatprep.subr.bf16.mxu0 %v652
  %1040 = vmatpush1.bf16.msra.mxu0 %v651
  %1041 = vmatprep.subr.bf16.mxu0 %v656
  %1042 = vmatpush1.bf16.msra.mxu0 %v655
  %1043 = vmatprep.subr.bf16.mxu0 %v660
  %1044 = vmatpush1.bf16.msra.mxu0 %v659
  %1045 = vmatprep.subr.bf16.mxu0 %v664
  %1046 = vmatpush1.bf16.msra.mxu0 %v663
  %1047 = vmatprep.subr.bf16.mxu0 %v668
  %1048 = vmatpush1.bf16.msra.mxu0 %v667
  %1049 = vmatprep.subr.bf16.mxu0 %v672
  %1050 = vmatpush1.bf16.msra.mxu0 %v671
  %1051 = vmatprep.subr.bf16.mxu0 %v676
  %1052 = vmatpush1.bf16.msra.mxu0 %v675
  %1053 = vmatprep.subr.bf16.mxu0 %v680
  %1054 = vmatpush1.bf16.msra.mxu0 %v679
  %1055 = vmatprep.subr.bf16.mxu0 %v684
  %1056 = vmatpush1.bf16.msra.mxu0 %v683
  %1057 = vmatprep.subr.bf16.mxu0 %v688
  %1058 = vmatpush1.bf16.msra.mxu0 %v687
  %1059 = vmatprep.mubr.bf16.mxu0 %v210
  %1060 = vmatmul.mubr.bf16.gmra.mrb[0].mxu0 %v209
  %v1061 = vpop.f32.mrb[0].mxu0
  %v1062 = vadd.f32 0.0, %v1061
  %v1063 = vpop.f32.mrb[0].mxu0
  %v1064 = vadd.f32 0.0, %v1063
  %v1065 = vpop.f32.mrb[0].mxu0
  %v1066 = vadd.f32 0.0, %v1065
  %v1067 = vpop.f32.mrb[0].mxu0
  %v1068 = vadd.f32 0.0, %v1067
  %1069 = vmatprep.mubr.bf16.mxu0 %v214
  %1070 = vmatmul.mubr.bf16.gmra.mrb[0].mxu0 %v213
  %v1071 = vpop.f32.mrb[0].mxu0
  %v1072 = vadd.f32 0.0, %v1071
  %v1073 = vpop.f32.mrb[0].mxu0
  %v1074 = vadd.f32 0.0, %v1073
  %v1075 = vpop.f32.mrb[0].mxu0
  %v1076 = vadd.f32 0.0, %v1075
  %v1077 = vpop.f32.mrb[0].mxu0
  %v1078 = vadd.f32 0.0, %v1077
  %1079 = vmatprep.mubr.bf16.mxu0 %v218
  %1080 = vmatmul.mubr.bf16.gmra.mrb[0].mxu0 %v217
  %v1081 = vpop.f32.mrb[0].mxu0
  %v1082 = vadd.f32 0.0, %v1081
  %v1083 = vpop.f32.mrb[0].mxu0
  %v1084 = vadd.f32 0.0, %v1083
  %v1085 = vpop.f32.mrb[0].mxu0
  %v1086 = vadd.f32 0.0, %v1085
  %v1087 = vpop.f32.mrb[0].mxu0
  %v1088 = vadd.f32 0.0, %v1087
  %1089 = vmatprep.mubr.bf16.mxu0 %v222
  %1090 = vmatmul.mubr.bf16.gmra.mrb[0].mxu0 %v221
  %v1091 = vpop.f32.mrb[0].mxu0
  %v1092 = vadd.f32 0.0, %v1091
  %v1093 = vpop.f32.mrb[0].mxu0
  %v1094 = vadd.f32 0.0, %v1093
  %v1095 = vpop.f32.mrb[0].mxu0
  %v1096 = vadd.f32 0.0, %v1095
  %v1097 = vpop.f32.mrb[0].mxu0
  %v1098 = vadd.f32 0.0, %v1097
  %1099 = vdwg.mxu0
  %1100 = vmatprep.subr.bf16.mxu0 %v692
  %1101 = vmatpush1.bf16.msra.mxu0 %v691
  %1102 = vmatprep.subr.bf16.mxu0 %v696
  %1103 = vmatpush1.bf16.msra.mxu0 %v695
  %1104 = vmatprep.subr.bf16.mxu0 %v700
  %1105 = vmatpush1.bf16.msra.mxu0 %v699
  %1106 = vmatprep.subr.bf16.mxu0 %v704
  %1107 = vmatpush1.bf16.msra.mxu0 %v703
  %1108 = vmatprep.subr.bf16.mxu0 %v708
  %1109 = vmatpush1.bf16.msra.mxu0 %v707
  %1110 = vmatprep.subr.bf16.mxu0 %v712
  %1111 = vmatpush1.bf16.msra.mxu0 %v711
  %1112 = vmatprep.subr.bf16.mxu0 %v716
  %1113 = vmatpush1.bf16.msra.mxu0 %v715
  %1114 = vmatprep.subr.bf16.mxu0 %v720
  %1115 = vmatpush1.bf16.msra.mxu0 %v719
  %1116 = vmatprep.subr.bf16.mxu0 %v724
  %1117 = vmatpush1.bf16.msra.mxu0 %v723
  %1118 = vmatprep.subr.bf16.mxu0 %v728
  %1119 = vmatpush1.bf16.msra.mxu0 %v727
  %1120 = vmatprep.subr.bf16.mxu0 %v732
  %1121 = vmatpush1.bf16.msra.mxu0 %v731
  %1122 = vmatprep.subr.bf16.mxu0 %v736
  %1123 = vmatpush1.bf16.msra.mxu0 %v735
  %1124 = vmatprep.subr.bf16.mxu0 %v740
  %1125 = vmatpush1.bf16.msra.mxu0 %v739
  %1126 = vmatprep.subr.bf16.mxu0 %v744
  %1127 = vmatpush1.bf16.msra.mxu0 %v743
  %1128 = vmatprep.subr.bf16.mxu0 %v748
  %1129 = vmatpush1.bf16.msra.mxu0 %v747
  %1130 = vmatprep.subr.bf16.mxu0 %v752
  %1131 = vmatpush1.bf16.msra.mxu0 %v751
  %1132 = vmatprep.mubr.bf16.mxu0 %v212
  %1133 = vmatmul.mubr.bf16.gmra.mrb[0].mxu0 %v211
  %v1134 = vpop.f32.mrb[0].mxu0
  %v1135 = vadd.f32 %v1062, %v1134
  %v1136 = vpop.f32.mrb[0].mxu0
  %v1137 = vadd.f32 %v1064, %v1136
  %v1138 = vpop.f32.mrb[0].mxu0
  %v1139 = vadd.f32 %v1066, %v1138
  %v1140 = vpop.f32.mrb[0].mxu0
  %v1141 = vadd.f32 %v1068, %v1140
  %1142 = vmatprep.mubr.bf16.mxu0 %v216
  %1143 = vmatmul.mubr.bf16.gmra.mrb[0].mxu0 %v215
  %v1144 = vpop.f32.mrb[0].mxu0
  %v1145 = vadd.f32 %v1072, %v1144
  %v1146 = vpop.f32.mrb[0].mxu0
  %v1147 = vadd.f32 %v1074, %v1146
  %v1148 = vpop.f32.mrb[0].mxu0
  %v1149 = vadd.f32 %v1076, %v1148
  %v1150 = vpop.f32.mrb[0].mxu0
  %v1151 = vadd.f32 %v1078, %v1150
  %1152 = vmatprep.mubr.bf16.mxu0 %v220
  %1153 = vmatmul.mubr.bf16.gmra.mrb[0].mxu0 %v219
  %v1154 = vpop.f32.mrb[0].mxu0
  %v1155 = vadd.f32 %v1082, %v1154
  %v1156 = vpop.f32.mrb[0].mxu0
  %v1157 = vadd.f32 %v1084, %v1156
  %v1158 = vpop.f32.mrb[0].mxu0
  %v1159 = vadd.f32 %v1086, %v1158
  %v1160 = vpop.f32.mrb[0].mxu0
  %v1161 = vadd.f32 %v1088, %v1160
  %1162 = vmatprep.mubr.bf16.mxu0 %v224
  %1163 = vmatmul.mubr.bf16.gmra.mrb[0].mxu0 %v223
  %v1164 = vpop.f32.mrb[0].mxu0
  %v1165 = vadd.f32 %v1092, %v1164
  %v1166 = vpop.f32.mrb[0].mxu0
  %v1167 = vadd.f32 %v1094, %v1166
  %v1168 = vpop.f32.mrb[0].mxu0
  %v1169 = vadd.f32 %v1096, %v1168
  %v1170 = vpop.f32.mrb[0].mxu0
  %v1171 = vadd.f32 %v1098, %v1170
  %1172 = vdwg.mxu0
  %v1173 = vadd.f32 %v989, %v991
  %v1174 = vadd.f32 %v1173, %v1135
  %v1175 = vadd.f32 %v1174, %v1137
  %1176 = vadd.xlane.f32.xlu0 %v1175
  %v1177 = vpop.xlane.xlu0 %1176
  %v1178 = vadd.f32 %v993, %v995
  %v1179 = vadd.f32 %v1178, %v1139
  %v1180 = vadd.f32 %v1179, %v1141
  %1181 = vadd.xlane.f32.xlu0 %v1180
  %v1182 = vpop.xlane.xlu0 %1181
  %v1183 = vadd.f32 %v999, %v1001
  %v1184 = vadd.f32 %v1183, %v1145
  %v1185 = vadd.f32 %v1184, %v1147
  %1186 = vadd.xlane.f32.xlu0 %v1185
  %v1187 = vpop.xlane.xlu0 %1186
  %v1188 = vadd.f32 %v1003, %v1005
  %v1189 = vadd.f32 %v1188, %v1149
  %v1190 = vadd.f32 %v1189, %v1151
  %1191 = vadd.xlane.f32.xlu0 %v1190
  %v1192 = vpop.xlane.xlu0 %1191
  %v1193 = vadd.f32 %v1009, %v1011
  %v1194 = vadd.f32 %v1193, %v1155
  %v1195 = vadd.f32 %v1194, %v1157
  %1196 = vadd.xlane.f32.xlu0 %v1195
  %v1197 = vpop.xlane.xlu0 %1196
  %v1198 = vadd.f32 %v1013, %v1015
  %v1199 = vadd.f32 %v1198, %v1159
  %v1200 = vadd.f32 %v1199, %v1161
  %1201 = vadd.xlane.f32.xlu0 %v1200
  %v1202 = vpop.xlane.xlu0 %1201
  %v1203 = vadd.f32 %v1019, %v1021
  %v1204 = vadd.f32 %v1203, %v1165
  %v1205 = vadd.f32 %v1204, %v1167
  %1206 = vadd.xlane.f32.xlu0 %v1205
  %v1207 = vpop.xlane.xlu0 %1206
  %v1208 = vadd.f32 %v1023, %v1025
  %v1209 = vadd.f32 %v1208, %v1169
  %v1210 = vadd.f32 %v1209, %v1171
  %1211 = vadd.xlane.f32.xlu0 %v1210
  %v1212 = vpop.xlane.xlu0 %1211
  %v1213 = vmul.f32 %v1177, 0.001953125
  %v1214 = vmul.f32 %v1182, 0.001953125
  %v1215 = vmul.f32 %v1187, 0.001953125
  %v1216 = vmul.f32 %v1192, 0.001953125
  %v1217 = vmul.f32 %v1197, 0.001953125
  %v1218 = vmul.f32 %v1202, 0.001953125
  %v1219 = vmul.f32 %v1207, 0.001953125
  %v1220 = vmul.f32 %v1212, 0.001953125
  %v1221 = vmul.f32 %v989, %v989
  %v1222 = vmul.f32 %v991, %v991
  %v1223 = vmul.f32 %v1135, %v1135
  %v1224 = vmul.f32 %v1137, %v1137
  %v1225 = vmul.f32 %v993, %v993
  %v1226 = vmul.f32 %v995, %v995
  %v1227 = vmul.f32 %v1139, %v1139
  %v1228 = vmul.f32 %v1141, %v1141
  %v1229 = vmul.f32 %v999, %v999
  %v1230 = vmul.f32 %v1001, %v1001
  %v1231 = vmul.f32 %v1145, %v1145
  %v1232 = vmul.f32 %v1147, %v1147
  %v1233 = vmul.f32 %v1003, %v1003
  %v1234 = vmul.f32 %v1005, %v1005
  %v1235 = vmul.f32 %v1149, %v1149
  %v1236 = vmul.f32 %v1151, %v1151
  %v1237 = vmul.f32 %v1009, %v1009
  %v1238 = vmul.f32 %v1011, %v1011
  %v1239 = vmul.f32 %v1155, %v1155
  %v1240 = vmul.f32 %v1157, %v1157
  %v1241 = vmul.f32 %v1013, %v1013
  %v1242 = vmul.f32 %v1015, %v1015
  %v1243 = vmul.f32 %v1159, %v1159
  %v1244 = vmul.f32 %v1161, %v1161
  %v1245 = vmul.f32 %v1019, %v1019
  %v1246 = vmul.f32 %v1021, %v1021
  %v1247 = vmul.f32 %v1165, %v1165
  %v1248 = vmul.f32 %v1167, %v1167
  %v1249 = vmul.f32 %v1023, %v1023
  %v1250 = vmul.f32 %v1025, %v1025
  %v1251 = vmul.f32 %v1169, %v1169
  %v1252 = vmul.f32 %v1171, %v1171
  %v1253 = vadd.f32 %v1221, %v1222
  %v1254 = vadd.f32 %v1253, %v1223
  %v1255 = vadd.f32 %v1254, %v1224
  %1256 = vadd.xlane.f32.xlu0 %v1255
  %v1257 = vpop.xlane.xlu0 %1256
  %v1258 = vadd.f32 %v1225, %v1226
  %v1259 = vadd.f32 %v1258, %v1227
  %v1260 = vadd.f32 %v1259, %v1228
  %1261 = vadd.xlane.f32.xlu0 %v1260
  %v1262 = vpop.xlane.xlu0 %1261
  %v1263 = vadd.f32 %v1229, %v1230
  %v1264 = vadd.f32 %v1263, %v1231
  %v1265 = vadd.f32 %v1264, %v1232
  %1266 = vadd.xlane.f32.xlu0 %v1265
  %v1267 = vpop.xlane.xlu0 %1266
  %v1268 = vadd.f32 %v1233, %v1234
  %v1269 = vadd.f32 %v1268, %v1235
  %v1270 = vadd.f32 %v1269, %v1236
  %1271 = vadd.xlane.f32.xlu0 %v1270
  %v1272 = vpop.xlane.xlu0 %1271
  %v1273 = vadd.f32 %v1237, %v1238
  %v1274 = vadd.f32 %v1273, %v1239
  %v1275 = vadd.f32 %v1274, %v1240
  %1276 = vadd.xlane.f32.xlu0 %v1275
  %v1277 = vpop.xlane.xlu0 %1276
  %v1278 = vadd.f32 %v1241, %v1242
  %v1279 = vadd.f32 %v1278, %v1243
  %v1280 = vadd.f32 %v1279, %v1244
  %1281 = vadd.xlane.f32.xlu0 %v1280
  %v1282 = vpop.xlane.xlu0 %1281
  %v1283 = vadd.f32 %v1245, %v1246
  %v1284 = vadd.f32 %v1283, %v1247
  %v1285 = vadd.f32 %v1284, %v1248
  %1286 = vadd.xlane.f32.xlu0 %v1285
  %v1287 = vpop.xlane.xlu0 %1286
  %v1288 = vadd.f32 %v1249, %v1250
  %v1289 = vadd.f32 %v1288, %v1251
  %v1290 = vadd.f32 %v1289, %v1252
  %1291 = vadd.xlane.f32.xlu0 %v1290
  %v1292 = vpop.xlane.xlu0 %1291
  %v1293 = vmul.f32 %v1257, 0.001953125
  %v1294 = vmul.f32 %v1262, 0.001953125
  %v1295 = vmul.f32 %v1267, 0.001953125
  %v1296 = vmul.f32 %v1272, 0.001953125
  %v1297 = vmul.f32 %v1277, 0.001953125
  %v1298 = vmul.f32 %v1282, 0.001953125
  %v1299 = vmul.f32 %v1287, 0.001953125
  %v1300 = vmul.f32 %v1292, 0.001953125
  %v1301 = vmul.f32 %v1213, %v1213
  %v1302 = vmul.f32 %v1214, %v1214
  %v1303 = vmul.f32 %v1215, %v1215
  %v1304 = vmul.f32 %v1216, %v1216
  %v1305 = vmul.f32 %v1217, %v1217
  %v1306 = vmul.f32 %v1218, %v1218
  %v1307 = vmul.f32 %v1219, %v1219
  %v1308 = vmul.f32 %v1220, %v1220
  %v1309 = vsub.f32 %v1293, %v1301
  %v1310 = vsub.f32 %v1294, %v1302
  %v1311 = vsub.f32 %v1295, %v1303
  %v1312 = vsub.f32 %v1296, %v1304
  %v1313 = vsub.f32 %v1297, %v1305
  %v1314 = vsub.f32 %v1298, %v1306
  %v1315 = vsub.f32 %v1299, %v1307
  %v1316 = vsub.f32 %v1300, %v1308
  %v1317 = vld [vmem:[%s2] sm:$0xff]
  %v1318 = vld [vmem:[%s2 + $0x8] sm:$0xff]
  %v1319 = vld [vmem:[%s2 + $0x10] sm:$0xff]
  %v1320 = vld [vmem:[%s2 + $0x18] sm:$0xff]
  %v1321 = vld [vmem:[%s2 + $0x20] sm:$0xff]
  %v1322 = vld [vmem:[%s2 + $0x28] sm:$0xff]
  %v1323 = vld [vmem:[%s2 + $0x30] sm:$0xff]
  %v1324 = vld [vmem:[%s2 + $0x38] sm:$0xff]
  %v1325 = vadd.f32 %v1309, 1e-05
  %v1326 = vadd.f32 %v1310, 1e-05
  %v1327 = vadd.f32 %v1311, 1e-05
  %v1328 = vadd.f32 %v1312, 1e-05
  %v1329 = vadd.f32 %v1313, 1e-05
  %v1330 = vadd.f32 %v1314, 1e-05
  %v1331 = vadd.f32 %v1315, 1e-05
  %v1332 = vadd.f32 %v1316, 1e-05
  %v1333 = vrsqrt.pop %v1325
  %v1334 = vrsqrt.pop %v1326
  %v1335 = vrsqrt.pop %v1327
  %v1336 = vrsqrt.pop %v1328
  %v1337 = vrsqrt.pop %v1329
  %v1338 = vrsqrt.pop %v1330
  %v1339 = vrsqrt.pop %v1331
  %v1340 = vrsqrt.pop %v1332
  %v1341 = vmul.f32 %v1317, %v1333
  %v1342 = vmul.f32 %v1318, %v1334
  %v1343 = vmul.f32 %v1319, %v1335
  %v1344 = vmul.f32 %v1320, %v1336
  %v1345 = vmul.f32 %v1321, %v1337
  %v1346 = vmul.f32 %v1322, %v1338
  %v1347 = vmul.f32 %v1323, %v1339
  %v1348 = vmul.f32 %v1324, %v1340
  %v1349 = vld [vmem:[%s3] sm:$0xff]
  %v1350 = vld [vmem:[%s3 + $0x8] sm:$0xff]
  %v1351 = vld [vmem:[%s3 + $0x10] sm:$0xff]
  %v1352 = vld [vmem:[%s3 + $0x18] sm:$0xff]
  %v1353 = vld [vmem:[%s3 + $0x20] sm:$0xff]
  %v1354 = vld [vmem:[%s3 + $0x28] sm:$0xff]
  %v1355 = vld [vmem:[%s3 + $0x30] sm:$0xff]
  %v1356 = vld [vmem:[%s3 + $0x38] sm:$0xff]
  %v1357 = vmul.f32 %v1213, %v1341
  %v1358 = vmul.f32 %v1214, %v1342
  %v1359 = vmul.f32 %v1215, %v1343
  %v1360 = vmul.f32 %v1216, %v1344
  %v1361 = vmul.f32 %v1217, %v1345
  %v1362 = vmul.f32 %v1218, %v1346
  %v1363 = vmul.f32 %v1219, %v1347
  %v1364 = vmul.f32 %v1220, %v1348
  %v1365 = vsub.f32 %v1349, %v1357
  %v1366 = vsub.f32 %v1350, %v1358
  %v1367 = vsub.f32 %v1351, %v1359
  %v1368 = vsub.f32 %v1352, %v1360
  %v1369 = vsub.f32 %v1353, %v1361
  %v1370 = vsub.f32 %v1354, %v1362
  %v1371 = vsub.f32 %v1355, %v1363
  %v1372 = vsub.f32 %v1356, %v1364
  %1374 = vset.pattern.permute.xlu0 0
  %1375 = vperm.xlu0 %1374, %v1341
  %v1376 = vpop.permute.xlu0 %1375
  %1379 = vset.pattern.permute.xlu0 0
  %1380 = vperm.xlu0 %1379, %v1342
  %v1381 = vpop.permute.xlu0 %1380
  %1384 = vset.pattern.permute.xlu0 0
  %1385 = vperm.xlu0 %1384, %v1343
  %v1386 = vpop.permute.xlu0 %1385
  %1389 = vset.pattern.permute.xlu0 0
  %1390 = vperm.xlu0 %1389, %v1344
  %v1391 = vpop.permute.xlu0 %1390
  %1394 = vset.pattern.permute.xlu0 0
  %1395 = vperm.xlu0 %1394, %v1345
  %v1396 = vpop.permute.xlu0 %1395
  %1399 = vset.pattern.permute.xlu0 0
  %1400 = vperm.xlu0 %1399, %v1346
  %v1401 = vpop.permute.xlu0 %1400
  %1404 = vset.pattern.permute.xlu0 0
  %1405 = vperm.xlu0 %1404, %v1347
  %v1406 = vpop.permute.xlu0 %1405
  %1409 = vset.pattern.permute.xlu0 0
  %1410 = vperm.xlu0 %1409, %v1348
  %v1411 = vpop.permute.xlu0 %1410
  %v1413 = vmul.f32 %v989, %v1376
  %v1414 = vmul.f32 %v991, %v1376
  %v1415 = vmul.f32 %v1135, %v1376
  %v1416 = vmul.f32 %v1137, %v1376
  %v1417 = vmul.f32 %v993, %v1381
  %v1418 = vmul.f32 %v995, %v1381
  %v1419 = vmul.f32 %v1139, %v1381
  %v1420 = vmul.f32 %v1141, %v1381
  %v1421 = vmul.f32 %v999, %v1386
  %v1422 = vmul.f32 %v1001, %v1386
  %v1423 = vmul.f32 %v1145, %v1386
  %v1424 = vmul.f32 %v1147, %v1386
  %v1425 = vmul.f32 %v1003, %v1391
  %v1426 = vmul.f32 %v1005, %v1391
  %v1427 = vmul.f32 %v1149, %v1391
  %v1428 = vmul.f32 %v1151, %v1391
  %v1429 = vmul.f32 %v1009, %v1396
  %v1430 = vmul.f32 %v1011, %v1396
  %v1431 = vmul.f32 %v1155, %v1396
  %v1432 = vmul.f32 %v1157, %v1396
  %v1433 = vmul.f32 %v1013, %v1401
  %v1434 = vmul.f32 %v1015, %v1401
  %v1435 = vmul.f32 %v1159, %v1401
  %v1436 = vmul.f32 %v1161, %v1401
  %v1437 = vmul.f32 %v1019, %v1406
  %v1438 = vmul.f32 %v1021, %v1406
  %v1439 = vmul.f32 %v1165, %v1406
  %v1440 = vmul.f32 %v1167, %v1406
  %v1441 = vmul.f32 %v1023, %v1411
  %v1442 = vmul.f32 %v1025, %v1411
  %v1443 = vmul.f32 %v1169, %v1411
  %v1444 = vmul.f32 %v1171, %v1411
  %1446 = vset.pattern.permute.xlu0 0
  %1447 = vperm.xlu0 %1446, %v1365
  %v1448 = vpop.permute.xlu0 %1447
  %1451 = vset.pattern.permute.xlu0 0
  %1452 = vperm.xlu0 %1451, %v1366
  %v1453 = vpop.permute.xlu0 %1452
  %1456 = vset.pattern.permute.xlu0 0
  %1457 = vperm.xlu0 %1456, %v1367
  %v1458 = vpop.permute.xlu0 %1457
  %1461 = vset.pattern.permute.xlu0 0
  %1462 = vperm.xlu0 %1461, %v1368
  %v1463 = vpop.permute.xlu0 %1462
  %1466 = vset.pattern.permute.xlu0 0
  %1467 = vperm.xlu0 %1466, %v1369
  %v1468 = vpop.permute.xlu0 %1467
  %1471 = vset.pattern.permute.xlu0 0
  %1472 = vperm.xlu0 %1471, %v1370
  %v1473 = vpop.permute.xlu0 %1472
  %1476 = vset.pattern.permute.xlu0 0
  %1477 = vperm.xlu0 %1476, %v1371
  %v1478 = vpop.permute.xlu0 %1477
  %1481 = vset.pattern.permute.xlu0 0
  %1482 = vperm.xlu0 %1481, %v1372
  %v1483 = vpop.permute.xlu0 %1482
  %v1485 = vadd.f32 %v1413, %v1448
  %v1486 = vadd.f32 %v1414, %v1448
  %v1487 = vadd.f32 %v1415, %v1448
  %v1488 = vadd.f32 %v1416, %v1448
  %v1489 = vadd.f32 %v1417, %v1453
  %v1490 = vadd.f32 %v1418, %v1453
  %v1491 = vadd.f32 %v1419, %v1453
  %v1492 = vadd.f32 %v1420, %v1453
  %v1493 = vadd.f32 %v1421, %v1458
  %v1494 = vadd.f32 %v1422, %v1458
  %v1495 = vadd.f32 %v1423, %v1458
  %v1496 = vadd.f32 %v1424, %v1458
  %v1497 = vadd.f32 %v1425, %v1463
  %v1498 = vadd.f32 %v1426, %v1463
  %v1499 = vadd.f32 %v1427, %v1463
  %v1500 = vadd.f32 %v1428, %v1463
  %v1501 = vadd.f32 %v1429, %v1468
  %v1502 = vadd.f32 %v1430, %v1468
  %v1503 = vadd.f32 %v1431, %v1468
  %v1504 = vadd.f32 %v1432, %v1468
  %v1505 = vadd.f32 %v1433, %v1473
  %v1506 = vadd.f32 %v1434, %v1473
  %v1507 = vadd.f32 %v1435, %v1473
  %v1508 = vadd.f32 %v1436, %v1473
  %v1509 = vadd.f32 %v1437, %v1478
  %v1510 = vadd.f32 %v1438, %v1478
  %v1511 = vadd.f32 %v1439, %v1478
  %v1512 = vadd.f32 %v1440, %v1478
  %v1513 = vadd.f32 %v1441, %v1483
  %v1514 = vadd.f32 %v1442, %v1483
  %v1515 = vadd.f32 %v1443, %v1483
  %v1516 = vadd.f32 %v1444, %v1483
  %v1517 = vmul.f32 %v1485, 0.2
  %v1518 = vmul.f32 %v1486, 0.2
  %v1519 = vmul.f32 %v1487, 0.2
  %v1520 = vmul.f32 %v1488, 0.2
  %v1521 = vmul.f32 %v1489, 0.2
  %v1522 = vmul.f32 %v1490, 0.2
  %v1523 = vmul.f32 %v1491, 0.2
  %v1524 = vmul.f32 %v1492, 0.2
  %v1525 = vmul.f32 %v1493, 0.2
  %v1526 = vmul.f32 %v1494, 0.2
  %v1527 = vmul.f32 %v1495, 0.2
  %v1528 = vmul.f32 %v1496, 0.2
  %v1529 = vmul.f32 %v1497, 0.2
  %v1530 = vmul.f32 %v1498, 0.2
  %v1531 = vmul.f32 %v1499, 0.2
  %v1532 = vmul.f32 %v1500, 0.2
  %v1533 = vmul.f32 %v1501, 0.2
  %v1534 = vmul.f32 %v1502, 0.2
  %v1535 = vmul.f32 %v1503, 0.2
  %v1536 = vmul.f32 %v1504, 0.2
  %v1537 = vmul.f32 %v1505, 0.2
  %v1538 = vmul.f32 %v1506, 0.2
  %v1539 = vmul.f32 %v1507, 0.2
  %v1540 = vmul.f32 %v1508, 0.2
  %v1541 = vmul.f32 %v1509, 0.2
  %v1542 = vmul.f32 %v1510, 0.2
  %v1543 = vmul.f32 %v1511, 0.2
  %v1544 = vmul.f32 %v1512, 0.2
  %v1545 = vmul.f32 %v1513, 0.2
  %v1546 = vmul.f32 %v1514, 0.2
  %v1547 = vmul.f32 %v1515, 0.2
  %v1548 = vmul.f32 %v1516, 0.2
  %v1549 = vmax.f32 %v1485, %v1517
  %v1550 = vmax.f32 %v1486, %v1518
  %v1551 = vmax.f32 %v1487, %v1519
  %v1552 = vmax.f32 %v1488, %v1520
  %v1553 = vmax.f32 %v1489, %v1521
  %v1554 = vmax.f32 %v1490, %v1522
  %v1555 = vmax.f32 %v1491, %v1523
  %v1556 = vmax.f32 %v1492, %v1524
  %v1557 = vmax.f32 %v1493, %v1525
  %v1558 = vmax.f32 %v1494, %v1526
  %v1559 = vmax.f32 %v1495, %v1527
  %v1560 = vmax.f32 %v1496, %v1528
  %v1561 = vmax.f32 %v1497, %v1529
  %v1562 = vmax.f32 %v1498, %v1530
  %v1563 = vmax.f32 %v1499, %v1531
  %v1564 = vmax.f32 %v1500, %v1532
  %v1565 = vmax.f32 %v1501, %v1533
  %v1566 = vmax.f32 %v1502, %v1534
  %v1567 = vmax.f32 %v1503, %v1535
  %v1568 = vmax.f32 %v1504, %v1536
  %v1569 = vmax.f32 %v1505, %v1537
  %v1570 = vmax.f32 %v1506, %v1538
  %v1571 = vmax.f32 %v1507, %v1539
  %v1572 = vmax.f32 %v1508, %v1540
  %v1573 = vmax.f32 %v1509, %v1541
  %v1574 = vmax.f32 %v1510, %v1542
  %v1575 = vmax.f32 %v1511, %v1543
  %v1576 = vmax.f32 %v1512, %v1544
  %v1577 = vmax.f32 %v1513, %v1545
  %v1578 = vmax.f32 %v1514, %v1546
  %v1579 = vmax.f32 %v1515, %v1547
  %v1580 = vmax.f32 %v1516, %v1548
  %v1581 = vpack.c.bf16 %v1553, %v1549
  %v1582 = vpack.c.bf16 %v1554, %v1550
  %v1583 = vpack.c.bf16 %v1555, %v1551
  %v1584 = vpack.c.bf16 %v1556, %v1552
  %v1585 = vpack.c.bf16 %v1561, %v1557
  %v1586 = vpack.c.bf16 %v1562, %v1558
  %v1587 = vpack.c.bf16 %v1563, %v1559
  %v1588 = vpack.c.bf16 %v1564, %v1560
  %v1589 = vpack.c.bf16 %v1569, %v1565
  %v1590 = vpack.c.bf16 %v1570, %v1566
  %v1591 = vpack.c.bf16 %v1571, %v1567
  %v1592 = vpack.c.bf16 %v1572, %v1568
  %v1593 = vpack.c.bf16 %v1577, %v1573
  %v1594 = vpack.c.bf16 %v1578, %v1574
  %v1595 = vpack.c.bf16 %v1579, %v1575
  %v1596 = vpack.c.bf16 %v1580, %v1576
  %v1613 = vunpack.c.l.b16 %v1581
  %v1614 = vunpack.c.l.b16 %v1582
  %v1615 = vunpack.c.l.b16 %v1583
  %v1616 = vunpack.c.l.b16 %v1584
  %v1617 = vunpack.c.h.b16 %v1581
  %v1618 = vunpack.c.h.b16 %v1582
  %v1619 = vunpack.c.h.b16 %v1583
  %v1620 = vunpack.c.h.b16 %v1584
  %v1621 = vunpack.c.l.b16 %v1585
  %v1622 = vunpack.c.l.b16 %v1586
  %v1623 = vunpack.c.l.b16 %v1587
  %v1624 = vunpack.c.l.b16 %v1588
  %v1625 = vunpack.c.h.b16 %v1585
  %v1626 = vunpack.c.h.b16 %v1586
  %v1627 = vunpack.c.h.b16 %v1587
  %v1628 = vunpack.c.h.b16 %v1588
  %v1629 = vunpack.c.l.b16 %v1589
  %v1630 = vunpack.c.l.b16 %v1590
  %v1631 = vunpack.c.l.b16 %v1591
  %v1632 = vunpack.c.l.b16 %v1592
  %v1633 = vunpack.c.h.b16 %v1589
  %v1634 = vunpack.c.h.b16 %v1590
  %v1635 = vunpack.c.h.b16 %v1591
  %v1636 = vunpack.c.h.b16 %v1592
  %v1637 = vunpack.c.l.b16 %v1593
  %v1638 = vunpack.c.l.b16 %v1594
  %v1639 = vunpack.c.l.b16 %v1595
  %v1640 = vunpack.c.l.b16 %v1596
  %v1641 = vunpack.c.h.b16 %v1593
  %v1642 = vunpack.c.h.b16 %v1594
  %v1643 = vunpack.c.h.b16 %v1595
  %v1644 = vunpack.c.h.b16 %v1596
  %v1645 = vpack.c.b16 %v1614, %v1613
  %v1646 = vpack.c.b16 %v1616, %v1615
  %v1647 = vpack.c.b16 %v1618, %v1617
  %v1648 = vpack.c.b16 %v1620, %v1619
  %v1649 = vpack.c.b16 %v1622, %v1621
  %v1650 = vpack.c.b16 %v1624, %v1623
  %v1651 = vpack.c.b16 %v1626, %v1625
  %v1652 = vpack.c.b16 %v1628, %v1627
  %v1653 = vpack.c.b16 %v1630, %v1629
  %v1654 = vpack.c.b16 %v1632, %v1631
  %v1655 = vpack.c.b16 %v1634, %v1633
  %v1656 = vpack.c.b16 %v1636, %v1635
  %v1657 = vpack.c.b16 %v1638, %v1637
  %v1658 = vpack.c.b16 %v1640, %v1639
  %v1659 = vpack.c.b16 %v1642, %v1641
  %v1660 = vpack.c.b16 %v1644, %v1643
  %1677 = vst [vmem:[%s4] sm:$0xff] %v1645
  %1678 = vst [vmem:[%s4 + $0x8] sm:$0xff] %v1646
  %1679 = vst [vmem:[%s4 + $0x10] sm:$0xff] %v1647
  %1680 = vst [vmem:[%s4 + $0x18] sm:$0xff] %v1648
  %1681 = vst [vmem:[%s4 + $0x20] sm:$0xff] %v1649
  %1682 = vst [vmem:[%s4 + $0x28] sm:$0xff] %v1650
  %1683 = vst [vmem:[%s4 + $0x30] sm:$0xff] %v1651
  %1684 = vst [vmem:[%s4 + $0x38] sm:$0xff] %v1652
  %1685 = vst [vmem:[%s4 + $0x40] sm:$0xff] %v1653
  %1686 = vst [vmem:[%s4 + $0x48] sm:$0xff] %v1654
  %1687 = vst [vmem:[%s4 + $0x50] sm:$0xff] %v1655
  %1688 = vst [vmem:[%s4 + $0x58] sm:$0xff] %v1656
  %1689 = vst [vmem:[%s4 + $0x60] sm:$0xff] %v1657
  %1690 = vst [vmem:[%s4 + $0x68] sm:$0xff] %v1658
  %1691 = vst [vmem:[%s4 + $0x70] sm:$0xff] %v1659
  %1692 = vst [vmem:[%s4 + $0x78] sm:$0xff] %v1660
  // Predicated region
  $region18: #{encoder_forward_pallas.8} parent=0 // pred_check
    _
  $region19: #{encoder_forward_pallas.8} parent=0 // pred_check_branch
    %1694 = sbr.rel (0) target = $region21
  $region20: #{encoder_forward_pallas.8} parent=0 // pred_region
    _
  $region21: #{encoder_forward_pallas.8} parent=0 // pred_fallthru
    _
  // Predicated region
  $region22: #{encoder_forward_pallas.8} parent=0 // pred_check
    _
  $region23: #{encoder_forward_pallas.8} parent=0 // pred_check_branch
    %1696 = sbr.rel (0) target = $region25
  $region24: #{encoder_forward_pallas.8} parent=0 // pred_region
    _
  $region25: #{encoder_forward_pallas.8} parent=0 // pred_fallthru
    _

// kernel: encoder_forward_pallas.9
$region0: #{encoder_forward_pallas.9}
  #allocation0 [shape = 'u32[]', space=smem, size = 0x4, offset = 0x4, fixed_abs, tag = 'smem constant byte address 0x4 - core index']
  #allocation1 [shape = 'u32[144,128]{1,0:T(1,128)}', space=vmem, size = 0x12000, scoped, tag = 'internal scratch']
  %s0 = inlined_call_operand.vmem [shape: bf16[1024,128], index: 0, kind: input, shape index: {}]
  %s1 = inlined_call_operand.vmem [shape: bf16[128,1024], index: 1, kind: input, shape index: {}]
  %s2 = inlined_call_operand.vmem [shape: f32[128,1], index: 2, kind: input, shape index: {}]
  %s3 = inlined_call_operand.vmem [shape: f32[128,1], index: 3, kind: input, shape index: {}]
  %s4 = inlined_call_operand.vmem [shape: bf16[128,128], index: 4, kind: output, shape index: {}]
  %s5 = sld [smem:[#allocation0]]
  $region26: #{encoder_forward_pallas.9} parent=0
    _
  %s7 = ssub.s32 1, %s5
  %s8 = scalar_select 0, %s7, %s5
  // Predicated region
  $region2: #{encoder_forward_pallas.9} parent=0 // pred_check
    _
  $region3: #{encoder_forward_pallas.9} parent=0 // pred_check_branch
    %10 = sbr.rel (0) target = $region5
  $region4: #{encoder_forward_pallas.9} parent=0 // pred_region
    _
  $region5: #{encoder_forward_pallas.9} parent=0 // pred_fallthru
    _
  // Predicated region
  $region6: #{encoder_forward_pallas.9} parent=0 // pred_check
    _
  $region7: #{encoder_forward_pallas.9} parent=0 // pred_check_branch
    %12 = sbr.rel (0) target = $region9
  $region8: #{encoder_forward_pallas.9} parent=0 // pred_region
    _
  $region9: #{encoder_forward_pallas.9} parent=0 // pred_fallthru
    _
  // Predicated region
  $region10: #{encoder_forward_pallas.9} parent=0 // pred_check
    _
  $region11: #{encoder_forward_pallas.9} parent=0 // pred_check_branch
    %14 = sbr.rel (0) target = $region13
  $region12: #{encoder_forward_pallas.9} parent=0 // pred_region
    _
  $region13: #{encoder_forward_pallas.9} parent=0 // pred_fallthru
    _
  // Predicated region
  $region14: #{encoder_forward_pallas.9} parent=0 // pred_check
    _
  $region15: #{encoder_forward_pallas.9} parent=0 // pred_check_branch
    %16 = sbr.rel (0) target = $region17
  $region16: #{encoder_forward_pallas.9} parent=0 // pred_region
    _
  $region17: #{encoder_forward_pallas.9} parent=0 // pred_fallthru
    _
  %v18 = vld [vmem:[%s1] sm:$0xff]
  %v19 = vld [vmem:[%s1 + $0x8] sm:$0xff]
  %v20 = vld [vmem:[%s1 + $0x10] sm:$0xff]
  %v21 = vld [vmem:[%s1 + $0x18] sm:$0xff]
  %v22 = vld [vmem:[%s1 + $0x20] sm:$0xff]
  %v23 = vld [vmem:[%s1 + $0x28] sm:$0xff]
  %v24 = vld [vmem:[%s1 + $0x30] sm:$0xff]
  %v25 = vld [vmem:[%s1 + $0x38] sm:$0xff]
  %v26 = vld [vmem:[%s1 + $0x40] sm:$0xff]
  %v27 = vld [vmem:[%s1 + $0x48] sm:$0xff]
  %v28 = vld [vmem:[%s1 + $0x50] sm:$0xff]
  %v29 = vld [vmem:[%s1 + $0x58] sm:$0xff]
  %v30 = vld [vmem:[%s1 + $0x60] sm:$0xff]
  %v31 = vld [vmem:[%s1 + $0x68] sm:$0xff]
  %v32 = vld [vmem:[%s1 + $0x70] sm:$0xff]
  %v33 = vld [vmem:[%s1 + $0x78] sm:$0xff]
  %v34 = vld [vmem:[%s1 + $0x80] sm:$0xff]
  %v35 = vld [vmem:[%s1 + $0x88] sm:$0xff]
  %v36 = vld [vmem:[%s1 + $0x90] sm:$0xff]
  %v37 = vld [vmem:[%s1 + $0x98] sm:$0xff]
  %v38 = vld [vmem:[%s1 + $0xa0] sm:$0xff]
  %v39 = vld [vmem:[%s1 + $0xa8] sm:$0xff]
  %v40 = vld [vmem:[%s1 + $0xb0] sm:$0xff]
  %v41 = vld [vmem:[%s1 + $0xb8] sm:$0xff]
  %v42 = vld [vmem:[%s1 + $0xc0] sm:$0xff]
  %v43 = vld [vmem:[%s1 + $0xc8] sm:$0xff]
  %v44 = vld [vmem:[%s1 + $0xd0] sm:$0xff]
  %v45 = vld [vmem:[%s1 + $0xd8] sm:$0xff]
  %v46 = vld [vmem:[%s1 + $0xe0] sm:$0xff]
  %v47 = vld [vmem:[%s1 + $0xe8] sm:$0xff]
  %v48 = vld [vmem:[%s1 + $0xf0] sm:$0xff]
  %v49 = vld [vmem:[%s1 + $0xf8] sm:$0xff]
  %v50 = vld [vmem:[%s1 + $0x100] sm:$0xff]
  %v51 = vld [vmem:[%s1 + $0x108] sm:$0xff]
  %v52 = vld [vmem:[%s1 + $0x110] sm:$0xff]
  %v53 = vld [vmem:[%s1 + $0x118] sm:$0xff]
  %v54 = vld [vmem:[%s1 + $0x120] sm:$0xff]
  %v55 = vld [vmem:[%s1 + $0x128] sm:$0xff]
  %v56 = vld [vmem:[%s1 + $0x130] sm:$0xff]
  %v57 = vld [vmem:[%s1 + $0x138] sm:$0xff]
  %v58 = vld [vmem:[%s1 + $0x140] sm:$0xff]
  %v59 = vld [vmem:[%s1 + $0x148] sm:$0xff]
  %v60 = vld [vmem:[%s1 + $0x150] sm:$0xff]
  %v61 = vld [vmem:[%s1 + $0x158] sm:$0xff]
  %v62 = vld [vmem:[%s1 + $0x160] sm:$0xff]
  %v63 = vld [vmem:[%s1 + $0x168] sm:$0xff]
  %v64 = vld [vmem:[%s1 + $0x170] sm:$0xff]
  %v65 = vld [vmem:[%s1 + $0x178] sm:$0xff]
  %v66 = vld [vmem:[%s1 + $0x180] sm:$0xff]
  %v67 = vld [vmem:[%s1 + $0x188] sm:$0xff]
  %v68 = vld [vmem:[%s1 + $0x190] sm:$0xff]
  %v69 = vld [vmem:[%s1 + $0x198] sm:$0xff]
  %v70 = vld [vmem:[%s1 + $0x1a0] sm:$0xff]
  %v71 = vld [vmem:[%s1 + $0x1a8] sm:$0xff]
  %v72 = vld [vmem:[%s1 + $0x1b0] sm:$0xff]
  %v73 = vld [vmem:[%s1 + $0x1b8] sm:$0xff]
  %v74 = vld [vmem:[%s1 + $0x1c0] sm:$0xff]
  %v75 = vld [vmem:[%s1 + $0x1c8] sm:$0xff]
  %v76 = vld [vmem:[%s1 + $0x1d0] sm:$0xff]
  %v77 = vld [vmem:[%s1 + $0x1d8] sm:$0xff]
  %v78 = vld [vmem:[%s1 + $0x1e0] sm:$0xff]
  %v79 = vld [vmem:[%s1 + $0x1e8] sm:$0xff]
  %v80 = vld [vmem:[%s1 + $0x1f0] sm:$0xff]
  %v81 = vld [vmem:[%s1 + $0x1f8] sm:$0xff]
  %v82 = vld [vmem:[%s0] sm:$0xf]
  %v83 = vld [vmem:[%s0 + $0x4] sm:$0xf]
  %v84 = vld [vmem:[%s0 + $0x8] sm:$0xf]
  %v85 = vld [vmem:[%s0 + $0xc] sm:$0xf]
  %v86 = vld [vmem:[%s0 + $0x10] sm:$0xf]
  %v87 = vld [vmem:[%s0 + $0x14] sm:$0xf]
  %v88 = vld [vmem:[%s0 + $0x18] sm:$0xf]
  %v89 = vld [vmem:[%s0 + $0x1c] sm:$0xf]
  %v90 = vld [vmem:[%s0 + $0x20] sm:$0xf]
  %v91 = vld [vmem:[%s0 + $0x24] sm:$0xf]
  %v92 = vld [vmem:[%s0 + $0x28] sm:$0xf]
  %v93 = vld [vmem:[%s0 + $0x2c] sm:$0xf]
  %v94 = vld [vmem:[%s0 + $0x30] sm:$0xf]
  %v95 = vld [vmem:[%s0 + $0x34] sm:$0xf]
  %v96 = vld [vmem:[%s0 + $0x38] sm:$0xf]
  %v97 = vld [vmem:[%s0 + $0x3c] sm:$0xf]
  %v98 = vld [vmem:[%s0 + $0x40] sm:$0xf]
  %v99 = vld [vmem:[%s0 + $0x44] sm:$0xf]
  %v100 = vld [vmem:[%s0 + $0x48] sm:$0xf]
  %v101 = vld [vmem:[%s0 + $0x4c] sm:$0xf]
  %v102 = vld [vmem:[%s0 + $0x50] sm:$0xf]
  %v103 = vld [vmem:[%s0 + $0x54] sm:$0xf]
  %v104 = vld [vmem:[%s0 + $0x58] sm:$0xf]
  %v105 = vld [vmem:[%s0 + $0x5c] sm:$0xf]
  %v106 = vld [vmem:[%s0 + $0x60] sm:$0xf]
  %v107 = vld [vmem:[%s0 + $0x64] sm:$0xf]
  %v108 = vld [vmem:[%s0 + $0x68] sm:$0xf]
  %v109 = vld [vmem:[%s0 + $0x6c] sm:$0xf]
  %v110 = vld [vmem:[%s0 + $0x70] sm:$0xf]
  %v111 = vld [vmem:[%s0 + $0x74] sm:$0xf]
  %v112 = vld [vmem:[%s0 + $0x78] sm:$0xf]
  %v113 = vld [vmem:[%s0 + $0x7c] sm:$0xf]
  %v114 = vld [vmem:[%s0 + $0x80] sm:$0xf]
  %v115 = vld [vmem:[%s0 + $0x84] sm:$0xf]
  %v116 = vld [vmem:[%s0 + $0x88] sm:$0xf]
  %v117 = vld [vmem:[%s0 + $0x8c] sm:$0xf]
  %v118 = vld [vmem:[%s0 + $0x90] sm:$0xf]
  %v119 = vld [vmem:[%s0 + $0x94] sm:$0xf]
  %v120 = vld [vmem:[%s0 + $0x98] sm:$0xf]
  %v121 = vld [vmem:[%s0 + $0x9c] sm:$0xf]
  %v122 = vld [vmem:[%s0 + $0xa0] sm:$0xf]
  %v123 = vld [vmem:[%s0 + $0xa4] sm:$0xf]
  %v124 = vld [vmem:[%s0 + $0xa8] sm:$0xf]
  %v125 = vld [vmem:[%s0 + $0xac] sm:$0xf]
  %v126 = vld [vmem:[%s0 + $0xb0] sm:$0xf]
  %v127 = vld [vmem:[%s0 + $0xb4] sm:$0xf]
  %v128 = vld [vmem:[%s0 + $0xb8] sm:$0xf]
  %v129 = vld [vmem:[%s0 + $0xbc] sm:$0xf]
  %v130 = vld [vmem:[%s0 + $0xc0] sm:$0xf]
  %v131 = vld [vmem:[%s0 + $0xc4] sm:$0xf]
  %v132 = vld [vmem:[%s0 + $0xc8] sm:$0xf]
  %v133 = vld [vmem:[%s0 + $0xcc] sm:$0xf]
  %v134 = vld [vmem:[%s0 + $0xd0] sm:$0xf]
  %v135 = vld [vmem:[%s0 + $0xd4] sm:$0xf]
  %v136 = vld [vmem:[%s0 + $0xd8] sm:$0xf]
  %v137 = vld [vmem:[%s0 + $0xdc] sm:$0xf]
  %v138 = vld [vmem:[%s0 + $0xe0] sm:$0xf]
  %v139 = vld [vmem:[%s0 + $0xe4] sm:$0xf]
  %v140 = vld [vmem:[%s0 + $0xe8] sm:$0xf]
  %v141 = vld [vmem:[%s0 + $0xec] sm:$0xf]
  %v142 = vld [vmem:[%s0 + $0xf0] sm:$0xf]
  %v143 = vld [vmem:[%s0 + $0xf4] sm:$0xf]
  %v144 = vld [vmem:[%s0 + $0xf8] sm:$0xf]
  %v145 = vld [vmem:[%s0 + $0xfc] sm:$0xf]
  %v146 = vld [vmem:[%s0 + $0x100] sm:$0xf]
  %v147 = vld [vmem:[%s0 + $0x104] sm:$0xf]
  %v148 = vld [vmem:[%s0 + $0x108] sm:$0xf]
  %v149 = vld [vmem:[%s0 + $0x10c] sm:$0xf]
  %v150 = vld [vmem:[%s0 + $0x110] sm:$0xf]
  %v151 = vld [vmem:[%s0 + $0x114] sm:$0xf]
  %v152 = vld [vmem:[%s0 + $0x118] sm:$0xf]
  %v153 = vld [vmem:[%s0 + $0x11c] sm:$0xf]
  %v154 = vld [vmem:[%s0 + $0x120] sm:$0xf]
  %v155 = vld [vmem:[%s0 + $0x124] sm:$0xf]
  %v156 = vld [vmem:[%s0 + $0x128] sm:$0xf]
  %v157 = vld [vmem:[%s0 + $0x12c] sm:$0xf]
  %v158 = vld [vmem:[%s0 + $0x130] sm:$0xf]
  %v159 = vld [vmem:[%s0 + $0x134] sm:$0xf]
  %v160 = vld [vmem:[%s0 + $0x138] sm:$0xf]
  %v161 = vld [vmem:[%s0 + $0x13c] sm:$0xf]
  %v162 = vld [vmem:[%s0 + $0x140] sm:$0xf]
  %v163 = vld [vmem:[%s0 + $0x144] sm:$0xf]
  %v164 = vld [vmem:[%s0 + $0x148] sm:$0xf]
  %v165 = vld [vmem:[%s0 + $0x14c] sm:$0xf]
  %v166 = vld [vmem:[%s0 + $0x150] sm:$0xf]
  %v167 = vld [vmem:[%s0 + $0x154] sm:$0xf]
  %v168 = vld [vmem:[%s0 + $0x158] sm:$0xf]
  %v169 = vld [vmem:[%s0 + $0x15c] sm:$0xf]
  %v170 = vld [vmem:[%s0 + $0x160] sm:$0xf]
  %v171 = vld [vmem:[%s0 + $0x164] sm:$0xf]
  %v172 = vld [vmem:[%s0 + $0x168] sm:$0xf]
  %v173 = vld [vmem:[%s0 + $0x16c] sm:$0xf]
  %v174 = vld [vmem:[%s0 + $0x170] sm:$0xf]
  %v175 = vld [vmem:[%s0 + $0x174] sm:$0xf]
  %v176 = vld [vmem:[%s0 + $0x178] sm:$0xf]
  %v177 = vld [vmem:[%s0 + $0x17c] sm:$0xf]
  %v178 = vld [vmem:[%s0 + $0x180] sm:$0xf]
  %v179 = vld [vmem:[%s0 + $0x184] sm:$0xf]
  %v180 = vld [vmem:[%s0 + $0x188] sm:$0xf]
  %v181 = vld [vmem:[%s0 + $0x18c] sm:$0xf]
  %v182 = vld [vmem:[%s0 + $0x190] sm:$0xf]
  %v183 = vld [vmem:[%s0 + $0x194] sm:$0xf]
  %v184 = vld [vmem:[%s0 + $0x198] sm:$0xf]
  %v185 = vld [vmem:[%s0 + $0x19c] sm:$0xf]
  %v186 = vld [vmem:[%s0 + $0x1a0] sm:$0xf]
  %v187 = vld [vmem:[%s0 + $0x1a4] sm:$0xf]
  %v188 = vld [vmem:[%s0 + $0x1a8] sm:$0xf]
  %v189 = vld [vmem:[%s0 + $0x1ac] sm:$0xf]
  %v190 = vld [vmem:[%s0 + $0x1b0] sm:$0xf]
  %v191 = vld [vmem:[%s0 + $0x1b4] sm:$0xf]
  %v192 = vld [vmem:[%s0 + $0x1b8] sm:$0xf]
  %v193 = vld [vmem:[%s0 + $0x1bc] sm:$0xf]
  %v194 = vld [vmem:[%s0 + $0x1c0] sm:$0xf]
  %v195 = vld [vmem:[%s0 + $0x1c4] sm:$0xf]
  %v196 = vld [vmem:[%s0 + $0x1c8] sm:$0xf]
  %v197 = vld [vmem:[%s0 + $0x1cc] sm:$0xf]
  %v198 = vld [vmem:[%s0 + $0x1d0] sm:$0xf]
  %v199 = vld [vmem:[%s0 + $0x1d4] sm:$0xf]
  %v200 = vld [vmem:[%s0 + $0x1d8] sm:$0xf]
  %v201 = vld [vmem:[%s0 + $0x1dc] sm:$0xf]
  %v202 = vld [vmem:[%s0 + $0x1e0] sm:$0xf]
  %v203 = vld [vmem:[%s0 + $0x1e4] sm:$0xf]
  %v204 = vld [vmem:[%s0 + $0x1e8] sm:$0xf]
  %v205 = vld [vmem:[%s0 + $0x1ec] sm:$0xf]
  %v206 = vld [vmem:[%s0 + $0x1f0] sm:$0xf]
  %v207 = vld [vmem:[%s0 + $0x1f4] sm:$0xf]
  %v208 = vld [vmem:[%s0 + $0x1f8] sm:$0xf]
  %v209 = vld [vmem:[%s0 + $0x1fc] sm:$0xf]
  %v274 = vunpack.c.l.b16 %v18
  %v275 = vunpack.c.h.b16 %v18
  %v276 = vunpack.c.l.b16 %v19
  %v277 = vunpack.c.h.b16 %v19
  %v278 = vunpack.c.l.b16 %v20
  %v279 = vunpack.c.h.b16 %v20
  %v280 = vunpack.c.l.b16 %v21
  %v281 = vunpack.c.h.b16 %v21
  %v282 = vunpack.c.l.b16 %v22
  %v283 = vunpack.c.h.b16 %v22
  %v284 = vunpack.c.l.b16 %v23
  %v285 = vunpack.c.h.b16 %v23
  %v286 = vunpack.c.l.b16 %v24
  %v287 = vunpack.c.h.b16 %v24
  %v288 = vunpack.c.l.b16 %v25
  %v289 = vunpack.c.h.b16 %v25
  %v290 = vunpack.c.l.b16 %v26
  %v291 = vunpack.c.h.b16 %v26
  %v292 = vunpack.c.l.b16 %v27
  %v293 = vunpack.c.h.b16 %v27
  %v294 = vunpack.c.l.b16 %v28
  %v295 = vunpack.c.h.b16 %v28
  %v296 = vunpack.c.l.b16 %v29
  %v297 = vunpack.c.h.b16 %v29
  %v298 = vunpack.c.l.b16 %v30
  %v299 = vunpack.c.h.b16 %v30
  %v300 = vunpack.c.l.b16 %v31
  %v301 = vunpack.c.h.b16 %v31
  %v302 = vunpack.c.l.b16 %v32
  %v303 = vunpack.c.h.b16 %v32
  %v304 = vunpack.c.l.b16 %v33
  %v305 = vunpack.c.h.b16 %v33
  %v306 = vunpack.c.l.b16 %v34
  %v307 = vunpack.c.h.b16 %v34
  %v308 = vunpack.c.l.b16 %v35
  %v309 = vunpack.c.h.b16 %v35
  %v310 = vunpack.c.l.b16 %v36
  %v311 = vunpack.c.h.b16 %v36
  %v312 = vunpack.c.l.b16 %v37
  %v313 = vunpack.c.h.b16 %v37
  %v314 = vunpack.c.l.b16 %v38
  %v315 = vunpack.c.h.b16 %v38
  %v316 = vunpack.c.l.b16 %v39
  %v317 = vunpack.c.h.b16 %v39
  %v318 = vunpack.c.l.b16 %v40
  %v319 = vunpack.c.h.b16 %v40
  %v320 = vunpack.c.l.b16 %v41
  %v321 = vunpack.c.h.b16 %v41
  %v322 = vunpack.c.l.b16 %v42
  %v323 = vunpack.c.h.b16 %v42
  %v324 = vunpack.c.l.b16 %v43
  %v325 = vunpack.c.h.b16 %v43
  %v326 = vunpack.c.l.b16 %v44
  %v327 = vunpack.c.h.b16 %v44
  %v328 = vunpack.c.l.b16 %v45
  %v329 = vunpack.c.h.b16 %v45
  %v330 = vunpack.c.l.b16 %v46
  %v331 = vunpack.c.h.b16 %v46
  %v332 = vunpack.c.l.b16 %v47
  %v333 = vunpack.c.h.b16 %v47
  %v334 = vunpack.c.l.b16 %v48
  %v335 = vunpack.c.h.b16 %v48
  %v336 = vunpack.c.l.b16 %v49
  %v337 = vunpack.c.h.b16 %v49
  %v338 = vunpack.c.l.b16 %v50
  %v339 = vunpack.c.h.b16 %v50
  %v340 = vunpack.c.l.b16 %v51
  %v341 = vunpack.c.h.b16 %v51
  %v342 = vunpack.c.l.b16 %v52
  %v343 = vunpack.c.h.b16 %v52
  %v344 = vunpack.c.l.b16 %v53
  %v345 = vunpack.c.h.b16 %v53
  %v346 = vunpack.c.l.b16 %v54
  %v347 = vunpack.c.h.b16 %v54
  %v348 = vunpack.c.l.b16 %v55
  %v349 = vunpack.c.h.b16 %v55
  %v350 = vunpack.c.l.b16 %v56
  %v351 = vunpack.c.h.b16 %v56
  %v352 = vunpack.c.l.b16 %v57
  %v353 = vunpack.c.h.b16 %v57
  %v354 = vunpack.c.l.b16 %v58
  %v355 = vunpack.c.h.b16 %v58
  %v356 = vunpack.c.l.b16 %v59
  %v357 = vunpack.c.h.b16 %v59
  %v358 = vunpack.c.l.b16 %v60
  %v359 = vunpack.c.h.b16 %v60
  %v360 = vunpack.c.l.b16 %v61
  %v361 = vunpack.c.h.b16 %v61
  %v362 = vunpack.c.l.b16 %v62
  %v363 = vunpack.c.h.b16 %v62
  %v364 = vunpack.c.l.b16 %v63
  %v365 = vunpack.c.h.b16 %v63
  %v366 = vunpack.c.l.b16 %v64
  %v367 = vunpack.c.h.b16 %v64
  %v368 = vunpack.c.l.b16 %v65
  %v369 = vunpack.c.h.b16 %v65
  %v370 = vunpack.c.l.b16 %v66
  %v371 = vunpack.c.h.b16 %v66
  %v372 = vunpack.c.l.b16 %v67
  %v373 = vunpack.c.h.b16 %v67
  %v374 = vunpack.c.l.b16 %v68
  %v375 = vunpack.c.h.b16 %v68
  %v376 = vunpack.c.l.b16 %v69
  %v377 = vunpack.c.h.b16 %v69
  %v378 = vunpack.c.l.b16 %v70
  %v379 = vunpack.c.h.b16 %v70
  %v380 = vunpack.c.l.b16 %v71
  %v381 = vunpack.c.h.b16 %v71
  %v382 = vunpack.c.l.b16 %v72
  %v383 = vunpack.c.h.b16 %v72
  %v384 = vunpack.c.l.b16 %v73
  %v385 = vunpack.c.h.b16 %v73
  %v386 = vunpack.c.l.b16 %v74
  %v387 = vunpack.c.h.b16 %v74
  %v388 = vunpack.c.l.b16 %v75
  %v389 = vunpack.c.h.b16 %v75
  %v390 = vunpack.c.l.b16 %v76
  %v391 = vunpack.c.h.b16 %v76
  %v392 = vunpack.c.l.b16 %v77
  %v393 = vunpack.c.h.b16 %v77
  %v394 = vunpack.c.l.b16 %v78
  %v395 = vunpack.c.h.b16 %v78
  %v396 = vunpack.c.l.b16 %v79
  %v397 = vunpack.c.h.b16 %v79
  %v398 = vunpack.c.l.b16 %v80
  %v399 = vunpack.c.h.b16 %v80
  %v400 = vunpack.c.l.b16 %v81
  %v401 = vunpack.c.h.b16 %v81
  %v402 = vpack.c.b16 %v282, %v274
  %v403 = vpack.c.b16 %v283, %v275
  %v404 = vpack.c.b16 %v284, %v276
  %v405 = vpack.c.b16 %v285, %v277
  %v406 = vpack.c.b16 %v286, %v278
  %v407 = vpack.c.b16 %v287, %v279
  %v408 = vpack.c.b16 %v288, %v280
  %v409 = vpack.c.b16 %v289, %v281
  %v410 = vpack.c.b16 %v298, %v290
  %v411 = vpack.c.b16 %v299, %v291
  %v412 = vpack.c.b16 %v300, %v292
  %v413 = vpack.c.b16 %v301, %v293
  %v414 = vpack.c.b16 %v302, %v294
  %v415 = vpack.c.b16 %v303, %v295
  %v416 = vpack.c.b16 %v304, %v296
  %v417 = vpack.c.b16 %v305, %v297
  %v418 = vpack.c.b16 %v314, %v306
  %v419 = vpack.c.b16 %v315, %v307
  %v420 = vpack.c.b16 %v316, %v308
  %v421 = vpack.c.b16 %v317, %v309
  %v422 = vpack.c.b16 %v318, %v310
  %v423 = vpack.c.b16 %v319, %v311
  %v424 = vpack.c.b16 %v320, %v312
  %v425 = vpack.c.b16 %v321, %v313
  %v426 = vpack.c.b16 %v330, %v322
  %v427 = vpack.c.b16 %v331, %v323
  %v428 = vpack.c.b16 %v332, %v324
  %v429 = vpack.c.b16 %v333, %v325
  %v430 = vpack.c.b16 %v334, %v326
  %v431 = vpack.c.b16 %v335, %v327
  %v432 = vpack.c.b16 %v336, %v328
  %v433 = vpack.c.b16 %v337, %v329
  %v434 = vpack.c.b16 %v346, %v338
  %v435 = vpack.c.b16 %v347, %v339
  %v436 = vpack.c.b16 %v348, %v340
  %v437 = vpack.c.b16 %v349, %v341
  %v438 = vpack.c.b16 %v350, %v342
  %v439 = vpack.c.b16 %v351, %v343
  %v440 = vpack.c.b16 %v352, %v344
  %v441 = vpack.c.b16 %v353, %v345
  %v442 = vpack.c.b16 %v362, %v354
  %v443 = vpack.c.b16 %v363, %v355
  %v444 = vpack.c.b16 %v364, %v356
  %v445 = vpack.c.b16 %v365, %v357
  %v446 = vpack.c.b16 %v366, %v358
  %v447 = vpack.c.b16 %v367, %v359
  %v448 = vpack.c.b16 %v368, %v360
  %v449 = vpack.c.b16 %v369, %v361
  %v450 = vpack.c.b16 %v378, %v370
  %v451 = vpack.c.b16 %v379, %v371
  %v452 = vpack.c.b16 %v380, %v372
  %v453 = vpack.c.b16 %v381, %v373
  %v454 = vpack.c.b16 %v382, %v374
  %v455 = vpack.c.b16 %v383, %v375
  %v456 = vpack.c.b16 %v384, %v376
  %v457 = vpack.c.b16 %v385, %v377
  %v458 = vpack.c.b16 %v394, %v386
  %v459 = vpack.c.b16 %v395, %v387
  %v460 = vpack.c.b16 %v396, %v388
  %v461 = vpack.c.b16 %v397, %v389
  %v462 = vpack.c.b16 %v398, %v390
  %v463 = vpack.c.b16 %v399, %v391
  %v464 = vpack.c.b16 %v400, %v392
  %v465 = vpack.c.b16 %v401, %v393
  %v658 = vunpack.c.l.b16 %v82
  %v659 = vunpack.c.l.b16 %v83
  %v660 = vunpack.c.l.b16 %v84
  %v661 = vunpack.c.l.b16 %v85
  %v662 = vunpack.c.l.b16 %v86
  %v663 = vunpack.c.l.b16 %v87
  %v664 = vunpack.c.l.b16 %v88
  %v665 = vunpack.c.l.b16 %v89
  %v666 = vunpack.c.l.b16 %v90
  %v667 = vunpack.c.l.b16 %v91
  %v668 = vunpack.c.l.b16 %v92
  %v669 = vunpack.c.l.b16 %v93
  %v670 = vunpack.c.l.b16 %v94
  %v671 = vunpack.c.l.b16 %v95
  %v672 = vunpack.c.l.b16 %v96
  %v673 = vunpack.c.l.b16 %v97
  %v674 = vunpack.c.l.b16 %v98
  %v675 = vunpack.c.l.b16 %v99
  %v676 = vunpack.c.l.b16 %v100
  %v677 = vunpack.c.l.b16 %v101
  %v678 = vunpack.c.l.b16 %v102
  %v679 = vunpack.c.l.b16 %v103
  %v680 = vunpack.c.l.b16 %v104
  %v681 = vunpack.c.l.b16 %v105
  %v682 = vunpack.c.l.b16 %v106
  %v683 = vunpack.c.l.b16 %v107
  %v684 = vunpack.c.l.b16 %v108
  %v685 = vunpack.c.l.b16 %v109
  %v686 = vunpack.c.l.b16 %v110
  %v687 = vunpack.c.l.b16 %v111
  %v688 = vunpack.c.l.b16 %v112
  %v689 = vunpack.c.l.b16 %v113
  %v690 = vunpack.c.l.b16 %v114
  %v691 = vunpack.c.l.b16 %v115
  %v692 = vunpack.c.l.b16 %v116
  %v693 = vunpack.c.l.b16 %v117
  %v694 = vunpack.c.l.b16 %v118
  %v695 = vunpack.c.l.b16 %v119
  %v696 = vunpack.c.l.b16 %v120
  %v697 = vunpack.c.l.b16 %v121
  %v698 = vunpack.c.l.b16 %v122
  %v699 = vunpack.c.l.b16 %v123
  %v700 = vunpack.c.l.b16 %v124
  %v701 = vunpack.c.l.b16 %v125
  %v702 = vunpack.c.l.b16 %v126
  %v703 = vunpack.c.l.b16 %v127
  %v704 = vunpack.c.l.b16 %v128
  %v705 = vunpack.c.l.b16 %v129
  %v706 = vunpack.c.l.b16 %v130
  %v707 = vunpack.c.l.b16 %v131
  %v708 = vunpack.c.l.b16 %v132
  %v709 = vunpack.c.l.b16 %v133
  %v710 = vunpack.c.l.b16 %v134
  %v711 = vunpack.c.l.b16 %v135
  %v712 = vunpack.c.l.b16 %v136
  %v713 = vunpack.c.l.b16 %v137
  %v714 = vunpack.c.l.b16 %v138
  %v715 = vunpack.c.l.b16 %v139
  %v716 = vunpack.c.l.b16 %v140
  %v717 = vunpack.c.l.b16 %v141
  %v718 = vunpack.c.l.b16 %v142
  %v719 = vunpack.c.l.b16 %v143
  %v720 = vunpack.c.l.b16 %v144
  %v721 = vunpack.c.l.b16 %v145
  %v722 = vunpack.c.l.b16 %v146
  %v723 = vunpack.c.l.b16 %v147
  %v724 = vunpack.c.l.b16 %v148
  %v725 = vunpack.c.l.b16 %v149
  %v726 = vunpack.c.l.b16 %v150
  %v727 = vunpack.c.l.b16 %v151
  %v728 = vunpack.c.l.b16 %v152
  %v729 = vunpack.c.l.b16 %v153
  %v730 = vunpack.c.l.b16 %v154
  %v731 = vunpack.c.l.b16 %v155
  %v732 = vunpack.c.l.b16 %v156
  %v733 = vunpack.c.l.b16 %v157
  %v734 = vunpack.c.l.b16 %v158
  %v735 = vunpack.c.l.b16 %v159
  %v736 = vunpack.c.l.b16 %v160
  %v737 = vunpack.c.l.b16 %v161
  %v738 = vunpack.c.l.b16 %v162
  %v739 = vunpack.c.l.b16 %v163
  %v740 = vunpack.c.l.b16 %v164
  %v741 = vunpack.c.l.b16 %v165
  %v742 = vunpack.c.l.b16 %v166
  %v743 = vunpack.c.l.b16 %v167
  %v744 = vunpack.c.l.b16 %v168
  %v745 = vunpack.c.l.b16 %v169
  %v746 = vunpack.c.l.b16 %v170
  %v747 = vunpack.c.l.b16 %v171
  %v748 = vunpack.c.l.b16 %v172
  %v749 = vunpack.c.l.b16 %v173
  %v750 = vunpack.c.l.b16 %v174
  %v751 = vunpack.c.l.b16 %v175
  %v752 = vunpack.c.l.b16 %v176
  %v753 = vunpack.c.l.b16 %v177
  %v754 = vunpack.c.l.b16 %v178
  %v755 = vunpack.c.l.b16 %v179
  %v756 = vunpack.c.l.b16 %v180
  %v757 = vunpack.c.l.b16 %v181
  %v758 = vunpack.c.l.b16 %v182
  %v759 = vunpack.c.l.b16 %v183
  %v760 = vunpack.c.l.b16 %v184
  %v761 = vunpack.c.l.b16 %v185
  %v762 = vunpack.c.l.b16 %v186
  %v763 = vunpack.c.l.b16 %v187
  %v764 = vunpack.c.l.b16 %v188
  %v765 = vunpack.c.l.b16 %v189
  %v766 = vunpack.c.l.b16 %v190
  %v767 = vunpack.c.l.b16 %v191
  %v768 = vunpack.c.l.b16 %v192
  %v769 = vunpack.c.l.b16 %v193
  %v770 = vunpack.c.l.b16 %v194
  %v771 = vunpack.c.l.b16 %v195
  %v772 = vunpack.c.l.b16 %v196
  %v773 = vunpack.c.l.b16 %v197
  %v774 = vunpack.c.l.b16 %v198
  %v775 = vunpack.c.l.b16 %v199
  %v776 = vunpack.c.l.b16 %v200
  %v777 = vunpack.c.l.b16 %v201
  %v778 = vunpack.c.l.b16 %v202
  %v779 = vunpack.c.l.b16 %v203
  %v780 = vunpack.c.l.b16 %v204
  %v781 = vunpack.c.l.b16 %v205
  %v782 = vunpack.c.l.b16 %v206
  %v783 = vunpack.c.l.b16 %v207
  %v784 = vunpack.c.l.b16 %v208
  %v785 = vunpack.c.l.b16 %v209
  %v786 = vpack.c.b16 %v659, %v658
  %v787 = vpack.c.b16 %v661, %v660
  %v788 = vpack.c.b16 %v663, %v662
  %v789 = vpack.c.b16 %v665, %v664
  %v790 = vpack.c.b16 %v667, %v666
  %v791 = vpack.c.b16 %v669, %v668
  %v792 = vpack.c.b16 %v671, %v670
  %v793 = vpack.c.b16 %v673, %v672
  %v794 = vpack.c.b16 %v675, %v674
  %v795 = vpack.c.b16 %v677, %v676
  %v796 = vpack.c.b16 %v679, %v678
  %v797 = vpack.c.b16 %v681, %v680
  %v798 = vpack.c.b16 %v683, %v682
  %v799 = vpack.c.b16 %v685, %v684
  %v800 = vpack.c.b16 %v687, %v686
  %v801 = vpack.c.b16 %v689, %v688
  %v802 = vpack.c.b16 %v691, %v690
  %v803 = vpack.c.b16 %v693, %v692
  %v804 = vpack.c.b16 %v695, %v694
  %v805 = vpack.c.b16 %v697, %v696
  %v806 = vpack.c.b16 %v699, %v698
  %v807 = vpack.c.b16 %v701, %v700
  %v808 = vpack.c.b16 %v703, %v702
  %v809 = vpack.c.b16 %v705, %v704
  %v810 = vpack.c.b16 %v707, %v706
  %v811 = vpack.c.b16 %v709, %v708
  %v812 = vpack.c.b16 %v711, %v710
  %v813 = vpack.c.b16 %v713, %v712
  %v814 = vpack.c.b16 %v715, %v714
  %v815 = vpack.c.b16 %v717, %v716
  %v816 = vpack.c.b16 %v719, %v718
  %v817 = vpack.c.b16 %v721, %v720
  %v818 = vpack.c.b16 %v723, %v722
  %v819 = vpack.c.b16 %v725, %v724
  %v820 = vpack.c.b16 %v727, %v726
  %v821 = vpack.c.b16 %v729, %v728
  %v822 = vpack.c.b16 %v731, %v730
  %v823 = vpack.c.b16 %v733, %v732
  %v824 = vpack.c.b16 %v735, %v734
  %v825 = vpack.c.b16 %v737, %v736
  %v826 = vpack.c.b16 %v739, %v738
  %v827 = vpack.c.b16 %v741, %v740
  %v828 = vpack.c.b16 %v743, %v742
  %v829 = vpack.c.b16 %v745, %v744
  %v830 = vpack.c.b16 %v747, %v746
  %v831 = vpack.c.b16 %v749, %v748
  %v832 = vpack.c.b16 %v751, %v750
  %v833 = vpack.c.b16 %v753, %v752
  %v834 = vpack.c.b16 %v755, %v754
  %v835 = vpack.c.b16 %v757, %v756
  %v836 = vpack.c.b16 %v759, %v758
  %v837 = vpack.c.b16 %v761, %v760
  %v838 = vpack.c.b16 %v763, %v762
  %v839 = vpack.c.b16 %v765, %v764
  %v840 = vpack.c.b16 %v767, %v766
  %v841 = vpack.c.b16 %v769, %v768
  %v842 = vpack.c.b16 %v771, %v770
  %v843 = vpack.c.b16 %v773, %v772
  %v844 = vpack.c.b16 %v775, %v774
  %v845 = vpack.c.b16 %v777, %v776
  %v846 = vpack.c.b16 %v779, %v778
  %v847 = vpack.c.b16 %v781, %v780
  %v848 = vpack.c.b16 %v783, %v782
  %v849 = vpack.c.b16 %v785, %v784
  %914 = vmatprep.subr.bf16.mxu0 0
  %915 = vmatpush1.bf16.msra.mxu0 %v786
  %916 = vmatprep.subr.bf16.mxu0 0
  %917 = vmatpush1.bf16.msra.mxu0 %v787
  %918 = vmatprep.subr.bf16.mxu0 0
  %919 = vmatpush1.bf16.msra.mxu0 %v788
  %920 = vmatprep.subr.bf16.mxu0 0
  %921 = vmatpush1.bf16.msra.mxu0 %v789
  %922 = vmatprep.subr.bf16.mxu0 0
  %923 = vmatpush1.bf16.msra.mxu0 %v790
  %924 = vmatprep.subr.bf16.mxu0 0
  %925 = vmatpush1.bf16.msra.mxu0 %v791
  %926 = vmatprep.subr.bf16.mxu0 0
  %927 = vmatpush1.bf16.msra.mxu0 %v792
  %928 = vmatprep.subr.bf16.mxu0 0
  %929 = vmatpush1.bf16.msra.mxu0 %v793
  %930 = vmatprep.subr.bf16.mxu0 0
  %931 = vmatpush1.bf16.msra.mxu0 %v794
  %932 = vmatprep.subr.bf16.mxu0 0
  %933 = vmatpush1.bf16.msra.mxu0 %v795
  %934 = vmatprep.subr.bf16.mxu0 0
  %935 = vmatpush1.bf16.msra.mxu0 %v796
  %936 = vmatprep.subr.bf16.mxu0 0
  %937 = vmatpush1.bf16.msra.mxu0 %v797
  %938 = vmatprep.subr.bf16.mxu0 0
  %939 = vmatpush1.bf16.msra.mxu0 %v798
  %940 = vmatprep.subr.bf16.mxu0 0
  %941 = vmatpush1.bf16.msra.mxu0 %v799
  %942 = vmatprep.subr.bf16.mxu0 0
  %943 = vmatpush1.bf16.msra.mxu0 %v800
  %944 = vmatprep.subr.bf16.mxu0 0
  %945 = vmatpush1.bf16.msra.mxu0 %v801
  %946 = vmatprep.mubr.bf16.mxu0 %v403
  %947 = vmatmul.mubr.bf16.gmra.mrb[0].mxu0 %v402
  %v948 = vpop.f32.mrb[0].mxu0
  %v949 = vadd.f32 0.0, %v948
  %v950 = vpop.f32.mrb[0].mxu0
  %v951 = vpop.f32.mrb[0].mxu0
  %v952 = vadd.f32 0.0, %v951
  %v953 = vpop.f32.mrb[0].mxu0
  %954 = vmatprep.mubr.bf16.mxu0 %v411
  %955 = vmatmul.mubr.bf16.gmra.mrb[0].mxu0 %v410
  %v956 = vpop.f32.mrb[0].mxu0
  %v957 = vadd.f32 0.0, %v956
  %v958 = vpop.f32.mrb[0].mxu0
  %v959 = vpop.f32.mrb[0].mxu0
  %v960 = vadd.f32 0.0, %v959
  %v961 = vpop.f32.mrb[0].mxu0
  %962 = vmatprep.mubr.bf16.mxu0 %v419
  %963 = vmatmul.mubr.bf16.gmra.mrb[0].mxu0 %v418
  %v964 = vpop.f32.mrb[0].mxu0
  %v965 = vadd.f32 0.0, %v964
  %v966 = vpop.f32.mrb[0].mxu0
  %v967 = vpop.f32.mrb[0].mxu0
  %v968 = vadd.f32 0.0, %v967
  %v969 = vpop.f32.mrb[0].mxu0
  %970 = vmatprep.mubr.bf16.mxu0 %v427
  %971 = vmatmul.mubr.bf16.gmra.mrb[0].mxu0 %v426
  %v972 = vpop.f32.mrb[0].mxu0
  %v973 = vadd.f32 0.0, %v972
  %v974 = vpop.f32.mrb[0].mxu0
  %v975 = vpop.f32.mrb[0].mxu0
  %v976 = vadd.f32 0.0, %v975
  %v977 = vpop.f32.mrb[0].mxu0
  %978 = vmatprep.mubr.bf16.mxu0 %v435
  %979 = vmatmul.mubr.bf16.gmra.mrb[0].mxu0 %v434
  %v980 = vpop.f32.mrb[0].mxu0
  %v981 = vadd.f32 0.0, %v980
  %v982 = vpop.f32.mrb[0].mxu0
  %v983 = vpop.f32.mrb[0].mxu0
  %v984 = vadd.f32 0.0, %v983
  %v985 = vpop.f32.mrb[0].mxu0
  %986 = vmatprep.mubr.bf16.mxu0 %v443
  %987 = vmatmul.mubr.bf16.gmra.mrb[0].mxu0 %v442
  %v988 = vpop.f32.mrb[0].mxu0
  %v989 = vadd.f32 0.0, %v988
  %v990 = vpop.f32.mrb[0].mxu0
  %v991 = vpop.f32.mrb[0].mxu0
  %v992 = vadd.f32 0.0, %v991
  %v993 = vpop.f32.mrb[0].mxu0
  %994 = vmatprep.mubr.bf16.mxu0 %v451
  %995 = vmatmul.mubr.bf16.gmra.mrb[0].mxu0 %v450
  %v996 = vpop.f32.mrb[0].mxu0
  %v997 = vadd.f32 0.0, %v996
  %v998 = vpop.f32.mrb[0].mxu0
  %v999 = vpop.f32.mrb[0].mxu0
  %v1000 = vadd.f32 0.0, %v999
  %v1001 = vpop.f32.mrb[0].mxu0
  %1002 = vmatprep.mubr.bf16.mxu0 %v459
  %1003 = vmatmul.mubr.bf16.gmra.mrb[0].mxu0 %v458
  %v1004 = vpop.f32.mrb[0].mxu0
  %v1005 = vadd.f32 0.0, %v1004
  %v1006 = vpop.f32.mrb[0].mxu0
  %v1007 = vpop.f32.mrb[0].mxu0
  %v1008 = vadd.f32 0.0, %v1007
  %v1009 = vpop.f32.mrb[0].mxu0
  %1010 = vdwg.mxu0
  %1011 = vmatprep.subr.bf16.mxu0 0
  %1012 = vmatpush1.bf16.msra.mxu0 %v802
  %1013 = vmatprep.subr.bf16.mxu0 0
  %1014 = vmatpush1.bf16.msra.mxu0 %v803
  %1015 = vmatprep.subr.bf16.mxu0 0
  %1016 = vmatpush1.bf16.msra.mxu0 %v804
  %1017 = vmatprep.subr.bf16.mxu0 0
  %1018 = vmatpush1.bf16.msra.mxu0 %v805
  %1019 = vmatprep.subr.bf16.mxu0 0
  %1020 = vmatpush1.bf16.msra.mxu0 %v806
  %1021 = vmatprep.subr.bf16.mxu0 0
  %1022 = vmatpush1.bf16.msra.mxu0 %v807
  %1023 = vmatprep.subr.bf16.mxu0 0
  %1024 = vmatpush1.bf16.msra.mxu0 %v808
  %1025 = vmatprep.subr.bf16.mxu0 0
  %1026 = vmatpush1.bf16.msra.mxu0 %v809
  %1027 = vmatprep.subr.bf16.mxu0 0
  %1028 = vmatpush1.bf16.msra.mxu0 %v810
  %1029 = vmatprep.subr.bf16.mxu0 0
  %1030 = vmatpush1.bf16.msra.mxu0 %v811
  %1031 = vmatprep.subr.bf16.mxu0 0
  %1032 = vmatpush1.bf16.msra.mxu0 %v812
  %1033 = vmatprep.subr.bf16.mxu0 0
  %1034 = vmatpush1.bf16.msra.mxu0 %v813
  %1035 = vmatprep.subr.bf16.mxu0 0
  %1036 = vmatpush1.bf16.msra.mxu0 %v814
  %1037 = vmatprep.subr.bf16.mxu0 0
  %1038 = vmatpush1.bf16.msra.mxu0 %v815
  %1039 = vmatprep.subr.bf16.mxu0 0
  %1040 = vmatpush1.bf16.msra.mxu0 %v816
  %1041 = vmatprep.subr.bf16.mxu0 0
  %1042 = vmatpush1.bf16.msra.mxu0 %v817
  %1043 = vmatprep.mubr.bf16.mxu0 %v405
  %1044 = vmatmul.mubr.bf16.gmra.mrb[0].mxu0 %v404
  %v1045 = vpop.f32.mrb[0].mxu0
  %v1046 = vadd.f32 %v949, %v1045
  %v1047 = vpop.f32.mrb[0].mxu0
  %v1048 = vpop.f32.mrb[0].mxu0
  %v1049 = vadd.f32 %v952, %v1048
  %v1050 = vpop.f32.mrb[0].mxu0
  %1051 = vmatprep.mubr.bf16.mxu0 %v413
  %1052 = vmatmul.mubr.bf16.gmra.mrb[0].mxu0 %v412
  %v1053 = vpop.f32.mrb[0].mxu0
  %v1054 = vadd.f32 %v957, %v1053
  %v1055 = vpop.f32.mrb[0].mxu0
  %v1056 = vpop.f32.mrb[0].mxu0
  %v1057 = vadd.f32 %v960, %v1056
  %v1058 = vpop.f32.mrb[0].mxu0
  %1059 = vmatprep.mubr.bf16.mxu0 %v421
  %1060 = vmatmul.mubr.bf16.gmra.mrb[0].mxu0 %v420
  %v1061 = vpop.f32.mrb[0].mxu0
  %v1062 = vadd.f32 %v965, %v1061
  %v1063 = vpop.f32.mrb[0].mxu0
  %v1064 = vpop.f32.mrb[0].mxu0
  %v1065 = vadd.f32 %v968, %v1064
  %v1066 = vpop.f32.mrb[0].mxu0
  %1067 = vmatprep.mubr.bf16.mxu0 %v429
  %1068 = vmatmul.mubr.bf16.gmra.mrb[0].mxu0 %v428
  %v1069 = vpop.f32.mrb[0].mxu0
  %v1070 = vadd.f32 %v973, %v1069
  %v1071 = vpop.f32.mrb[0].mxu0
  %v1072 = vpop.f32.mrb[0].mxu0
  %v1073 = vadd.f32 %v976, %v1072
  %v1074 = vpop.f32.mrb[0].mxu0
  %1075 = vmatprep.mubr.bf16.mxu0 %v437
  %1076 = vmatmul.mubr.bf16.gmra.mrb[0].mxu0 %v436
  %v1077 = vpop.f32.mrb[0].mxu0
  %v1078 = vadd.f32 %v981, %v1077
  %v1079 = vpop.f32.mrb[0].mxu0
  %v1080 = vpop.f32.mrb[0].mxu0
  %v1081 = vadd.f32 %v984, %v1080
  %v1082 = vpop.f32.mrb[0].mxu0
  %1083 = vmatprep.mubr.bf16.mxu0 %v445
  %1084 = vmatmul.mubr.bf16.gmra.mrb[0].mxu0 %v444
  %v1085 = vpop.f32.mrb[0].mxu0
  %v1086 = vadd.f32 %v989, %v1085
  %v1087 = vpop.f32.mrb[0].mxu0
  %v1088 = vpop.f32.mrb[0].mxu0
  %v1089 = vadd.f32 %v992, %v1088
  %v1090 = vpop.f32.mrb[0].mxu0
  %1091 = vmatprep.mubr.bf16.mxu0 %v453
  %1092 = vmatmul.mubr.bf16.gmra.mrb[0].mxu0 %v452
  %v1093 = vpop.f32.mrb[0].mxu0
  %v1094 = vadd.f32 %v997, %v1093
  %v1095 = vpop.f32.mrb[0].mxu0
  %v1096 = vpop.f32.mrb[0].mxu0
  %v1097 = vadd.f32 %v1000, %v1096
  %v1098 = vpop.f32.mrb[0].mxu0
  %1099 = vmatprep.mubr.bf16.mxu0 %v461
  %1100 = vmatmul.mubr.bf16.gmra.mrb[0].mxu0 %v460
  %v1101 = vpop.f32.mrb[0].mxu0
  %v1102 = vadd.f32 %v1005, %v1101
  %v1103 = vpop.f32.mrb[0].mxu0
  %v1104 = vpop.f32.mrb[0].mxu0
  %v1105 = vadd.f32 %v1008, %v1104
  %v1106 = vpop.f32.mrb[0].mxu0
  %1107 = vdwg.mxu0
  %1108 = vmatprep.subr.bf16.mxu0 0
  %1109 = vmatpush1.bf16.msra.mxu0 %v818
  %1110 = vmatprep.subr.bf16.mxu0 0
  %1111 = vmatpush1.bf16.msra.mxu0 %v819
  %1112 = vmatprep.subr.bf16.mxu0 0
  %1113 = vmatpush1.bf16.msra.mxu0 %v820
  %1114 = vmatprep.subr.bf16.mxu0 0
  %1115 = vmatpush1.bf16.msra.mxu0 %v821
  %1116 = vmatprep.subr.bf16.mxu0 0
  %1117 = vmatpush1.bf16.msra.mxu0 %v822
  %1118 = vmatprep.subr.bf16.mxu0 0
  %1119 = vmatpush1.bf16.msra.mxu0 %v823
  %1120 = vmatprep.subr.bf16.mxu0 0
  %1121 = vmatpush1.bf16.msra.mxu0 %v824
  %1122 = vmatprep.subr.bf16.mxu0 0
  %1123 = vmatpush1.bf16.msra.mxu0 %v825
  %1124 = vmatprep.subr.bf16.mxu0 0
  %1125 = vmatpush1.bf16.msra.mxu0 %v826
  %1126 = vmatprep.subr.bf16.mxu0 0
  %1127 = vmatpush1.bf16.msra.mxu0 %v827
  %1128 = vmatprep.subr.bf16.mxu0 0
  %1129 = vmatpush1.bf16.msra.mxu0 %v828
  %1130 = vmatprep.subr.bf16.mxu0 0
  %1131 = vmatpush1.bf16.msra.mxu0 %v829
  %1132 = vmatprep.subr.bf16.mxu0 0
  %1133 = vmatpush1.bf16.msra.mxu0 %v830
  %1134 = vmatprep.subr.bf16.mxu0 0
  %1135 = vmatpush1.bf16.msra.mxu0 %v831
  %1136 = vmatprep.subr.bf16.mxu0 0
  %1137 = vmatpush1.bf16.msra.mxu0 %v832
  %1138 = vmatprep.subr.bf16.mxu0 0
  %1139 = vmatpush1.bf16.msra.mxu0 %v833
  %1140 = vmatprep.mubr.bf16.mxu0 %v407
  %1141 = vmatmul.mubr.bf16.gmra.mrb[0].mxu0 %v406
  %v1142 = vpop.f32.mrb[0].mxu0
  %v1143 = vadd.f32 %v1046, %v1142
  %v1144 = vpop.f32.mrb[0].mxu0
  %v1145 = vpop.f32.mrb[0].mxu0
  %v1146 = vadd.f32 %v1049, %v1145
  %v1147 = vpop.f32.mrb[0].mxu0
  %1148 = vmatprep.mubr.bf16.mxu0 %v415
  %1149 = vmatmul.mubr.bf16.gmra.mrb[0].mxu0 %v414
  %v1150 = vpop.f32.mrb[0].mxu0
  %v1151 = vadd.f32 %v1054, %v1150
  %v1152 = vpop.f32.mrb[0].mxu0
  %v1153 = vpop.f32.mrb[0].mxu0
  %v1154 = vadd.f32 %v1057, %v1153
  %v1155 = vpop.f32.mrb[0].mxu0
  %1156 = vmatprep.mubr.bf16.mxu0 %v423
  %1157 = vmatmul.mubr.bf16.gmra.mrb[0].mxu0 %v422
  %v1158 = vpop.f32.mrb[0].mxu0
  %v1159 = vadd.f32 %v1062, %v1158
  %v1160 = vpop.f32.mrb[0].mxu0
  %v1161 = vpop.f32.mrb[0].mxu0
  %v1162 = vadd.f32 %v1065, %v1161
  %v1163 = vpop.f32.mrb[0].mxu0
  %1164 = vmatprep.mubr.bf16.mxu0 %v431
  %1165 = vmatmul.mubr.bf16.gmra.mrb[0].mxu0 %v430
  %v1166 = vpop.f32.mrb[0].mxu0
  %v1167 = vadd.f32 %v1070, %v1166
  %v1168 = vpop.f32.mrb[0].mxu0
  %v1169 = vpop.f32.mrb[0].mxu0
  %v1170 = vadd.f32 %v1073, %v1169
  %v1171 = vpop.f32.mrb[0].mxu0
  %1172 = vmatprep.mubr.bf16.mxu0 %v439
  %1173 = vmatmul.mubr.bf16.gmra.mrb[0].mxu0 %v438
  %v1174 = vpop.f32.mrb[0].mxu0
  %v1175 = vadd.f32 %v1078, %v1174
  %v1176 = vpop.f32.mrb[0].mxu0
  %v1177 = vpop.f32.mrb[0].mxu0
  %v1178 = vadd.f32 %v1081, %v1177
  %v1179 = vpop.f32.mrb[0].mxu0
  %1180 = vmatprep.mubr.bf16.mxu0 %v447
  %1181 = vmatmul.mubr.bf16.gmra.mrb[0].mxu0 %v446
  %v1182 = vpop.f32.mrb[0].mxu0
  %v1183 = vadd.f32 %v1086, %v1182
  %v1184 = vpop.f32.mrb[0].mxu0
  %v1185 = vpop.f32.mrb[0].mxu0
  %v1186 = vadd.f32 %v1089, %v1185
  %v1187 = vpop.f32.mrb[0].mxu0
  %1188 = vmatprep.mubr.bf16.mxu0 %v455
  %1189 = vmatmul.mubr.bf16.gmra.mrb[0].mxu0 %v454
  %v1190 = vpop.f32.mrb[0].mxu0
  %v1191 = vadd.f32 %v1094, %v1190
  %v1192 = vpop.f32.mrb[0].mxu0
  %v1193 = vpop.f32.mrb[0].mxu0
  %v1194 = vadd.f32 %v1097, %v1193
  %v1195 = vpop.f32.mrb[0].mxu0
  %1196 = vmatprep.mubr.bf16.mxu0 %v463
  %1197 = vmatmul.mubr.bf16.gmra.mrb[0].mxu0 %v462
  %v1198 = vpop.f32.mrb[0].mxu0
  %v1199 = vadd.f32 %v1102, %v1198
  %v1200 = vpop.f32.mrb[0].mxu0
  %v1201 = vpop.f32.mrb[0].mxu0
  %v1202 = vadd.f32 %v1105, %v1201
  %v1203 = vpop.f32.mrb[0].mxu0
  %1204 = vdwg.mxu0
  %1205 = vmatprep.subr.bf16.mxu0 0
  %1206 = vmatpush1.bf16.msra.mxu0 %v834
  %1207 = vmatprep.subr.bf16.mxu0 0
  %1208 = vmatpush1.bf16.msra.mxu0 %v835
  %1209 = vmatprep.subr.bf16.mxu0 0
  %1210 = vmatpush1.bf16.msra.mxu0 %v836
  %1211 = vmatprep.subr.bf16.mxu0 0
  %1212 = vmatpush1.bf16.msra.mxu0 %v837
  %1213 = vmatprep.subr.bf16.mxu0 0
  %1214 = vmatpush1.bf16.msra.mxu0 %v838
  %1215 = vmatprep.subr.bf16.mxu0 0
  %1216 = vmatpush1.bf16.msra.mxu0 %v839
  %1217 = vmatprep.subr.bf16.mxu0 0
  %1218 = vmatpush1.bf16.msra.mxu0 %v840
  %1219 = vmatprep.subr.bf16.mxu0 0
  %1220 = vmatpush1.bf16.msra.mxu0 %v841
  %1221 = vmatprep.subr.bf16.mxu0 0
  %1222 = vmatpush1.bf16.msra.mxu0 %v842
  %1223 = vmatprep.subr.bf16.mxu0 0
  %1224 = vmatpush1.bf16.msra.mxu0 %v843
  %1225 = vmatprep.subr.bf16.mxu0 0
  %1226 = vmatpush1.bf16.msra.mxu0 %v844
  %1227 = vmatprep.subr.bf16.mxu0 0
  %1228 = vmatpush1.bf16.msra.mxu0 %v845
  %1229 = vmatprep.subr.bf16.mxu0 0
  %1230 = vmatpush1.bf16.msra.mxu0 %v846
  %1231 = vmatprep.subr.bf16.mxu0 0
  %1232 = vmatpush1.bf16.msra.mxu0 %v847
  %1233 = vmatprep.subr.bf16.mxu0 0
  %1234 = vmatpush1.bf16.msra.mxu0 %v848
  %1235 = vmatprep.subr.bf16.mxu0 0
  %1236 = vmatpush1.bf16.msra.mxu0 %v849
  %1237 = vmatprep.mubr.bf16.mxu0 %v409
  %1238 = vmatmul.mubr.bf16.gmra.mrb[0].mxu0 %v408
  %v1239 = vpop.f32.mrb[0].mxu0
  %v1240 = vadd.f32 %v1143, %v1239
  %v1241 = vpop.f32.mrb[0].mxu0
  %v1242 = vpop.f32.mrb[0].mxu0
  %v1243 = vadd.f32 %v1146, %v1242
  %v1244 = vpop.f32.mrb[0].mxu0
  %1245 = vmatprep.mubr.bf16.mxu0 %v417
  %1246 = vmatmul.mubr.bf16.gmra.mrb[0].mxu0 %v416
  %v1247 = vpop.f32.mrb[0].mxu0
  %v1248 = vadd.f32 %v1151, %v1247
  %v1249 = vpop.f32.mrb[0].mxu0
  %v1250 = vpop.f32.mrb[0].mxu0
  %v1251 = vadd.f32 %v1154, %v1250
  %v1252 = vpop.f32.mrb[0].mxu0
  %1253 = vmatprep.mubr.bf16.mxu0 %v425
  %1254 = vmatmul.mubr.bf16.gmra.mrb[0].mxu0 %v424
  %v1255 = vpop.f32.mrb[0].mxu0
  %v1256 = vadd.f32 %v1159, %v1255
  %v1257 = vpop.f32.mrb[0].mxu0
  %v1258 = vpop.f32.mrb[0].mxu0
  %v1259 = vadd.f32 %v1162, %v1258
  %v1260 = vpop.f32.mrb[0].mxu0
  %1261 = vmatprep.mubr.bf16.mxu0 %v433
  %1262 = vmatmul.mubr.bf16.gmra.mrb[0].mxu0 %v432
  %v1263 = vpop.f32.mrb[0].mxu0
  %v1264 = vadd.f32 %v1167, %v1263
  %v1265 = vpop.f32.mrb[0].mxu0
  %v1266 = vpop.f32.mrb[0].mxu0
  %v1267 = vadd.f32 %v1170, %v1266
  %v1268 = vpop.f32.mrb[0].mxu0
  %1269 = vmatprep.mubr.bf16.mxu0 %v441
  %1270 = vmatmul.mubr.bf16.gmra.mrb[0].mxu0 %v440
  %v1271 = vpop.f32.mrb[0].mxu0
  %v1272 = vadd.f32 %v1175, %v1271
  %v1273 = vpop.f32.mrb[0].mxu0
  %v1274 = vpop.f32.mrb[0].mxu0
  %v1275 = vadd.f32 %v1178, %v1274
  %v1276 = vpop.f32.mrb[0].mxu0
  %1277 = vmatprep.mubr.bf16.mxu0 %v449
  %1278 = vmatmul.mubr.bf16.gmra.mrb[0].mxu0 %v448
  %v1279 = vpop.f32.mrb[0].mxu0
  %v1280 = vadd.f32 %v1183, %v1279
  %v1281 = vpop.f32.mrb[0].mxu0
  %v1282 = vpop.f32.mrb[0].mxu0
  %v1283 = vadd.f32 %v1186, %v1282
  %v1284 = vpop.f32.mrb[0].mxu0
  %1285 = vmatprep.mubr.bf16.mxu0 %v457
  %1286 = vmatmul.mubr.bf16.gmra.mrb[0].mxu0 %v456
  %v1287 = vpop.f32.mrb[0].mxu0
  %v1288 = vadd.f32 %v1191, %v1287
  %v1289 = vpop.f32.mrb[0].mxu0
  %v1290 = vpop.f32.mrb[0].mxu0
  %v1291 = vadd.f32 %v1194, %v1290
  %v1292 = vpop.f32.mrb[0].mxu0
  %1293 = vmatprep.mubr.bf16.mxu0 %v465
  %1294 = vmatmul.mubr.bf16.gmra.mrb[0].mxu0 %v464
  %v1295 = vpop.f32.mrb[0].mxu0
  %v1296 = vadd.f32 %v1199, %v1295
  %v1297 = vpop.f32.mrb[0].mxu0
  %v1298 = vpop.f32.mrb[0].mxu0
  %v1299 = vadd.f32 %v1202, %v1298
  %v1300 = vpop.f32.mrb[0].mxu0
  %1301 = vdwg.mxu0
  %1302 = vadd.xlane.f32.xlu0 %v1240
  %v1303 = vpop.xlane.xlu0 %1302
  %1304 = vadd.xlane.f32.xlu0 %v1243
  %v1305 = vpop.xlane.xlu0 %1304
  %1306 = vadd.xlane.f32.xlu0 %v1248
  %v1307 = vpop.xlane.xlu0 %1306
  %1308 = vadd.xlane.f32.xlu0 %v1251
  %v1309 = vpop.xlane.xlu0 %1308
  %1310 = vadd.xlane.f32.xlu0 %v1256
  %v1311 = vpop.xlane.xlu0 %1310
  %1312 = vadd.xlane.f32.xlu0 %v1259
  %v1313 = vpop.xlane.xlu0 %1312
  %1314 = vadd.xlane.f32.xlu0 %v1264
  %v1315 = vpop.xlane.xlu0 %1314
  %1316 = vadd.xlane.f32.xlu0 %v1267
  %v1317 = vpop.xlane.xlu0 %1316
  %1318 = vadd.xlane.f32.xlu0 %v1272
  %v1319 = vpop.xlane.xlu0 %1318
  %1320 = vadd.xlane.f32.xlu0 %v1275
  %v1321 = vpop.xlane.xlu0 %1320
  %1322 = vadd.xlane.f32.xlu0 %v1280
  %v1323 = vpop.xlane.xlu0 %1322
  %1324 = vadd.xlane.f32.xlu0 %v1283
  %v1325 = vpop.xlane.xlu0 %1324
  %1326 = vadd.xlane.f32.xlu0 %v1288
  %v1327 = vpop.xlane.xlu0 %1326
  %1328 = vadd.xlane.f32.xlu0 %v1291
  %v1329 = vpop.xlane.xlu0 %1328
  %1330 = vadd.xlane.f32.xlu0 %v1296
  %v1331 = vpop.xlane.xlu0 %1330
  %1332 = vadd.xlane.f32.xlu0 %v1299
  %v1333 = vpop.xlane.xlu0 %1332
  %v1334 = vmul.f32 %v1303, 0.0078125
  %v1335 = vmul.f32 %v1305, 0.0078125
  %v1336 = vmul.f32 %v1307, 0.0078125
  %v1337 = vmul.f32 %v1309, 0.0078125
  %v1338 = vmul.f32 %v1311, 0.0078125
  %v1339 = vmul.f32 %v1313, 0.0078125
  %v1340 = vmul.f32 %v1315, 0.0078125
  %v1341 = vmul.f32 %v1317, 0.0078125
  %v1342 = vmul.f32 %v1319, 0.0078125
  %v1343 = vmul.f32 %v1321, 0.0078125
  %v1344 = vmul.f32 %v1323, 0.0078125
  %v1345 = vmul.f32 %v1325, 0.0078125
  %v1346 = vmul.f32 %v1327, 0.0078125
  %v1347 = vmul.f32 %v1329, 0.0078125
  %v1348 = vmul.f32 %v1331, 0.0078125
  %v1349 = vmul.f32 %v1333, 0.0078125
  %v1350 = vmul.f32 %v1240, %v1240
  %v1351 = vmul.f32 %v1243, %v1243
  %v1352 = vmul.f32 %v1248, %v1248
  %v1353 = vmul.f32 %v1251, %v1251
  %v1354 = vmul.f32 %v1256, %v1256
  %v1355 = vmul.f32 %v1259, %v1259
  %v1356 = vmul.f32 %v1264, %v1264
  %v1357 = vmul.f32 %v1267, %v1267
  %v1358 = vmul.f32 %v1272, %v1272
  %v1359 = vmul.f32 %v1275, %v1275
  %v1360 = vmul.f32 %v1280, %v1280
  %v1361 = vmul.f32 %v1283, %v1283
  %v1362 = vmul.f32 %v1288, %v1288
  %v1363 = vmul.f32 %v1291, %v1291
  %v1364 = vmul.f32 %v1296, %v1296
  %v1365 = vmul.f32 %v1299, %v1299
  %1366 = vadd.xlane.f32.xlu0 %v1350
  %v1367 = vpop.xlane.xlu0 %1366
  %1368 = vadd.xlane.f32.xlu0 %v1351
  %v1369 = vpop.xlane.xlu0 %1368
  %1370 = vadd.xlane.f32.xlu0 %v1352
  %v1371 = vpop.xlane.xlu0 %1370
  %1372 = vadd.xlane.f32.xlu0 %v1353
  %v1373 = vpop.xlane.xlu0 %1372
  %1374 = vadd.xlane.f32.xlu0 %v1354
  %v1375 = vpop.xlane.xlu0 %1374
  %1376 = vadd.xlane.f32.xlu0 %v1355
  %v1377 = vpop.xlane.xlu0 %1376
  %1378 = vadd.xlane.f32.xlu0 %v1356
  %v1379 = vpop.xlane.xlu0 %1378
  %1380 = vadd.xlane.f32.xlu0 %v1357
  %v1381 = vpop.xlane.xlu0 %1380
  %1382 = vadd.xlane.f32.xlu0 %v1358
  %v1383 = vpop.xlane.xlu0 %1382
  %1384 = vadd.xlane.f32.xlu0 %v1359
  %v1385 = vpop.xlane.xlu0 %1384
  %1386 = vadd.xlane.f32.xlu0 %v1360
  %v1387 = vpop.xlane.xlu0 %1386
  %1388 = vadd.xlane.f32.xlu0 %v1361
  %v1389 = vpop.xlane.xlu0 %1388
  %1390 = vadd.xlane.f32.xlu0 %v1362
  %v1391 = vpop.xlane.xlu0 %1390
  %1392 = vadd.xlane.f32.xlu0 %v1363
  %v1393 = vpop.xlane.xlu0 %1392
  %1394 = vadd.xlane.f32.xlu0 %v1364
  %v1395 = vpop.xlane.xlu0 %1394
  %1396 = vadd.xlane.f32.xlu0 %v1365
  %v1397 = vpop.xlane.xlu0 %1396
  %v1398 = vmul.f32 %v1367, 0.0078125
  %v1399 = vmul.f32 %v1369, 0.0078125
  %v1400 = vmul.f32 %v1371, 0.0078125
  %v1401 = vmul.f32 %v1373, 0.0078125
  %v1402 = vmul.f32 %v1375, 0.0078125
  %v1403 = vmul.f32 %v1377, 0.0078125
  %v1404 = vmul.f32 %v1379, 0.0078125
  %v1405 = vmul.f32 %v1381, 0.0078125
  %v1406 = vmul.f32 %v1383, 0.0078125
  %v1407 = vmul.f32 %v1385, 0.0078125
  %v1408 = vmul.f32 %v1387, 0.0078125
  %v1409 = vmul.f32 %v1389, 0.0078125
  %v1410 = vmul.f32 %v1391, 0.0078125
  %v1411 = vmul.f32 %v1393, 0.0078125
  %v1412 = vmul.f32 %v1395, 0.0078125
  %v1413 = vmul.f32 %v1397, 0.0078125
  %v1414 = vmul.f32 %v1334, %v1334
  %v1415 = vmul.f32 %v1335, %v1335
  %v1416 = vmul.f32 %v1336, %v1336
  %v1417 = vmul.f32 %v1337, %v1337
  %v1418 = vmul.f32 %v1338, %v1338
  %v1419 = vmul.f32 %v1339, %v1339
  %v1420 = vmul.f32 %v1340, %v1340
  %v1421 = vmul.f32 %v1341, %v1341
  %v1422 = vmul.f32 %v1342, %v1342
  %v1423 = vmul.f32 %v1343, %v1343
  %v1424 = vmul.f32 %v1344, %v1344
  %v1425 = vmul.f32 %v1345, %v1345
  %v1426 = vmul.f32 %v1346, %v1346
  %v1427 = vmul.f32 %v1347, %v1347
  %v1428 = vmul.f32 %v1348, %v1348
  %v1429 = vmul.f32 %v1349, %v1349
  %v1430 = vsub.f32 %v1398, %v1414
  %v1431 = vsub.f32 %v1399, %v1415
  %v1432 = vsub.f32 %v1400, %v1416
  %v1433 = vsub.f32 %v1401, %v1417
  %v1434 = vsub.f32 %v1402, %v1418
  %v1435 = vsub.f32 %v1403, %v1419
  %v1436 = vsub.f32 %v1404, %v1420
  %v1437 = vsub.f32 %v1405, %v1421
  %v1438 = vsub.f32 %v1406, %v1422
  %v1439 = vsub.f32 %v1407, %v1423
  %v1440 = vsub.f32 %v1408, %v1424
  %v1441 = vsub.f32 %v1409, %v1425
  %v1442 = vsub.f32 %v1410, %v1426
  %v1443 = vsub.f32 %v1411, %v1427
  %v1444 = vsub.f32 %v1412, %v1428
  %v1445 = vsub.f32 %v1413, %v1429
  %v1446 = vld [vmem:[%s2] sm:$0xff]
  %v1447 = vld [vmem:[%s2 + $0x8] sm:$0xff]
  %v1448 = vld [vmem:[%s2 + $0x10] sm:$0xff]
  %v1449 = vld [vmem:[%s2 + $0x18] sm:$0xff]
  %v1450 = vld [vmem:[%s2 + $0x20] sm:$0xff]
  %v1451 = vld [vmem:[%s2 + $0x28] sm:$0xff]
  %v1452 = vld [vmem:[%s2 + $0x30] sm:$0xff]
  %v1453 = vld [vmem:[%s2 + $0x38] sm:$0xff]
  %v1454 = vld [vmem:[%s2 + $0x40] sm:$0xff]
  %v1455 = vld [vmem:[%s2 + $0x48] sm:$0xff]
  %v1456 = vld [vmem:[%s2 + $0x50] sm:$0xff]
  %v1457 = vld [vmem:[%s2 + $0x58] sm:$0xff]
  %v1458 = vld [vmem:[%s2 + $0x60] sm:$0xff]
  %v1459 = vld [vmem:[%s2 + $0x68] sm:$0xff]
  %v1460 = vld [vmem:[%s2 + $0x70] sm:$0xff]
  %v1461 = vld [vmem:[%s2 + $0x78] sm:$0xff]
  %v1462 = vadd.f32 %v1430, 1e-05
  %v1463 = vadd.f32 %v1431, 1e-05
  %v1464 = vadd.f32 %v1432, 1e-05
  %v1465 = vadd.f32 %v1433, 1e-05
  %v1466 = vadd.f32 %v1434, 1e-05
  %v1467 = vadd.f32 %v1435, 1e-05
  %v1468 = vadd.f32 %v1436, 1e-05
  %v1469 = vadd.f32 %v1437, 1e-05
  %v1470 = vadd.f32 %v1438, 1e-05
  %v1471 = vadd.f32 %v1439, 1e-05
  %v1472 = vadd.f32 %v1440, 1e-05
  %v1473 = vadd.f32 %v1441, 1e-05
  %v1474 = vadd.f32 %v1442, 1e-05
  %v1475 = vadd.f32 %v1443, 1e-05
  %v1476 = vadd.f32 %v1444, 1e-05
  %v1477 = vadd.f32 %v1445, 1e-05
  %v1478 = vrsqrt.pop %v1462
  %v1479 = vrsqrt.pop %v1463
  %v1480 = vrsqrt.pop %v1464
  %v1481 = vrsqrt.pop %v1465
  %v1482 = vrsqrt.pop %v1466
  %v1483 = vrsqrt.pop %v1467
  %v1484 = vrsqrt.pop %v1468
  %v1485 = vrsqrt.pop %v1469
  %v1486 = vrsqrt.pop %v1470
  %v1487 = vrsqrt.pop %v1471
  %v1488 = vrsqrt.pop %v1472
  %v1489 = vrsqrt.pop %v1473
  %v1490 = vrsqrt.pop %v1474
  %v1491 = vrsqrt.pop %v1475
  %v1492 = vrsqrt.pop %v1476
  %v1493 = vrsqrt.pop %v1477
  %v1494 = vmul.f32 %v1446, %v1478
  %v1495 = vmul.f32 %v1447, %v1479
  %v1496 = vmul.f32 %v1448, %v1480
  %v1497 = vmul.f32 %v1449, %v1481
  %v1498 = vmul.f32 %v1450, %v1482
  %v1499 = vmul.f32 %v1451, %v1483
  %v1500 = vmul.f32 %v1452, %v1484
  %v1501 = vmul.f32 %v1453, %v1485
  %v1502 = vmul.f32 %v1454, %v1486
  %v1503 = vmul.f32 %v1455, %v1487
  %v1504 = vmul.f32 %v1456, %v1488
  %v1505 = vmul.f32 %v1457, %v1489
  %v1506 = vmul.f32 %v1458, %v1490
  %v1507 = vmul.f32 %v1459, %v1491
  %v1508 = vmul.f32 %v1460, %v1492
  %v1509 = vmul.f32 %v1461, %v1493
  %v1510 = vld [vmem:[%s3] sm:$0xff]
  %v1511 = vld [vmem:[%s3 + $0x8] sm:$0xff]
  %v1512 = vld [vmem:[%s3 + $0x10] sm:$0xff]
  %v1513 = vld [vmem:[%s3 + $0x18] sm:$0xff]
  %v1514 = vld [vmem:[%s3 + $0x20] sm:$0xff]
  %v1515 = vld [vmem:[%s3 + $0x28] sm:$0xff]
  %v1516 = vld [vmem:[%s3 + $0x30] sm:$0xff]
  %v1517 = vld [vmem:[%s3 + $0x38] sm:$0xff]
  %v1518 = vld [vmem:[%s3 + $0x40] sm:$0xff]
  %v1519 = vld [vmem:[%s3 + $0x48] sm:$0xff]
  %v1520 = vld [vmem:[%s3 + $0x50] sm:$0xff]
  %v1521 = vld [vmem:[%s3 + $0x58] sm:$0xff]
  %v1522 = vld [vmem:[%s3 + $0x60] sm:$0xff]
  %v1523 = vld [vmem:[%s3 + $0x68] sm:$0xff]
  %v1524 = vld [vmem:[%s3 + $0x70] sm:$0xff]
  %v1525 = vld [vmem:[%s3 + $0x78] sm:$0xff]
  %v1526 = vmul.f32 %v1334, %v1494
  %v1527 = vmul.f32 %v1335, %v1495
  %v1528 = vmul.f32 %v1336, %v1496
  %v1529 = vmul.f32 %v1337, %v1497
  %v1530 = vmul.f32 %v1338, %v1498
  %v1531 = vmul.f32 %v1339, %v1499
  %v1532 = vmul.f32 %v1340, %v1500
  %v1533 = vmul.f32 %v1341, %v1501
  %v1534 = vmul.f32 %v1342, %v1502
  %v1535 = vmul.f32 %v1343, %v1503
  %v1536 = vmul.f32 %v1344, %v1504
  %v1537 = vmul.f32 %v1345, %v1505
  %v1538 = vmul.f32 %v1346, %v1506
  %v1539 = vmul.f32 %v1347, %v1507
  %v1540 = vmul.f32 %v1348, %v1508
  %v1541 = vmul.f32 %v1349, %v1509
  %v1542 = vsub.f32 %v1510, %v1526
  %v1543 = vsub.f32 %v1511, %v1527
  %v1544 = vsub.f32 %v1512, %v1528
  %v1545 = vsub.f32 %v1513, %v1529
  %v1546 = vsub.f32 %v1514, %v1530
  %v1547 = vsub.f32 %v1515, %v1531
  %v1548 = vsub.f32 %v1516, %v1532
  %v1549 = vsub.f32 %v1517, %v1533
  %v1550 = vsub.f32 %v1518, %v1534
  %v1551 = vsub.f32 %v1519, %v1535
  %v1552 = vsub.f32 %v1520, %v1536
  %v1553 = vsub.f32 %v1521, %v1537
  %v1554 = vsub.f32 %v1522, %v1538
  %v1555 = vsub.f32 %v1523, %v1539
  %v1556 = vsub.f32 %v1524, %v1540
  %v1557 = vsub.f32 %v1525, %v1541
  %1559 = vset.pattern.permute.xlu0 0
  %1560 = vperm.xlu0 %1559, %v1494
  %v1561 = vpop.permute.xlu0 %1560
  %1564 = vset.pattern.permute.xlu0 0
  %1565 = vperm.xlu0 %1564, %v1495
  %v1566 = vpop.permute.xlu0 %1565
  %1569 = vset.pattern.permute.xlu0 0
  %1570 = vperm.xlu0 %1569, %v1496
  %v1571 = vpop.permute.xlu0 %1570
  %1574 = vset.pattern.permute.xlu0 0
  %1575 = vperm.xlu0 %1574, %v1497
  %v1576 = vpop.permute.xlu0 %1575
  %1579 = vset.pattern.permute.xlu0 0
  %1580 = vperm.xlu0 %1579, %v1498
  %v1581 = vpop.permute.xlu0 %1580
  %1584 = vset.pattern.permute.xlu0 0
  %1585 = vperm.xlu0 %1584, %v1499
  %v1586 = vpop.permute.xlu0 %1585
  %1589 = vset.pattern.permute.xlu0 0
  %1590 = vperm.xlu0 %1589, %v1500
  %v1591 = vpop.permute.xlu0 %1590
  %1594 = vset.pattern.permute.xlu0 0
  %1595 = vperm.xlu0 %1594, %v1501
  %v1596 = vpop.permute.xlu0 %1595
  %1599 = vset.pattern.permute.xlu0 0
  %1600 = vperm.xlu0 %1599, %v1502
  %v1601 = vpop.permute.xlu0 %1600
  %1604 = vset.pattern.permute.xlu0 0
  %1605 = vperm.xlu0 %1604, %v1503
  %v1606 = vpop.permute.xlu0 %1605
  %1609 = vset.pattern.permute.xlu0 0
  %1610 = vperm.xlu0 %1609, %v1504
  %v1611 = vpop.permute.xlu0 %1610
  %1614 = vset.pattern.permute.xlu0 0
  %1615 = vperm.xlu0 %1614, %v1505
  %v1616 = vpop.permute.xlu0 %1615
  %1619 = vset.pattern.permute.xlu0 0
  %1620 = vperm.xlu0 %1619, %v1506
  %v1621 = vpop.permute.xlu0 %1620
  %1624 = vset.pattern.permute.xlu0 0
  %1625 = vperm.xlu0 %1624, %v1507
  %v1626 = vpop.permute.xlu0 %1625
  %1629 = vset.pattern.permute.xlu0 0
  %1630 = vperm.xlu0 %1629, %v1508
  %v1631 = vpop.permute.xlu0 %1630
  %1634 = vset.pattern.permute.xlu0 0
  %1635 = vperm.xlu0 %1634, %v1509
  %v1636 = vpop.permute.xlu0 %1635
  %v1638 = vmul.f32 %v1240, %v1561
  %v1639 = vmul.f32 %v1243, %v1566
  %v1640 = vmul.f32 %v1248, %v1571
  %v1641 = vmul.f32 %v1251, %v1576
  %v1642 = vmul.f32 %v1256, %v1581
  %v1643 = vmul.f32 %v1259, %v1586
  %v1644 = vmul.f32 %v1264, %v1591
  %v1645 = vmul.f32 %v1267, %v1596
  %v1646 = vmul.f32 %v1272, %v1601
  %v1647 = vmul.f32 %v1275, %v1606
  %v1648 = vmul.f32 %v1280, %v1611
  %v1649 = vmul.f32 %v1283, %v1616
  %v1650 = vmul.f32 %v1288, %v1621
  %v1651 = vmul.f32 %v1291, %v1626
  %v1652 = vmul.f32 %v1296, %v1631
  %v1653 = vmul.f32 %v1299, %v1636
  %1655 = vset.pattern.permute.xlu0 0
  %1656 = vperm.xlu0 %1655, %v1542
  %v1657 = vpop.permute.xlu0 %1656
  %1660 = vset.pattern.permute.xlu0 0
  %1661 = vperm.xlu0 %1660, %v1543
  %v1662 = vpop.permute.xlu0 %1661
  %1665 = vset.pattern.permute.xlu0 0
  %1666 = vperm.xlu0 %1665, %v1544
  %v1667 = vpop.permute.xlu0 %1666
  %1670 = vset.pattern.permute.xlu0 0
  %1671 = vperm.xlu0 %1670, %v1545
  %v1672 = vpop.permute.xlu0 %1671
  %1675 = vset.pattern.permute.xlu0 0
  %1676 = vperm.xlu0 %1675, %v1546
  %v1677 = vpop.permute.xlu0 %1676
  %1680 = vset.pattern.permute.xlu0 0
  %1681 = vperm.xlu0 %1680, %v1547
  %v1682 = vpop.permute.xlu0 %1681
  %1685 = vset.pattern.permute.xlu0 0
  %1686 = vperm.xlu0 %1685, %v1548
  %v1687 = vpop.permute.xlu0 %1686
  %1690 = vset.pattern.permute.xlu0 0
  %1691 = vperm.xlu0 %1690, %v1549
  %v1692 = vpop.permute.xlu0 %1691
  %1695 = vset.pattern.permute.xlu0 0
  %1696 = vperm.xlu0 %1695, %v1550
  %v1697 = vpop.permute.xlu0 %1696
  %1700 = vset.pattern.permute.xlu0 0
  %1701 = vperm.xlu0 %1700, %v1551
  %v1702 = vpop.permute.xlu0 %1701
  %1705 = vset.pattern.permute.xlu0 0
  %1706 = vperm.xlu0 %1705, %v1552
  %v1707 = vpop.permute.xlu0 %1706
  %1710 = vset.pattern.permute.xlu0 0
  %1711 = vperm.xlu0 %1710, %v1553
  %v1712 = vpop.permute.xlu0 %1711
  %1715 = vset.pattern.permute.xlu0 0
  %1716 = vperm.xlu0 %1715, %v1554
  %v1717 = vpop.permute.xlu0 %1716
  %1720 = vset.pattern.permute.xlu0 0
  %1721 = vperm.xlu0 %1720, %v1555
  %v1722 = vpop.permute.xlu0 %1721
  %1725 = vset.pattern.permute.xlu0 0
  %1726 = vperm.xlu0 %1725, %v1556
  %v1727 = vpop.permute.xlu0 %1726
  %1730 = vset.pattern.permute.xlu0 0
  %1731 = vperm.xlu0 %1730, %v1557
  %v1732 = vpop.permute.xlu0 %1731
  %v1734 = vadd.f32 %v1638, %v1657
  %v1735 = vadd.f32 %v1639, %v1662
  %v1736 = vadd.f32 %v1640, %v1667
  %v1737 = vadd.f32 %v1641, %v1672
  %v1738 = vadd.f32 %v1642, %v1677
  %v1739 = vadd.f32 %v1643, %v1682
  %v1740 = vadd.f32 %v1644, %v1687
  %v1741 = vadd.f32 %v1645, %v1692
  %v1742 = vadd.f32 %v1646, %v1697
  %v1743 = vadd.f32 %v1647, %v1702
  %v1744 = vadd.f32 %v1648, %v1707
  %v1745 = vadd.f32 %v1649, %v1712
  %v1746 = vadd.f32 %v1650, %v1717
  %v1747 = vadd.f32 %v1651, %v1722
  %v1748 = vadd.f32 %v1652, %v1727
  %v1749 = vadd.f32 %v1653, %v1732
  %v1750 = vmul.f32 %v1734, 0.2
  %v1751 = vmul.f32 %v1735, 0.2
  %v1752 = vmul.f32 %v1736, 0.2
  %v1753 = vmul.f32 %v1737, 0.2
  %v1754 = vmul.f32 %v1738, 0.2
  %v1755 = vmul.f32 %v1739, 0.2
  %v1756 = vmul.f32 %v1740, 0.2
  %v1757 = vmul.f32 %v1741, 0.2
  %v1758 = vmul.f32 %v1742, 0.2
  %v1759 = vmul.f32 %v1743, 0.2
  %v1760 = vmul.f32 %v1744, 0.2
  %v1761 = vmul.f32 %v1745, 0.2
  %v1762 = vmul.f32 %v1746, 0.2
  %v1763 = vmul.f32 %v1747, 0.2
  %v1764 = vmul.f32 %v1748, 0.2
  %v1765 = vmul.f32 %v1749, 0.2
  %v1766 = vmax.f32 %v1734, %v1750
  %v1767 = vmax.f32 %v1735, %v1751
  %v1768 = vmax.f32 %v1736, %v1752
  %v1769 = vmax.f32 %v1737, %v1753
  %v1770 = vmax.f32 %v1738, %v1754
  %v1771 = vmax.f32 %v1739, %v1755
  %v1772 = vmax.f32 %v1740, %v1756
  %v1773 = vmax.f32 %v1741, %v1757
  %v1774 = vmax.f32 %v1742, %v1758
  %v1775 = vmax.f32 %v1743, %v1759
  %v1776 = vmax.f32 %v1744, %v1760
  %v1777 = vmax.f32 %v1745, %v1761
  %v1778 = vmax.f32 %v1746, %v1762
  %v1779 = vmax.f32 %v1747, %v1763
  %v1780 = vmax.f32 %v1748, %v1764
  %v1781 = vmax.f32 %v1749, %v1765
  %v1782 = vpack.c.bf16 %v1767, %v1766
  %v1783 = vpack.c.bf16 %v1769, %v1768
  %v1784 = vpack.c.bf16 %v1771, %v1770
  %v1785 = vpack.c.bf16 %v1773, %v1772
  %v1786 = vpack.c.bf16 %v1775, %v1774
  %v1787 = vpack.c.bf16 %v1777, %v1776
  %v1788 = vpack.c.bf16 %v1779, %v1778
  %v1789 = vpack.c.bf16 %v1781, %v1780
  %v1798 = vunpack.c.l.b16 %v1782
  %v1799 = vunpack.c.h.b16 %v1782
  %v1800 = vunpack.c.l.b16 %v1783
  %v1801 = vunpack.c.h.b16 %v1783
  %v1802 = vunpack.c.l.b16 %v1784
  %v1803 = vunpack.c.h.b16 %v1784
  %v1804 = vunpack.c.l.b16 %v1785
  %v1805 = vunpack.c.h.b16 %v1785
  %v1806 = vunpack.c.l.b16 %v1786
  %v1807 = vunpack.c.h.b16 %v1786
  %v1808 = vunpack.c.l.b16 %v1787
  %v1809 = vunpack.c.h.b16 %v1787
  %v1810 = vunpack.c.l.b16 %v1788
  %v1811 = vunpack.c.h.b16 %v1788
  %v1812 = vunpack.c.l.b16 %v1789
  %v1813 = vunpack.c.h.b16 %v1789
  %v1814 = vpack.c.b16 %v1798, %v1798
  %v1815 = vpack.c.b16 %v1799, %v1799
  %v1816 = vpack.c.b16 %v1800, %v1800
  %v1817 = vpack.c.b16 %v1801, %v1801
  %v1818 = vpack.c.b16 %v1802, %v1802
  %v1819 = vpack.c.b16 %v1803, %v1803
  %v1820 = vpack.c.b16 %v1804, %v1804
  %v1821 = vpack.c.b16 %v1805, %v1805
  %v1822 = vpack.c.b16 %v1806, %v1806
  %v1823 = vpack.c.b16 %v1807, %v1807
  %v1824 = vpack.c.b16 %v1808, %v1808
  %v1825 = vpack.c.b16 %v1809, %v1809
  %v1826 = vpack.c.b16 %v1810, %v1810
  %v1827 = vpack.c.b16 %v1811, %v1811
  %v1828 = vpack.c.b16 %v1812, %v1812
  %v1829 = vpack.c.b16 %v1813, %v1813
  %1846 = vst [vmem:[%s4] sm:$0xf] %v1814
  %1847 = vst [vmem:[%s4 + $0x4] sm:$0xf] %v1815
  %1848 = vst [vmem:[%s4 + $0x8] sm:$0xf] %v1816
  %1849 = vst [vmem:[%s4 + $0xc] sm:$0xf] %v1817
  %1850 = vst [vmem:[%s4 + $0x10] sm:$0xf] %v1818
  %1851 = vst [vmem:[%s4 + $0x14] sm:$0xf] %v1819
  %1852 = vst [vmem:[%s4 + $0x18] sm:$0xf] %v1820
  %1853 = vst [vmem:[%s4 + $0x1c] sm:$0xf] %v1821
  %1854 = vst [vmem:[%s4 + $0x20] sm:$0xf] %v1822
  %1855 = vst [vmem:[%s4 + $0x24] sm:$0xf] %v1823
  %1856 = vst [vmem:[%s4 + $0x28] sm:$0xf] %v1824
  %1857 = vst [vmem:[%s4 + $0x2c] sm:$0xf] %v1825
  %1858 = vst [vmem:[%s4 + $0x30] sm:$0xf] %v1826
  %1859 = vst [vmem:[%s4 + $0x34] sm:$0xf] %v1827
  %1860 = vst [vmem:[%s4 + $0x38] sm:$0xf] %v1828
  %1861 = vst [vmem:[%s4 + $0x3c] sm:$0xf] %v1829
  // Predicated region
  $region18: #{encoder_forward_pallas.9} parent=0 // pred_check
    _
  $region19: #{encoder_forward_pallas.9} parent=0 // pred_check_branch
    %1863 = sbr.rel (0) target = $region21
  $region20: #{encoder_forward_pallas.9} parent=0 // pred_region
    _
  $region21: #{encoder_forward_pallas.9} parent=0 // pred_fallthru
    _
  // Predicated region
  $region22: #{encoder_forward_pallas.9} parent=0 // pred_check
    _
  $region23: #{encoder_forward_pallas.9} parent=0 // pred_check_branch
    %1865 = sbr.rel (0) target = $region25
  $region24: #{encoder_forward_pallas.9} parent=0 // pred_region
    _
  $region25: #{encoder_forward_pallas.9} parent=0 // pred_fallthru
    _

// kernel: encoder_forward_pallas.10
$region0: #{encoder_forward_pallas.10}
  #allocation0 [shape = 'u32[]', space=smem, size = 0x4, offset = 0x4, fixed_abs, tag = 'smem constant byte address 0x4 - core index']
  #allocation1 [shape = 'u32[144,128]{1,0:T(1,128)}', space=vmem, size = 0x12000, scoped, tag = 'internal scratch']
  %s0 = inlined_call_operand.vmem [shape: bf16[2048,32], index: 0, kind: input, shape index: {}]
  %s1 = inlined_call_operand.vmem [shape: bf16[128,2048], index: 1, kind: input, shape index: {}]
  %s2 = inlined_call_operand.vmem [shape: f32[128,1], index: 2, kind: input, shape index: {}]
  %s3 = inlined_call_operand.vmem [shape: f32[128,1], index: 3, kind: input, shape index: {}]
  %s4 = inlined_call_operand.vmem [shape: bf16[128,32], index: 4, kind: output, shape index: {}]
  %s5 = sld [smem:[#allocation0]]
  $region26: #{encoder_forward_pallas.10} parent=0
    _
  %s7 = ssub.s32 1, %s5
  %s8 = scalar_select 0, %s7, %s5
  // Predicated region
  $region2: #{encoder_forward_pallas.10} parent=0 // pred_check
    _
  $region3: #{encoder_forward_pallas.10} parent=0 // pred_check_branch
    %10 = sbr.rel (0) target = $region5
  $region4: #{encoder_forward_pallas.10} parent=0 // pred_region
    _
  $region5: #{encoder_forward_pallas.10} parent=0 // pred_fallthru
    _
  // Predicated region
  $region6: #{encoder_forward_pallas.10} parent=0 // pred_check
    _
  $region7: #{encoder_forward_pallas.10} parent=0 // pred_check_branch
    %12 = sbr.rel (0) target = $region9
  $region8: #{encoder_forward_pallas.10} parent=0 // pred_region
    _
  $region9: #{encoder_forward_pallas.10} parent=0 // pred_fallthru
    _
  // Predicated region
  $region10: #{encoder_forward_pallas.10} parent=0 // pred_check
    _
  $region11: #{encoder_forward_pallas.10} parent=0 // pred_check_branch
    %14 = sbr.rel (0) target = $region13
  $region12: #{encoder_forward_pallas.10} parent=0 // pred_region
    _
  $region13: #{encoder_forward_pallas.10} parent=0 // pred_fallthru
    _
  // Predicated region
  $region14: #{encoder_forward_pallas.10} parent=0 // pred_check
    _
  $region15: #{encoder_forward_pallas.10} parent=0 // pred_check_branch
    %16 = sbr.rel (0) target = $region17
  $region16: #{encoder_forward_pallas.10} parent=0 // pred_region
    _
  $region17: #{encoder_forward_pallas.10} parent=0 // pred_fallthru
    _
  %v18 = vld [vmem:[%s1] sm:$0xff]
  %v19 = vld [vmem:[%s1 + $0x8] sm:$0xff]
  %v20 = vld [vmem:[%s1 + $0x10] sm:$0xff]
  %v21 = vld [vmem:[%s1 + $0x18] sm:$0xff]
  %v22 = vld [vmem:[%s1 + $0x20] sm:$0xff]
  %v23 = vld [vmem:[%s1 + $0x28] sm:$0xff]
  %v24 = vld [vmem:[%s1 + $0x30] sm:$0xff]
  %v25 = vld [vmem:[%s1 + $0x38] sm:$0xff]
  %v26 = vld [vmem:[%s1 + $0x40] sm:$0xff]
  %v27 = vld [vmem:[%s1 + $0x48] sm:$0xff]
  %v28 = vld [vmem:[%s1 + $0x50] sm:$0xff]
  %v29 = vld [vmem:[%s1 + $0x58] sm:$0xff]
  %v30 = vld [vmem:[%s1 + $0x60] sm:$0xff]
  %v31 = vld [vmem:[%s1 + $0x68] sm:$0xff]
  %v32 = vld [vmem:[%s1 + $0x70] sm:$0xff]
  %v33 = vld [vmem:[%s1 + $0x78] sm:$0xff]
  %v34 = vld [vmem:[%s1 + $0x80] sm:$0xff]
  %v35 = vld [vmem:[%s1 + $0x88] sm:$0xff]
  %v36 = vld [vmem:[%s1 + $0x90] sm:$0xff]
  %v37 = vld [vmem:[%s1 + $0x98] sm:$0xff]
  %v38 = vld [vmem:[%s1 + $0xa0] sm:$0xff]
  %v39 = vld [vmem:[%s1 + $0xa8] sm:$0xff]
  %v40 = vld [vmem:[%s1 + $0xb0] sm:$0xff]
  %v41 = vld [vmem:[%s1 + $0xb8] sm:$0xff]
  %v42 = vld [vmem:[%s1 + $0xc0] sm:$0xff]
  %v43 = vld [vmem:[%s1 + $0xc8] sm:$0xff]
  %v44 = vld [vmem:[%s1 + $0xd0] sm:$0xff]
  %v45 = vld [vmem:[%s1 + $0xd8] sm:$0xff]
  %v46 = vld [vmem:[%s1 + $0xe0] sm:$0xff]
  %v47 = vld [vmem:[%s1 + $0xe8] sm:$0xff]
  %v48 = vld [vmem:[%s1 + $0xf0] sm:$0xff]
  %v49 = vld [vmem:[%s1 + $0xf8] sm:$0xff]
  %v50 = vld [vmem:[%s1 + $0x100] sm:$0xff]
  %v51 = vld [vmem:[%s1 + $0x108] sm:$0xff]
  %v52 = vld [vmem:[%s1 + $0x110] sm:$0xff]
  %v53 = vld [vmem:[%s1 + $0x118] sm:$0xff]
  %v54 = vld [vmem:[%s1 + $0x120] sm:$0xff]
  %v55 = vld [vmem:[%s1 + $0x128] sm:$0xff]
  %v56 = vld [vmem:[%s1 + $0x130] sm:$0xff]
  %v57 = vld [vmem:[%s1 + $0x138] sm:$0xff]
  %v58 = vld [vmem:[%s1 + $0x140] sm:$0xff]
  %v59 = vld [vmem:[%s1 + $0x148] sm:$0xff]
  %v60 = vld [vmem:[%s1 + $0x150] sm:$0xff]
  %v61 = vld [vmem:[%s1 + $0x158] sm:$0xff]
  %v62 = vld [vmem:[%s1 + $0x160] sm:$0xff]
  %v63 = vld [vmem:[%s1 + $0x168] sm:$0xff]
  %v64 = vld [vmem:[%s1 + $0x170] sm:$0xff]
  %v65 = vld [vmem:[%s1 + $0x178] sm:$0xff]
  %v66 = vld [vmem:[%s1 + $0x180] sm:$0xff]
  %v67 = vld [vmem:[%s1 + $0x188] sm:$0xff]
  %v68 = vld [vmem:[%s1 + $0x190] sm:$0xff]
  %v69 = vld [vmem:[%s1 + $0x198] sm:$0xff]
  %v70 = vld [vmem:[%s1 + $0x1a0] sm:$0xff]
  %v71 = vld [vmem:[%s1 + $0x1a8] sm:$0xff]
  %v72 = vld [vmem:[%s1 + $0x1b0] sm:$0xff]
  %v73 = vld [vmem:[%s1 + $0x1b8] sm:$0xff]
  %v74 = vld [vmem:[%s1 + $0x1c0] sm:$0xff]
  %v75 = vld [vmem:[%s1 + $0x1c8] sm:$0xff]
  %v76 = vld [vmem:[%s1 + $0x1d0] sm:$0xff]
  %v77 = vld [vmem:[%s1 + $0x1d8] sm:$0xff]
  %v78 = vld [vmem:[%s1 + $0x1e0] sm:$0xff]
  %v79 = vld [vmem:[%s1 + $0x1e8] sm:$0xff]
  %v80 = vld [vmem:[%s1 + $0x1f0] sm:$0xff]
  %v81 = vld [vmem:[%s1 + $0x1f8] sm:$0xff]
  %v82 = vld [vmem:[%s1 + $0x200] sm:$0xff]
  %v83 = vld [vmem:[%s1 + $0x208] sm:$0xff]
  %v84 = vld [vmem:[%s1 + $0x210] sm:$0xff]
  %v85 = vld [vmem:[%s1 + $0x218] sm:$0xff]
  %v86 = vld [vmem:[%s1 + $0x220] sm:$0xff]
  %v87 = vld [vmem:[%s1 + $0x228] sm:$0xff]
  %v88 = vld [vmem:[%s1 + $0x230] sm:$0xff]
  %v89 = vld [vmem:[%s1 + $0x238] sm:$0xff]
  %v90 = vld [vmem:[%s1 + $0x240] sm:$0xff]
  %v91 = vld [vmem:[%s1 + $0x248] sm:$0xff]
  %v92 = vld [vmem:[%s1 + $0x250] sm:$0xff]
  %v93 = vld [vmem:[%s1 + $0x258] sm:$0xff]
  %v94 = vld [vmem:[%s1 + $0x260] sm:$0xff]
  %v95 = vld [vmem:[%s1 + $0x268] sm:$0xff]
  %v96 = vld [vmem:[%s1 + $0x270] sm:$0xff]
  %v97 = vld [vmem:[%s1 + $0x278] sm:$0xff]
  %v98 = vld [vmem:[%s1 + $0x280] sm:$0xff]
  %v99 = vld [vmem:[%s1 + $0x288] sm:$0xff]
  %v100 = vld [vmem:[%s1 + $0x290] sm:$0xff]
  %v101 = vld [vmem:[%s1 + $0x298] sm:$0xff]
  %v102 = vld [vmem:[%s1 + $0x2a0] sm:$0xff]
  %v103 = vld [vmem:[%s1 + $0x2a8] sm:$0xff]
  %v104 = vld [vmem:[%s1 + $0x2b0] sm:$0xff]
  %v105 = vld [vmem:[%s1 + $0x2b8] sm:$0xff]
  %v106 = vld [vmem:[%s1 + $0x2c0] sm:$0xff]
  %v107 = vld [vmem:[%s1 + $0x2c8] sm:$0xff]
  %v108 = vld [vmem:[%s1 + $0x2d0] sm:$0xff]
  %v109 = vld [vmem:[%s1 + $0x2d8] sm:$0xff]
  %v110 = vld [vmem:[%s1 + $0x2e0] sm:$0xff]
  %v111 = vld [vmem:[%s1 + $0x2e8] sm:$0xff]
  %v112 = vld [vmem:[%s1 + $0x2f0] sm:$0xff]
  %v113 = vld [vmem:[%s1 + $0x2f8] sm:$0xff]
  %v114 = vld [vmem:[%s1 + $0x300] sm:$0xff]
  %v115 = vld [vmem:[%s1 + $0x308] sm:$0xff]
  %v116 = vld [vmem:[%s1 + $0x310] sm:$0xff]
  %v117 = vld [vmem:[%s1 + $0x318] sm:$0xff]
  %v118 = vld [vmem:[%s1 + $0x320] sm:$0xff]
  %v119 = vld [vmem:[%s1 + $0x328] sm:$0xff]
  %v120 = vld [vmem:[%s1 + $0x330] sm:$0xff]
  %v121 = vld [vmem:[%s1 + $0x338] sm:$0xff]
  %v122 = vld [vmem:[%s1 + $0x340] sm:$0xff]
  %v123 = vld [vmem:[%s1 + $0x348] sm:$0xff]
  %v124 = vld [vmem:[%s1 + $0x350] sm:$0xff]
  %v125 = vld [vmem:[%s1 + $0x358] sm:$0xff]
  %v126 = vld [vmem:[%s1 + $0x360] sm:$0xff]
  %v127 = vld [vmem:[%s1 + $0x368] sm:$0xff]
  %v128 = vld [vmem:[%s1 + $0x370] sm:$0xff]
  %v129 = vld [vmem:[%s1 + $0x378] sm:$0xff]
  %v130 = vld [vmem:[%s1 + $0x380] sm:$0xff]
  %v131 = vld [vmem:[%s1 + $0x388] sm:$0xff]
  %v132 = vld [vmem:[%s1 + $0x390] sm:$0xff]
  %v133 = vld [vmem:[%s1 + $0x398] sm:$0xff]
  %v134 = vld [vmem:[%s1 + $0x3a0] sm:$0xff]
  %v135 = vld [vmem:[%s1 + $0x3a8] sm:$0xff]
  %v136 = vld [vmem:[%s1 + $0x3b0] sm:$0xff]
  %v137 = vld [vmem:[%s1 + $0x3b8] sm:$0xff]
  %v138 = vld [vmem:[%s1 + $0x3c0] sm:$0xff]
  %v139 = vld [vmem:[%s1 + $0x3c8] sm:$0xff]
  %v140 = vld [vmem:[%s1 + $0x3d0] sm:$0xff]
  %v141 = vld [vmem:[%s1 + $0x3d8] sm:$0xff]
  %v142 = vld [vmem:[%s1 + $0x3e0] sm:$0xff]
  %v143 = vld [vmem:[%s1 + $0x3e8] sm:$0xff]
  %v144 = vld [vmem:[%s1 + $0x3f0] sm:$0xff]
  %v145 = vld [vmem:[%s1 + $0x3f8] sm:$0xff]
  %v146 = vld [vmem:[%s0] sm:$0xf]
  %v147 = vld [vmem:[%s0 + $0x4] sm:$0xf]
  %v148 = vld [vmem:[%s0 + $0x8] sm:$0xf]
  %v149 = vld [vmem:[%s0 + $0xc] sm:$0xf]
  %v150 = vld [vmem:[%s0 + $0x10] sm:$0xf]
  %v151 = vld [vmem:[%s0 + $0x14] sm:$0xf]
  %v152 = vld [vmem:[%s0 + $0x18] sm:$0xf]
  %v153 = vld [vmem:[%s0 + $0x1c] sm:$0xf]
  %v154 = vld [vmem:[%s0 + $0x20] sm:$0xf]
  %v155 = vld [vmem:[%s0 + $0x24] sm:$0xf]
  %v156 = vld [vmem:[%s0 + $0x28] sm:$0xf]
  %v157 = vld [vmem:[%s0 + $0x2c] sm:$0xf]
  %v158 = vld [vmem:[%s0 + $0x30] sm:$0xf]
  %v159 = vld [vmem:[%s0 + $0x34] sm:$0xf]
  %v160 = vld [vmem:[%s0 + $0x38] sm:$0xf]
  %v161 = vld [vmem:[%s0 + $0x3c] sm:$0xf]
  %v162 = vld [vmem:[%s0 + $0x40] sm:$0xf]
  %v163 = vld [vmem:[%s0 + $0x44] sm:$0xf]
  %v164 = vld [vmem:[%s0 + $0x48] sm:$0xf]
  %v165 = vld [vmem:[%s0 + $0x4c] sm:$0xf]
  %v166 = vld [vmem:[%s0 + $0x50] sm:$0xf]
  %v167 = vld [vmem:[%s0 + $0x54] sm:$0xf]
  %v168 = vld [vmem:[%s0 + $0x58] sm:$0xf]
  %v169 = vld [vmem:[%s0 + $0x5c] sm:$0xf]
  %v170 = vld [vmem:[%s0 + $0x60] sm:$0xf]
  %v171 = vld [vmem:[%s0 + $0x64] sm:$0xf]
  %v172 = vld [vmem:[%s0 + $0x68] sm:$0xf]
  %v173 = vld [vmem:[%s0 + $0x6c] sm:$0xf]
  %v174 = vld [vmem:[%s0 + $0x70] sm:$0xf]
  %v175 = vld [vmem:[%s0 + $0x74] sm:$0xf]
  %v176 = vld [vmem:[%s0 + $0x78] sm:$0xf]
  %v177 = vld [vmem:[%s0 + $0x7c] sm:$0xf]
  %v178 = vld [vmem:[%s0 + $0x80] sm:$0xf]
  %v179 = vld [vmem:[%s0 + $0x84] sm:$0xf]
  %v180 = vld [vmem:[%s0 + $0x88] sm:$0xf]
  %v181 = vld [vmem:[%s0 + $0x8c] sm:$0xf]
  %v182 = vld [vmem:[%s0 + $0x90] sm:$0xf]
  %v183 = vld [vmem:[%s0 + $0x94] sm:$0xf]
  %v184 = vld [vmem:[%s0 + $0x98] sm:$0xf]
  %v185 = vld [vmem:[%s0 + $0x9c] sm:$0xf]
  %v186 = vld [vmem:[%s0 + $0xa0] sm:$0xf]
  %v187 = vld [vmem:[%s0 + $0xa4] sm:$0xf]
  %v188 = vld [vmem:[%s0 + $0xa8] sm:$0xf]
  %v189 = vld [vmem:[%s0 + $0xac] sm:$0xf]
  %v190 = vld [vmem:[%s0 + $0xb0] sm:$0xf]
  %v191 = vld [vmem:[%s0 + $0xb4] sm:$0xf]
  %v192 = vld [vmem:[%s0 + $0xb8] sm:$0xf]
  %v193 = vld [vmem:[%s0 + $0xbc] sm:$0xf]
  %v194 = vld [vmem:[%s0 + $0xc0] sm:$0xf]
  %v195 = vld [vmem:[%s0 + $0xc4] sm:$0xf]
  %v196 = vld [vmem:[%s0 + $0xc8] sm:$0xf]
  %v197 = vld [vmem:[%s0 + $0xcc] sm:$0xf]
  %v198 = vld [vmem:[%s0 + $0xd0] sm:$0xf]
  %v199 = vld [vmem:[%s0 + $0xd4] sm:$0xf]
  %v200 = vld [vmem:[%s0 + $0xd8] sm:$0xf]
  %v201 = vld [vmem:[%s0 + $0xdc] sm:$0xf]
  %v202 = vld [vmem:[%s0 + $0xe0] sm:$0xf]
  %v203 = vld [vmem:[%s0 + $0xe4] sm:$0xf]
  %v204 = vld [vmem:[%s0 + $0xe8] sm:$0xf]
  %v205 = vld [vmem:[%s0 + $0xec] sm:$0xf]
  %v206 = vld [vmem:[%s0 + $0xf0] sm:$0xf]
  %v207 = vld [vmem:[%s0 + $0xf4] sm:$0xf]
  %v208 = vld [vmem:[%s0 + $0xf8] sm:$0xf]
  %v209 = vld [vmem:[%s0 + $0xfc] sm:$0xf]
  %v210 = vld [vmem:[%s0 + $0x100] sm:$0xf]
  %v211 = vld [vmem:[%s0 + $0x104] sm:$0xf]
  %v212 = vld [vmem:[%s0 + $0x108] sm:$0xf]
  %v213 = vld [vmem:[%s0 + $0x10c] sm:$0xf]
  %v214 = vld [vmem:[%s0 + $0x110] sm:$0xf]
  %v215 = vld [vmem:[%s0 + $0x114] sm:$0xf]
  %v216 = vld [vmem:[%s0 + $0x118] sm:$0xf]
  %v217 = vld [vmem:[%s0 + $0x11c] sm:$0xf]
  %v218 = vld [vmem:[%s0 + $0x120] sm:$0xf]
  %v219 = vld [vmem:[%s0 + $0x124] sm:$0xf]
  %v220 = vld [vmem:[%s0 + $0x128] sm:$0xf]
  %v221 = vld [vmem:[%s0 + $0x12c] sm:$0xf]
  %v222 = vld [vmem:[%s0 + $0x130] sm:$0xf]
  %v223 = vld [vmem:[%s0 + $0x134] sm:$0xf]
  %v224 = vld [vmem:[%s0 + $0x138] sm:$0xf]
  %v225 = vld [vmem:[%s0 + $0x13c] sm:$0xf]
  %v226 = vld [vmem:[%s0 + $0x140] sm:$0xf]
  %v227 = vld [vmem:[%s0 + $0x144] sm:$0xf]
  %v228 = vld [vmem:[%s0 + $0x148] sm:$0xf]
  %v229 = vld [vmem:[%s0 + $0x14c] sm:$0xf]
  %v230 = vld [vmem:[%s0 + $0x150] sm:$0xf]
  %v231 = vld [vmem:[%s0 + $0x154] sm:$0xf]
  %v232 = vld [vmem:[%s0 + $0x158] sm:$0xf]
  %v233 = vld [vmem:[%s0 + $0x15c] sm:$0xf]
  %v234 = vld [vmem:[%s0 + $0x160] sm:$0xf]
  %v235 = vld [vmem:[%s0 + $0x164] sm:$0xf]
  %v236 = vld [vmem:[%s0 + $0x168] sm:$0xf]
  %v237 = vld [vmem:[%s0 + $0x16c] sm:$0xf]
  %v238 = vld [vmem:[%s0 + $0x170] sm:$0xf]
  %v239 = vld [vmem:[%s0 + $0x174] sm:$0xf]
  %v240 = vld [vmem:[%s0 + $0x178] sm:$0xf]
  %v241 = vld [vmem:[%s0 + $0x17c] sm:$0xf]
  %v242 = vld [vmem:[%s0 + $0x180] sm:$0xf]
  %v243 = vld [vmem:[%s0 + $0x184] sm:$0xf]
  %v244 = vld [vmem:[%s0 + $0x188] sm:$0xf]
  %v245 = vld [vmem:[%s0 + $0x18c] sm:$0xf]
  %v246 = vld [vmem:[%s0 + $0x190] sm:$0xf]
  %v247 = vld [vmem:[%s0 + $0x194] sm:$0xf]
  %v248 = vld [vmem:[%s0 + $0x198] sm:$0xf]
  %v249 = vld [vmem:[%s0 + $0x19c] sm:$0xf]
  %v250 = vld [vmem:[%s0 + $0x1a0] sm:$0xf]
  %v251 = vld [vmem:[%s0 + $0x1a4] sm:$0xf]
  %v252 = vld [vmem:[%s0 + $0x1a8] sm:$0xf]
  %v253 = vld [vmem:[%s0 + $0x1ac] sm:$0xf]
  %v254 = vld [vmem:[%s0 + $0x1b0] sm:$0xf]
  %v255 = vld [vmem:[%s0 + $0x1b4] sm:$0xf]
  %v256 = vld [vmem:[%s0 + $0x1b8] sm:$0xf]
  %v257 = vld [vmem:[%s0 + $0x1bc] sm:$0xf]
  %v258 = vld [vmem:[%s0 + $0x1c0] sm:$0xf]
  %v259 = vld [vmem:[%s0 + $0x1c4] sm:$0xf]
  %v260 = vld [vmem:[%s0 + $0x1c8] sm:$0xf]
  %v261 = vld [vmem:[%s0 + $0x1cc] sm:$0xf]
  %v262 = vld [vmem:[%s0 + $0x1d0] sm:$0xf]
  %v263 = vld [vmem:[%s0 + $0x1d4] sm:$0xf]
  %v264 = vld [vmem:[%s0 + $0x1d8] sm:$0xf]
  %v265 = vld [vmem:[%s0 + $0x1dc] sm:$0xf]
  %v266 = vld [vmem:[%s0 + $0x1e0] sm:$0xf]
  %v267 = vld [vmem:[%s0 + $0x1e4] sm:$0xf]
  %v268 = vld [vmem:[%s0 + $0x1e8] sm:$0xf]
  %v269 = vld [vmem:[%s0 + $0x1ec] sm:$0xf]
  %v270 = vld [vmem:[%s0 + $0x1f0] sm:$0xf]
  %v271 = vld [vmem:[%s0 + $0x1f4] sm:$0xf]
  %v272 = vld [vmem:[%s0 + $0x1f8] sm:$0xf]
  %v273 = vld [vmem:[%s0 + $0x1fc] sm:$0xf]
  %v274 = vld [vmem:[%s0 + $0x200] sm:$0xf]
  %v275 = vld [vmem:[%s0 + $0x204] sm:$0xf]
  %v276 = vld [vmem:[%s0 + $0x208] sm:$0xf]
  %v277 = vld [vmem:[%s0 + $0x20c] sm:$0xf]
  %v278 = vld [vmem:[%s0 + $0x210] sm:$0xf]
  %v279 = vld [vmem:[%s0 + $0x214] sm:$0xf]
  %v280 = vld [vmem:[%s0 + $0x218] sm:$0xf]
  %v281 = vld [vmem:[%s0 + $0x21c] sm:$0xf]
  %v282 = vld [vmem:[%s0 + $0x220] sm:$0xf]
  %v283 = vld [vmem:[%s0 + $0x224] sm:$0xf]
  %v284 = vld [vmem:[%s0 + $0x228] sm:$0xf]
  %v285 = vld [vmem:[%s0 + $0x22c] sm:$0xf]
  %v286 = vld [vmem:[%s0 + $0x230] sm:$0xf]
  %v287 = vld [vmem:[%s0 + $0x234] sm:$0xf]
  %v288 = vld [vmem:[%s0 + $0x238] sm:$0xf]
  %v289 = vld [vmem:[%s0 + $0x23c] sm:$0xf]
  %v290 = vld [vmem:[%s0 + $0x240] sm:$0xf]
  %v291 = vld [vmem:[%s0 + $0x244] sm:$0xf]
  %v292 = vld [vmem:[%s0 + $0x248] sm:$0xf]
  %v293 = vld [vmem:[%s0 + $0x24c] sm:$0xf]
  %v294 = vld [vmem:[%s0 + $0x250] sm:$0xf]
  %v295 = vld [vmem:[%s0 + $0x254] sm:$0xf]
  %v296 = vld [vmem:[%s0 + $0x258] sm:$0xf]
  %v297 = vld [vmem:[%s0 + $0x25c] sm:$0xf]
  %v298 = vld [vmem:[%s0 + $0x260] sm:$0xf]
  %v299 = vld [vmem:[%s0 + $0x264] sm:$0xf]
  %v300 = vld [vmem:[%s0 + $0x268] sm:$0xf]
  %v301 = vld [vmem:[%s0 + $0x26c] sm:$0xf]
  %v302 = vld [vmem:[%s0 + $0x270] sm:$0xf]
  %v303 = vld [vmem:[%s0 + $0x274] sm:$0xf]
  %v304 = vld [vmem:[%s0 + $0x278] sm:$0xf]
  %v305 = vld [vmem:[%s0 + $0x27c] sm:$0xf]
  %v306 = vld [vmem:[%s0 + $0x280] sm:$0xf]
  %v307 = vld [vmem:[%s0 + $0x284] sm:$0xf]
  %v308 = vld [vmem:[%s0 + $0x288] sm:$0xf]
  %v309 = vld [vmem:[%s0 + $0x28c] sm:$0xf]
  %v310 = vld [vmem:[%s0 + $0x290] sm:$0xf]
  %v311 = vld [vmem:[%s0 + $0x294] sm:$0xf]
  %v312 = vld [vmem:[%s0 + $0x298] sm:$0xf]
  %v313 = vld [vmem:[%s0 + $0x29c] sm:$0xf]
  %v314 = vld [vmem:[%s0 + $0x2a0] sm:$0xf]
  %v315 = vld [vmem:[%s0 + $0x2a4] sm:$0xf]
  %v316 = vld [vmem:[%s0 + $0x2a8] sm:$0xf]
  %v317 = vld [vmem:[%s0 + $0x2ac] sm:$0xf]
  %v318 = vld [vmem:[%s0 + $0x2b0] sm:$0xf]
  %v319 = vld [vmem:[%s0 + $0x2b4] sm:$0xf]
  %v320 = vld [vmem:[%s0 + $0x2b8] sm:$0xf]
  %v321 = vld [vmem:[%s0 + $0x2bc] sm:$0xf]
  %v322 = vld [vmem:[%s0 + $0x2c0] sm:$0xf]
  %v323 = vld [vmem:[%s0 + $0x2c4] sm:$0xf]
  %v324 = vld [vmem:[%s0 + $0x2c8] sm:$0xf]
  %v325 = vld [vmem:[%s0 + $0x2cc] sm:$0xf]
  %v326 = vld [vmem:[%s0 + $0x2d0] sm:$0xf]
  %v327 = vld [vmem:[%s0 + $0x2d4] sm:$0xf]
  %v328 = vld [vmem:[%s0 + $0x2d8] sm:$0xf]
  %v329 = vld [vmem:[%s0 + $0x2dc] sm:$0xf]
  %v330 = vld [vmem:[%s0 + $0x2e0] sm:$0xf]
  %v331 = vld [vmem:[%s0 + $0x2e4] sm:$0xf]
  %v332 = vld [vmem:[%s0 + $0x2e8] sm:$0xf]
  %v333 = vld [vmem:[%s0 + $0x2ec] sm:$0xf]
  %v334 = vld [vmem:[%s0 + $0x2f0] sm:$0xf]
  %v335 = vld [vmem:[%s0 + $0x2f4] sm:$0xf]
  %v336 = vld [vmem:[%s0 + $0x2f8] sm:$0xf]
  %v337 = vld [vmem:[%s0 + $0x2fc] sm:$0xf]
  %v338 = vld [vmem:[%s0 + $0x300] sm:$0xf]
  %v339 = vld [vmem:[%s0 + $0x304] sm:$0xf]
  %v340 = vld [vmem:[%s0 + $0x308] sm:$0xf]
  %v341 = vld [vmem:[%s0 + $0x30c] sm:$0xf]
  %v342 = vld [vmem:[%s0 + $0x310] sm:$0xf]
  %v343 = vld [vmem:[%s0 + $0x314] sm:$0xf]
  %v344 = vld [vmem:[%s0 + $0x318] sm:$0xf]
  %v345 = vld [vmem:[%s0 + $0x31c] sm:$0xf]
  %v346 = vld [vmem:[%s0 + $0x320] sm:$0xf]
  %v347 = vld [vmem:[%s0 + $0x324] sm:$0xf]
  %v348 = vld [vmem:[%s0 + $0x328] sm:$0xf]
  %v349 = vld [vmem:[%s0 + $0x32c] sm:$0xf]
  %v350 = vld [vmem:[%s0 + $0x330] sm:$0xf]
  %v351 = vld [vmem:[%s0 + $0x334] sm:$0xf]
  %v352 = vld [vmem:[%s0 + $0x338] sm:$0xf]
  %v353 = vld [vmem:[%s0 + $0x33c] sm:$0xf]
  %v354 = vld [vmem:[%s0 + $0x340] sm:$0xf]
  %v355 = vld [vmem:[%s0 + $0x344] sm:$0xf]
  %v356 = vld [vmem:[%s0 + $0x348] sm:$0xf]
  %v357 = vld [vmem:[%s0 + $0x34c] sm:$0xf]
  %v358 = vld [vmem:[%s0 + $0x350] sm:$0xf]
  %v359 = vld [vmem:[%s0 + $0x354] sm:$0xf]
  %v360 = vld [vmem:[%s0 + $0x358] sm:$0xf]
  %v361 = vld [vmem:[%s0 + $0x35c] sm:$0xf]
  %v362 = vld [vmem:[%s0 + $0x360] sm:$0xf]
  %v363 = vld [vmem:[%s0 + $0x364] sm:$0xf]
  %v364 = vld [vmem:[%s0 + $0x368] sm:$0xf]
  %v365 = vld [vmem:[%s0 + $0x36c] sm:$0xf]
  %v366 = vld [vmem:[%s0 + $0x370] sm:$0xf]
  %v367 = vld [vmem:[%s0 + $0x374] sm:$0xf]
  %v368 = vld [vmem:[%s0 + $0x378] sm:$0xf]
  %v369 = vld [vmem:[%s0 + $0x37c] sm:$0xf]
  %v370 = vld [vmem:[%s0 + $0x380] sm:$0xf]
  %v371 = vld [vmem:[%s0 + $0x384] sm:$0xf]
  %v372 = vld [vmem:[%s0 + $0x388] sm:$0xf]
  %v373 = vld [vmem:[%s0 + $0x38c] sm:$0xf]
  %v374 = vld [vmem:[%s0 + $0x390] sm:$0xf]
  %v375 = vld [vmem:[%s0 + $0x394] sm:$0xf]
  %v376 = vld [vmem:[%s0 + $0x398] sm:$0xf]
  %v377 = vld [vmem:[%s0 + $0x39c] sm:$0xf]
  %v378 = vld [vmem:[%s0 + $0x3a0] sm:$0xf]
  %v379 = vld [vmem:[%s0 + $0x3a4] sm:$0xf]
  %v380 = vld [vmem:[%s0 + $0x3a8] sm:$0xf]
  %v381 = vld [vmem:[%s0 + $0x3ac] sm:$0xf]
  %v382 = vld [vmem:[%s0 + $0x3b0] sm:$0xf]
  %v383 = vld [vmem:[%s0 + $0x3b4] sm:$0xf]
  %v384 = vld [vmem:[%s0 + $0x3b8] sm:$0xf]
  %v385 = vld [vmem:[%s0 + $0x3bc] sm:$0xf]
  %v386 = vld [vmem:[%s0 + $0x3c0] sm:$0xf]
  %v387 = vld [vmem:[%s0 + $0x3c4] sm:$0xf]
  %v388 = vld [vmem:[%s0 + $0x3c8] sm:$0xf]
  %v389 = vld [vmem:[%s0 + $0x3cc] sm:$0xf]
  %v390 = vld [vmem:[%s0 + $0x3d0] sm:$0xf]
  %v391 = vld [vmem:[%s0 + $0x3d4] sm:$0xf]
  %v392 = vld [vmem:[%s0 + $0x3d8] sm:$0xf]
  %v393 = vld [vmem:[%s0 + $0x3dc] sm:$0xf]
  %v394 = vld [vmem:[%s0 + $0x3e0] sm:$0xf]
  %v395 = vld [vmem:[%s0 + $0x3e4] sm:$0xf]
  %v396 = vld [vmem:[%s0 + $0x3e8] sm:$0xf]
  %v397 = vld [vmem:[%s0 + $0x3ec] sm:$0xf]
  %v398 = vld [vmem:[%s0 + $0x3f0] sm:$0xf]
  %v399 = vld [vmem:[%s0 + $0x3f4] sm:$0xf]
  %v400 = vld [vmem:[%s0 + $0x3f8] sm:$0xf]
  %v401 = vld [vmem:[%s0 + $0x3fc] sm:$0xf]
  %v530 = vunpack.c.l.b16 %v18
  %v531 = vunpack.c.h.b16 %v18
  %v532 = vunpack.c.l.b16 %v19
  %v533 = vunpack.c.h.b16 %v19
  %v534 = vunpack.c.l.b16 %v20
  %v535 = vunpack.c.h.b16 %v20
  %v536 = vunpack.c.l.b16 %v21
  %v537 = vunpack.c.h.b16 %v21
  %v538 = vunpack.c.l.b16 %v22
  %v539 = vunpack.c.h.b16 %v22
  %v540 = vunpack.c.l.b16 %v23
  %v541 = vunpack.c.h.b16 %v23
  %v542 = vunpack.c.l.b16 %v24
  %v543 = vunpack.c.h.b16 %v24
  %v544 = vunpack.c.l.b16 %v25
  %v545 = vunpack.c.h.b16 %v25
  %v546 = vunpack.c.l.b16 %v26
  %v547 = vunpack.c.h.b16 %v26
  %v548 = vunpack.c.l.b16 %v27
  %v549 = vunpack.c.h.b16 %v27
  %v550 = vunpack.c.l.b16 %v28
  %v551 = vunpack.c.h.b16 %v28
  %v552 = vunpack.c.l.b16 %v29
  %v553 = vunpack.c.h.b16 %v29
  %v554 = vunpack.c.l.b16 %v30
  %v555 = vunpack.c.h.b16 %v30
  %v556 = vunpack.c.l.b16 %v31
  %v557 = vunpack.c.h.b16 %v31
  %v558 = vunpack.c.l.b16 %v32
  %v559 = vunpack.c.h.b16 %v32
  %v560 = vunpack.c.l.b16 %v33
  %v561 = vunpack.c.h.b16 %v33
  %v562 = vunpack.c.l.b16 %v34
  %v563 = vunpack.c.h.b16 %v34
  %v564 = vunpack.c.l.b16 %v35
  %v565 = vunpack.c.h.b16 %v35
  %v566 = vunpack.c.l.b16 %v36
  %v567 = vunpack.c.h.b16 %v36
  %v568 = vunpack.c.l.b16 %v37
  %v569 = vunpack.c.h.b16 %v37
  %v570 = vunpack.c.l.b16 %v38
  %v571 = vunpack.c.h.b16 %v38
  %v572 = vunpack.c.l.b16 %v39
  %v573 = vunpack.c.h.b16 %v39
  %v574 = vunpack.c.l.b16 %v40
  %v575 = vunpack.c.h.b16 %v40
  %v576 = vunpack.c.l.b16 %v41
  %v577 = vunpack.c.h.b16 %v41
  %v578 = vunpack.c.l.b16 %v42
  %v579 = vunpack.c.h.b16 %v42
  %v580 = vunpack.c.l.b16 %v43
  %v581 = vunpack.c.h.b16 %v43
  %v582 = vunpack.c.l.b16 %v44
  %v583 = vunpack.c.h.b16 %v44
  %v584 = vunpack.c.l.b16 %v45
  %v585 = vunpack.c.h.b16 %v45
  %v586 = vunpack.c.l.b16 %v46
  %v587 = vunpack.c.h.b16 %v46
  %v588 = vunpack.c.l.b16 %v47
  %v589 = vunpack.c.h.b16 %v47
  %v590 = vunpack.c.l.b16 %v48
  %v591 = vunpack.c.h.b16 %v48
  %v592 = vunpack.c.l.b16 %v49
  %v593 = vunpack.c.h.b16 %v49
  %v594 = vunpack.c.l.b16 %v50
  %v595 = vunpack.c.h.b16 %v50
  %v596 = vunpack.c.l.b16 %v51
  %v597 = vunpack.c.h.b16 %v51
  %v598 = vunpack.c.l.b16 %v52
  %v599 = vunpack.c.h.b16 %v52
  %v600 = vunpack.c.l.b16 %v53
  %v601 = vunpack.c.h.b16 %v53
  %v602 = vunpack.c.l.b16 %v54
  %v603 = vunpack.c.h.b16 %v54
  %v604 = vunpack.c.l.b16 %v55
  %v605 = vunpack.c.h.b16 %v55
  %v606 = vunpack.c.l.b16 %v56
  %v607 = vunpack.c.h.b16 %v56
  %v608 = vunpack.c.l.b16 %v57
  %v609 = vunpack.c.h.b16 %v57
  %v610 = vunpack.c.l.b16 %v58
  %v611 = vunpack.c.h.b16 %v58
  %v612 = vunpack.c.l.b16 %v59
  %v613 = vunpack.c.h.b16 %v59
  %v614 = vunpack.c.l.b16 %v60
  %v615 = vunpack.c.h.b16 %v60
  %v616 = vunpack.c.l.b16 %v61
  %v617 = vunpack.c.h.b16 %v61
  %v618 = vunpack.c.l.b16 %v62
  %v619 = vunpack.c.h.b16 %v62
  %v620 = vunpack.c.l.b16 %v63
  %v621 = vunpack.c.h.b16 %v63
  %v622 = vunpack.c.l.b16 %v64
  %v623 = vunpack.c.h.b16 %v64
  %v624 = vunpack.c.l.b16 %v65
  %v625 = vunpack.c.h.b16 %v65
  %v626 = vunpack.c.l.b16 %v66
  %v627 = vunpack.c.h.b16 %v66
  %v628 = vunpack.c.l.b16 %v67
  %v629 = vunpack.c.h.b16 %v67
  %v630 = vunpack.c.l.b16 %v68
  %v631 = vunpack.c.h.b16 %v68
  %v632 = vunpack.c.l.b16 %v69
  %v633 = vunpack.c.h.b16 %v69
  %v634 = vunpack.c.l.b16 %v70
  %v635 = vunpack.c.h.b16 %v70
  %v636 = vunpack.c.l.b16 %v71
  %v637 = vunpack.c.h.b16 %v71
  %v638 = vunpack.c.l.b16 %v72
  %v639 = vunpack.c.h.b16 %v72
  %v640 = vunpack.c.l.b16 %v73
  %v641 = vunpack.c.h.b16 %v73
  %v642 = vunpack.c.l.b16 %v74
  %v643 = vunpack.c.h.b16 %v74
  %v644 = vunpack.c.l.b16 %v75
  %v645 = vunpack.c.h.b16 %v75
  %v646 = vunpack.c.l.b16 %v76
  %v647 = vunpack.c.h.b16 %v76
  %v648 = vunpack.c.l.b16 %v77
  %v649 = vunpack.c.h.b16 %v77
  %v650 = vunpack.c.l.b16 %v78
  %v651 = vunpack.c.h.b16 %v78
  %v652 = vunpack.c.l.b16 %v79
  %v653 = vunpack.c.h.b16 %v79
  %v654 = vunpack.c.l.b16 %v80
  %v655 = vunpack.c.h.b16 %v80
  %v656 = vunpack.c.l.b16 %v81
  %v657 = vunpack.c.h.b16 %v81
  %v658 = vunpack.c.l.b16 %v82
  %v659 = vunpack.c.h.b16 %v82
  %v660 = vunpack.c.l.b16 %v83
  %v661 = vunpack.c.h.b16 %v83
  %v662 = vunpack.c.l.b16 %v84
  %v663 = vunpack.c.h.b16 %v84
  %v664 = vunpack.c.l.b16 %v85
  %v665 = vunpack.c.h.b16 %v85
  %v666 = vunpack.c.l.b16 %v86
  %v667 = vunpack.c.h.b16 %v86
  %v668 = vunpack.c.l.b16 %v87
  %v669 = vunpack.c.h.b16 %v87
  %v670 = vunpack.c.l.b16 %v88
  %v671 = vunpack.c.h.b16 %v88
  %v672 = vunpack.c.l.b16 %v89
  %v673 = vunpack.c.h.b16 %v89
  %v674 = vunpack.c.l.b16 %v90
  %v675 = vunpack.c.h.b16 %v90
  %v676 = vunpack.c.l.b16 %v91
  %v677 = vunpack.c.h.b16 %v91
  %v678 = vunpack.c.l.b16 %v92
  %v679 = vunpack.c.h.b16 %v92
  %v680 = vunpack.c.l.b16 %v93
  %v681 = vunpack.c.h.b16 %v93
  %v682 = vunpack.c.l.b16 %v94
  %v683 = vunpack.c.h.b16 %v94
  %v684 = vunpack.c.l.b16 %v95
  %v685 = vunpack.c.h.b16 %v95
  %v686 = vunpack.c.l.b16 %v96
  %v687 = vunpack.c.h.b16 %v96
  %v688 = vunpack.c.l.b16 %v97
  %v689 = vunpack.c.h.b16 %v97
  %v690 = vunpack.c.l.b16 %v98
  %v691 = vunpack.c.h.b16 %v98
  %v692 = vunpack.c.l.b16 %v99
  %v693 = vunpack.c.h.b16 %v99
  %v694 = vunpack.c.l.b16 %v100
  %v695 = vunpack.c.h.b16 %v100
  %v696 = vunpack.c.l.b16 %v101
  %v697 = vunpack.c.h.b16 %v101
  %v698 = vunpack.c.l.b16 %v102
  %v699 = vunpack.c.h.b16 %v102
  %v700 = vunpack.c.l.b16 %v103
  %v701 = vunpack.c.h.b16 %v103
  %v702 = vunpack.c.l.b16 %v104
  %v703 = vunpack.c.h.b16 %v104
  %v704 = vunpack.c.l.b16 %v105
  %v705 = vunpack.c.h.b16 %v105
  %v706 = vunpack.c.l.b16 %v106
  %v707 = vunpack.c.h.b16 %v106
  %v708 = vunpack.c.l.b16 %v107
  %v709 = vunpack.c.h.b16 %v107
  %v710 = vunpack.c.l.b16 %v108
  %v711 = vunpack.c.h.b16 %v108
  %v712 = vunpack.c.l.b16 %v109
  %v713 = vunpack.c.h.b16 %v109
  %v714 = vunpack.c.l.b16 %v110
  %v715 = vunpack.c.h.b16 %v110
  %v716 = vunpack.c.l.b16 %v111
  %v717 = vunpack.c.h.b16 %v111
  %v718 = vunpack.c.l.b16 %v112
  %v719 = vunpack.c.h.b16 %v112
  %v720 = vunpack.c.l.b16 %v113
  %v721 = vunpack.c.h.b16 %v113
  %v722 = vunpack.c.l.b16 %v114
  %v723 = vunpack.c.h.b16 %v114
  %v724 = vunpack.c.l.b16 %v115
  %v725 = vunpack.c.h.b16 %v115
  %v726 = vunpack.c.l.b16 %v116
  %v727 = vunpack.c.h.b16 %v116
  %v728 = vunpack.c.l.b16 %v117
  %v729 = vunpack.c.h.b16 %v117
  %v730 = vunpack.c.l.b16 %v118
  %v731 = vunpack.c.h.b16 %v118
  %v732 = vunpack.c.l.b16 %v119
  %v733 = vunpack.c.h.b16 %v119
  %v734 = vunpack.c.l.b16 %v120
  %v735 = vunpack.c.h.b16 %v120
  %v736 = vunpack.c.l.b16 %v121
  %v737 = vunpack.c.h.b16 %v121
  %v738 = vunpack.c.l.b16 %v122
  %v739 = vunpack.c.h.b16 %v122
  %v740 = vunpack.c.l.b16 %v123
  %v741 = vunpack.c.h.b16 %v123
  %v742 = vunpack.c.l.b16 %v124
  %v743 = vunpack.c.h.b16 %v124
  %v744 = vunpack.c.l.b16 %v125
  %v745 = vunpack.c.h.b16 %v125
  %v746 = vunpack.c.l.b16 %v126
  %v747 = vunpack.c.h.b16 %v126
  %v748 = vunpack.c.l.b16 %v127
  %v749 = vunpack.c.h.b16 %v127
  %v750 = vunpack.c.l.b16 %v128
  %v751 = vunpack.c.h.b16 %v128
  %v752 = vunpack.c.l.b16 %v129
  %v753 = vunpack.c.h.b16 %v129
  %v754 = vunpack.c.l.b16 %v130
  %v755 = vunpack.c.h.b16 %v130
  %v756 = vunpack.c.l.b16 %v131
  %v757 = vunpack.c.h.b16 %v131
  %v758 = vunpack.c.l.b16 %v132
  %v759 = vunpack.c.h.b16 %v132
  %v760 = vunpack.c.l.b16 %v133
  %v761 = vunpack.c.h.b16 %v133
  %v762 = vunpack.c.l.b16 %v134
  %v763 = vunpack.c.h.b16 %v134
  %v764 = vunpack.c.l.b16 %v135
  %v765 = vunpack.c.h.b16 %v135
  %v766 = vunpack.c.l.b16 %v136
  %v767 = vunpack.c.h.b16 %v136
  %v768 = vunpack.c.l.b16 %v137
  %v769 = vunpack.c.h.b16 %v137
  %v770 = vunpack.c.l.b16 %v138
  %v771 = vunpack.c.h.b16 %v138
  %v772 = vunpack.c.l.b16 %v139
  %v773 = vunpack.c.h.b16 %v139
  %v774 = vunpack.c.l.b16 %v140
  %v775 = vunpack.c.h.b16 %v140
  %v776 = vunpack.c.l.b16 %v141
  %v777 = vunpack.c.h.b16 %v141
  %v778 = vunpack.c.l.b16 %v142
  %v779 = vunpack.c.h.b16 %v142
  %v780 = vunpack.c.l.b16 %v143
  %v781 = vunpack.c.h.b16 %v143
  %v782 = vunpack.c.l.b16 %v144
  %v783 = vunpack.c.h.b16 %v144
  %v784 = vunpack.c.l.b16 %v145
  %v785 = vunpack.c.h.b16 %v145
  %v786 = vpack.c.b16 %v546, %v530
  %v787 = vpack.c.b16 %v547, %v531
  %v788 = vpack.c.b16 %v548, %v532
  %v789 = vpack.c.b16 %v549, %v533
  %v790 = vpack.c.b16 %v550, %v534
  %v791 = vpack.c.b16 %v551, %v535
  %v792 = vpack.c.b16 %v552, %v536
  %v793 = vpack.c.b16 %v553, %v537
  %v794 = vpack.c.b16 %v554, %v538
  %v795 = vpack.c.b16 %v555, %v539
  %v796 = vpack.c.b16 %v556, %v540
  %v797 = vpack.c.b16 %v557, %v541
  %v798 = vpack.c.b16 %v558, %v542
  %v799 = vpack.c.b16 %v559, %v543
  %v800 = vpack.c.b16 %v560, %v544
  %v801 = vpack.c.b16 %v561, %v545
  %v802 = vpack.c.b16 %v578, %v562
  %v803 = vpack.c.b16 %v579, %v563
  %v804 = vpack.c.b16 %v580, %v564
  %v805 = vpack.c.b16 %v581, %v565
  %v806 = vpack.c.b16 %v582, %v566
  %v807 = vpack.c.b16 %v583, %v567
  %v808 = vpack.c.b16 %v584, %v568
  %v809 = vpack.c.b16 %v585, %v569
  %v810 = vpack.c.b16 %v586, %v570
  %v811 = vpack.c.b16 %v587, %v571
  %v812 = vpack.c.b16 %v588, %v572
  %v813 = vpack.c.b16 %v589, %v573
  %v814 = vpack.c.b16 %v590, %v574
  %v815 = vpack.c.b16 %v591, %v575
  %v816 = vpack.c.b16 %v592, %v576
  %v817 = vpack.c.b16 %v593, %v577
  %v818 = vpack.c.b16 %v610, %v594
  %v819 = vpack.c.b16 %v611, %v595
  %v820 = vpack.c.b16 %v612, %v596
  %v821 = vpack.c.b16 %v613, %v597
  %v822 = vpack.c.b16 %v614, %v598
  %v823 = vpack.c.b16 %v615, %v599
  %v824 = vpack.c.b16 %v616, %v600
  %v825 = vpack.c.b16 %v617, %v601
  %v826 = vpack.c.b16 %v618, %v602
  %v827 = vpack.c.b16 %v619, %v603
  %v828 = vpack.c.b16 %v620, %v604
  %v829 = vpack.c.b16 %v621, %v605
  %v830 = vpack.c.b16 %v622, %v606
  %v831 = vpack.c.b16 %v623, %v607
  %v832 = vpack.c.b16 %v624, %v608
  %v833 = vpack.c.b16 %v625, %v609
  %v834 = vpack.c.b16 %v642, %v626
  %v835 = vpack.c.b16 %v643, %v627
  %v836 = vpack.c.b16 %v644, %v628
  %v837 = vpack.c.b16 %v645, %v629
  %v838 = vpack.c.b16 %v646, %v630
  %v839 = vpack.c.b16 %v647, %v631
  %v840 = vpack.c.b16 %v648, %v632
  %v841 = vpack.c.b16 %v649, %v633
  %v842 = vpack.c.b16 %v650, %v634
  %v843 = vpack.c.b16 %v651, %v635
  %v844 = vpack.c.b16 %v652, %v636
  %v845 = vpack.c.b16 %v653, %v637
  %v846 = vpack.c.b16 %v654, %v638
  %v847 = vpack.c.b16 %v655, %v639
  %v848 = vpack.c.b16 %v656, %v640
  %v849 = vpack.c.b16 %v657, %v641
  %v850 = vpack.c.b16 %v674, %v658
  %v851 = vpack.c.b16 %v675, %v659
  %v852 = vpack.c.b16 %v676, %v660
  %v853 = vpack.c.b16 %v677, %v661
  %v854 = vpack.c.b16 %v678, %v662
  %v855 = vpack.c.b16 %v679, %v663
  %v856 = vpack.c.b16 %v680, %v664
  %v857 = vpack.c.b16 %v681, %v665
  %v858 = vpack.c.b16 %v682, %v666
  %v859 = vpack.c.b16 %v683, %v667
  %v860 = vpack.c.b16 %v684, %v668
  %v861 = vpack.c.b16 %v685, %v669
  %v862 = vpack.c.b16 %v686, %v670
  %v863 = vpack.c.b16 %v687, %v671
  %v864 = vpack.c.b16 %v688, %v672
  %v865 = vpack.c.b16 %v689, %v673
  %v866 = vpack.c.b16 %v706, %v690
  %v867 = vpack.c.b16 %v707, %v691
  %v868 = vpack.c.b16 %v708, %v692
  %v869 = vpack.c.b16 %v709, %v693
  %v870 = vpack.c.b16 %v710, %v694
  %v871 = vpack.c.b16 %v711, %v695
  %v872 = vpack.c.b16 %v712, %v696
  %v873 = vpack.c.b16 %v713, %v697
  %v874 = vpack.c.b16 %v714, %v698
  %v875 = vpack.c.b16 %v715, %v699
  %v876 = vpack.c.b16 %v716, %v700
  %v877 = vpack.c.b16 %v717, %v701
  %v878 = vpack.c.b16 %v718, %v702
  %v879 = vpack.c.b16 %v719, %v703
  %v880 = vpack.c.b16 %v720, %v704
  %v881 = vpack.c.b16 %v721, %v705
  %v882 = vpack.c.b16 %v738, %v722
  %v883 = vpack.c.b16 %v739, %v723
  %v884 = vpack.c.b16 %v740, %v724
  %v885 = vpack.c.b16 %v741, %v725
  %v886 = vpack.c.b16 %v742, %v726
  %v887 = vpack.c.b16 %v743, %v727
  %v888 = vpack.c.b16 %v744, %v728
  %v889 = vpack.c.b16 %v745, %v729
  %v890 = vpack.c.b16 %v746, %v730
  %v891 = vpack.c.b16 %v747, %v731
  %v892 = vpack.c.b16 %v748, %v732
  %v893 = vpack.c.b16 %v749, %v733
  %v894 = vpack.c.b16 %v750, %v734
  %v895 = vpack.c.b16 %v751, %v735
  %v896 = vpack.c.b16 %v752, %v736
  %v897 = vpack.c.b16 %v753, %v737
  %v898 = vpack.c.b16 %v770, %v754
  %v899 = vpack.c.b16 %v771, %v755
  %v900 = vpack.c.b16 %v772, %v756
  %v901 = vpack.c.b16 %v773, %v757
  %v902 = vpack.c.b16 %v774, %v758
  %v903 = vpack.c.b16 %v775, %v759
  %v904 = vpack.c.b16 %v776, %v760
  %v905 = vpack.c.b16 %v777, %v761
  %v906 = vpack.c.b16 %v778, %v762
  %v907 = vpack.c.b16 %v779, %v763
  %v908 = vpack.c.b16 %v780, %v764
  %v909 = vpack.c.b16 %v781, %v765
  %v910 = vpack.c.b16 %v782, %v766
  %v911 = vpack.c.b16 %v783, %v767
  %v912 = vpack.c.b16 %v784, %v768
  %v913 = vpack.c.b16 %v785, %v769
  %v1298 = vunpack.c.l.b16 %v146
  %v1299 = vunpack.c.l.b16 %v147
  %v1300 = vunpack.c.l.b16 %v148
  %v1301 = vunpack.c.l.b16 %v149
  %v1302 = vunpack.c.l.b16 %v150
  %v1303 = vunpack.c.l.b16 %v151
  %v1304 = vunpack.c.l.b16 %v152
  %v1305 = vunpack.c.l.b16 %v153
  %v1306 = vunpack.c.l.b16 %v154
  %v1307 = vunpack.c.l.b16 %v155
  %v1308 = vunpack.c.l.b16 %v156
  %v1309 = vunpack.c.l.b16 %v157
  %v1310 = vunpack.c.l.b16 %v158
  %v1311 = vunpack.c.l.b16 %v159
  %v1312 = vunpack.c.l.b16 %v160
  %v1313 = vunpack.c.l.b16 %v161
  %v1314 = vunpack.c.l.b16 %v162
  %v1315 = vunpack.c.l.b16 %v163
  %v1316 = vunpack.c.l.b16 %v164
  %v1317 = vunpack.c.l.b16 %v165
  %v1318 = vunpack.c.l.b16 %v166
  %v1319 = vunpack.c.l.b16 %v167
  %v1320 = vunpack.c.l.b16 %v168
  %v1321 = vunpack.c.l.b16 %v169
  %v1322 = vunpack.c.l.b16 %v170
  %v1323 = vunpack.c.l.b16 %v171
  %v1324 = vunpack.c.l.b16 %v172
  %v1325 = vunpack.c.l.b16 %v173
  %v1326 = vunpack.c.l.b16 %v174
  %v1327 = vunpack.c.l.b16 %v175
  %v1328 = vunpack.c.l.b16 %v176
  %v1329 = vunpack.c.l.b16 %v177
  %v1330 = vunpack.c.l.b16 %v178
  %v1331 = vunpack.c.l.b16 %v179
  %v1332 = vunpack.c.l.b16 %v180
  %v1333 = vunpack.c.l.b16 %v181
  %v1334 = vunpack.c.l.b16 %v182
  %v1335 = vunpack.c.l.b16 %v183
  %v1336 = vunpack.c.l.b16 %v184
  %v1337 = vunpack.c.l.b16 %v185
  %v1338 = vunpack.c.l.b16 %v186
  %v1339 = vunpack.c.l.b16 %v187
  %v1340 = vunpack.c.l.b16 %v188
  %v1341 = vunpack.c.l.b16 %v189
  %v1342 = vunpack.c.l.b16 %v190
  %v1343 = vunpack.c.l.b16 %v191
  %v1344 = vunpack.c.l.b16 %v192
  %v1345 = vunpack.c.l.b16 %v193
  %v1346 = vunpack.c.l.b16 %v194
  %v1347 = vunpack.c.l.b16 %v195
  %v1348 = vunpack.c.l.b16 %v196
  %v1349 = vunpack.c.l.b16 %v197
  %v1350 = vunpack.c.l.b16 %v198
  %v1351 = vunpack.c.l.b16 %v199
  %v1352 = vunpack.c.l.b16 %v200
  %v1353 = vunpack.c.l.b16 %v201
  %v1354 = vunpack.c.l.b16 %v202
  %v1355 = vunpack.c.l.b16 %v203
  %v1356 = vunpack.c.l.b16 %v204
  %v1357 = vunpack.c.l.b16 %v205
  %v1358 = vunpack.c.l.b16 %v206
  %v1359 = vunpack.c.l.b16 %v207
  %v1360 = vunpack.c.l.b16 %v208
  %v1361 = vunpack.c.l.b16 %v209
  %v1362 = vunpack.c.l.b16 %v210
  %v1363 = vunpack.c.l.b16 %v211
  %v1364 = vunpack.c.l.b16 %v212
  %v1365 = vunpack.c.l.b16 %v213
  %v1366 = vunpack.c.l.b16 %v214
  %v1367 = vunpack.c.l.b16 %v215
  %v1368 = vunpack.c.l.b16 %v216
  %v1369 = vunpack.c.l.b16 %v217
  %v1370 = vunpack.c.l.b16 %v218
  %v1371 = vunpack.c.l.b16 %v219
  %v1372 = vunpack.c.l.b16 %v220
  %v1373 = vunpack.c.l.b16 %v221
  %v1374 = vunpack.c.l.b16 %v222
  %v1375 = vunpack.c.l.b16 %v223
  %v1376 = vunpack.c.l.b16 %v224
  %v1377 = vunpack.c.l.b16 %v225
  %v1378 = vunpack.c.l.b16 %v226
  %v1379 = vunpack.c.l.b16 %v227
  %v1380 = vunpack.c.l.b16 %v228
  %v1381 = vunpack.c.l.b16 %v229
  %v1382 = vunpack.c.l.b16 %v230
  %v1383 = vunpack.c.l.b16 %v231
  %v1384 = vunpack.c.l.b16 %v232
  %v1385 = vunpack.c.l.b16 %v233
  %v1386 = vunpack.c.l.b16 %v234
  %v1387 = vunpack.c.l.b16 %v235
  %v1388 = vunpack.c.l.b16 %v236
  %v1389 = vunpack.c.l.b16 %v237
  %v1390 = vunpack.c.l.b16 %v238
  %v1391 = vunpack.c.l.b16 %v239
  %v1392 = vunpack.c.l.b16 %v240
  %v1393 = vunpack.c.l.b16 %v241
  %v1394 = vunpack.c.l.b16 %v242
  %v1395 = vunpack.c.l.b16 %v243
  %v1396 = vunpack.c.l.b16 %v244
  %v1397 = vunpack.c.l.b16 %v245
  %v1398 = vunpack.c.l.b16 %v246
  %v1399 = vunpack.c.l.b16 %v247
  %v1400 = vunpack.c.l.b16 %v248
  %v1401 = vunpack.c.l.b16 %v249
  %v1402 = vunpack.c.l.b16 %v250
  %v1403 = vunpack.c.l.b16 %v251
  %v1404 = vunpack.c.l.b16 %v252
  %v1405 = vunpack.c.l.b16 %v253
  %v1406 = vunpack.c.l.b16 %v254
  %v1407 = vunpack.c.l.b16 %v255
  %v1408 = vunpack.c.l.b16 %v256
  %v1409 = vunpack.c.l.b16 %v257
  %v1410 = vunpack.c.l.b16 %v258
  %v1411 = vunpack.c.l.b16 %v259
  %v1412 = vunpack.c.l.b16 %v260
  %v1413 = vunpack.c.l.b16 %v261
  %v1414 = vunpack.c.l.b16 %v262
  %v1415 = vunpack.c.l.b16 %v263
  %v1416 = vunpack.c.l.b16 %v264
  %v1417 = vunpack.c.l.b16 %v265
  %v1418 = vunpack.c.l.b16 %v266
  %v1419 = vunpack.c.l.b16 %v267
  %v1420 = vunpack.c.l.b16 %v268
  %v1421 = vunpack.c.l.b16 %v269
  %v1422 = vunpack.c.l.b16 %v270
  %v1423 = vunpack.c.l.b16 %v271
  %v1424 = vunpack.c.l.b16 %v272
  %v1425 = vunpack.c.l.b16 %v273
  %v1426 = vunpack.c.l.b16 %v274
  %v1427 = vunpack.c.l.b16 %v275
  %v1428 = vunpack.c.l.b16 %v276
  %v1429 = vunpack.c.l.b16 %v277
  %v1430 = vunpack.c.l.b16 %v278
  %v1431 = vunpack.c.l.b16 %v279
  %v1432 = vunpack.c.l.b16 %v280
  %v1433 = vunpack.c.l.b16 %v281
  %v1434 = vunpack.c.l.b16 %v282
  %v1435 = vunpack.c.l.b16 %v283
  %v1436 = vunpack.c.l.b16 %v284
  %v1437 = vunpack.c.l.b16 %v285
  %v1438 = vunpack.c.l.b16 %v286
  %v1439 = vunpack.c.l.b16 %v287
  %v1440 = vunpack.c.l.b16 %v288
  %v1441 = vunpack.c.l.b16 %v289
  %v1442 = vunpack.c.l.b16 %v290
  %v1443 = vunpack.c.l.b16 %v291
  %v1444 = vunpack.c.l.b16 %v292
  %v1445 = vunpack.c.l.b16 %v293
  %v1446 = vunpack.c.l.b16 %v294
  %v1447 = vunpack.c.l.b16 %v295
  %v1448 = vunpack.c.l.b16 %v296
  %v1449 = vunpack.c.l.b16 %v297
  %v1450 = vunpack.c.l.b16 %v298
  %v1451 = vunpack.c.l.b16 %v299
  %v1452 = vunpack.c.l.b16 %v300
  %v1453 = vunpack.c.l.b16 %v301
  %v1454 = vunpack.c.l.b16 %v302
  %v1455 = vunpack.c.l.b16 %v303
  %v1456 = vunpack.c.l.b16 %v304
  %v1457 = vunpack.c.l.b16 %v305
  %v1458 = vunpack.c.l.b16 %v306
  %v1459 = vunpack.c.l.b16 %v307
  %v1460 = vunpack.c.l.b16 %v308
  %v1461 = vunpack.c.l.b16 %v309
  %v1462 = vunpack.c.l.b16 %v310
  %v1463 = vunpack.c.l.b16 %v311
  %v1464 = vunpack.c.l.b16 %v312
  %v1465 = vunpack.c.l.b16 %v313
  %v1466 = vunpack.c.l.b16 %v314
  %v1467 = vunpack.c.l.b16 %v315
  %v1468 = vunpack.c.l.b16 %v316
  %v1469 = vunpack.c.l.b16 %v317
  %v1470 = vunpack.c.l.b16 %v318
  %v1471 = vunpack.c.l.b16 %v319
  %v1472 = vunpack.c.l.b16 %v320
  %v1473 = vunpack.c.l.b16 %v321
  %v1474 = vunpack.c.l.b16 %v322
  %v1475 = vunpack.c.l.b16 %v323
  %v1476 = vunpack.c.l.b16 %v324
  %v1477 = vunpack.c.l.b16 %v325
  %v1478 = vunpack.c.l.b16 %v326
  %v1479 = vunpack.c.l.b16 %v327
  %v1480 = vunpack.c.l.b16 %v328
  %v1481 = vunpack.c.l.b16 %v329
  %v1482 = vunpack.c.l.b16 %v330
  %v1483 = vunpack.c.l.b16 %v331
  %v1484 = vunpack.c.l.b16 %v332
  %v1485 = vunpack.c.l.b16 %v333
  %v1486 = vunpack.c.l.b16 %v334
  %v1487 = vunpack.c.l.b16 %v335
  %v1488 = vunpack.c.l.b16 %v336
  %v1489 = vunpack.c.l.b16 %v337
  %v1490 = vunpack.c.l.b16 %v338
  %v1491 = vunpack.c.l.b16 %v339
  %v1492 = vunpack.c.l.b16 %v340
  %v1493 = vunpack.c.l.b16 %v341
  %v1494 = vunpack.c.l.b16 %v342
  %v1495 = vunpack.c.l.b16 %v343
  %v1496 = vunpack.c.l.b16 %v344
  %v1497 = vunpack.c.l.b16 %v345
  %v1498 = vunpack.c.l.b16 %v346
  %v1499 = vunpack.c.l.b16 %v347
  %v1500 = vunpack.c.l.b16 %v348
  %v1501 = vunpack.c.l.b16 %v349
  %v1502 = vunpack.c.l.b16 %v350
  %v1503 = vunpack.c.l.b16 %v351
  %v1504 = vunpack.c.l.b16 %v352
  %v1505 = vunpack.c.l.b16 %v353
  %v1506 = vunpack.c.l.b16 %v354
  %v1507 = vunpack.c.l.b16 %v355
  %v1508 = vunpack.c.l.b16 %v356
  %v1509 = vunpack.c.l.b16 %v357
  %v1510 = vunpack.c.l.b16 %v358
  %v1511 = vunpack.c.l.b16 %v359
  %v1512 = vunpack.c.l.b16 %v360
  %v1513 = vunpack.c.l.b16 %v361
  %v1514 = vunpack.c.l.b16 %v362
  %v1515 = vunpack.c.l.b16 %v363
  %v1516 = vunpack.c.l.b16 %v364
  %v1517 = vunpack.c.l.b16 %v365
  %v1518 = vunpack.c.l.b16 %v366
  %v1519 = vunpack.c.l.b16 %v367
  %v1520 = vunpack.c.l.b16 %v368
  %v1521 = vunpack.c.l.b16 %v369
  %v1522 = vunpack.c.l.b16 %v370
  %v1523 = vunpack.c.l.b16 %v371
  %v1524 = vunpack.c.l.b16 %v372
  %v1525 = vunpack.c.l.b16 %v373
  %v1526 = vunpack.c.l.b16 %v374
  %v1527 = vunpack.c.l.b16 %v375
  %v1528 = vunpack.c.l.b16 %v376
  %v1529 = vunpack.c.l.b16 %v377
  %v1530 = vunpack.c.l.b16 %v378
  %v1531 = vunpack.c.l.b16 %v379
  %v1532 = vunpack.c.l.b16 %v380
  %v1533 = vunpack.c.l.b16 %v381
  %v1534 = vunpack.c.l.b16 %v382
  %v1535 = vunpack.c.l.b16 %v383
  %v1536 = vunpack.c.l.b16 %v384
  %v1537 = vunpack.c.l.b16 %v385
  %v1538 = vunpack.c.l.b16 %v386
  %v1539 = vunpack.c.l.b16 %v387
  %v1540 = vunpack.c.l.b16 %v388
  %v1541 = vunpack.c.l.b16 %v389
  %v1542 = vunpack.c.l.b16 %v390
  %v1543 = vunpack.c.l.b16 %v391
  %v1544 = vunpack.c.l.b16 %v392
  %v1545 = vunpack.c.l.b16 %v393
  %v1546 = vunpack.c.l.b16 %v394
  %v1547 = vunpack.c.l.b16 %v395
  %v1548 = vunpack.c.l.b16 %v396
  %v1549 = vunpack.c.l.b16 %v397
  %v1550 = vunpack.c.l.b16 %v398
  %v1551 = vunpack.c.l.b16 %v399
  %v1552 = vunpack.c.l.b16 %v400
  %v1553 = vunpack.c.l.b16 %v401
  %v1554 = vpack.c.b16 %v1299, %v1298
  %v1555 = vpack.c.b16 %v1301, %v1300
  %v1556 = vpack.c.b16 %v1303, %v1302
  %v1557 = vpack.c.b16 %v1305, %v1304
  %v1558 = vpack.c.b16 %v1307, %v1306
  %v1559 = vpack.c.b16 %v1309, %v1308
  %v1560 = vpack.c.b16 %v1311, %v1310
  %v1561 = vpack.c.b16 %v1313, %v1312
  %v1562 = vpack.c.b16 %v1315, %v1314
  %v1563 = vpack.c.b16 %v1317, %v1316
  %v1564 = vpack.c.b16 %v1319, %v1318
  %v1565 = vpack.c.b16 %v1321, %v1320
  %v1566 = vpack.c.b16 %v1323, %v1322
  %v1567 = vpack.c.b16 %v1325, %v1324
  %v1568 = vpack.c.b16 %v1327, %v1326
  %v1569 = vpack.c.b16 %v1329, %v1328
  %v1570 = vpack.c.b16 %v1331, %v1330
  %v1571 = vpack.c.b16 %v1333, %v1332
  %v1572 = vpack.c.b16 %v1335, %v1334
  %v1573 = vpack.c.b16 %v1337, %v1336
  %v1574 = vpack.c.b16 %v1339, %v1338
  %v1575 = vpack.c.b16 %v1341, %v1340
  %v1576 = vpack.c.b16 %v1343, %v1342
  %v1577 = vpack.c.b16 %v1345, %v1344
  %v1578 = vpack.c.b16 %v1347, %v1346
  %v1579 = vpack.c.b16 %v1349, %v1348
  %v1580 = vpack.c.b16 %v1351, %v1350
  %v1581 = vpack.c.b16 %v1353, %v1352
  %v1582 = vpack.c.b16 %v1355, %v1354
  %v1583 = vpack.c.b16 %v1357, %v1356
  %v1584 = vpack.c.b16 %v1359, %v1358
  %v1585 = vpack.c.b16 %v1361, %v1360
  %v1586 = vpack.c.b16 %v1363, %v1362
  %v1587 = vpack.c.b16 %v1365, %v1364
  %v1588 = vpack.c.b16 %v1367, %v1366
  %v1589 = vpack.c.b16 %v1369, %v1368
  %v1590 = vpack.c.b16 %v1371, %v1370
  %v1591 = vpack.c.b16 %v1373, %v1372
  %v1592 = vpack.c.b16 %v1375, %v1374
  %v1593 = vpack.c.b16 %v1377, %v1376
  %v1594 = vpack.c.b16 %v1379, %v1378
  %v1595 = vpack.c.b16 %v1381, %v1380
  %v1596 = vpack.c.b16 %v1383, %v1382
  %v1597 = vpack.c.b16 %v1385, %v1384
  %v1598 = vpack.c.b16 %v1387, %v1386
  %v1599 = vpack.c.b16 %v1389, %v1388
  %v1600 = vpack.c.b16 %v1391, %v1390
  %v1601 = vpack.c.b16 %v1393, %v1392
  %v1602 = vpack.c.b16 %v1395, %v1394
  %v1603 = vpack.c.b16 %v1397, %v1396
  %v1604 = vpack.c.b16 %v1399, %v1398
  %v1605 = vpack.c.b16 %v1401, %v1400
  %v1606 = vpack.c.b16 %v1403, %v1402
  %v1607 = vpack.c.b16 %v1405, %v1404
  %v1608 = vpack.c.b16 %v1407, %v1406
  %v1609 = vpack.c.b16 %v1409, %v1408
  %v1610 = vpack.c.b16 %v1411, %v1410
  %v1611 = vpack.c.b16 %v1413, %v1412
  %v1612 = vpack.c.b16 %v1415, %v1414
  %v1613 = vpack.c.b16 %v1417, %v1416
  %v1614 = vpack.c.b16 %v1419, %v1418
  %v1615 = vpack.c.b16 %v1421, %v1420
  %v1616 = vpack.c.b16 %v1423, %v1422
  %v1617 = vpack.c.b16 %v1425, %v1424
  %v1618 = vpack.c.b16 %v1427, %v1426
  %v1619 = vpack.c.b16 %v1429, %v1428
  %v1620 = vpack.c.b16 %v1431, %v1430
  %v1621 = vpack.c.b16 %v1433, %v1432
  %v1622 = vpack.c.b16 %v1435, %v1434
  %v1623 = vpack.c.b16 %v1437, %v1436
  %v1624 = vpack.c.b16 %v1439, %v1438
  %v1625 = vpack.c.b16 %v1441, %v1440
  %v1626 = vpack.c.b16 %v1443, %v1442
  %v1627 = vpack.c.b16 %v1445, %v1444
  %v1628 = vpack.c.b16 %v1447, %v1446
  %v1629 = vpack.c.b16 %v1449, %v1448
  %v1630 = vpack.c.b16 %v1451, %v1450
  %v1631 = vpack.c.b16 %v1453, %v1452
  %v1632 = vpack.c.b16 %v1455, %v1454
  %v1633 = vpack.c.b16 %v1457, %v1456
  %v1634 = vpack.c.b16 %v1459, %v1458
  %v1635 = vpack.c.b16 %v1461, %v1460
  %v1636 = vpack.c.b16 %v1463, %v1462
  %v1637 = vpack.c.b16 %v1465, %v1464
  %v1638 = vpack.c.b16 %v1467, %v1466
  %v1639 = vpack.c.b16 %v1469, %v1468
  %v1640 = vpack.c.b16 %v1471, %v1470
  %v1641 = vpack.c.b16 %v1473, %v1472
  %v1642 = vpack.c.b16 %v1475, %v1474
  %v1643 = vpack.c.b16 %v1477, %v1476
  %v1644 = vpack.c.b16 %v1479, %v1478
  %v1645 = vpack.c.b16 %v1481, %v1480
  %v1646 = vpack.c.b16 %v1483, %v1482
  %v1647 = vpack.c.b16 %v1485, %v1484
  %v1648 = vpack.c.b16 %v1487, %v1486
  %v1649 = vpack.c.b16 %v1489, %v1488
  %v1650 = vpack.c.b16 %v1491, %v1490
  %v1651 = vpack.c.b16 %v1493, %v1492
  %v1652 = vpack.c.b16 %v1495, %v1494
  %v1653 = vpack.c.b16 %v1497, %v1496
  %v1654 = vpack.c.b16 %v1499, %v1498
  %v1655 = vpack.c.b16 %v1501, %v1500
  %v1656 = vpack.c.b16 %v1503, %v1502
  %v1657 = vpack.c.b16 %v1505, %v1504
  %v1658 = vpack.c.b16 %v1507, %v1506
  %v1659 = vpack.c.b16 %v1509, %v1508
  %v1660 = vpack.c.b16 %v1511, %v1510
  %v1661 = vpack.c.b16 %v1513, %v1512
  %v1662 = vpack.c.b16 %v1515, %v1514
  %v1663 = vpack.c.b16 %v1517, %v1516
  %v1664 = vpack.c.b16 %v1519, %v1518
  %v1665 = vpack.c.b16 %v1521, %v1520
  %v1666 = vpack.c.b16 %v1523, %v1522
  %v1667 = vpack.c.b16 %v1525, %v1524
  %v1668 = vpack.c.b16 %v1527, %v1526
  %v1669 = vpack.c.b16 %v1529, %v1528
  %v1670 = vpack.c.b16 %v1531, %v1530
  %v1671 = vpack.c.b16 %v1533, %v1532
  %v1672 = vpack.c.b16 %v1535, %v1534
  %v1673 = vpack.c.b16 %v1537, %v1536
  %v1674 = vpack.c.b16 %v1539, %v1538
  %v1675 = vpack.c.b16 %v1541, %v1540
  %v1676 = vpack.c.b16 %v1543, %v1542
  %v1677 = vpack.c.b16 %v1545, %v1544
  %v1678 = vpack.c.b16 %v1547, %v1546
  %v1679 = vpack.c.b16 %v1549, %v1548
  %v1680 = vpack.c.b16 %v1551, %v1550
  %v1681 = vpack.c.b16 %v1553, %v1552
  %1810 = vmatprep.subr.bf16.mxu0 0
  %1811 = vmatpush1.bf16.msra.mxu0 %v1554
  %1812 = vmatprep.subr.bf16.mxu0 0
  %1813 = vmatpush1.bf16.msra.mxu0 %v1555
  %1814 = vmatprep.subr.bf16.mxu0 0
  %1815 = vmatpush1.bf16.msra.mxu0 %v1556
  %1816 = vmatprep.subr.bf16.mxu0 0
  %1817 = vmatpush1.bf16.msra.mxu0 %v1557
  %1818 = vmatprep.subr.bf16.mxu0 0
  %1819 = vmatpush1.bf16.msra.mxu0 %v1558
  %1820 = vmatprep.subr.bf16.mxu0 0
  %1821 = vmatpush1.bf16.msra.mxu0 %v1559
  %1822 = vmatprep.subr.bf16.mxu0 0
  %1823 = vmatpush1.bf16.msra.mxu0 %v1560
  %1824 = vmatprep.subr.bf16.mxu0 0
  %1825 = vmatpush1.bf16.msra.mxu0 %v1561
  %1826 = vmatprep.subr.bf16.mxu0 0
  %1827 = vmatpush1.bf16.msra.mxu0 %v1562
  %1828 = vmatprep.subr.bf16.mxu0 0
  %1829 = vmatpush1.bf16.msra.mxu0 %v1563
  %1830 = vmatprep.subr.bf16.mxu0 0
  %1831 = vmatpush1.bf16.msra.mxu0 %v1564
  %1832 = vmatprep.subr.bf16.mxu0 0
  %1833 = vmatpush1.bf16.msra.mxu0 %v1565
  %1834 = vmatprep.subr.bf16.mxu0 0
  %1835 = vmatpush1.bf16.msra.mxu0 %v1566
  %1836 = vmatprep.subr.bf16.mxu0 0
  %1837 = vmatpush1.bf16.msra.mxu0 %v1567
  %1838 = vmatprep.subr.bf16.mxu0 0
  %1839 = vmatpush1.bf16.msra.mxu0 %v1568
  %1840 = vmatprep.subr.bf16.mxu0 0
  %1841 = vmatpush1.bf16.msra.mxu0 %v1569
  %1842 = vmatprep.mubr.bf16.mxu0 %v787
  %1843 = vmatmul.mubr.bf16.gmra.mrb[0].mxu0 %v786
  %v1844 = vpop.f32.mrb[0].mxu0
  %v1845 = vadd.f32 0.0, %v1844
  %v1846 = vpop.f32.mrb[0].mxu0
  %v1847 = vpop.f32.mrb[0].mxu0
  %v1848 = vadd.f32 0.0, %v1847
  %v1849 = vpop.f32.mrb[0].mxu0
  %1850 = vmatprep.mubr.bf16.mxu0 %v803
  %1851 = vmatmul.mubr.bf16.gmra.mrb[0].mxu0 %v802
  %v1852 = vpop.f32.mrb[0].mxu0
  %v1853 = vadd.f32 0.0, %v1852
  %v1854 = vpop.f32.mrb[0].mxu0
  %v1855 = vpop.f32.mrb[0].mxu0
  %v1856 = vadd.f32 0.0, %v1855
  %v1857 = vpop.f32.mrb[0].mxu0
  %1858 = vmatprep.mubr.bf16.mxu0 %v819
  %1859 = vmatmul.mubr.bf16.gmra.mrb[0].mxu0 %v818
  %v1860 = vpop.f32.mrb[0].mxu0
  %v1861 = vadd.f32 0.0, %v1860
  %v1862 = vpop.f32.mrb[0].mxu0
  %v1863 = vpop.f32.mrb[0].mxu0
  %v1864 = vadd.f32 0.0, %v1863
  %v1865 = vpop.f32.mrb[0].mxu0
  %1866 = vmatprep.mubr.bf16.mxu0 %v835
  %1867 = vmatmul.mubr.bf16.gmra.mrb[0].mxu0 %v834
  %v1868 = vpop.f32.mrb[0].mxu0
  %v1869 = vadd.f32 0.0, %v1868
  %v1870 = vpop.f32.mrb[0].mxu0
  %v1871 = vpop.f32.mrb[0].mxu0
  %v1872 = vadd.f32 0.0, %v1871
  %v1873 = vpop.f32.mrb[0].mxu0
  %1874 = vmatprep.mubr.bf16.mxu0 %v851
  %1875 = vmatmul.mubr.bf16.gmra.mrb[0].mxu0 %v850
  %v1876 = vpop.f32.mrb[0].mxu0
  %v1877 = vadd.f32 0.0, %v1876
  %v1878 = vpop.f32.mrb[0].mxu0
  %v1879 = vpop.f32.mrb[0].mxu0
  %v1880 = vadd.f32 0.0, %v1879
  %v1881 = vpop.f32.mrb[0].mxu0
  %1882 = vmatprep.mubr.bf16.mxu0 %v867
  %1883 = vmatmul.mubr.bf16.gmra.mrb[0].mxu0 %v866
  %v1884 = vpop.f32.mrb[0].mxu0
  %v1885 = vadd.f32 0.0, %v1884
  %v1886 = vpop.f32.mrb[0].mxu0
  %v1887 = vpop.f32.mrb[0].mxu0
  %v1888 = vadd.f32 0.0, %v1887
  %v1889 = vpop.f32.mrb[0].mxu0
  %1890 = vmatprep.mubr.bf16.mxu0 %v883
  %1891 = vmatmul.mubr.bf16.gmra.mrb[0].mxu0 %v882
  %v1892 = vpop.f32.mrb[0].mxu0
  %v1893 = vadd.f32 0.0, %v1892
  %v1894 = vpop.f32.mrb[0].mxu0
  %v1895 = vpop.f32.mrb[0].mxu0
  %v1896 = vadd.f32 0.0, %v1895
  %v1897 = vpop.f32.mrb[0].mxu0
  %1898 = vmatprep.mubr.bf16.mxu0 %v899
  %1899 = vmatmul.mubr.bf16.gmra.mrb[0].mxu0 %v898
  %v1900 = vpop.f32.mrb[0].mxu0
  %v1901 = vadd.f32 0.0, %v1900
  %v1902 = vpop.f32.mrb[0].mxu0
  %v1903 = vpop.f32.mrb[0].mxu0
  %v1904 = vadd.f32 0.0, %v1903
  %v1905 = vpop.f32.mrb[0].mxu0
  %1906 = vdwg.mxu0
  %1907 = vmatprep.subr.bf16.mxu0 0
  %1908 = vmatpush1.bf16.msra.mxu0 %v1570
  %1909 = vmatprep.subr.bf16.mxu0 0
  %1910 = vmatpush1.bf16.msra.mxu0 %v1571
  %1911 = vmatprep.subr.bf16.mxu0 0
  %1912 = vmatpush1.bf16.msra.mxu0 %v1572
  %1913 = vmatprep.subr.bf16.mxu0 0
  %1914 = vmatpush1.bf16.msra.mxu0 %v1573
  %1915 = vmatprep.subr.bf16.mxu0 0
  %1916 = vmatpush1.bf16.msra.mxu0 %v1574
  %1917 = vmatprep.subr.bf16.mxu0 0
  %1918 = vmatpush1.bf16.msra.mxu0 %v1575
  %1919 = vmatprep.subr.bf16.mxu0 0
  %1920 = vmatpush1.bf16.msra.mxu0 %v1576
  %1921 = vmatprep.subr.bf16.mxu0 0
  %1922 = vmatpush1.bf16.msra.mxu0 %v1577
  %1923 = vmatprep.subr.bf16.mxu0 0
  %1924 = vmatpush1.bf16.msra.mxu0 %v1578
  %1925 = vmatprep.subr.bf16.mxu0 0
  %1926 = vmatpush1.bf16.msra.mxu0 %v1579
  %1927 = vmatprep.subr.bf16.mxu0 0
  %1928 = vmatpush1.bf16.msra.mxu0 %v1580
  %1929 = vmatprep.subr.bf16.mxu0 0
  %1930 = vmatpush1.bf16.msra.mxu0 %v1581
  %1931 = vmatprep.subr.bf16.mxu0 0
  %1932 = vmatpush1.bf16.msra.mxu0 %v1582
  %1933 = vmatprep.subr.bf16.mxu0 0
  %1934 = vmatpush1.bf16.msra.mxu0 %v1583
  %1935 = vmatprep.subr.bf16.mxu0 0
  %1936 = vmatpush1.bf16.msra.mxu0 %v1584
  %1937 = vmatprep.subr.bf16.mxu0 0
  %1938 = vmatpush1.bf16.msra.mxu0 %v1585
  %1939 = vmatprep.mubr.bf16.mxu0 %v789
  %1940 = vmatmul.mubr.bf16.gmra.mrb[0].mxu0 %v788
  %v1941 = vpop.f32.mrb[0].mxu0
  %v1942 = vadd.f32 %v1845, %v1941
  %v1943 = vpop.f32.mrb[0].mxu0
  %v1944 = vpop.f32.mrb[0].mxu0
  %v1945 = vadd.f32 %v1848, %v1944
  %v1946 = vpop.f32.mrb[0].mxu0
  %1947 = vmatprep.mubr.bf16.mxu0 %v805
  %1948 = vmatmul.mubr.bf16.gmra.mrb[0].mxu0 %v804
  %v1949 = vpop.f32.mrb[0].mxu0
  %v1950 = vadd.f32 %v1853, %v1949
  %v1951 = vpop.f32.mrb[0].mxu0
  %v1952 = vpop.f32.mrb[0].mxu0
  %v1953 = vadd.f32 %v1856, %v1952
  %v1954 = vpop.f32.mrb[0].mxu0
  %1955 = vmatprep.mubr.bf16.mxu0 %v821
  %1956 = vmatmul.mubr.bf16.gmra.mrb[0].mxu0 %v820
  %v1957 = vpop.f32.mrb[0].mxu0
  %v1958 = vadd.f32 %v1861, %v1957
  %v1959 = vpop.f32.mrb[0].mxu0
  %v1960 = vpop.f32.mrb[0].mxu0
  %v1961 = vadd.f32 %v1864, %v1960
  %v1962 = vpop.f32.mrb[0].mxu0
  %1963 = vmatprep.mubr.bf16.mxu0 %v837
  %1964 = vmatmul.mubr.bf16.gmra.mrb[0].mxu0 %v836
  %v1965 = vpop.f32.mrb[0].mxu0
  %v1966 = vadd.f32 %v1869, %v1965
  %v1967 = vpop.f32.mrb[0].mxu0
  %v1968 = vpop.f32.mrb[0].mxu0
  %v1969 = vadd.f32 %v1872, %v1968
  %v1970 = vpop.f32.mrb[0].mxu0
  %1971 = vmatprep.mubr.bf16.mxu0 %v853
  %1972 = vmatmul.mubr.bf16.gmra.mrb[0].mxu0 %v852
  %v1973 = vpop.f32.mrb[0].mxu0
  %v1974 = vadd.f32 %v1877, %v1973
  %v1975 = vpop.f32.mrb[0].mxu0
  %v1976 = vpop.f32.mrb[0].mxu0
  %v1977 = vadd.f32 %v1880, %v1976
  %v1978 = vpop.f32.mrb[0].mxu0
  %1979 = vmatprep.mubr.bf16.mxu0 %v869
  %1980 = vmatmul.mubr.bf16.gmra.mrb[0].mxu0 %v868
  %v1981 = vpop.f32.mrb[0].mxu0
  %v1982 = vadd.f32 %v1885, %v1981
  %v1983 = vpop.f32.mrb[0].mxu0
  %v1984 = vpop.f32.mrb[0].mxu0
  %v1985 = vadd.f32 %v1888, %v1984
  %v1986 = vpop.f32.mrb[0].mxu0
  %1987 = vmatprep.mubr.bf16.mxu0 %v885
  %1988 = vmatmul.mubr.bf16.gmra.mrb[0].mxu0 %v884
  %v1989 = vpop.f32.mrb[0].mxu0
  %v1990 = vadd.f32 %v1893, %v1989
  %v1991 = vpop.f32.mrb[0].mxu0
  %v1992 = vpop.f32.mrb[0].mxu0
  %v1993 = vadd.f32 %v1896, %v1992
  %v1994 = vpop.f32.mrb[0].mxu0
  %1995 = vmatprep.mubr.bf16.mxu0 %v901
  %1996 = vmatmul.mubr.bf16.gmra.mrb[0].mxu0 %v900
  %v1997 = vpop.f32.mrb[0].mxu0
  %v1998 = vadd.f32 %v1901, %v1997
  %v1999 = vpop.f32.mrb[0].mxu0
  %v2000 = vpop.f32.mrb[0].mxu0
  %v2001 = vadd.f32 %v1904, %v2000
  %v2002 = vpop.f32.mrb[0].mxu0
  %2003 = vdwg.mxu0
  %2004 = vmatprep.subr.bf16.mxu0 0
  %2005 = vmatpush1.bf16.msra.mxu0 %v1586
  %2006 = vmatprep.subr.bf16.mxu0 0
  %2007 = vmatpush1.bf16.msra.mxu0 %v1587
  %2008 = vmatprep.subr.bf16.mxu0 0
  %2009 = vmatpush1.bf16.msra.mxu0 %v1588
  %2010 = vmatprep.subr.bf16.mxu0 0
  %2011 = vmatpush1.bf16.msra.mxu0 %v1589
  %2012 = vmatprep.subr.bf16.mxu0 0
  %2013 = vmatpush1.bf16.msra.mxu0 %v1590
  %2014 = vmatprep.subr.bf16.mxu0 0
  %2015 = vmatpush1.bf16.msra.mxu0 %v1591
  %2016 = vmatprep.subr.bf16.mxu0 0
  %2017 = vmatpush1.bf16.msra.mxu0 %v1592
  %2018 = vmatprep.subr.bf16.mxu0 0
  %2019 = vmatpush1.bf16.msra.mxu0 %v1593
  %2020 = vmatprep.subr.bf16.mxu0 0
  %2021 = vmatpush1.bf16.msra.mxu0 %v1594
  %2022 = vmatprep.subr.bf16.mxu0 0
  %2023 = vmatpush1.bf16.msra.mxu0 %v1595
  %2024 = vmatprep.subr.bf16.mxu0 0
  %2025 = vmatpush1.bf16.msra.mxu0 %v1596
  %2026 = vmatprep.subr.bf16.mxu0 0
  %2027 = vmatpush1.bf16.msra.mxu0 %v1597
  %2028 = vmatprep.subr.bf16.mxu0 0
  %2029 = vmatpush1.bf16.msra.mxu0 %v1598
  %2030 = vmatprep.subr.bf16.mxu0 0
  %2031 = vmatpush1.bf16.msra.mxu0 %v1599
  %2032 = vmatprep.subr.bf16.mxu0 0
  %2033 = vmatpush1.bf16.msra.mxu0 %v1600
  %2034 = vmatprep.subr.bf16.mxu0 0
  %2035 = vmatpush1.bf16.msra.mxu0 %v1601
  %2036 = vmatprep.mubr.bf16.mxu0 %v791
  %2037 = vmatmul.mubr.bf16.gmra.mrb[0].mxu0 %v790
  %v2038 = vpop.f32.mrb[0].mxu0
  %v2039 = vadd.f32 %v1942, %v2038
  %v2040 = vpop.f32.mrb[0].mxu0
  %v2041 = vpop.f32.mrb[0].mxu0
  %v2042 = vadd.f32 %v1945, %v2041
  %v2043 = vpop.f32.mrb[0].mxu0
  %2044 = vmatprep.mubr.bf16.mxu0 %v807
  %2045 = vmatmul.mubr.bf16.gmra.mrb[0].mxu0 %v806
  %v2046 = vpop.f32.mrb[0].mxu0
  %v2047 = vadd.f32 %v1950, %v2046
  %v2048 = vpop.f32.mrb[0].mxu0
  %v2049 = vpop.f32.mrb[0].mxu0
  %v2050 = vadd.f32 %v1953, %v2049
  %v2051 = vpop.f32.mrb[0].mxu0
  %2052 = vmatprep.mubr.bf16.mxu0 %v823
  %2053 = vmatmul.mubr.bf16.gmra.mrb[0].mxu0 %v822
  %v2054 = vpop.f32.mrb[0].mxu0
  %v2055 = vadd.f32 %v1958, %v2054
  %v2056 = vpop.f32.mrb[0].mxu0
  %v2057 = vpop.f32.mrb[0].mxu0
  %v2058 = vadd.f32 %v1961, %v2057
  %v2059 = vpop.f32.mrb[0].mxu0
  %2060 = vmatprep.mubr.bf16.mxu0 %v839
  %2061 = vmatmul.mubr.bf16.gmra.mrb[0].mxu0 %v838
  %v2062 = vpop.f32.mrb[0].mxu0
  %v2063 = vadd.f32 %v1966, %v2062
  %v2064 = vpop.f32.mrb[0].mxu0
  %v2065 = vpop.f32.mrb[0].mxu0
  %v2066 = vadd.f32 %v1969, %v2065
  %v2067 = vpop.f32.mrb[0].mxu0
  %2068 = vmatprep.mubr.bf16.mxu0 %v855
  %2069 = vmatmul.mubr.bf16.gmra.mrb[0].mxu0 %v854
  %v2070 = vpop.f32.mrb[0].mxu0
  %v2071 = vadd.f32 %v1974, %v2070
  %v2072 = vpop.f32.mrb[0].mxu0
  %v2073 = vpop.f32.mrb[0].mxu0
  %v2074 = vadd.f32 %v1977, %v2073
  %v2075 = vpop.f32.mrb[0].mxu0
  %2076 = vmatprep.mubr.bf16.mxu0 %v871
  %2077 = vmatmul.mubr.bf16.gmra.mrb[0].mxu0 %v870
  %v2078 = vpop.f32.mrb[0].mxu0
  %v2079 = vadd.f32 %v1982, %v2078
  %v2080 = vpop.f32.mrb[0].mxu0
  %v2081 = vpop.f32.mrb[0].mxu0
  %v2082 = vadd.f32 %v1985, %v2081
  %v2083 = vpop.f32.mrb[0].mxu0
  %2084 = vmatprep.mubr.bf16.mxu0 %v887
  %2085 = vmatmul.mubr.bf16.gmra.mrb[0].mxu0 %v886
  %v2086 = vpop.f32.mrb[0].mxu0
  %v2087 = vadd.f32 %v1990, %v2086
  %v2088 = vpop.f32.mrb[0].mxu0
  %v2089 = vpop.f32.mrb[0].mxu0
  %v2090 = vadd.f32 %v1993, %v2089
  %v2091 = vpop.f32.mrb[0].mxu0
  %2092 = vmatprep.mubr.bf16.mxu0 %v903
  %2093 = vmatmul.mubr.bf16.gmra.mrb[0].mxu0 %v902
  %v2094 = vpop.f32.mrb[0].mxu0
  %v2095 = vadd.f32 %v1998, %v2094
  %v2096 = vpop.f32.mrb[0].mxu0
  %v2097 = vpop.f32.mrb[0].mxu0
  %v2098 = vadd.f32 %v2001, %v2097
  %v2099 = vpop.f32.mrb[0].mxu0
  %2100 = vdwg.mxu0
  %2101 = vmatprep.subr.bf16.mxu0 0
  %2102 = vmatpush1.bf16.msra.mxu0 %v1602
  %2103 = vmatprep.subr.bf16.mxu0 0
  %2104 = vmatpush1.bf16.msra.mxu0 %v1603
  %2105 = vmatprep.subr.bf16.mxu0 0
  %2106 = vmatpush1.bf16.msra.mxu0 %v1604
  %2107 = vmatprep.subr.bf16.mxu0 0
  %2108 = vmatpush1.bf16.msra.mxu0 %v1605
  %2109 = vmatprep.subr.bf16.mxu0 0
  %2110 = vmatpush1.bf16.msra.mxu0 %v1606
  %2111 = vmatprep.subr.bf16.mxu0 0
  %2112 = vmatpush1.bf16.msra.mxu0 %v1607
  %2113 = vmatprep.subr.bf16.mxu0 0
  %2114 = vmatpush1.bf16.msra.mxu0 %v1608
  %2115 = vmatprep.subr.bf16.mxu0 0
  %2116 = vmatpush1.bf16.msra.mxu0 %v1609
  %2117 = vmatprep.subr.bf16.mxu0 0
  %2118 = vmatpush1.bf16.msra.mxu0 %v1610
  %2119 = vmatprep.subr.bf16.mxu0 0
  %2120 = vmatpush1.bf16.msra.mxu0 %v1611
  %2121 = vmatprep.subr.bf16.mxu0 0
  %2122 = vmatpush1.bf16.msra.mxu0 %v1612
  %2123 = vmatprep.subr.bf16.mxu0 0
  %2124 = vmatpush1.bf16.msra.mxu0 %v1613
  %2125 = vmatprep.subr.bf16.mxu0 0
  %2126 = vmatpush1.bf16.msra.mxu0 %v1614
  %2127 = vmatprep.subr.bf16.mxu0 0
  %2128 = vmatpush1.bf16.msra.mxu0 %v1615
  %2129 = vmatprep.subr.bf16.mxu0 0
  %2130 = vmatpush1.bf16.msra.mxu0 %v1616
  %2131 = vmatprep.subr.bf16.mxu0 0
  %2132 = vmatpush1.bf16.msra.mxu0 %v1617
  %2133 = vmatprep.mubr.bf16.mxu0 %v793
  %2134 = vmatmul.mubr.bf16.gmra.mrb[0].mxu0 %v792
  %v2135 = vpop.f32.mrb[0].mxu0
  %v2136 = vadd.f32 %v2039, %v2135
  %v2137 = vpop.f32.mrb[0].mxu0
  %v2138 = vpop.f32.mrb[0].mxu0
  %v2139 = vadd.f32 %v2042, %v2138
  %v2140 = vpop.f32.mrb[0].mxu0
  %2141 = vmatprep.mubr.bf16.mxu0 %v809
  %2142 = vmatmul.mubr.bf16.gmra.mrb[0].mxu0 %v808
  %v2143 = vpop.f32.mrb[0].mxu0
  %v2144 = vadd.f32 %v2047, %v2143
  %v2145 = vpop.f32.mrb[0].mxu0
  %v2146 = vpop.f32.mrb[0].mxu0
  %v2147 = vadd.f32 %v2050, %v2146
  %v2148 = vpop.f32.mrb[0].mxu0
  %2149 = vmatprep.mubr.bf16.mxu0 %v825
  %2150 = vmatmul.mubr.bf16.gmra.mrb[0].mxu0 %v824
  %v2151 = vpop.f32.mrb[0].mxu0
  %v2152 = vadd.f32 %v2055, %v2151
  %v2153 = vpop.f32.mrb[0].mxu0
  %v2154 = vpop.f32.mrb[0].mxu0
  %v2155 = vadd.f32 %v2058, %v2154
  %v2156 = vpop.f32.mrb[0].mxu0
  %2157 = vmatprep.mubr.bf16.mxu0 %v841
  %2158 = vmatmul.mubr.bf16.gmra.mrb[0].mxu0 %v840
  %v2159 = vpop.f32.mrb[0].mxu0
  %v2160 = vadd.f32 %v2063, %v2159
  %v2161 = vpop.f32.mrb[0].mxu0
  %v2162 = vpop.f32.mrb[0].mxu0
  %v2163 = vadd.f32 %v2066, %v2162
  %v2164 = vpop.f32.mrb[0].mxu0
  %2165 = vmatprep.mubr.bf16.mxu0 %v857
  %2166 = vmatmul.mubr.bf16.gmra.mrb[0].mxu0 %v856
  %v2167 = vpop.f32.mrb[0].mxu0
  %v2168 = vadd.f32 %v2071, %v2167
  %v2169 = vpop.f32.mrb[0].mxu0
  %v2170 = vpop.f32.mrb[0].mxu0
  %v2171 = vadd.f32 %v2074, %v2170
  %v2172 = vpop.f32.mrb[0].mxu0
  %2173 = vmatprep.mubr.bf16.mxu0 %v873
  %2174 = vmatmul.mubr.bf16.gmra.mrb[0].mxu0 %v872
  %v2175 = vpop.f32.mrb[0].mxu0
  %v2176 = vadd.f32 %v2079, %v2175
  %v2177 = vpop.f32.mrb[0].mxu0
  %v2178 = vpop.f32.mrb[0].mxu0
  %v2179 = vadd.f32 %v2082, %v2178
  %v2180 = vpop.f32.mrb[0].mxu0
  %2181 = vmatprep.mubr.bf16.mxu0 %v889
  %2182 = vmatmul.mubr.bf16.gmra.mrb[0].mxu0 %v888
  %v2183 = vpop.f32.mrb[0].mxu0
  %v2184 = vadd.f32 %v2087, %v2183
  %v2185 = vpop.f32.mrb[0].mxu0
  %v2186 = vpop.f32.mrb[0].mxu0
  %v2187 = vadd.f32 %v2090, %v2186
  %v2188 = vpop.f32.mrb[0].mxu0
  %2189 = vmatprep.mubr.bf16.mxu0 %v905
  %2190 = vmatmul.mubr.bf16.gmra.mrb[0].mxu0 %v904
  %v2191 = vpop.f32.mrb[0].mxu0
  %v2192 = vadd.f32 %v2095, %v2191
  %v2193 = vpop.f32.mrb[0].mxu0
  %v2194 = vpop.f32.mrb[0].mxu0
  %v2195 = vadd.f32 %v2098, %v2194
  %v2196 = vpop.f32.mrb[0].mxu0
  %2197 = vdwg.mxu0
  %2198 = vmatprep.subr.bf16.mxu0 0
  %2199 = vmatpush1.bf16.msra.mxu0 %v1618
  %2200 = vmatprep.subr.bf16.mxu0 0
  %2201 = vmatpush1.bf16.msra.mxu0 %v1619
  %2202 = vmatprep.subr.bf16.mxu0 0
  %2203 = vmatpush1.bf16.msra.mxu0 %v1620
  %2204 = vmatprep.subr.bf16.mxu0 0
  %2205 = vmatpush1.bf16.msra.mxu0 %v1621
  %2206 = vmatprep.subr.bf16.mxu0 0
  %2207 = vmatpush1.bf16.msra.mxu0 %v1622
  %2208 = vmatprep.subr.bf16.mxu0 0
  %2209 = vmatpush1.bf16.msra.mxu0 %v1623
  %2210 = vmatprep.subr.bf16.mxu0 0
  %2211 = vmatpush1.bf16.msra.mxu0 %v1624
  %2212 = vmatprep.subr.bf16.mxu0 0
  %2213 = vmatpush1.bf16.msra.mxu0 %v1625
  %2214 = vmatprep.subr.bf16.mxu0 0
  %2215 = vmatpush1.bf16.msra.mxu0 %v1626
  %2216 = vmatprep.subr.bf16.mxu0 0
  %2217 = vmatpush1.bf16.msra.mxu0 %v1627
  %2218 = vmatprep.subr.bf16.mxu0 0
  %2219 = vmatpush1.bf16.msra.mxu0 %v1628
  %2220 = vmatprep.subr.bf16.mxu0 0
  %2221 = vmatpush1.bf16.msra.mxu0 %v1629
  %2222 = vmatprep.subr.bf16.mxu0 0
  %2223 = vmatpush1.bf16.msra.mxu0 %v1630
  %2224 = vmatprep.subr.bf16.mxu0 0
  %2225 = vmatpush1.bf16.msra.mxu0 %v1631
  %2226 = vmatprep.subr.bf16.mxu0 0
  %2227 = vmatpush1.bf16.msra.mxu0 %v1632
  %2228 = vmatprep.subr.bf16.mxu0 0
  %2229 = vmatpush1.bf16.msra.mxu0 %v1633
  %2230 = vmatprep.mubr.bf16.mxu0 %v795
  %2231 = vmatmul.mubr.bf16.gmra.mrb[0].mxu0 %v794
  %v2232 = vpop.f32.mrb[0].mxu0
  %v2233 = vadd.f32 %v2136, %v2232
  %v2234 = vpop.f32.mrb[0].mxu0
  %v2235 = vpop.f32.mrb[0].mxu0
  %v2236 = vadd.f32 %v2139, %v2235
  %v2237 = vpop.f32.mrb[0].mxu0
  %2238 = vmatprep.mubr.bf16.mxu0 %v811
  %2239 = vmatmul.mubr.bf16.gmra.mrb[0].mxu0 %v810
  %v2240 = vpop.f32.mrb[0].mxu0
  %v2241 = vadd.f32 %v2144, %v2240
  %v2242 = vpop.f32.mrb[0].mxu0
  %v2243 = vpop.f32.mrb[0].mxu0
  %v2244 = vadd.f32 %v2147, %v2243
  %v2245 = vpop.f32.mrb[0].mxu0
  %2246 = vmatprep.mubr.bf16.mxu0 %v827
  %2247 = vmatmul.mubr.bf16.gmra.mrb[0].mxu0 %v826
  %v2248 = vpop.f32.mrb[0].mxu0
  %v2249 = vadd.f32 %v2152, %v2248
  %v2250 = vpop.f32.mrb[0].mxu0
  %v2251 = vpop.f32.mrb[0].mxu0
  %v2252 = vadd.f32 %v2155, %v2251
  %v2253 = vpop.f32.mrb[0].mxu0
  %2254 = vmatprep.mubr.bf16.mxu0 %v843
  %2255 = vmatmul.mubr.bf16.gmra.mrb[0].mxu0 %v842
  %v2256 = vpop.f32.mrb[0].mxu0
  %v2257 = vadd.f32 %v2160, %v2256
  %v2258 = vpop.f32.mrb[0].mxu0
  %v2259 = vpop.f32.mrb[0].mxu0
  %v2260 = vadd.f32 %v2163, %v2259
  %v2261 = vpop.f32.mrb[0].mxu0
  %2262 = vmatprep.mubr.bf16.mxu0 %v859
  %2263 = vmatmul.mubr.bf16.gmra.mrb[0].mxu0 %v858
  %v2264 = vpop.f32.mrb[0].mxu0
  %v2265 = vadd.f32 %v2168, %v2264
  %v2266 = vpop.f32.mrb[0].mxu0
  %v2267 = vpop.f32.mrb[0].mxu0
  %v2268 = vadd.f32 %v2171, %v2267
  %v2269 = vpop.f32.mrb[0].mxu0
  %2270 = vmatprep.mubr.bf16.mxu0 %v875
  %2271 = vmatmul.mubr.bf16.gmra.mrb[0].mxu0 %v874
  %v2272 = vpop.f32.mrb[0].mxu0
  %v2273 = vadd.f32 %v2176, %v2272
  %v2274 = vpop.f32.mrb[0].mxu0
  %v2275 = vpop.f32.mrb[0].mxu0
  %v2276 = vadd.f32 %v2179, %v2275
  %v2277 = vpop.f32.mrb[0].mxu0
  %2278 = vmatprep.mubr.bf16.mxu0 %v891
  %2279 = vmatmul.mubr.bf16.gmra.mrb[0].mxu0 %v890
  %v2280 = vpop.f32.mrb[0].mxu0
  %v2281 = vadd.f32 %v2184, %v2280
  %v2282 = vpop.f32.mrb[0].mxu0
  %v2283 = vpop.f32.mrb[0].mxu0
  %v2284 = vadd.f32 %v2187, %v2283
  %v2285 = vpop.f32.mrb[0].mxu0
  %2286 = vmatprep.mubr.bf16.mxu0 %v907
  %2287 = vmatmul.mubr.bf16.gmra.mrb[0].mxu0 %v906
  %v2288 = vpop.f32.mrb[0].mxu0
  %v2289 = vadd.f32 %v2192, %v2288
  %v2290 = vpop.f32.mrb[0].mxu0
  %v2291 = vpop.f32.mrb[0].mxu0
  %v2292 = vadd.f32 %v2195, %v2291
  %v2293 = vpop.f32.mrb[0].mxu0
  %2294 = vdwg.mxu0
  %2295 = vmatprep.subr.bf16.mxu0 0
  %2296 = vmatpush1.bf16.msra.mxu0 %v1634
  %2297 = vmatprep.subr.bf16.mxu0 0
  %2298 = vmatpush1.bf16.msra.mxu0 %v1635
  %2299 = vmatprep.subr.bf16.mxu0 0
  %2300 = vmatpush1.bf16.msra.mxu0 %v1636
  %2301 = vmatprep.subr.bf16.mxu0 0
  %2302 = vmatpush1.bf16.msra.mxu0 %v1637
  %2303 = vmatprep.subr.bf16.mxu0 0
  %2304 = vmatpush1.bf16.msra.mxu0 %v1638
  %2305 = vmatprep.subr.bf16.mxu0 0
  %2306 = vmatpush1.bf16.msra.mxu0 %v1639
  %2307 = vmatprep.subr.bf16.mxu0 0
  %2308 = vmatpush1.bf16.msra.mxu0 %v1640
  %2309 = vmatprep.subr.bf16.mxu0 0
  %2310 = vmatpush1.bf16.msra.mxu0 %v1641
  %2311 = vmatprep.subr.bf16.mxu0 0
  %2312 = vmatpush1.bf16.msra.mxu0 %v1642
  %2313 = vmatprep.subr.bf16.mxu0 0
  %2314 = vmatpush1.bf16.msra.mxu0 %v1643
  %2315 = vmatprep.subr.bf16.mxu0 0
  %2316 = vmatpush1.bf16.msra.mxu0 %v1644
  %2317 = vmatprep.subr.bf16.mxu0 0
  %2318 = vmatpush1.bf16.msra.mxu0 %v1645
  %2319 = vmatprep.subr.bf16.mxu0 0
  %2320 = vmatpush1.bf16.msra.mxu0 %v1646
  %2321 = vmatprep.subr.bf16.mxu0 0
  %2322 = vmatpush1.bf16.msra.mxu0 %v1647
  %2323 = vmatprep.subr.bf16.mxu0 0
  %2324 = vmatpush1.bf16.msra.mxu0 %v1648
  %2325 = vmatprep.subr.bf16.mxu0 0
  %2326 = vmatpush1.bf16.msra.mxu0 %v1649
  %2327 = vmatprep.mubr.bf16.mxu0 %v797
  %2328 = vmatmul.mubr.bf16.gmra.mrb[0].mxu0 %v796
  %v2329 = vpop.f32.mrb[0].mxu0
  %v2330 = vadd.f32 %v2233, %v2329
  %v2331 = vpop.f32.mrb[0].mxu0
  %v2332 = vpop.f32.mrb[0].mxu0
  %v2333 = vadd.f32 %v2236, %v2332
  %v2334 = vpop.f32.mrb[0].mxu0
  %2335 = vmatprep.mubr.bf16.mxu0 %v813
  %2336 = vmatmul.mubr.bf16.gmra.mrb[0].mxu0 %v812
  %v2337 = vpop.f32.mrb[0].mxu0
  %v2338 = vadd.f32 %v2241, %v2337
  %v2339 = vpop.f32.mrb[0].mxu0
  %v2340 = vpop.f32.mrb[0].mxu0
  %v2341 = vadd.f32 %v2244, %v2340
  %v2342 = vpop.f32.mrb[0].mxu0
  %2343 = vmatprep.mubr.bf16.mxu0 %v829
  %2344 = vmatmul.mubr.bf16.gmra.mrb[0].mxu0 %v828
  %v2345 = vpop.f32.mrb[0].mxu0
  %v2346 = vadd.f32 %v2249, %v2345
  %v2347 = vpop.f32.mrb[0].mxu0
  %v2348 = vpop.f32.mrb[0].mxu0
  %v2349 = vadd.f32 %v2252, %v2348
  %v2350 = vpop.f32.mrb[0].mxu0
  %2351 = vmatprep.mubr.bf16.mxu0 %v845
  %2352 = vmatmul.mubr.bf16.gmra.mrb[0].mxu0 %v844
  %v2353 = vpop.f32.mrb[0].mxu0
  %v2354 = vadd.f32 %v2257, %v2353
  %v2355 = vpop.f32.mrb[0].mxu0
  %v2356 = vpop.f32.mrb[0].mxu0
  %v2357 = vadd.f32 %v2260, %v2356
  %v2358 = vpop.f32.mrb[0].mxu0
  %2359 = vmatprep.mubr.bf16.mxu0 %v861
  %2360 = vmatmul.mubr.bf16.gmra.mrb[0].mxu0 %v860
  %v2361 = vpop.f32.mrb[0].mxu0
  %v2362 = vadd.f32 %v2265, %v2361
  %v2363 = vpop.f32.mrb[0].mxu0
  %v2364 = vpop.f32.mrb[0].mxu0
  %v2365 = vadd.f32 %v2268, %v2364
  %v2366 = vpop.f32.mrb[0].mxu0
  %2367 = vmatprep.mubr.bf16.mxu0 %v877
  %2368 = vmatmul.mubr.bf16.gmra.mrb[0].mxu0 %v876
  %v2369 = vpop.f32.mrb[0].mxu0
  %v2370 = vadd.f32 %v2273, %v2369
  %v2371 = vpop.f32.mrb[0].mxu0
  %v2372 = vpop.f32.mrb[0].mxu0
  %v2373 = vadd.f32 %v2276, %v2372
  %v2374 = vpop.f32.mrb[0].mxu0
  %2375 = vmatprep.mubr.bf16.mxu0 %v893
  %2376 = vmatmul.mubr.bf16.gmra.mrb[0].mxu0 %v892
  %v2377 = vpop.f32.mrb[0].mxu0
  %v2378 = vadd.f32 %v2281, %v2377
  %v2379 = vpop.f32.mrb[0].mxu0
  %v2380 = vpop.f32.mrb[0].mxu0
  %v2381 = vadd.f32 %v2284, %v2380
  %v2382 = vpop.f32.mrb[0].mxu0
  %2383 = vmatprep.mubr.bf16.mxu0 %v909
  %2384 = vmatmul.mubr.bf16.gmra.mrb[0].mxu0 %v908
  %v2385 = vpop.f32.mrb[0].mxu0
  %v2386 = vadd.f32 %v2289, %v2385
  %v2387 = vpop.f32.mrb[0].mxu0
  %v2388 = vpop.f32.mrb[0].mxu0
  %v2389 = vadd.f32 %v2292, %v2388
  %v2390 = vpop.f32.mrb[0].mxu0
  %2391 = vdwg.mxu0
  %2392 = vmatprep.subr.bf16.mxu0 0
  %2393 = vmatpush1.bf16.msra.mxu0 %v1650
  %2394 = vmatprep.subr.bf16.mxu0 0
  %2395 = vmatpush1.bf16.msra.mxu0 %v1651
  %2396 = vmatprep.subr.bf16.mxu0 0
  %2397 = vmatpush1.bf16.msra.mxu0 %v1652
  %2398 = vmatprep.subr.bf16.mxu0 0
  %2399 = vmatpush1.bf16.msra.mxu0 %v1653
  %2400 = vmatprep.subr.bf16.mxu0 0
  %2401 = vmatpush1.bf16.msra.mxu0 %v1654
  %2402 = vmatprep.subr.bf16.mxu0 0
  %2403 = vmatpush1.bf16.msra.mxu0 %v1655
  %2404 = vmatprep.subr.bf16.mxu0 0
  %2405 = vmatpush1.bf16.msra.mxu0 %v1656
  %2406 = vmatprep.subr.bf16.mxu0 0
  %2407 = vmatpush1.bf16.msra.mxu0 %v1657
  %2408 = vmatprep.subr.bf16.mxu0 0
  %2409 = vmatpush1.bf16.msra.mxu0 %v1658
  %2410 = vmatprep.subr.bf16.mxu0 0
  %2411 = vmatpush1.bf16.msra.mxu0 %v1659
  %2412 = vmatprep.subr.bf16.mxu0 0
  %2413 = vmatpush1.bf16.msra.mxu0 %v1660
  %2414 = vmatprep.subr.bf16.mxu0 0
  %2415 = vmatpush1.bf16.msra.mxu0 %v1661
  %2416 = vmatprep.subr.bf16.mxu0 0
  %2417 = vmatpush1.bf16.msra.mxu0 %v1662
  %2418 = vmatprep.subr.bf16.mxu0 0
  %2419 = vmatpush1.bf16.msra.mxu0 %v1663
  %2420 = vmatprep.subr.bf16.mxu0 0
  %2421 = vmatpush1.bf16.msra.mxu0 %v1664
  %2422 = vmatprep.subr.bf16.mxu0 0
  %2423 = vmatpush1.bf16.msra.mxu0 %v1665
  %2424 = vmatprep.mubr.bf16.mxu0 %v799
  %2425 = vmatmul.mubr.bf16.gmra.mrb[0].mxu0 %v798
  %v2426 = vpop.f32.mrb[0].mxu0
  %v2427 = vadd.f32 %v2330, %v2426
  %v2428 = vpop.f32.mrb[0].mxu0
  %v2429 = vpop.f32.mrb[0].mxu0
  %v2430 = vadd.f32 %v2333, %v2429
  %v2431 = vpop.f32.mrb[0].mxu0
  %2432 = vmatprep.mubr.bf16.mxu0 %v815
  %2433 = vmatmul.mubr.bf16.gmra.mrb[0].mxu0 %v814
  %v2434 = vpop.f32.mrb[0].mxu0
  %v2435 = vadd.f32 %v2338, %v2434
  %v2436 = vpop.f32.mrb[0].mxu0
  %v2437 = vpop.f32.mrb[0].mxu0
  %v2438 = vadd.f32 %v2341, %v2437
  %v2439 = vpop.f32.mrb[0].mxu0
  %2440 = vmatprep.mubr.bf16.mxu0 %v831
  %2441 = vmatmul.mubr.bf16.gmra.mrb[0].mxu0 %v830
  %v2442 = vpop.f32.mrb[0].mxu0
  %v2443 = vadd.f32 %v2346, %v2442
  %v2444 = vpop.f32.mrb[0].mxu0
  %v2445 = vpop.f32.mrb[0].mxu0
  %v2446 = vadd.f32 %v2349, %v2445
  %v2447 = vpop.f32.mrb[0].mxu0
  %2448 = vmatprep.mubr.bf16.mxu0 %v847
  %2449 = vmatmul.mubr.bf16.gmra.mrb[0].mxu0 %v846
  %v2450 = vpop.f32.mrb[0].mxu0
  %v2451 = vadd.f32 %v2354, %v2450
  %v2452 = vpop.f32.mrb[0].mxu0
  %v2453 = vpop.f32.mrb[0].mxu0
  %v2454 = vadd.f32 %v2357, %v2453
  %v2455 = vpop.f32.mrb[0].mxu0
  %2456 = vmatprep.mubr.bf16.mxu0 %v863
  %2457 = vmatmul.mubr.bf16.gmra.mrb[0].mxu0 %v862
  %v2458 = vpop.f32.mrb[0].mxu0
  %v2459 = vadd.f32 %v2362, %v2458
  %v2460 = vpop.f32.mrb[0].mxu0
  %v2461 = vpop.f32.mrb[0].mxu0
  %v2462 = vadd.f32 %v2365, %v2461
  %v2463 = vpop.f32.mrb[0].mxu0
  %2464 = vmatprep.mubr.bf16.mxu0 %v879
  %2465 = vmatmul.mubr.bf16.gmra.mrb[0].mxu0 %v878
  %v2466 = vpop.f32.mrb[0].mxu0
  %v2467 = vadd.f32 %v2370, %v2466
  %v2468 = vpop.f32.mrb[0].mxu0
  %v2469 = vpop.f32.mrb[0].mxu0
  %v2470 = vadd.f32 %v2373, %v2469
  %v2471 = vpop.f32.mrb[0].mxu0
  %2472 = vmatprep.mubr.bf16.mxu0 %v895
  %2473 = vmatmul.mubr.bf16.gmra.mrb[0].mxu0 %v894
  %v2474 = vpop.f32.mrb[0].mxu0
  %v2475 = vadd.f32 %v2378, %v2474
  %v2476 = vpop.f32.mrb[0].mxu0
  %v2477 = vpop.f32.mrb[0].mxu0
  %v2478 = vadd.f32 %v2381, %v2477
  %v2479 = vpop.f32.mrb[0].mxu0
  %2480 = vmatprep.mubr.bf16.mxu0 %v911
  %2481 = vmatmul.mubr.bf16.gmra.mrb[0].mxu0 %v910
  %v2482 = vpop.f32.mrb[0].mxu0
  %v2483 = vadd.f32 %v2386, %v2482
  %v2484 = vpop.f32.mrb[0].mxu0
  %v2485 = vpop.f32.mrb[0].mxu0
  %v2486 = vadd.f32 %v2389, %v2485
  %v2487 = vpop.f32.mrb[0].mxu0
  %2488 = vdwg.mxu0
  %2489 = vmatprep.subr.bf16.mxu0 0
  %2490 = vmatpush1.bf16.msra.mxu0 %v1666
  %2491 = vmatprep.subr.bf16.mxu0 0
  %2492 = vmatpush1.bf16.msra.mxu0 %v1667
  %2493 = vmatprep.subr.bf16.mxu0 0
  %2494 = vmatpush1.bf16.msra.mxu0 %v1668
  %2495 = vmatprep.subr.bf16.mxu0 0
  %2496 = vmatpush1.bf16.msra.mxu0 %v1669
  %2497 = vmatprep.subr.bf16.mxu0 0
  %2498 = vmatpush1.bf16.msra.mxu0 %v1670
  %2499 = vmatprep.subr.bf16.mxu0 0
  %2500 = vmatpush1.bf16.msra.mxu0 %v1671
  %2501 = vmatprep.subr.bf16.mxu0 0
  %2502 = vmatpush1.bf16.msra.mxu0 %v1672
  %2503 = vmatprep.subr.bf16.mxu0 0
  %2504 = vmatpush1.bf16.msra.mxu0 %v1673
  %2505 = vmatprep.subr.bf16.mxu0 0
  %2506 = vmatpush1.bf16.msra.mxu0 %v1674
  %2507 = vmatprep.subr.bf16.mxu0 0
  %2508 = vmatpush1.bf16.msra.mxu0 %v1675
  %2509 = vmatprep.subr.bf16.mxu0 0
  %2510 = vmatpush1.bf16.msra.mxu0 %v1676
  %2511 = vmatprep.subr.bf16.mxu0 0
  %2512 = vmatpush1.bf16.msra.mxu0 %v1677
  %2513 = vmatprep.subr.bf16.mxu0 0
  %2514 = vmatpush1.bf16.msra.mxu0 %v1678
  %2515 = vmatprep.subr.bf16.mxu0 0
  %2516 = vmatpush1.bf16.msra.mxu0 %v1679
  %2517 = vmatprep.subr.bf16.mxu0 0
  %2518 = vmatpush1.bf16.msra.mxu0 %v1680
  %2519 = vmatprep.subr.bf16.mxu0 0
  %2520 = vmatpush1.bf16.msra.mxu0 %v1681
  %2521 = vmatprep.mubr.bf16.mxu0 %v801
  %2522 = vmatmul.mubr.bf16.gmra.mrb[0].mxu0 %v800
  %v2523 = vpop.f32.mrb[0].mxu0
  %v2524 = vadd.f32 %v2427, %v2523
  %v2525 = vpop.f32.mrb[0].mxu0
  %v2526 = vpop.f32.mrb[0].mxu0
  %v2527 = vadd.f32 %v2430, %v2526
  %v2528 = vpop.f32.mrb[0].mxu0
  %2529 = vmatprep.mubr.bf16.mxu0 %v817
  %2530 = vmatmul.mubr.bf16.gmra.mrb[0].mxu0 %v816
  %v2531 = vpop.f32.mrb[0].mxu0
  %v2532 = vadd.f32 %v2435, %v2531
  %v2533 = vpop.f32.mrb[0].mxu0
  %v2534 = vpop.f32.mrb[0].mxu0
  %v2535 = vadd.f32 %v2438, %v2534
  %v2536 = vpop.f32.mrb[0].mxu0
  %2537 = vmatprep.mubr.bf16.mxu0 %v833
  %2538 = vmatmul.mubr.bf16.gmra.mrb[0].mxu0 %v832
  %v2539 = vpop.f32.mrb[0].mxu0
  %v2540 = vadd.f32 %v2443, %v2539
  %v2541 = vpop.f32.mrb[0].mxu0
  %v2542 = vpop.f32.mrb[0].mxu0
  %v2543 = vadd.f32 %v2446, %v2542
  %v2544 = vpop.f32.mrb[0].mxu0
  %2545 = vmatprep.mubr.bf16.mxu0 %v849
  %2546 = vmatmul.mubr.bf16.gmra.mrb[0].mxu0 %v848
  %v2547 = vpop.f32.mrb[0].mxu0
  %v2548 = vadd.f32 %v2451, %v2547
  %v2549 = vpop.f32.mrb[0].mxu0
  %v2550 = vpop.f32.mrb[0].mxu0
  %v2551 = vadd.f32 %v2454, %v2550
  %v2552 = vpop.f32.mrb[0].mxu0
  %2553 = vmatprep.mubr.bf16.mxu0 %v865
  %2554 = vmatmul.mubr.bf16.gmra.mrb[0].mxu0 %v864
  %v2555 = vpop.f32.mrb[0].mxu0
  %v2556 = vadd.f32 %v2459, %v2555
  %v2557 = vpop.f32.mrb[0].mxu0
  %v2558 = vpop.f32.mrb[0].mxu0
  %v2559 = vadd.f32 %v2462, %v2558
  %v2560 = vpop.f32.mrb[0].mxu0
  %2561 = vmatprep.mubr.bf16.mxu0 %v881
  %2562 = vmatmul.mubr.bf16.gmra.mrb[0].mxu0 %v880
  %v2563 = vpop.f32.mrb[0].mxu0
  %v2564 = vadd.f32 %v2467, %v2563
  %v2565 = vpop.f32.mrb[0].mxu0
  %v2566 = vpop.f32.mrb[0].mxu0
  %v2567 = vadd.f32 %v2470, %v2566
  %v2568 = vpop.f32.mrb[0].mxu0
  %2569 = vmatprep.mubr.bf16.mxu0 %v897
  %2570 = vmatmul.mubr.bf16.gmra.mrb[0].mxu0 %v896
  %v2571 = vpop.f32.mrb[0].mxu0
  %v2572 = vadd.f32 %v2475, %v2571
  %v2573 = vpop.f32.mrb[0].mxu0
  %v2574 = vpop.f32.mrb[0].mxu0
  %v2575 = vadd.f32 %v2478, %v2574
  %v2576 = vpop.f32.mrb[0].mxu0
  %2577 = vmatprep.mubr.bf16.mxu0 %v913
  %2578 = vmatmul.mubr.bf16.gmra.mrb[0].mxu0 %v912
  %v2579 = vpop.f32.mrb[0].mxu0
  %v2580 = vadd.f32 %v2483, %v2579
  %v2581 = vpop.f32.mrb[0].mxu0
  %v2582 = vpop.f32.mrb[0].mxu0
  %v2583 = vadd.f32 %v2486, %v2582
  %v2584 = vpop.f32.mrb[0].mxu0
  %2585 = vdwg.mxu0
  %vm2586 = vcmask 261120
  %v2587 = vsel %vm2586, %v2524, 0.0
  %2588 = vadd.xlane.f32.xlu0 %v2587
  %v2589 = vpop.xlane.xlu0 %2588
  %v2590 = vsel %vm2586, %v2527, 0.0
  %2591 = vadd.xlane.f32.xlu0 %v2590
  %v2592 = vpop.xlane.xlu0 %2591
  %v2593 = vsel %vm2586, %v2532, 0.0
  %2594 = vadd.xlane.f32.xlu0 %v2593
  %v2595 = vpop.xlane.xlu0 %2594
  %v2596 = vsel %vm2586, %v2535, 0.0
  %2597 = vadd.xlane.f32.xlu0 %v2596
  %v2598 = vpop.xlane.xlu0 %2597
  %v2599 = vsel %vm2586, %v2540, 0.0
  %2600 = vadd.xlane.f32.xlu0 %v2599
  %v2601 = vpop.xlane.xlu0 %2600
  %v2602 = vsel %vm2586, %v2543, 0.0
  %2603 = vadd.xlane.f32.xlu0 %v2602
  %v2604 = vpop.xlane.xlu0 %2603
  %v2605 = vsel %vm2586, %v2548, 0.0
  %2606 = vadd.xlane.f32.xlu0 %v2605
  %v2607 = vpop.xlane.xlu0 %2606
  %v2608 = vsel %vm2586, %v2551, 0.0
  %2609 = vadd.xlane.f32.xlu0 %v2608
  %v2610 = vpop.xlane.xlu0 %2609
  %v2611 = vsel %vm2586, %v2556, 0.0
  %2612 = vadd.xlane.f32.xlu0 %v2611
  %v2613 = vpop.xlane.xlu0 %2612
  %v2614 = vsel %vm2586, %v2559, 0.0
  %2615 = vadd.xlane.f32.xlu0 %v2614
  %v2616 = vpop.xlane.xlu0 %2615
  %v2617 = vsel %vm2586, %v2564, 0.0
  %2618 = vadd.xlane.f32.xlu0 %v2617
  %v2619 = vpop.xlane.xlu0 %2618
  %v2620 = vsel %vm2586, %v2567, 0.0
  %2621 = vadd.xlane.f32.xlu0 %v2620
  %v2622 = vpop.xlane.xlu0 %2621
  %v2623 = vsel %vm2586, %v2572, 0.0
  %2624 = vadd.xlane.f32.xlu0 %v2623
  %v2625 = vpop.xlane.xlu0 %2624
  %v2626 = vsel %vm2586, %v2575, 0.0
  %2627 = vadd.xlane.f32.xlu0 %v2626
  %v2628 = vpop.xlane.xlu0 %2627
  %v2629 = vsel %vm2586, %v2580, 0.0
  %2630 = vadd.xlane.f32.xlu0 %v2629
  %v2631 = vpop.xlane.xlu0 %2630
  %v2632 = vsel %vm2586, %v2583, 0.0
  %2633 = vadd.xlane.f32.xlu0 %v2632
  %v2634 = vpop.xlane.xlu0 %2633
  %v2635 = vmul.f32 %v2589, 0.03125
  %v2636 = vmul.f32 %v2592, 0.03125
  %v2637 = vmul.f32 %v2595, 0.03125
  %v2638 = vmul.f32 %v2598, 0.03125
  %v2639 = vmul.f32 %v2601, 0.03125
  %v2640 = vmul.f32 %v2604, 0.03125
  %v2641 = vmul.f32 %v2607, 0.03125
  %v2642 = vmul.f32 %v2610, 0.03125
  %v2643 = vmul.f32 %v2613, 0.03125
  %v2644 = vmul.f32 %v2616, 0.03125
  %v2645 = vmul.f32 %v2619, 0.03125
  %v2646 = vmul.f32 %v2622, 0.03125
  %v2647 = vmul.f32 %v2625, 0.03125
  %v2648 = vmul.f32 %v2628, 0.03125
  %v2649 = vmul.f32 %v2631, 0.03125
  %v2650 = vmul.f32 %v2634, 0.03125
  %v2651 = vmul.f32 %v2524, %v2524
  %v2652 = vmul.f32 %v2527, %v2527
  %v2653 = vmul.f32 %v2532, %v2532
  %v2654 = vmul.f32 %v2535, %v2535
  %v2655 = vmul.f32 %v2540, %v2540
  %v2656 = vmul.f32 %v2543, %v2543
  %v2657 = vmul.f32 %v2548, %v2548
  %v2658 = vmul.f32 %v2551, %v2551
  %v2659 = vmul.f32 %v2556, %v2556
  %v2660 = vmul.f32 %v2559, %v2559
  %v2661 = vmul.f32 %v2564, %v2564
  %v2662 = vmul.f32 %v2567, %v2567
  %v2663 = vmul.f32 %v2572, %v2572
  %v2664 = vmul.f32 %v2575, %v2575
  %v2665 = vmul.f32 %v2580, %v2580
  %v2666 = vmul.f32 %v2583, %v2583
  %v2667 = vsel %vm2586, %v2651, 0.0
  %2668 = vadd.xlane.f32.xlu0 %v2667
  %v2669 = vpop.xlane.xlu0 %2668
  %v2670 = vsel %vm2586, %v2652, 0.0
  %2671 = vadd.xlane.f32.xlu0 %v2670
  %v2672 = vpop.xlane.xlu0 %2671
  %v2673 = vsel %vm2586, %v2653, 0.0
  %2674 = vadd.xlane.f32.xlu0 %v2673
  %v2675 = vpop.xlane.xlu0 %2674
  %v2676 = vsel %vm2586, %v2654, 0.0
  %2677 = vadd.xlane.f32.xlu0 %v2676
  %v2678 = vpop.xlane.xlu0 %2677
  %v2679 = vsel %vm2586, %v2655, 0.0
  %2680 = vadd.xlane.f32.xlu0 %v2679
  %v2681 = vpop.xlane.xlu0 %2680
  %v2682 = vsel %vm2586, %v2656, 0.0
  %2683 = vadd.xlane.f32.xlu0 %v2682
  %v2684 = vpop.xlane.xlu0 %2683
  %v2685 = vsel %vm2586, %v2657, 0.0
  %2686 = vadd.xlane.f32.xlu0 %v2685
  %v2687 = vpop.xlane.xlu0 %2686
  %v2688 = vsel %vm2586, %v2658, 0.0
  %2689 = vadd.xlane.f32.xlu0 %v2688
  %v2690 = vpop.xlane.xlu0 %2689
  %v2691 = vsel %vm2586, %v2659, 0.0
  %2692 = vadd.xlane.f32.xlu0 %v2691
  %v2693 = vpop.xlane.xlu0 %2692
  %v2694 = vsel %vm2586, %v2660, 0.0
  %2695 = vadd.xlane.f32.xlu0 %v2694
  %v2696 = vpop.xlane.xlu0 %2695
  %v2697 = vsel %vm2586, %v2661, 0.0
  %2698 = vadd.xlane.f32.xlu0 %v2697
  %v2699 = vpop.xlane.xlu0 %2698
  %v2700 = vsel %vm2586, %v2662, 0.0
  %2701 = vadd.xlane.f32.xlu0 %v2700
  %v2702 = vpop.xlane.xlu0 %2701
  %v2703 = vsel %vm2586, %v2663, 0.0
  %2704 = vadd.xlane.f32.xlu0 %v2703
  %v2705 = vpop.xlane.xlu0 %2704
  %v2706 = vsel %vm2586, %v2664, 0.0
  %2707 = vadd.xlane.f32.xlu0 %v2706
  %v2708 = vpop.xlane.xlu0 %2707
  %v2709 = vsel %vm2586, %v2665, 0.0
  %2710 = vadd.xlane.f32.xlu0 %v2709
  %v2711 = vpop.xlane.xlu0 %2710
  %v2712 = vsel %vm2586, %v2666, 0.0
  %2713 = vadd.xlane.f32.xlu0 %v2712
  %v2714 = vpop.xlane.xlu0 %2713
  %v2715 = vmul.f32 %v2669, 0.03125
  %v2716 = vmul.f32 %v2672, 0.03125
  %v2717 = vmul.f32 %v2675, 0.03125
  %v2718 = vmul.f32 %v2678, 0.03125
  %v2719 = vmul.f32 %v2681, 0.03125
  %v2720 = vmul.f32 %v2684, 0.03125
  %v2721 = vmul.f32 %v2687, 0.03125
  %v2722 = vmul.f32 %v2690, 0.03125
  %v2723 = vmul.f32 %v2693, 0.03125
  %v2724 = vmul.f32 %v2696, 0.03125
  %v2725 = vmul.f32 %v2699, 0.03125
  %v2726 = vmul.f32 %v2702, 0.03125
  %v2727 = vmul.f32 %v2705, 0.03125
  %v2728 = vmul.f32 %v2708, 0.03125
  %v2729 = vmul.f32 %v2711, 0.03125
  %v2730 = vmul.f32 %v2714, 0.03125
  %v2731 = vmul.f32 %v2635, %v2635
  %v2732 = vmul.f32 %v2636, %v2636
  %v2733 = vmul.f32 %v2637, %v2637
  %v2734 = vmul.f32 %v2638, %v2638
  %v2735 = vmul.f32 %v2639, %v2639
  %v2736 = vmul.f32 %v2640, %v2640
  %v2737 = vmul.f32 %v2641, %v2641
  %v2738 = vmul.f32 %v2642, %v2642
  %v2739 = vmul.f32 %v2643, %v2643
  %v2740 = vmul.f32 %v2644, %v2644
  %v2741 = vmul.f32 %v2645, %v2645
  %v2742 = vmul.f32 %v2646, %v2646
  %v2743 = vmul.f32 %v2647, %v2647
  %v2744 = vmul.f32 %v2648, %v2648
  %v2745 = vmul.f32 %v2649, %v2649
  %v2746 = vmul.f32 %v2650, %v2650
  %v2747 = vsub.f32 %v2715, %v2731
  %v2748 = vsub.f32 %v2716, %v2732
  %v2749 = vsub.f32 %v2717, %v2733
  %v2750 = vsub.f32 %v2718, %v2734
  %v2751 = vsub.f32 %v2719, %v2735
  %v2752 = vsub.f32 %v2720, %v2736
  %v2753 = vsub.f32 %v2721, %v2737
  %v2754 = vsub.f32 %v2722, %v2738
  %v2755 = vsub.f32 %v2723, %v2739
  %v2756 = vsub.f32 %v2724, %v2740
  %v2757 = vsub.f32 %v2725, %v2741
  %v2758 = vsub.f32 %v2726, %v2742
  %v2759 = vsub.f32 %v2727, %v2743
  %v2760 = vsub.f32 %v2728, %v2744
  %v2761 = vsub.f32 %v2729, %v2745
  %v2762 = vsub.f32 %v2730, %v2746
  %v2763 = vld [vmem:[%s2] sm:$0xff]
  %v2764 = vld [vmem:[%s2 + $0x8] sm:$0xff]
  %v2765 = vld [vmem:[%s2 + $0x10] sm:$0xff]
  %v2766 = vld [vmem:[%s2 + $0x18] sm:$0xff]
  %v2767 = vld [vmem:[%s2 + $0x20] sm:$0xff]
  %v2768 = vld [vmem:[%s2 + $0x28] sm:$0xff]
  %v2769 = vld [vmem:[%s2 + $0x30] sm:$0xff]
  %v2770 = vld [vmem:[%s2 + $0x38] sm:$0xff]
  %v2771 = vld [vmem:[%s2 + $0x40] sm:$0xff]
  %v2772 = vld [vmem:[%s2 + $0x48] sm:$0xff]
  %v2773 = vld [vmem:[%s2 + $0x50] sm:$0xff]
  %v2774 = vld [vmem:[%s2 + $0x58] sm:$0xff]
  %v2775 = vld [vmem:[%s2 + $0x60] sm:$0xff]
  %v2776 = vld [vmem:[%s2 + $0x68] sm:$0xff]
  %v2777 = vld [vmem:[%s2 + $0x70] sm:$0xff]
  %v2778 = vld [vmem:[%s2 + $0x78] sm:$0xff]
  %v2779 = vadd.f32 %v2747, 1e-05
  %v2780 = vadd.f32 %v2748, 1e-05
  %v2781 = vadd.f32 %v2749, 1e-05
  %v2782 = vadd.f32 %v2750, 1e-05
  %v2783 = vadd.f32 %v2751, 1e-05
  %v2784 = vadd.f32 %v2752, 1e-05
  %v2785 = vadd.f32 %v2753, 1e-05
  %v2786 = vadd.f32 %v2754, 1e-05
  %v2787 = vadd.f32 %v2755, 1e-05
  %v2788 = vadd.f32 %v2756, 1e-05
  %v2789 = vadd.f32 %v2757, 1e-05
  %v2790 = vadd.f32 %v2758, 1e-05
  %v2791 = vadd.f32 %v2759, 1e-05
  %v2792 = vadd.f32 %v2760, 1e-05
  %v2793 = vadd.f32 %v2761, 1e-05
  %v2794 = vadd.f32 %v2762, 1e-05
  %v2795 = vrsqrt.pop %v2779
  %v2796 = vrsqrt.pop %v2780
  %v2797 = vrsqrt.pop %v2781
  %v2798 = vrsqrt.pop %v2782
  %v2799 = vrsqrt.pop %v2783
  %v2800 = vrsqrt.pop %v2784
  %v2801 = vrsqrt.pop %v2785
  %v2802 = vrsqrt.pop %v2786
  %v2803 = vrsqrt.pop %v2787
  %v2804 = vrsqrt.pop %v2788
  %v2805 = vrsqrt.pop %v2789
  %v2806 = vrsqrt.pop %v2790
  %v2807 = vrsqrt.pop %v2791
  %v2808 = vrsqrt.pop %v2792
  %v2809 = vrsqrt.pop %v2793
  %v2810 = vrsqrt.pop %v2794
  %v2811 = vmul.f32 %v2763, %v2795
  %v2812 = vmul.f32 %v2764, %v2796
  %v2813 = vmul.f32 %v2765, %v2797
  %v2814 = vmul.f32 %v2766, %v2798
  %v2815 = vmul.f32 %v2767, %v2799
  %v2816 = vmul.f32 %v2768, %v2800
  %v2817 = vmul.f32 %v2769, %v2801
  %v2818 = vmul.f32 %v2770, %v2802
  %v2819 = vmul.f32 %v2771, %v2803
  %v2820 = vmul.f32 %v2772, %v2804
  %v2821 = vmul.f32 %v2773, %v2805
  %v2822 = vmul.f32 %v2774, %v2806
  %v2823 = vmul.f32 %v2775, %v2807
  %v2824 = vmul.f32 %v2776, %v2808
  %v2825 = vmul.f32 %v2777, %v2809
  %v2826 = vmul.f32 %v2778, %v2810
  %v2827 = vld [vmem:[%s3] sm:$0xff]
  %v2828 = vld [vmem:[%s3 + $0x8] sm:$0xff]
  %v2829 = vld [vmem:[%s3 + $0x10] sm:$0xff]
  %v2830 = vld [vmem:[%s3 + $0x18] sm:$0xff]
  %v2831 = vld [vmem:[%s3 + $0x20] sm:$0xff]
  %v2832 = vld [vmem:[%s3 + $0x28] sm:$0xff]
  %v2833 = vld [vmem:[%s3 + $0x30] sm:$0xff]
  %v2834 = vld [vmem:[%s3 + $0x38] sm:$0xff]
  %v2835 = vld [vmem:[%s3 + $0x40] sm:$0xff]
  %v2836 = vld [vmem:[%s3 + $0x48] sm:$0xff]
  %v2837 = vld [vmem:[%s3 + $0x50] sm:$0xff]
  %v2838 = vld [vmem:[%s3 + $0x58] sm:$0xff]
  %v2839 = vld [vmem:[%s3 + $0x60] sm:$0xff]
  %v2840 = vld [vmem:[%s3 + $0x68] sm:$0xff]
  %v2841 = vld [vmem:[%s3 + $0x70] sm:$0xff]
  %v2842 = vld [vmem:[%s3 + $0x78] sm:$0xff]
  %v2843 = vmul.f32 %v2635, %v2811
  %v2844 = vmul.f32 %v2636, %v2812
  %v2845 = vmul.f32 %v2637, %v2813
  %v2846 = vmul.f32 %v2638, %v2814
  %v2847 = vmul.f32 %v2639, %v2815
  %v2848 = vmul.f32 %v2640, %v2816
  %v2849 = vmul.f32 %v2641, %v2817
  %v2850 = vmul.f32 %v2642, %v2818
  %v2851 = vmul.f32 %v2643, %v2819
  %v2852 = vmul.f32 %v2644, %v2820
  %v2853 = vmul.f32 %v2645, %v2821
  %v2854 = vmul.f32 %v2646, %v2822
  %v2855 = vmul.f32 %v2647, %v2823
  %v2856 = vmul.f32 %v2648, %v2824
  %v2857 = vmul.f32 %v2649, %v2825
  %v2858 = vmul.f32 %v2650, %v2826
  %v2859 = vsub.f32 %v2827, %v2843
  %v2860 = vsub.f32 %v2828, %v2844
  %v2861 = vsub.f32 %v2829, %v2845
  %v2862 = vsub.f32 %v2830, %v2846
  %v2863 = vsub.f32 %v2831, %v2847
  %v2864 = vsub.f32 %v2832, %v2848
  %v2865 = vsub.f32 %v2833, %v2849
  %v2866 = vsub.f32 %v2834, %v2850
  %v2867 = vsub.f32 %v2835, %v2851
  %v2868 = vsub.f32 %v2836, %v2852
  %v2869 = vsub.f32 %v2837, %v2853
  %v2870 = vsub.f32 %v2838, %v2854
  %v2871 = vsub.f32 %v2839, %v2855
  %v2872 = vsub.f32 %v2840, %v2856
  %v2873 = vsub.f32 %v2841, %v2857
  %v2874 = vsub.f32 %v2842, %v2858
  %2876 = vset.pattern.permute.xlu0 0
  %2877 = vperm.xlu0 %2876, %v2811
  %v2878 = vpop.permute.xlu0 %2877
  %2881 = vset.pattern.permute.xlu0 0
  %2882 = vperm.xlu0 %2881, %v2812
  %v2883 = vpop.permute.xlu0 %2882
  %2886 = vset.pattern.permute.xlu0 0
  %2887 = vperm.xlu0 %2886, %v2813
  %v2888 = vpop.permute.xlu0 %2887
  %2891 = vset.pattern.permute.xlu0 0
  %2892 = vperm.xlu0 %2891, %v2814
  %v2893 = vpop.permute.xlu0 %2892
  %2896 = vset.pattern.permute.xlu0 0
  %2897 = vperm.xlu0 %2896, %v2815
  %v2898 = vpop.permute.xlu0 %2897
  %2901 = vset.pattern.permute.xlu0 0
  %2902 = vperm.xlu0 %2901, %v2816
  %v2903 = vpop.permute.xlu0 %2902
  %2906 = vset.pattern.permute.xlu0 0
  %2907 = vperm.xlu0 %2906, %v2817
  %v2908 = vpop.permute.xlu0 %2907
  %2911 = vset.pattern.permute.xlu0 0
  %2912 = vperm.xlu0 %2911, %v2818
  %v2913 = vpop.permute.xlu0 %2912
  %2916 = vset.pattern.permute.xlu0 0
  %2917 = vperm.xlu0 %2916, %v2819
  %v2918 = vpop.permute.xlu0 %2917
  %2921 = vset.pattern.permute.xlu0 0
  %2922 = vperm.xlu0 %2921, %v2820
  %v2923 = vpop.permute.xlu0 %2922
  %2926 = vset.pattern.permute.xlu0 0
  %2927 = vperm.xlu0 %2926, %v2821
  %v2928 = vpop.permute.xlu0 %2927
  %2931 = vset.pattern.permute.xlu0 0
  %2932 = vperm.xlu0 %2931, %v2822
  %v2933 = vpop.permute.xlu0 %2932
  %2936 = vset.pattern.permute.xlu0 0
  %2937 = vperm.xlu0 %2936, %v2823
  %v2938 = vpop.permute.xlu0 %2937
  %2941 = vset.pattern.permute.xlu0 0
  %2942 = vperm.xlu0 %2941, %v2824
  %v2943 = vpop.permute.xlu0 %2942
  %2946 = vset.pattern.permute.xlu0 0
  %2947 = vperm.xlu0 %2946, %v2825
  %v2948 = vpop.permute.xlu0 %2947
  %2951 = vset.pattern.permute.xlu0 0
  %2952 = vperm.xlu0 %2951, %v2826
  %v2953 = vpop.permute.xlu0 %2952
  %v2955 = vmul.f32 %v2524, %v2878
  %v2956 = vmul.f32 %v2527, %v2883
  %v2957 = vmul.f32 %v2532, %v2888
  %v2958 = vmul.f32 %v2535, %v2893
  %v2959 = vmul.f32 %v2540, %v2898
  %v2960 = vmul.f32 %v2543, %v2903
  %v2961 = vmul.f32 %v2548, %v2908
  %v2962 = vmul.f32 %v2551, %v2913
  %v2963 = vmul.f32 %v2556, %v2918
  %v2964 = vmul.f32 %v2559, %v2923
  %v2965 = vmul.f32 %v2564, %v2928
  %v2966 = vmul.f32 %v2567, %v2933
  %v2967 = vmul.f32 %v2572, %v2938
  %v2968 = vmul.f32 %v2575, %v2943
  %v2969 = vmul.f32 %v2580, %v2948
  %v2970 = vmul.f32 %v2583, %v2953
  %2972 = vset.pattern.permute.xlu0 0
  %2973 = vperm.xlu0 %2972, %v2859
  %v2974 = vpop.permute.xlu0 %2973
  %2977 = vset.pattern.permute.xlu0 0
  %2978 = vperm.xlu0 %2977, %v2860
  %v2979 = vpop.permute.xlu0 %2978
  %2982 = vset.pattern.permute.xlu0 0
  %2983 = vperm.xlu0 %2982, %v2861
  %v2984 = vpop.permute.xlu0 %2983
  %2987 = vset.pattern.permute.xlu0 0
  %2988 = vperm.xlu0 %2987, %v2862
  %v2989 = vpop.permute.xlu0 %2988
  %2992 = vset.pattern.permute.xlu0 0
  %2993 = vperm.xlu0 %2992, %v2863
  %v2994 = vpop.permute.xlu0 %2993
  %2997 = vset.pattern.permute.xlu0 0
  %2998 = vperm.xlu0 %2997, %v2864
  %v2999 = vpop.permute.xlu0 %2998
  %3002 = vset.pattern.permute.xlu0 0
  %3003 = vperm.xlu0 %3002, %v2865
  %v3004 = vpop.permute.xlu0 %3003
  %3007 = vset.pattern.permute.xlu0 0
  %3008 = vperm.xlu0 %3007, %v2866
  %v3009 = vpop.permute.xlu0 %3008
  %3012 = vset.pattern.permute.xlu0 0
  %3013 = vperm.xlu0 %3012, %v2867
  %v3014 = vpop.permute.xlu0 %3013
  %3017 = vset.pattern.permute.xlu0 0
  %3018 = vperm.xlu0 %3017, %v2868
  %v3019 = vpop.permute.xlu0 %3018
  %3022 = vset.pattern.permute.xlu0 0
  %3023 = vperm.xlu0 %3022, %v2869
  %v3024 = vpop.permute.xlu0 %3023
  %3027 = vset.pattern.permute.xlu0 0
  %3028 = vperm.xlu0 %3027, %v2870
  %v3029 = vpop.permute.xlu0 %3028
  %3032 = vset.pattern.permute.xlu0 0
  %3033 = vperm.xlu0 %3032, %v2871
  %v3034 = vpop.permute.xlu0 %3033
  %3037 = vset.pattern.permute.xlu0 0
  %3038 = vperm.xlu0 %3037, %v2872
  %v3039 = vpop.permute.xlu0 %3038
  %3042 = vset.pattern.permute.xlu0 0
  %3043 = vperm.xlu0 %3042, %v2873
  %v3044 = vpop.permute.xlu0 %3043
  %3047 = vset.pattern.permute.xlu0 0
  %3048 = vperm.xlu0 %3047, %v2874
  %v3049 = vpop.permute.xlu0 %3048
  %v3051 = vadd.f32 %v2955, %v2974
  %v3052 = vadd.f32 %v2956, %v2979
  %v3053 = vadd.f32 %v2957, %v2984
  %v3054 = vadd.f32 %v2958, %v2989
  %v3055 = vadd.f32 %v2959, %v2994
  %v3056 = vadd.f32 %v2960, %v2999
  %v3057 = vadd.f32 %v2961, %v3004
  %v3058 = vadd.f32 %v2962, %v3009
  %v3059 = vadd.f32 %v2963, %v3014
  %v3060 = vadd.f32 %v2964, %v3019
  %v3061 = vadd.f32 %v2965, %v3024
  %v3062 = vadd.f32 %v2966, %v3029
  %v3063 = vadd.f32 %v2967, %v3034
  %v3064 = vadd.f32 %v2968, %v3039
  %v3065 = vadd.f32 %v2969, %v3044
  %v3066 = vadd.f32 %v2970, %v3049
  %v3067 = vmul.f32 %v3051, 0.2
  %v3068 = vmul.f32 %v3052, 0.2
  %v3069 = vmul.f32 %v3053, 0.2
  %v3070 = vmul.f32 %v3054, 0.2
  %v3071 = vmul.f32 %v3055, 0.2
  %v3072 = vmul.f32 %v3056, 0.2
  %v3073 = vmul.f32 %v3057, 0.2
  %v3074 = vmul.f32 %v3058, 0.2
  %v3075 = vmul.f32 %v3059, 0.2
  %v3076 = vmul.f32 %v3060, 0.2
  %v3077 = vmul.f32 %v3061, 0.2
  %v3078 = vmul.f32 %v3062, 0.2
  %v3079 = vmul.f32 %v3063, 0.2
  %v3080 = vmul.f32 %v3064, 0.2
  %v3081 = vmul.f32 %v3065, 0.2
  %v3082 = vmul.f32 %v3066, 0.2
  %v3083 = vmax.f32 %v3051, %v3067
  %v3084 = vmax.f32 %v3052, %v3068
  %v3085 = vmax.f32 %v3053, %v3069
  %v3086 = vmax.f32 %v3054, %v3070
  %v3087 = vmax.f32 %v3055, %v3071
  %v3088 = vmax.f32 %v3056, %v3072
  %v3089 = vmax.f32 %v3057, %v3073
  %v3090 = vmax.f32 %v3058, %v3074
  %v3091 = vmax.f32 %v3059, %v3075
  %v3092 = vmax.f32 %v3060, %v3076
  %v3093 = vmax.f32 %v3061, %v3077
  %v3094 = vmax.f32 %v3062, %v3078
  %v3095 = vmax.f32 %v3063, %v3079
  %v3096 = vmax.f32 %v3064, %v3080
  %v3097 = vmax.f32 %v3065, %v3081
  %v3098 = vmax.f32 %v3066, %v3082
  %v3099 = vpack.c.bf16 %v3084, %v3083
  %v3100 = vpack.c.bf16 %v3086, %v3085
  %v3101 = vpack.c.bf16 %v3088, %v3087
  %v3102 = vpack.c.bf16 %v3090, %v3089
  %v3103 = vpack.c.bf16 %v3092, %v3091
  %v3104 = vpack.c.bf16 %v3094, %v3093
  %v3105 = vpack.c.bf16 %v3096, %v3095
  %v3106 = vpack.c.bf16 %v3098, %v3097
  %v3115 = vunpack.c.l.b16 %v3099
  %v3116 = vunpack.c.h.b16 %v3099
  %v3117 = vunpack.c.l.b16 %v3100
  %v3118 = vunpack.c.h.b16 %v3100
  %v3119 = vunpack.c.l.b16 %v3101
  %v3120 = vunpack.c.h.b16 %v3101
  %v3121 = vunpack.c.l.b16 %v3102
  %v3122 = vunpack.c.h.b16 %v3102
  %v3123 = vunpack.c.l.b16 %v3103
  %v3124 = vunpack.c.h.b16 %v3103
  %v3125 = vunpack.c.l.b16 %v3104
  %v3126 = vunpack.c.h.b16 %v3104
  %v3127 = vunpack.c.l.b16 %v3105
  %v3128 = vunpack.c.h.b16 %v3105
  %v3129 = vunpack.c.l.b16 %v3106
  %v3130 = vunpack.c.h.b16 %v3106
  %v3131 = vpack.c.b16 %v3115, %v3115
  %v3132 = vpack.c.b16 %v3116, %v3116
  %v3133 = vpack.c.b16 %v3117, %v3117
  %v3134 = vpack.c.b16 %v3118, %v3118
  %v3135 = vpack.c.b16 %v3119, %v3119
  %v3136 = vpack.c.b16 %v3120, %v3120
  %v3137 = vpack.c.b16 %v3121, %v3121
  %v3138 = vpack.c.b16 %v3122, %v3122
  %v3139 = vpack.c.b16 %v3123, %v3123
  %v3140 = vpack.c.b16 %v3124, %v3124
  %v3141 = vpack.c.b16 %v3125, %v3125
  %v3142 = vpack.c.b16 %v3126, %v3126
  %v3143 = vpack.c.b16 %v3127, %v3127
  %v3144 = vpack.c.b16 %v3128, %v3128
  %v3145 = vpack.c.b16 %v3129, %v3129
  %v3146 = vpack.c.b16 %v3130, %v3130
  %vm3163 = vcmask 257024
  %3164 = vst.msk [vmem:[%s4] sm:$0xf] %vm3163, %v3131
  %3165 = vst.msk [vmem:[%s4 + $0x4] sm:$0xf] %vm3163, %v3132
  %3166 = vst.msk [vmem:[%s4 + $0x8] sm:$0xf] %vm3163, %v3133
  %3167 = vst.msk [vmem:[%s4 + $0xc] sm:$0xf] %vm3163, %v3134
  %3168 = vst.msk [vmem:[%s4 + $0x10] sm:$0xf] %vm3163, %v3135
  %3169 = vst.msk [vmem:[%s4 + $0x14] sm:$0xf] %vm3163, %v3136
  %3170 = vst.msk [vmem:[%s4 + $0x18] sm:$0xf] %vm3163, %v3137
  %3171 = vst.msk [vmem:[%s4 + $0x1c] sm:$0xf] %vm3163, %v3138
  %3172 = vst.msk [vmem:[%s4 + $0x20] sm:$0xf] %vm3163, %v3139
  %3173 = vst.msk [vmem:[%s4 + $0x24] sm:$0xf] %vm3163, %v3140
  %3174 = vst.msk [vmem:[%s4 + $0x28] sm:$0xf] %vm3163, %v3141
  %3175 = vst.msk [vmem:[%s4 + $0x2c] sm:$0xf] %vm3163, %v3142
  %3176 = vst.msk [vmem:[%s4 + $0x30] sm:$0xf] %vm3163, %v3143
  %3177 = vst.msk [vmem:[%s4 + $0x34] sm:$0xf] %vm3163, %v3144
  %3178 = vst.msk [vmem:[%s4 + $0x38] sm:$0xf] %vm3163, %v3145
  %3179 = vst.msk [vmem:[%s4 + $0x3c] sm:$0xf] %vm3163, %v3146
  // Predicated region
  $region18: #{encoder_forward_pallas.10} parent=0 // pred_check
    _
  $region19: #{encoder_forward_pallas.10} parent=0 // pred_check_branch
    %3181 = sbr.rel (0) target = $region21
  $region20: #{encoder_forward_pallas.10} parent=0 // pred_region
    _
  $region21: #{encoder_forward_pallas.10} parent=0 // pred_fallthru
    _
  // Predicated region
  $region22: #{encoder_forward_pallas.10} parent=0 // pred_check
    _
  $region23: #{encoder_forward_pallas.10} parent=0 // pred_check_branch
    %3183 = sbr.rel (0) target = $region25
  $region24: #{encoder_forward_pallas.10} parent=0 // pred_region
    _
  $region25: #{encoder_forward_pallas.10} parent=0 // pred_fallthru
    _

// kernel: encoder_forward_pallas.11
$region0: #{encoder_forward_pallas.11}
  #allocation0 [shape = 'u32[]', space=smem, size = 0x4, offset = 0x4, fixed_abs, tag = 'smem constant byte address 0x4 - core index']
  #allocation1 [shape = 'u32[144,128]{1,0:T(1,128)}', space=vmem, size = 0x12000, scoped, tag = 'internal scratch']
  %s0 = inlined_call_operand.vmem [shape: bf16[2048,2], index: 0, kind: input, shape index: {}]
  %s1 = inlined_call_operand.vmem [shape: bf16[32,2048], index: 1, kind: input, shape index: {}]
  %s2 = inlined_call_operand.vmem [shape: bf16[32,2048], index: 2, kind: input, shape index: {}]
  %s3 = inlined_call_operand.vmem [shape: f32[32,1], index: 3, kind: input, shape index: {}]
  %s4 = inlined_call_operand.vmem [shape: f32[32,1], index: 4, kind: input, shape index: {}]
  %s5 = inlined_call_operand.vmem [shape: f32[32,2], index: 5, kind: output, shape index: {0}]
  %s6 = inlined_call_operand.vmem [shape: f32[32,2], index: 6, kind: output, shape index: {1}]
  %7 = xla_tuple %s5, %s6
  %s8 = sld [smem:[#allocation0]]
  $region38: #{encoder_forward_pallas.11} parent=0
    _
  %s10 = ssub.s32 1, %s8
  %s11 = scalar_select 0, %s10, %s8
  // Predicated region
  $region2: #{encoder_forward_pallas.11} parent=0 // pred_check
    _
  $region3: #{encoder_forward_pallas.11} parent=0 // pred_check_branch
    %13 = sbr.rel (0) target = $region5
  $region4: #{encoder_forward_pallas.11} parent=0 // pred_region
    _
  $region5: #{encoder_forward_pallas.11} parent=0 // pred_fallthru
    _
  // Predicated region
  $region6: #{encoder_forward_pallas.11} parent=0 // pred_check
    _
  $region7: #{encoder_forward_pallas.11} parent=0 // pred_check_branch
    %15 = sbr.rel (0) target = $region9
  $region8: #{encoder_forward_pallas.11} parent=0 // pred_region
    _
  $region9: #{encoder_forward_pallas.11} parent=0 // pred_fallthru
    _
  // Predicated region
  $region10: #{encoder_forward_pallas.11} parent=0 // pred_check
    _
  $region11: #{encoder_forward_pallas.11} parent=0 // pred_check_branch
    %17 = sbr.rel (0) target = $region13
  $region12: #{encoder_forward_pallas.11} parent=0 // pred_region
    _
  $region13: #{encoder_forward_pallas.11} parent=0 // pred_fallthru
    _
  // Predicated region
  $region14: #{encoder_forward_pallas.11} parent=0 // pred_check
    _
  $region15: #{encoder_forward_pallas.11} parent=0 // pred_check_branch
    %19 = sbr.rel (0) target = $region17
  $region16: #{encoder_forward_pallas.11} parent=0 // pred_region
    _
  $region17: #{encoder_forward_pallas.11} parent=0 // pred_fallthru
    _
  // Predicated region
  $region18: #{encoder_forward_pallas.11} parent=0 // pred_check
    _
  $region19: #{encoder_forward_pallas.11} parent=0 // pred_check_branch
    %21 = sbr.rel (0) target = $region21
  $region20: #{encoder_forward_pallas.11} parent=0 // pred_region
    _
  $region21: #{encoder_forward_pallas.11} parent=0 // pred_fallthru
    _
  %v23 = vld [vmem:[%s0] sm:$0xf]
  %v24 = vld [vmem:[%s0 + $0x4] sm:$0xf]
  %v25 = vld [vmem:[%s0 + $0x8] sm:$0xf]
  %v26 = vld [vmem:[%s0 + $0xc] sm:$0xf]
  %v27 = vld [vmem:[%s0 + $0x10] sm:$0xf]
  %v28 = vld [vmem:[%s0 + $0x14] sm:$0xf]
  %v29 = vld [vmem:[%s0 + $0x18] sm:$0xf]
  %v30 = vld [vmem:[%s0 + $0x1c] sm:$0xf]
  %v31 = vld [vmem:[%s0 + $0x20] sm:$0xf]
  %v32 = vld [vmem:[%s0 + $0x24] sm:$0xf]
  %v33 = vld [vmem:[%s0 + $0x28] sm:$0xf]
  %v34 = vld [vmem:[%s0 + $0x2c] sm:$0xf]
  %v35 = vld [vmem:[%s0 + $0x30] sm:$0xf]
  %v36 = vld [vmem:[%s0 + $0x34] sm:$0xf]
  %v37 = vld [vmem:[%s0 + $0x38] sm:$0xf]
  %v38 = vld [vmem:[%s0 + $0x3c] sm:$0xf]
  %v39 = vld [vmem:[%s0 + $0x40] sm:$0xf]
  %v40 = vld [vmem:[%s0 + $0x44] sm:$0xf]
  %v41 = vld [vmem:[%s0 + $0x48] sm:$0xf]
  %v42 = vld [vmem:[%s0 + $0x4c] sm:$0xf]
  %v43 = vld [vmem:[%s0 + $0x50] sm:$0xf]
  %v44 = vld [vmem:[%s0 + $0x54] sm:$0xf]
  %v45 = vld [vmem:[%s0 + $0x58] sm:$0xf]
  %v46 = vld [vmem:[%s0 + $0x5c] sm:$0xf]
  %v47 = vld [vmem:[%s0 + $0x60] sm:$0xf]
  %v48 = vld [vmem:[%s0 + $0x64] sm:$0xf]
  %v49 = vld [vmem:[%s0 + $0x68] sm:$0xf]
  %v50 = vld [vmem:[%s0 + $0x6c] sm:$0xf]
  %v51 = vld [vmem:[%s0 + $0x70] sm:$0xf]
  %v52 = vld [vmem:[%s0 + $0x74] sm:$0xf]
  %v53 = vld [vmem:[%s0 + $0x78] sm:$0xf]
  %v54 = vld [vmem:[%s0 + $0x7c] sm:$0xf]
  %v55 = vld [vmem:[%s0 + $0x80] sm:$0xf]
  %v56 = vld [vmem:[%s0 + $0x84] sm:$0xf]
  %v57 = vld [vmem:[%s0 + $0x88] sm:$0xf]
  %v58 = vld [vmem:[%s0 + $0x8c] sm:$0xf]
  %v59 = vld [vmem:[%s0 + $0x90] sm:$0xf]
  %v60 = vld [vmem:[%s0 + $0x94] sm:$0xf]
  %v61 = vld [vmem:[%s0 + $0x98] sm:$0xf]
  %v62 = vld [vmem:[%s0 + $0x9c] sm:$0xf]
  %v63 = vld [vmem:[%s0 + $0xa0] sm:$0xf]
  %v64 = vld [vmem:[%s0 + $0xa4] sm:$0xf]
  %v65 = vld [vmem:[%s0 + $0xa8] sm:$0xf]
  %v66 = vld [vmem:[%s0 + $0xac] sm:$0xf]
  %v67 = vld [vmem:[%s0 + $0xb0] sm:$0xf]
  %v68 = vld [vmem:[%s0 + $0xb4] sm:$0xf]
  %v69 = vld [vmem:[%s0 + $0xb8] sm:$0xf]
  %v70 = vld [vmem:[%s0 + $0xbc] sm:$0xf]
  %v71 = vld [vmem:[%s0 + $0xc0] sm:$0xf]
  %v72 = vld [vmem:[%s0 + $0xc4] sm:$0xf]
  %v73 = vld [vmem:[%s0 + $0xc8] sm:$0xf]
  %v74 = vld [vmem:[%s0 + $0xcc] sm:$0xf]
  %v75 = vld [vmem:[%s0 + $0xd0] sm:$0xf]
  %v76 = vld [vmem:[%s0 + $0xd4] sm:$0xf]
  %v77 = vld [vmem:[%s0 + $0xd8] sm:$0xf]
  %v78 = vld [vmem:[%s0 + $0xdc] sm:$0xf]
  %v79 = vld [vmem:[%s0 + $0xe0] sm:$0xf]
  %v80 = vld [vmem:[%s0 + $0xe4] sm:$0xf]
  %v81 = vld [vmem:[%s0 + $0xe8] sm:$0xf]
  %v82 = vld [vmem:[%s0 + $0xec] sm:$0xf]
  %v83 = vld [vmem:[%s0 + $0xf0] sm:$0xf]
  %v84 = vld [vmem:[%s0 + $0xf4] sm:$0xf]
  %v85 = vld [vmem:[%s0 + $0xf8] sm:$0xf]
  %v86 = vld [vmem:[%s0 + $0xfc] sm:$0xf]
  %v87 = vld [vmem:[%s0 + $0x100] sm:$0xf]
  %v88 = vld [vmem:[%s0 + $0x104] sm:$0xf]
  %v89 = vld [vmem:[%s0 + $0x108] sm:$0xf]
  %v90 = vld [vmem:[%s0 + $0x10c] sm:$0xf]
  %v91 = vld [vmem:[%s0 + $0x110] sm:$0xf]
  %v92 = vld [vmem:[%s0 + $0x114] sm:$0xf]
  %v93 = vld [vmem:[%s0 + $0x118] sm:$0xf]
  %v94 = vld [vmem:[%s0 + $0x11c] sm:$0xf]
  %v95 = vld [vmem:[%s0 + $0x120] sm:$0xf]
  %v96 = vld [vmem:[%s0 + $0x124] sm:$0xf]
  %v97 = vld [vmem:[%s0 + $0x128] sm:$0xf]
  %v98 = vld [vmem:[%s0 + $0x12c] sm:$0xf]
  %v99 = vld [vmem:[%s0 + $0x130] sm:$0xf]
  %v100 = vld [vmem:[%s0 + $0x134] sm:$0xf]
  %v101 = vld [vmem:[%s0 + $0x138] sm:$0xf]
  %v102 = vld [vmem:[%s0 + $0x13c] sm:$0xf]
  %v103 = vld [vmem:[%s0 + $0x140] sm:$0xf]
  %v104 = vld [vmem:[%s0 + $0x144] sm:$0xf]
  %v105 = vld [vmem:[%s0 + $0x148] sm:$0xf]
  %v106 = vld [vmem:[%s0 + $0x14c] sm:$0xf]
  %v107 = vld [vmem:[%s0 + $0x150] sm:$0xf]
  %v108 = vld [vmem:[%s0 + $0x154] sm:$0xf]
  %v109 = vld [vmem:[%s0 + $0x158] sm:$0xf]
  %v110 = vld [vmem:[%s0 + $0x15c] sm:$0xf]
  %v111 = vld [vmem:[%s0 + $0x160] sm:$0xf]
  %v112 = vld [vmem:[%s0 + $0x164] sm:$0xf]
  %v113 = vld [vmem:[%s0 + $0x168] sm:$0xf]
  %v114 = vld [vmem:[%s0 + $0x16c] sm:$0xf]
  %v115 = vld [vmem:[%s0 + $0x170] sm:$0xf]
  %v116 = vld [vmem:[%s0 + $0x174] sm:$0xf]
  %v117 = vld [vmem:[%s0 + $0x178] sm:$0xf]
  %v118 = vld [vmem:[%s0 + $0x17c] sm:$0xf]
  %v119 = vld [vmem:[%s0 + $0x180] sm:$0xf]
  %v120 = vld [vmem:[%s0 + $0x184] sm:$0xf]
  %v121 = vld [vmem:[%s0 + $0x188] sm:$0xf]
  %v122 = vld [vmem:[%s0 + $0x18c] sm:$0xf]
  %v123 = vld [vmem:[%s0 + $0x190] sm:$0xf]
  %v124 = vld [vmem:[%s0 + $0x194] sm:$0xf]
  %v125 = vld [vmem:[%s0 + $0x198] sm:$0xf]
  %v126 = vld [vmem:[%s0 + $0x19c] sm:$0xf]
  %v127 = vld [vmem:[%s0 + $0x1a0] sm:$0xf]
  %v128 = vld [vmem:[%s0 + $0x1a4] sm:$0xf]
  %v129 = vld [vmem:[%s0 + $0x1a8] sm:$0xf]
  %v130 = vld [vmem:[%s0 + $0x1ac] sm:$0xf]
  %v131 = vld [vmem:[%s0 + $0x1b0] sm:$0xf]
  %v132 = vld [vmem:[%s0 + $0x1b4] sm:$0xf]
  %v133 = vld [vmem:[%s0 + $0x1b8] sm:$0xf]
  %v134 = vld [vmem:[%s0 + $0x1bc] sm:$0xf]
  %v135 = vld [vmem:[%s0 + $0x1c0] sm:$0xf]
  %v136 = vld [vmem:[%s0 + $0x1c4] sm:$0xf]
  %v137 = vld [vmem:[%s0 + $0x1c8] sm:$0xf]
  %v138 = vld [vmem:[%s0 + $0x1cc] sm:$0xf]
  %v139 = vld [vmem:[%s0 + $0x1d0] sm:$0xf]
  %v140 = vld [vmem:[%s0 + $0x1d4] sm:$0xf]
  %v141 = vld [vmem:[%s0 + $0x1d8] sm:$0xf]
  %v142 = vld [vmem:[%s0 + $0x1dc] sm:$0xf]
  %v143 = vld [vmem:[%s0 + $0x1e0] sm:$0xf]
  %v144 = vld [vmem:[%s0 + $0x1e4] sm:$0xf]
  %v145 = vld [vmem:[%s0 + $0x1e8] sm:$0xf]
  %v146 = vld [vmem:[%s0 + $0x1ec] sm:$0xf]
  %v147 = vld [vmem:[%s0 + $0x1f0] sm:$0xf]
  %v148 = vld [vmem:[%s0 + $0x1f4] sm:$0xf]
  %v149 = vld [vmem:[%s0 + $0x1f8] sm:$0xf]
  %v150 = vld [vmem:[%s0 + $0x1fc] sm:$0xf]
  %v151 = vld [vmem:[%s0 + $0x200] sm:$0xf]
  %v152 = vld [vmem:[%s0 + $0x204] sm:$0xf]
  %v153 = vld [vmem:[%s0 + $0x208] sm:$0xf]
  %v154 = vld [vmem:[%s0 + $0x20c] sm:$0xf]
  %v155 = vld [vmem:[%s0 + $0x210] sm:$0xf]
  %v156 = vld [vmem:[%s0 + $0x214] sm:$0xf]
  %v157 = vld [vmem:[%s0 + $0x218] sm:$0xf]
  %v158 = vld [vmem:[%s0 + $0x21c] sm:$0xf]
  %v159 = vld [vmem:[%s0 + $0x220] sm:$0xf]
  %v160 = vld [vmem:[%s0 + $0x224] sm:$0xf]
  %v161 = vld [vmem:[%s0 + $0x228] sm:$0xf]
  %v162 = vld [vmem:[%s0 + $0x22c] sm:$0xf]
  %v163 = vld [vmem:[%s0 + $0x230] sm:$0xf]
  %v164 = vld [vmem:[%s0 + $0x234] sm:$0xf]
  %v165 = vld [vmem:[%s0 + $0x238] sm:$0xf]
  %v166 = vld [vmem:[%s0 + $0x23c] sm:$0xf]
  %v167 = vld [vmem:[%s0 + $0x240] sm:$0xf]
  %v168 = vld [vmem:[%s0 + $0x244] sm:$0xf]
  %v169 = vld [vmem:[%s0 + $0x248] sm:$0xf]
  %v170 = vld [vmem:[%s0 + $0x24c] sm:$0xf]
  %v171 = vld [vmem:[%s0 + $0x250] sm:$0xf]
  %v172 = vld [vmem:[%s0 + $0x254] sm:$0xf]
  %v173 = vld [vmem:[%s0 + $0x258] sm:$0xf]
  %v174 = vld [vmem:[%s0 + $0x25c] sm:$0xf]
  %v175 = vld [vmem:[%s0 + $0x260] sm:$0xf]
  %v176 = vld [vmem:[%s0 + $0x264] sm:$0xf]
  %v177 = vld [vmem:[%s0 + $0x268] sm:$0xf]
  %v178 = vld [vmem:[%s0 + $0x26c] sm:$0xf]
  %v179 = vld [vmem:[%s0 + $0x270] sm:$0xf]
  %v180 = vld [vmem:[%s0 + $0x274] sm:$0xf]
  %v181 = vld [vmem:[%s0 + $0x278] sm:$0xf]
  %v182 = vld [vmem:[%s0 + $0x27c] sm:$0xf]
  %v183 = vld [vmem:[%s0 + $0x280] sm:$0xf]
  %v184 = vld [vmem:[%s0 + $0x284] sm:$0xf]
  %v185 = vld [vmem:[%s0 + $0x288] sm:$0xf]
  %v186 = vld [vmem:[%s0 + $0x28c] sm:$0xf]
  %v187 = vld [vmem:[%s0 + $0x290] sm:$0xf]
  %v188 = vld [vmem:[%s0 + $0x294] sm:$0xf]
  %v189 = vld [vmem:[%s0 + $0x298] sm:$0xf]
  %v190 = vld [vmem:[%s0 + $0x29c] sm:$0xf]
  %v191 = vld [vmem:[%s0 + $0x2a0] sm:$0xf]
  %v192 = vld [vmem:[%s0 + $0x2a4] sm:$0xf]
  %v193 = vld [vmem:[%s0 + $0x2a8] sm:$0xf]
  %v194 = vld [vmem:[%s0 + $0x2ac] sm:$0xf]
  %v195 = vld [vmem:[%s0 + $0x2b0] sm:$0xf]
  %v196 = vld [vmem:[%s0 + $0x2b4] sm:$0xf]
  %v197 = vld [vmem:[%s0 + $0x2b8] sm:$0xf]
  %v198 = vld [vmem:[%s0 + $0x2bc] sm:$0xf]
  %v199 = vld [vmem:[%s0 + $0x2c0] sm:$0xf]
  %v200 = vld [vmem:[%s0 + $0x2c4] sm:$0xf]
  %v201 = vld [vmem:[%s0 + $0x2c8] sm:$0xf]
  %v202 = vld [vmem:[%s0 + $0x2cc] sm:$0xf]
  %v203 = vld [vmem:[%s0 + $0x2d0] sm:$0xf]
  %v204 = vld [vmem:[%s0 + $0x2d4] sm:$0xf]
  %v205 = vld [vmem:[%s0 + $0x2d8] sm:$0xf]
  %v206 = vld [vmem:[%s0 + $0x2dc] sm:$0xf]
  %v207 = vld [vmem:[%s0 + $0x2e0] sm:$0xf]
  %v208 = vld [vmem:[%s0 + $0x2e4] sm:$0xf]
  %v209 = vld [vmem:[%s0 + $0x2e8] sm:$0xf]
  %v210 = vld [vmem:[%s0 + $0x2ec] sm:$0xf]
  %v211 = vld [vmem:[%s0 + $0x2f0] sm:$0xf]
  %v212 = vld [vmem:[%s0 + $0x2f4] sm:$0xf]
  %v213 = vld [vmem:[%s0 + $0x2f8] sm:$0xf]
  %v214 = vld [vmem:[%s0 + $0x2fc] sm:$0xf]
  %v215 = vld [vmem:[%s0 + $0x300] sm:$0xf]
  %v216 = vld [vmem:[%s0 + $0x304] sm:$0xf]
  %v217 = vld [vmem:[%s0 + $0x308] sm:$0xf]
  %v218 = vld [vmem:[%s0 + $0x30c] sm:$0xf]
  %v219 = vld [vmem:[%s0 + $0x310] sm:$0xf]
  %v220 = vld [vmem:[%s0 + $0x314] sm:$0xf]
  %v221 = vld [vmem:[%s0 + $0x318] sm:$0xf]
  %v222 = vld [vmem:[%s0 + $0x31c] sm:$0xf]
  %v223 = vld [vmem:[%s0 + $0x320] sm:$0xf]
  %v224 = vld [vmem:[%s0 + $0x324] sm:$0xf]
  %v225 = vld [vmem:[%s0 + $0x328] sm:$0xf]
  %v226 = vld [vmem:[%s0 + $0x32c] sm:$0xf]
  %v227 = vld [vmem:[%s0 + $0x330] sm:$0xf]
  %v228 = vld [vmem:[%s0 + $0x334] sm:$0xf]
  %v229 = vld [vmem:[%s0 + $0x338] sm:$0xf]
  %v230 = vld [vmem:[%s0 + $0x33c] sm:$0xf]
  %v231 = vld [vmem:[%s0 + $0x340] sm:$0xf]
  %v232 = vld [vmem:[%s0 + $0x344] sm:$0xf]
  %v233 = vld [vmem:[%s0 + $0x348] sm:$0xf]
  %v234 = vld [vmem:[%s0 + $0x34c] sm:$0xf]
  %v235 = vld [vmem:[%s0 + $0x350] sm:$0xf]
  %v236 = vld [vmem:[%s0 + $0x354] sm:$0xf]
  %v237 = vld [vmem:[%s0 + $0x358] sm:$0xf]
  %v238 = vld [vmem:[%s0 + $0x35c] sm:$0xf]
  %v239 = vld [vmem:[%s0 + $0x360] sm:$0xf]
  %v240 = vld [vmem:[%s0 + $0x364] sm:$0xf]
  %v241 = vld [vmem:[%s0 + $0x368] sm:$0xf]
  %v242 = vld [vmem:[%s0 + $0x36c] sm:$0xf]
  %v243 = vld [vmem:[%s0 + $0x370] sm:$0xf]
  %v244 = vld [vmem:[%s0 + $0x374] sm:$0xf]
  %v245 = vld [vmem:[%s0 + $0x378] sm:$0xf]
  %v246 = vld [vmem:[%s0 + $0x37c] sm:$0xf]
  %v247 = vld [vmem:[%s0 + $0x380] sm:$0xf]
  %v248 = vld [vmem:[%s0 + $0x384] sm:$0xf]
  %v249 = vld [vmem:[%s0 + $0x388] sm:$0xf]
  %v250 = vld [vmem:[%s0 + $0x38c] sm:$0xf]
  %v251 = vld [vmem:[%s0 + $0x390] sm:$0xf]
  %v252 = vld [vmem:[%s0 + $0x394] sm:$0xf]
  %v253 = vld [vmem:[%s0 + $0x398] sm:$0xf]
  %v254 = vld [vmem:[%s0 + $0x39c] sm:$0xf]
  %v255 = vld [vmem:[%s0 + $0x3a0] sm:$0xf]
  %v256 = vld [vmem:[%s0 + $0x3a4] sm:$0xf]
  %v257 = vld [vmem:[%s0 + $0x3a8] sm:$0xf]
  %v258 = vld [vmem:[%s0 + $0x3ac] sm:$0xf]
  %v259 = vld [vmem:[%s0 + $0x3b0] sm:$0xf]
  %v260 = vld [vmem:[%s0 + $0x3b4] sm:$0xf]
  %v261 = vld [vmem:[%s0 + $0x3b8] sm:$0xf]
  %v262 = vld [vmem:[%s0 + $0x3bc] sm:$0xf]
  %v263 = vld [vmem:[%s0 + $0x3c0] sm:$0xf]
  %v264 = vld [vmem:[%s0 + $0x3c4] sm:$0xf]
  %v265 = vld [vmem:[%s0 + $0x3c8] sm:$0xf]
  %v266 = vld [vmem:[%s0 + $0x3cc] sm:$0xf]
  %v267 = vld [vmem:[%s0 + $0x3d0] sm:$0xf]
  %v268 = vld [vmem:[%s0 + $0x3d4] sm:$0xf]
  %v269 = vld [vmem:[%s0 + $0x3d8] sm:$0xf]
  %v270 = vld [vmem:[%s0 + $0x3dc] sm:$0xf]
  %v271 = vld [vmem:[%s0 + $0x3e0] sm:$0xf]
  %v272 = vld [vmem:[%s0 + $0x3e4] sm:$0xf]
  %v273 = vld [vmem:[%s0 + $0x3e8] sm:$0xf]
  %v274 = vld [vmem:[%s0 + $0x3ec] sm:$0xf]
  %v275 = vld [vmem:[%s0 + $0x3f0] sm:$0xf]
  %v276 = vld [vmem:[%s0 + $0x3f4] sm:$0xf]
  %v277 = vld [vmem:[%s0 + $0x3f8] sm:$0xf]
  %v278 = vld [vmem:[%s0 + $0x3fc] sm:$0xf]
  %v279 = vld [vmem:[%s1] sm:$0xff]
  %v280 = vld [vmem:[%s1 + $0x8] sm:$0xff]
  %v281 = vld [vmem:[%s1 + $0x10] sm:$0xff]
  %v282 = vld [vmem:[%s1 + $0x18] sm:$0xff]
  %v283 = vld [vmem:[%s1 + $0x20] sm:$0xff]
  %v284 = vld [vmem:[%s1 + $0x28] sm:$0xff]
  %v285 = vld [vmem:[%s1 + $0x30] sm:$0xff]
  %v286 = vld [vmem:[%s1 + $0x38] sm:$0xff]
  %v287 = vld [vmem:[%s1 + $0x40] sm:$0xff]
  %v288 = vld [vmem:[%s1 + $0x48] sm:$0xff]
  %v289 = vld [vmem:[%s1 + $0x50] sm:$0xff]
  %v290 = vld [vmem:[%s1 + $0x58] sm:$0xff]
  %v291 = vld [vmem:[%s1 + $0x60] sm:$0xff]
  %v292 = vld [vmem:[%s1 + $0x68] sm:$0xff]
  %v293 = vld [vmem:[%s1 + $0x70] sm:$0xff]
  %v294 = vld [vmem:[%s1 + $0x78] sm:$0xff]
  %v295 = vld [vmem:[%s1 + $0x80] sm:$0xff]
  %v296 = vld [vmem:[%s1 + $0x88] sm:$0xff]
  %v297 = vld [vmem:[%s1 + $0x90] sm:$0xff]
  %v298 = vld [vmem:[%s1 + $0x98] sm:$0xff]
  %v299 = vld [vmem:[%s1 + $0xa0] sm:$0xff]
  %v300 = vld [vmem:[%s1 + $0xa8] sm:$0xff]
  %v301 = vld [vmem:[%s1 + $0xb0] sm:$0xff]
  %v302 = vld [vmem:[%s1 + $0xb8] sm:$0xff]
  %v303 = vld [vmem:[%s1 + $0xc0] sm:$0xff]
  %v304 = vld [vmem:[%s1 + $0xc8] sm:$0xff]
  %v305 = vld [vmem:[%s1 + $0xd0] sm:$0xff]
  %v306 = vld [vmem:[%s1 + $0xd8] sm:$0xff]
  %v307 = vld [vmem:[%s1 + $0xe0] sm:$0xff]
  %v308 = vld [vmem:[%s1 + $0xe8] sm:$0xff]
  %v309 = vld [vmem:[%s1 + $0xf0] sm:$0xff]
  %v310 = vld [vmem:[%s1 + $0xf8] sm:$0xff]
  %v311 = vld [vmem:[%s3] sm:$0xff]
  %v312 = vld [vmem:[%s3 + $0x8] sm:$0xff]
  %v313 = vld [vmem:[%s3 + $0x10] sm:$0xff]
  %v314 = vld [vmem:[%s3 + $0x18] sm:$0xff]
  %316 = vset.pattern.permute.xlu0 0
  %317 = vperm.xlu0 %316, %v311
  %v318 = vpop.permute.xlu0 %317
  %321 = vset.pattern.permute.xlu0 0
  %322 = vperm.xlu0 %321, %v312
  %v323 = vpop.permute.xlu0 %322
  %326 = vset.pattern.permute.xlu0 0
  %327 = vperm.xlu0 %326, %v313
  %v328 = vpop.permute.xlu0 %327
  %331 = vset.pattern.permute.xlu0 0
  %332 = vperm.xlu0 %331, %v314
  %v333 = vpop.permute.xlu0 %332
  %v367 = vunpack.c.l.b16 %v279
  %v368 = vunpack.c.h.b16 %v279
  %v369 = vunpack.c.l.b16 %v280
  %v370 = vunpack.c.h.b16 %v280
  %v371 = vunpack.c.l.b16 %v281
  %v372 = vunpack.c.h.b16 %v281
  %v373 = vunpack.c.l.b16 %v282
  %v374 = vunpack.c.h.b16 %v282
  %v375 = vunpack.c.l.b16 %v283
  %v376 = vunpack.c.h.b16 %v283
  %v377 = vunpack.c.l.b16 %v284
  %v378 = vunpack.c.h.b16 %v284
  %v379 = vunpack.c.l.b16 %v285
  %v380 = vunpack.c.h.b16 %v285
  %v381 = vunpack.c.l.b16 %v286
  %v382 = vunpack.c.h.b16 %v286
  %v383 = vunpack.c.l.b16 %v287
  %v384 = vunpack.c.h.b16 %v287
  %v385 = vunpack.c.l.b16 %v288
  %v386 = vunpack.c.h.b16 %v288
  %v387 = vunpack.c.l.b16 %v289
  %v388 = vunpack.c.h.b16 %v289
  %v389 = vunpack.c.l.b16 %v290
  %v390 = vunpack.c.h.b16 %v290
  %v391 = vunpack.c.l.b16 %v291
  %v392 = vunpack.c.h.b16 %v291
  %v393 = vunpack.c.l.b16 %v292
  %v394 = vunpack.c.h.b16 %v292
  %v395 = vunpack.c.l.b16 %v293
  %v396 = vunpack.c.h.b16 %v293
  %v397 = vunpack.c.l.b16 %v294
  %v398 = vunpack.c.h.b16 %v294
  %v399 = vunpack.c.l.b16 %v295
  %v400 = vunpack.c.h.b16 %v295
  %v401 = vunpack.c.l.b16 %v296
  %v402 = vunpack.c.h.b16 %v296
  %v403 = vunpack.c.l.b16 %v297
  %v404 = vunpack.c.h.b16 %v297
  %v405 = vunpack.c.l.b16 %v298
  %v406 = vunpack.c.h.b16 %v298
  %v407 = vunpack.c.l.b16 %v299
  %v408 = vunpack.c.h.b16 %v299
  %v409 = vunpack.c.l.b16 %v300
  %v410 = vunpack.c.h.b16 %v300
  %v411 = vunpack.c.l.b16 %v301
  %v412 = vunpack.c.h.b16 %v301
  %v413 = vunpack.c.l.b16 %v302
  %v414 = vunpack.c.h.b16 %v302
  %v415 = vunpack.c.l.b16 %v303
  %v416 = vunpack.c.h.b16 %v303
  %v417 = vunpack.c.l.b16 %v304
  %v418 = vunpack.c.h.b16 %v304
  %v419 = vunpack.c.l.b16 %v305
  %v420 = vunpack.c.h.b16 %v305
  %v421 = vunpack.c.l.b16 %v306
  %v422 = vunpack.c.h.b16 %v306
  %v423 = vunpack.c.l.b16 %v307
  %v424 = vunpack.c.h.b16 %v307
  %v425 = vunpack.c.l.b16 %v308
  %v426 = vunpack.c.h.b16 %v308
  %v427 = vunpack.c.l.b16 %v309
  %v428 = vunpack.c.h.b16 %v309
  %v429 = vunpack.c.l.b16 %v310
  %v430 = vunpack.c.h.b16 %v310
  %v431 = vpack.c.b16 %v383, %v367
  %v432 = vpack.c.b16 %v384, %v368
  %v433 = vpack.c.b16 %v385, %v369
  %v434 = vpack.c.b16 %v386, %v370
  %v435 = vpack.c.b16 %v387, %v371
  %v436 = vpack.c.b16 %v388, %v372
  %v437 = vpack.c.b16 %v389, %v373
  %v438 = vpack.c.b16 %v390, %v374
  %v439 = vpack.c.b16 %v391, %v375
  %v440 = vpack.c.b16 %v392, %v376
  %v441 = vpack.c.b16 %v393, %v377
  %v442 = vpack.c.b16 %v394, %v378
  %v443 = vpack.c.b16 %v395, %v379
  %v444 = vpack.c.b16 %v396, %v380
  %v445 = vpack.c.b16 %v397, %v381
  %v446 = vpack.c.b16 %v398, %v382
  %v447 = vpack.c.b16 %v415, %v399
  %v448 = vpack.c.b16 %v416, %v400
  %v449 = vpack.c.b16 %v417, %v401
  %v450 = vpack.c.b16 %v418, %v402
  %v451 = vpack.c.b16 %v419, %v403
  %v452 = vpack.c.b16 %v420, %v404
  %v453 = vpack.c.b16 %v421, %v405
  %v454 = vpack.c.b16 %v422, %v406
  %v455 = vpack.c.b16 %v423, %v407
  %v456 = vpack.c.b16 %v424, %v408
  %v457 = vpack.c.b16 %v425, %v409
  %v458 = vpack.c.b16 %v426, %v410
  %v459 = vpack.c.b16 %v427, %v411
  %v460 = vpack.c.b16 %v428, %v412
  %v461 = vpack.c.b16 %v429, %v413
  %v462 = vpack.c.b16 %v430, %v414
  %v751 = vunpack.c.l.b16 %v23
  %v752 = vunpack.c.l.b16 %v24
  %v753 = vunpack.c.l.b16 %v25
  %v754 = vunpack.c.l.b16 %v26
  %v755 = vunpack.c.l.b16 %v27
  %v756 = vunpack.c.l.b16 %v28
  %v757 = vunpack.c.l.b16 %v29
  %v758 = vunpack.c.l.b16 %v30
  %v759 = vunpack.c.l.b16 %v31
  %v760 = vunpack.c.l.b16 %v32
  %v761 = vunpack.c.l.b16 %v33
  %v762 = vunpack.c.l.b16 %v34
  %v763 = vunpack.c.l.b16 %v35
  %v764 = vunpack.c.l.b16 %v36
  %v765 = vunpack.c.l.b16 %v37
  %v766 = vunpack.c.l.b16 %v38
  %v767 = vunpack.c.l.b16 %v39
  %v768 = vunpack.c.l.b16 %v40
  %v769 = vunpack.c.l.b16 %v41
  %v770 = vunpack.c.l.b16 %v42
  %v771 = vunpack.c.l.b16 %v43
  %v772 = vunpack.c.l.b16 %v44
  %v773 = vunpack.c.l.b16 %v45
  %v774 = vunpack.c.l.b16 %v46
  %v775 = vunpack.c.l.b16 %v47
  %v776 = vunpack.c.l.b16 %v48
  %v777 = vunpack.c.l.b16 %v49
  %v778 = vunpack.c.l.b16 %v50
  %v779 = vunpack.c.l.b16 %v51
  %v780 = vunpack.c.l.b16 %v52
  %v781 = vunpack.c.l.b16 %v53
  %v782 = vunpack.c.l.b16 %v54
  %v783 = vunpack.c.l.b16 %v55
  %v784 = vunpack.c.l.b16 %v56
  %v785 = vunpack.c.l.b16 %v57
  %v786 = vunpack.c.l.b16 %v58
  %v787 = vunpack.c.l.b16 %v59
  %v788 = vunpack.c.l.b16 %v60
  %v789 = vunpack.c.l.b16 %v61
  %v790 = vunpack.c.l.b16 %v62
  %v791 = vunpack.c.l.b16 %v63
  %v792 = vunpack.c.l.b16 %v64
  %v793 = vunpack.c.l.b16 %v65
  %v794 = vunpack.c.l.b16 %v66
  %v795 = vunpack.c.l.b16 %v67
  %v796 = vunpack.c.l.b16 %v68
  %v797 = vunpack.c.l.b16 %v69
  %v798 = vunpack.c.l.b16 %v70
  %v799 = vunpack.c.l.b16 %v71
  %v800 = vunpack.c.l.b16 %v72
  %v801 = vunpack.c.l.b16 %v73
  %v802 = vunpack.c.l.b16 %v74
  %v803 = vunpack.c.l.b16 %v75
  %v804 = vunpack.c.l.b16 %v76
  %v805 = vunpack.c.l.b16 %v77
  %v806 = vunpack.c.l.b16 %v78
  %v807 = vunpack.c.l.b16 %v79
  %v808 = vunpack.c.l.b16 %v80
  %v809 = vunpack.c.l.b16 %v81
  %v810 = vunpack.c.l.b16 %v82
  %v811 = vunpack.c.l.b16 %v83
  %v812 = vunpack.c.l.b16 %v84
  %v813 = vunpack.c.l.b16 %v85
  %v814 = vunpack.c.l.b16 %v86
  %v815 = vunpack.c.l.b16 %v87
  %v816 = vunpack.c.l.b16 %v88
  %v817 = vunpack.c.l.b16 %v89
  %v818 = vunpack.c.l.b16 %v90
  %v819 = vunpack.c.l.b16 %v91
  %v820 = vunpack.c.l.b16 %v92
  %v821 = vunpack.c.l.b16 %v93
  %v822 = vunpack.c.l.b16 %v94
  %v823 = vunpack.c.l.b16 %v95
  %v824 = vunpack.c.l.b16 %v96
  %v825 = vunpack.c.l.b16 %v97
  %v826 = vunpack.c.l.b16 %v98
  %v827 = vunpack.c.l.b16 %v99
  %v828 = vunpack.c.l.b16 %v100
  %v829 = vunpack.c.l.b16 %v101
  %v830 = vunpack.c.l.b16 %v102
  %v831 = vunpack.c.l.b16 %v103
  %v832 = vunpack.c.l.b16 %v104
  %v833 = vunpack.c.l.b16 %v105
  %v834 = vunpack.c.l.b16 %v106
  %v835 = vunpack.c.l.b16 %v107
  %v836 = vunpack.c.l.b16 %v108
  %v837 = vunpack.c.l.b16 %v109
  %v838 = vunpack.c.l.b16 %v110
  %v839 = vunpack.c.l.b16 %v111
  %v840 = vunpack.c.l.b16 %v112
  %v841 = vunpack.c.l.b16 %v113
  %v842 = vunpack.c.l.b16 %v114
  %v843 = vunpack.c.l.b16 %v115
  %v844 = vunpack.c.l.b16 %v116
  %v845 = vunpack.c.l.b16 %v117
  %v846 = vunpack.c.l.b16 %v118
  %v847 = vunpack.c.l.b16 %v119
  %v848 = vunpack.c.l.b16 %v120
  %v849 = vunpack.c.l.b16 %v121
  %v850 = vunpack.c.l.b16 %v122
  %v851 = vunpack.c.l.b16 %v123
  %v852 = vunpack.c.l.b16 %v124
  %v853 = vunpack.c.l.b16 %v125
  %v854 = vunpack.c.l.b16 %v126
  %v855 = vunpack.c.l.b16 %v127
  %v856 = vunpack.c.l.b16 %v128
  %v857 = vunpack.c.l.b16 %v129
  %v858 = vunpack.c.l.b16 %v130
  %v859 = vunpack.c.l.b16 %v131
  %v860 = vunpack.c.l.b16 %v132
  %v861 = vunpack.c.l.b16 %v133
  %v862 = vunpack.c.l.b16 %v134
  %v863 = vunpack.c.l.b16 %v135
  %v864 = vunpack.c.l.b16 %v136
  %v865 = vunpack.c.l.b16 %v137
  %v866 = vunpack.c.l.b16 %v138
  %v867 = vunpack.c.l.b16 %v139
  %v868 = vunpack.c.l.b16 %v140
  %v869 = vunpack.c.l.b16 %v141
  %v870 = vunpack.c.l.b16 %v142
  %v871 = vunpack.c.l.b16 %v143
  %v872 = vunpack.c.l.b16 %v144
  %v873 = vunpack.c.l.b16 %v145
  %v874 = vunpack.c.l.b16 %v146
  %v875 = vunpack.c.l.b16 %v147
  %v876 = vunpack.c.l.b16 %v148
  %v877 = vunpack.c.l.b16 %v149
  %v878 = vunpack.c.l.b16 %v150
  %v879 = vunpack.c.l.b16 %v151
  %v880 = vunpack.c.l.b16 %v152
  %v881 = vunpack.c.l.b16 %v153
  %v882 = vunpack.c.l.b16 %v154
  %v883 = vunpack.c.l.b16 %v155
  %v884 = vunpack.c.l.b16 %v156
  %v885 = vunpack.c.l.b16 %v157
  %v886 = vunpack.c.l.b16 %v158
  %v887 = vunpack.c.l.b16 %v159
  %v888 = vunpack.c.l.b16 %v160
  %v889 = vunpack.c.l.b16 %v161
  %v890 = vunpack.c.l.b16 %v162
  %v891 = vunpack.c.l.b16 %v163
  %v892 = vunpack.c.l.b16 %v164
  %v893 = vunpack.c.l.b16 %v165
  %v894 = vunpack.c.l.b16 %v166
  %v895 = vunpack.c.l.b16 %v167
  %v896 = vunpack.c.l.b16 %v168
  %v897 = vunpack.c.l.b16 %v169
  %v898 = vunpack.c.l.b16 %v170
  %v899 = vunpack.c.l.b16 %v171
  %v900 = vunpack.c.l.b16 %v172
  %v901 = vunpack.c.l.b16 %v173
  %v902 = vunpack.c.l.b16 %v174
  %v903 = vunpack.c.l.b16 %v175
  %v904 = vunpack.c.l.b16 %v176
  %v905 = vunpack.c.l.b16 %v177
  %v906 = vunpack.c.l.b16 %v178
  %v907 = vunpack.c.l.b16 %v179
  %v908 = vunpack.c.l.b16 %v180
  %v909 = vunpack.c.l.b16 %v181
  %v910 = vunpack.c.l.b16 %v182
  %v911 = vunpack.c.l.b16 %v183
  %v912 = vunpack.c.l.b16 %v184
  %v913 = vunpack.c.l.b16 %v185
  %v914 = vunpack.c.l.b16 %v186
  %v915 = vunpack.c.l.b16 %v187
  %v916 = vunpack.c.l.b16 %v188
  %v917 = vunpack.c.l.b16 %v189
  %v918 = vunpack.c.l.b16 %v190
  %v919 = vunpack.c.l.b16 %v191
  %v920 = vunpack.c.l.b16 %v192
  %v921 = vunpack.c.l.b16 %v193
  %v922 = vunpack.c.l.b16 %v194
  %v923 = vunpack.c.l.b16 %v195
  %v924 = vunpack.c.l.b16 %v196
  %v925 = vunpack.c.l.b16 %v197
  %v926 = vunpack.c.l.b16 %v198
  %v927 = vunpack.c.l.b16 %v199
  %v928 = vunpack.c.l.b16 %v200
  %v929 = vunpack.c.l.b16 %v201
  %v930 = vunpack.c.l.b16 %v202
  %v931 = vunpack.c.l.b16 %v203
  %v932 = vunpack.c.l.b16 %v204
  %v933 = vunpack.c.l.b16 %v205
  %v934 = vunpack.c.l.b16 %v206
  %v935 = vunpack.c.l.b16 %v207
  %v936 = vunpack.c.l.b16 %v208
  %v937 = vunpack.c.l.b16 %v209
  %v938 = vunpack.c.l.b16 %v210
  %v939 = vunpack.c.l.b16 %v211
  %v940 = vunpack.c.l.b16 %v212
  %v941 = vunpack.c.l.b16 %v213
  %v942 = vunpack.c.l.b16 %v214
  %v943 = vunpack.c.l.b16 %v215
  %v944 = vunpack.c.l.b16 %v216
  %v945 = vunpack.c.l.b16 %v217
  %v946 = vunpack.c.l.b16 %v218
  %v947 = vunpack.c.l.b16 %v219
  %v948 = vunpack.c.l.b16 %v220
  %v949 = vunpack.c.l.b16 %v221
  %v950 = vunpack.c.l.b16 %v222
  %v951 = vunpack.c.l.b16 %v223
  %v952 = vunpack.c.l.b16 %v224
  %v953 = vunpack.c.l.b16 %v225
  %v954 = vunpack.c.l.b16 %v226
  %v955 = vunpack.c.l.b16 %v227
  %v956 = vunpack.c.l.b16 %v228
  %v957 = vunpack.c.l.b16 %v229
  %v958 = vunpack.c.l.b16 %v230
  %v959 = vunpack.c.l.b16 %v231
  %v960 = vunpack.c.l.b16 %v232
  %v961 = vunpack.c.l.b16 %v233
  %v962 = vunpack.c.l.b16 %v234
  %v963 = vunpack.c.l.b16 %v235
  %v964 = vunpack.c.l.b16 %v236
  %v965 = vunpack.c.l.b16 %v237
  %v966 = vunpack.c.l.b16 %v238
  %v967 = vunpack.c.l.b16 %v239
  %v968 = vunpack.c.l.b16 %v240
  %v969 = vunpack.c.l.b16 %v241
  %v970 = vunpack.c.l.b16 %v242
  %v971 = vunpack.c.l.b16 %v243
  %v972 = vunpack.c.l.b16 %v244
  %v973 = vunpack.c.l.b16 %v245
  %v974 = vunpack.c.l.b16 %v246
  %v975 = vunpack.c.l.b16 %v247
  %v976 = vunpack.c.l.b16 %v248
  %v977 = vunpack.c.l.b16 %v249
  %v978 = vunpack.c.l.b16 %v250
  %v979 = vunpack.c.l.b16 %v251
  %v980 = vunpack.c.l.b16 %v252
  %v981 = vunpack.c.l.b16 %v253
  %v982 = vunpack.c.l.b16 %v254
  %v983 = vunpack.c.l.b16 %v255
  %v984 = vunpack.c.l.b16 %v256
  %v985 = vunpack.c.l.b16 %v257
  %v986 = vunpack.c.l.b16 %v258
  %v987 = vunpack.c.l.b16 %v259
  %v988 = vunpack.c.l.b16 %v260
  %v989 = vunpack.c.l.b16 %v261
  %v990 = vunpack.c.l.b16 %v262
  %v991 = vunpack.c.l.b16 %v263
  %v992 = vunpack.c.l.b16 %v264
  %v993 = vunpack.c.l.b16 %v265
  %v994 = vunpack.c.l.b16 %v266
  %v995 = vunpack.c.l.b16 %v267
  %v996 = vunpack.c.l.b16 %v268
  %v997 = vunpack.c.l.b16 %v269
  %v998 = vunpack.c.l.b16 %v270
  %v999 = vunpack.c.l.b16 %v271
  %v1000 = vunpack.c.l.b16 %v272
  %v1001 = vunpack.c.l.b16 %v273
  %v1002 = vunpack.c.l.b16 %v274
  %v1003 = vunpack.c.l.b16 %v275
  %v1004 = vunpack.c.l.b16 %v276
  %v1005 = vunpack.c.l.b16 %v277
  %v1006 = vunpack.c.l.b16 %v278
  %v1007 = vpack.c.b16 %v752, %v751
  %v1008 = vpack.c.b16 %v754, %v753
  %v1009 = vpack.c.b16 %v756, %v755
  %v1010 = vpack.c.b16 %v758, %v757
  %v1011 = vpack.c.b16 %v760, %v759
  %v1012 = vpack.c.b16 %v762, %v761
  %v1013 = vpack.c.b16 %v764, %v763
  %v1014 = vpack.c.b16 %v766, %v765
  %v1015 = vpack.c.b16 %v768, %v767
  %v1016 = vpack.c.b16 %v770, %v769
  %v1017 = vpack.c.b16 %v772, %v771
  %v1018 = vpack.c.b16 %v774, %v773
  %v1019 = vpack.c.b16 %v776, %v775
  %v1020 = vpack.c.b16 %v778, %v777
  %v1021 = vpack.c.b16 %v780, %v779
  %v1022 = vpack.c.b16 %v782, %v781
  %v1023 = vpack.c.b16 %v784, %v783
  %v1024 = vpack.c.b16 %v786, %v785
  %v1025 = vpack.c.b16 %v788, %v787
  %v1026 = vpack.c.b16 %v790, %v789
  %v1027 = vpack.c.b16 %v792, %v791
  %v1028 = vpack.c.b16 %v794, %v793
  %v1029 = vpack.c.b16 %v796, %v795
  %v1030 = vpack.c.b16 %v798, %v797
  %v1031 = vpack.c.b16 %v800, %v799
  %v1032 = vpack.c.b16 %v802, %v801
  %v1033 = vpack.c.b16 %v804, %v803
  %v1034 = vpack.c.b16 %v806, %v805
  %v1035 = vpack.c.b16 %v808, %v807
  %v1036 = vpack.c.b16 %v810, %v809
  %v1037 = vpack.c.b16 %v812, %v811
  %v1038 = vpack.c.b16 %v814, %v813
  %v1039 = vpack.c.b16 %v816, %v815
  %v1040 = vpack.c.b16 %v818, %v817
  %v1041 = vpack.c.b16 %v820, %v819
  %v1042 = vpack.c.b16 %v822, %v821
  %v1043 = vpack.c.b16 %v824, %v823
  %v1044 = vpack.c.b16 %v826, %v825
  %v1045 = vpack.c.b16 %v828, %v827
  %v1046 = vpack.c.b16 %v830, %v829
  %v1047 = vpack.c.b16 %v832, %v831
  %v1048 = vpack.c.b16 %v834, %v833
  %v1049 = vpack.c.b16 %v836, %v835
  %v1050 = vpack.c.b16 %v838, %v837
  %v1051 = vpack.c.b16 %v840, %v839
  %v1052 = vpack.c.b16 %v842, %v841
  %v1053 = vpack.c.b16 %v844, %v843
  %v1054 = vpack.c.b16 %v846, %v845
  %v1055 = vpack.c.b16 %v848, %v847
  %v1056 = vpack.c.b16 %v850, %v849
  %v1057 = vpack.c.b16 %v852, %v851
  %v1058 = vpack.c.b16 %v854, %v853
  %v1059 = vpack.c.b16 %v856, %v855
  %v1060 = vpack.c.b16 %v858, %v857
  %v1061 = vpack.c.b16 %v860, %v859
  %v1062 = vpack.c.b16 %v862, %v861
  %v1063 = vpack.c.b16 %v864, %v863
  %v1064 = vpack.c.b16 %v866, %v865
  %v1065 = vpack.c.b16 %v868, %v867
  %v1066 = vpack.c.b16 %v870, %v869
  %v1067 = vpack.c.b16 %v872, %v871
  %v1068 = vpack.c.b16 %v874, %v873
  %v1069 = vpack.c.b16 %v876, %v875
  %v1070 = vpack.c.b16 %v878, %v877
  %v1071 = vpack.c.b16 %v880, %v879
  %v1072 = vpack.c.b16 %v882, %v881
  %v1073 = vpack.c.b16 %v884, %v883
  %v1074 = vpack.c.b16 %v886, %v885
  %v1075 = vpack.c.b16 %v888, %v887
  %v1076 = vpack.c.b16 %v890, %v889
  %v1077 = vpack.c.b16 %v892, %v891
  %v1078 = vpack.c.b16 %v894, %v893
  %v1079 = vpack.c.b16 %v896, %v895
  %v1080 = vpack.c.b16 %v898, %v897
  %v1081 = vpack.c.b16 %v900, %v899
  %v1082 = vpack.c.b16 %v902, %v901
  %v1083 = vpack.c.b16 %v904, %v903
  %v1084 = vpack.c.b16 %v906, %v905
  %v1085 = vpack.c.b16 %v908, %v907
  %v1086 = vpack.c.b16 %v910, %v909
  %v1087 = vpack.c.b16 %v912, %v911
  %v1088 = vpack.c.b16 %v914, %v913
  %v1089 = vpack.c.b16 %v916, %v915
  %v1090 = vpack.c.b16 %v918, %v917
  %v1091 = vpack.c.b16 %v920, %v919
  %v1092 = vpack.c.b16 %v922, %v921
  %v1093 = vpack.c.b16 %v924, %v923
  %v1094 = vpack.c.b16 %v926, %v925
  %v1095 = vpack.c.b16 %v928, %v927
  %v1096 = vpack.c.b16 %v930, %v929
  %v1097 = vpack.c.b16 %v932, %v931
  %v1098 = vpack.c.b16 %v934, %v933
  %v1099 = vpack.c.b16 %v936, %v935
  %v1100 = vpack.c.b16 %v938, %v937
  %v1101 = vpack.c.b16 %v940, %v939
  %v1102 = vpack.c.b16 %v942, %v941
  %v1103 = vpack.c.b16 %v944, %v943
  %v1104 = vpack.c.b16 %v946, %v945
  %v1105 = vpack.c.b16 %v948, %v947
  %v1106 = vpack.c.b16 %v950, %v949
  %v1107 = vpack.c.b16 %v952, %v951
  %v1108 = vpack.c.b16 %v954, %v953
  %v1109 = vpack.c.b16 %v956, %v955
  %v1110 = vpack.c.b16 %v958, %v957
  %v1111 = vpack.c.b16 %v960, %v959
  %v1112 = vpack.c.b16 %v962, %v961
  %v1113 = vpack.c.b16 %v964, %v963
  %v1114 = vpack.c.b16 %v966, %v965
  %v1115 = vpack.c.b16 %v968, %v967
  %v1116 = vpack.c.b16 %v970, %v969
  %v1117 = vpack.c.b16 %v972, %v971
  %v1118 = vpack.c.b16 %v974, %v973
  %v1119 = vpack.c.b16 %v976, %v975
  %v1120 = vpack.c.b16 %v978, %v977
  %v1121 = vpack.c.b16 %v980, %v979
  %v1122 = vpack.c.b16 %v982, %v981
  %v1123 = vpack.c.b16 %v984, %v983
  %v1124 = vpack.c.b16 %v986, %v985
  %v1125 = vpack.c.b16 %v988, %v987
  %v1126 = vpack.c.b16 %v990, %v989
  %v1127 = vpack.c.b16 %v992, %v991
  %v1128 = vpack.c.b16 %v994, %v993
  %v1129 = vpack.c.b16 %v996, %v995
  %v1130 = vpack.c.b16 %v998, %v997
  %v1131 = vpack.c.b16 %v1000, %v999
  %v1132 = vpack.c.b16 %v1002, %v1001
  %v1133 = vpack.c.b16 %v1004, %v1003
  %v1134 = vpack.c.b16 %v1006, %v1005
  %1263 = vmatprep.subr.bf16.mxu0 0
  %1264 = vmatpush1.bf16.msra.mxu0 %v1007
  %1265 = vmatprep.subr.bf16.mxu0 0
  %1266 = vmatpush1.bf16.msra.mxu0 %v1008
  %1267 = vmatprep.subr.bf16.mxu0 0
  %1268 = vmatpush1.bf16.msra.mxu0 %v1009
  %1269 = vmatprep.subr.bf16.mxu0 0
  %1270 = vmatpush1.bf16.msra.mxu0 %v1010
  %1271 = vmatprep.subr.bf16.mxu0 0
  %1272 = vmatpush1.bf16.msra.mxu0 %v1011
  %1273 = vmatprep.subr.bf16.mxu0 0
  %1274 = vmatpush1.bf16.msra.mxu0 %v1012
  %1275 = vmatprep.subr.bf16.mxu0 0
  %1276 = vmatpush1.bf16.msra.mxu0 %v1013
  %1277 = vmatprep.subr.bf16.mxu0 0
  %1278 = vmatpush1.bf16.msra.mxu0 %v1014
  %1279 = vmatprep.subr.bf16.mxu0 0
  %1280 = vmatpush1.bf16.msra.mxu0 %v1015
  %1281 = vmatprep.subr.bf16.mxu0 0
  %1282 = vmatpush1.bf16.msra.mxu0 %v1016
  %1283 = vmatprep.subr.bf16.mxu0 0
  %1284 = vmatpush1.bf16.msra.mxu0 %v1017
  %1285 = vmatprep.subr.bf16.mxu0 0
  %1286 = vmatpush1.bf16.msra.mxu0 %v1018
  %1287 = vmatprep.subr.bf16.mxu0 0
  %1288 = vmatpush1.bf16.msra.mxu0 %v1019
  %1289 = vmatprep.subr.bf16.mxu0 0
  %1290 = vmatpush1.bf16.msra.mxu0 %v1020
  %1291 = vmatprep.subr.bf16.mxu0 0
  %1292 = vmatpush1.bf16.msra.mxu0 %v1021
  %1293 = vmatprep.subr.bf16.mxu0 0
  %1294 = vmatpush1.bf16.msra.mxu0 %v1022
  %1295 = vmatprep.mubr.bf16.mxu0 %v432
  %1296 = vmatmul.mubr.bf16.gmra.mrb[0].mxu0 %v431
  %v1297 = vpop.f32.mrb[0].mxu0
  %v1298 = vadd.f32 %v318, %v1297
  %v1299 = vpop.f32.mrb[0].mxu0
  %v1300 = vpop.f32.mrb[0].mxu0
  %v1301 = vadd.f32 %v323, %v1300
  %v1302 = vpop.f32.mrb[0].mxu0
  %1303 = vmatprep.mubr.bf16.mxu0 %v448
  %1304 = vmatmul.mubr.bf16.gmra.mrb[0].mxu0 %v447
  %v1305 = vpop.f32.mrb[0].mxu0
  %v1306 = vadd.f32 %v328, %v1305
  %v1307 = vpop.f32.mrb[0].mxu0
  %v1308 = vpop.f32.mrb[0].mxu0
  %v1309 = vadd.f32 %v333, %v1308
  %v1310 = vpop.f32.mrb[0].mxu0
  %1311 = vdwg.mxu0
  %1312 = vmatprep.subr.bf16.mxu0 0
  %1313 = vmatpush1.bf16.msra.mxu0 %v1023
  %1314 = vmatprep.subr.bf16.mxu0 0
  %1315 = vmatpush1.bf16.msra.mxu0 %v1024
  %1316 = vmatprep.subr.bf16.mxu0 0
  %1317 = vmatpush1.bf16.msra.mxu0 %v1025
  %1318 = vmatprep.subr.bf16.mxu0 0
  %1319 = vmatpush1.bf16.msra.mxu0 %v1026
  %1320 = vmatprep.subr.bf16.mxu0 0
  %1321 = vmatpush1.bf16.msra.mxu0 %v1027
  %1322 = vmatprep.subr.bf16.mxu0 0
  %1323 = vmatpush1.bf16.msra.mxu0 %v1028
  %1324 = vmatprep.subr.bf16.mxu0 0
  %1325 = vmatpush1.bf16.msra.mxu0 %v1029
  %1326 = vmatprep.subr.bf16.mxu0 0
  %1327 = vmatpush1.bf16.msra.mxu0 %v1030
  %1328 = vmatprep.subr.bf16.mxu0 0
  %1329 = vmatpush1.bf16.msra.mxu0 %v1031
  %1330 = vmatprep.subr.bf16.mxu0 0
  %1331 = vmatpush1.bf16.msra.mxu0 %v1032
  %1332 = vmatprep.subr.bf16.mxu0 0
  %1333 = vmatpush1.bf16.msra.mxu0 %v1033
  %1334 = vmatprep.subr.bf16.mxu0 0
  %1335 = vmatpush1.bf16.msra.mxu0 %v1034
  %1336 = vmatprep.subr.bf16.mxu0 0
  %1337 = vmatpush1.bf16.msra.mxu0 %v1035
  %1338 = vmatprep.subr.bf16.mxu0 0
  %1339 = vmatpush1.bf16.msra.mxu0 %v1036
  %1340 = vmatprep.subr.bf16.mxu0 0
  %1341 = vmatpush1.bf16.msra.mxu0 %v1037
  %1342 = vmatprep.subr.bf16.mxu0 0
  %1343 = vmatpush1.bf16.msra.mxu0 %v1038
  %1344 = vmatprep.mubr.bf16.mxu0 %v434
  %1345 = vmatmul.mubr.bf16.gmra.mrb[0].mxu0 %v433
  %v1346 = vpop.f32.mrb[0].mxu0
  %v1347 = vadd.f32 %v1298, %v1346
  %v1348 = vpop.f32.mrb[0].mxu0
  %v1349 = vpop.f32.mrb[0].mxu0
  %v1350 = vadd.f32 %v1301, %v1349
  %v1351 = vpop.f32.mrb[0].mxu0
  %1352 = vmatprep.mubr.bf16.mxu0 %v450
  %1353 = vmatmul.mubr.bf16.gmra.mrb[0].mxu0 %v449
  %v1354 = vpop.f32.mrb[0].mxu0
  %v1355 = vadd.f32 %v1306, %v1354
  %v1356 = vpop.f32.mrb[0].mxu0
  %v1357 = vpop.f32.mrb[0].mxu0
  %v1358 = vadd.f32 %v1309, %v1357
  %v1359 = vpop.f32.mrb[0].mxu0
  %1360 = vdwg.mxu0
  %1361 = vmatprep.subr.bf16.mxu0 0
  %1362 = vmatpush1.bf16.msra.mxu0 %v1039
  %1363 = vmatprep.subr.bf16.mxu0 0
  %1364 = vmatpush1.bf16.msra.mxu0 %v1040
  %1365 = vmatprep.subr.bf16.mxu0 0
  %1366 = vmatpush1.bf16.msra.mxu0 %v1041
  %1367 = vmatprep.subr.bf16.mxu0 0
  %1368 = vmatpush1.bf16.msra.mxu0 %v1042
  %1369 = vmatprep.subr.bf16.mxu0 0
  %1370 = vmatpush1.bf16.msra.mxu0 %v1043
  %1371 = vmatprep.subr.bf16.mxu0 0
  %1372 = vmatpush1.bf16.msra.mxu0 %v1044
  %1373 = vmatprep.subr.bf16.mxu0 0
  %1374 = vmatpush1.bf16.msra.mxu0 %v1045
  %1375 = vmatprep.subr.bf16.mxu0 0
  %1376 = vmatpush1.bf16.msra.mxu0 %v1046
  %1377 = vmatprep.subr.bf16.mxu0 0
  %1378 = vmatpush1.bf16.msra.mxu0 %v1047
  %1379 = vmatprep.subr.bf16.mxu0 0
  %1380 = vmatpush1.bf16.msra.mxu0 %v1048
  %1381 = vmatprep.subr.bf16.mxu0 0
  %1382 = vmatpush1.bf16.msra.mxu0 %v1049
  %1383 = vmatprep.subr.bf16.mxu0 0
  %1384 = vmatpush1.bf16.msra.mxu0 %v1050
  %1385 = vmatprep.subr.bf16.mxu0 0
  %1386 = vmatpush1.bf16.msra.mxu0 %v1051
  %1387 = vmatprep.subr.bf16.mxu0 0
  %1388 = vmatpush1.bf16.msra.mxu0 %v1052
  %1389 = vmatprep.subr.bf16.mxu0 0
  %1390 = vmatpush1.bf16.msra.mxu0 %v1053
  %1391 = vmatprep.subr.bf16.mxu0 0
  %1392 = vmatpush1.bf16.msra.mxu0 %v1054
  %1393 = vmatprep.mubr.bf16.mxu0 %v436
  %1394 = vmatmul.mubr.bf16.gmra.mrb[0].mxu0 %v435
  %v1395 = vpop.f32.mrb[0].mxu0
  %v1396 = vadd.f32 %v1347, %v1395
  %v1397 = vpop.f32.mrb[0].mxu0
  %v1398 = vpop.f32.mrb[0].mxu0
  %v1399 = vadd.f32 %v1350, %v1398
  %v1400 = vpop.f32.mrb[0].mxu0
  %1401 = vmatprep.mubr.bf16.mxu0 %v452
  %1402 = vmatmul.mubr.bf16.gmra.mrb[0].mxu0 %v451
  %v1403 = vpop.f32.mrb[0].mxu0
  %v1404 = vadd.f32 %v1355, %v1403
  %v1405 = vpop.f32.mrb[0].mxu0
  %v1406 = vpop.f32.mrb[0].mxu0
  %v1407 = vadd.f32 %v1358, %v1406
  %v1408 = vpop.f32.mrb[0].mxu0
  %1409 = vdwg.mxu0
  %1410 = vmatprep.subr.bf16.mxu0 0
  %1411 = vmatpush1.bf16.msra.mxu0 %v1055
  %1412 = vmatprep.subr.bf16.mxu0 0
  %1413 = vmatpush1.bf16.msra.mxu0 %v1056
  %1414 = vmatprep.subr.bf16.mxu0 0
  %1415 = vmatpush1.bf16.msra.mxu0 %v1057
  %1416 = vmatprep.subr.bf16.mxu0 0
  %1417 = vmatpush1.bf16.msra.mxu0 %v1058
  %1418 = vmatprep.subr.bf16.mxu0 0
  %1419 = vmatpush1.bf16.msra.mxu0 %v1059
  %1420 = vmatprep.subr.bf16.mxu0 0
  %1421 = vmatpush1.bf16.msra.mxu0 %v1060
  %1422 = vmatprep.subr.bf16.mxu0 0
  %1423 = vmatpush1.bf16.msra.mxu0 %v1061
  %1424 = vmatprep.subr.bf16.mxu0 0
  %1425 = vmatpush1.bf16.msra.mxu0 %v1062
  %1426 = vmatprep.subr.bf16.mxu0 0
  %1427 = vmatpush1.bf16.msra.mxu0 %v1063
  %1428 = vmatprep.subr.bf16.mxu0 0
  %1429 = vmatpush1.bf16.msra.mxu0 %v1064
  %1430 = vmatprep.subr.bf16.mxu0 0
  %1431 = vmatpush1.bf16.msra.mxu0 %v1065
  %1432 = vmatprep.subr.bf16.mxu0 0
  %1433 = vmatpush1.bf16.msra.mxu0 %v1066
  %1434 = vmatprep.subr.bf16.mxu0 0
  %1435 = vmatpush1.bf16.msra.mxu0 %v1067
  %1436 = vmatprep.subr.bf16.mxu0 0
  %1437 = vmatpush1.bf16.msra.mxu0 %v1068
  %1438 = vmatprep.subr.bf16.mxu0 0
  %1439 = vmatpush1.bf16.msra.mxu0 %v1069
  %1440 = vmatprep.subr.bf16.mxu0 0
  %1441 = vmatpush1.bf16.msra.mxu0 %v1070
  %1442 = vmatprep.mubr.bf16.mxu0 %v438
  %1443 = vmatmul.mubr.bf16.gmra.mrb[0].mxu0 %v437
  %v1444 = vpop.f32.mrb[0].mxu0
  %v1445 = vadd.f32 %v1396, %v1444
  %v1446 = vpop.f32.mrb[0].mxu0
  %v1447 = vpop.f32.mrb[0].mxu0
  %v1448 = vadd.f32 %v1399, %v1447
  %v1449 = vpop.f32.mrb[0].mxu0
  %1450 = vmatprep.mubr.bf16.mxu0 %v454
  %1451 = vmatmul.mubr.bf16.gmra.mrb[0].mxu0 %v453
  %v1452 = vpop.f32.mrb[0].mxu0
  %v1453 = vadd.f32 %v1404, %v1452
  %v1454 = vpop.f32.mrb[0].mxu0
  %v1455 = vpop.f32.mrb[0].mxu0
  %v1456 = vadd.f32 %v1407, %v1455
  %v1457 = vpop.f32.mrb[0].mxu0
  %1458 = vdwg.mxu0
  %1459 = vmatprep.subr.bf16.mxu0 0
  %1460 = vmatpush1.bf16.msra.mxu0 %v1071
  %1461 = vmatprep.subr.bf16.mxu0 0
  %1462 = vmatpush1.bf16.msra.mxu0 %v1072
  %1463 = vmatprep.subr.bf16.mxu0 0
  %1464 = vmatpush1.bf16.msra.mxu0 %v1073
  %1465 = vmatprep.subr.bf16.mxu0 0
  %1466 = vmatpush1.bf16.msra.mxu0 %v1074
  %1467 = vmatprep.subr.bf16.mxu0 0
  %1468 = vmatpush1.bf16.msra.mxu0 %v1075
  %1469 = vmatprep.subr.bf16.mxu0 0
  %1470 = vmatpush1.bf16.msra.mxu0 %v1076
  %1471 = vmatprep.subr.bf16.mxu0 0
  %1472 = vmatpush1.bf16.msra.mxu0 %v1077
  %1473 = vmatprep.subr.bf16.mxu0 0
  %1474 = vmatpush1.bf16.msra.mxu0 %v1078
  %1475 = vmatprep.subr.bf16.mxu0 0
  %1476 = vmatpush1.bf16.msra.mxu0 %v1079
  %1477 = vmatprep.subr.bf16.mxu0 0
  %1478 = vmatpush1.bf16.msra.mxu0 %v1080
  %1479 = vmatprep.subr.bf16.mxu0 0
  %1480 = vmatpush1.bf16.msra.mxu0 %v1081
  %1481 = vmatprep.subr.bf16.mxu0 0
  %1482 = vmatpush1.bf16.msra.mxu0 %v1082
  %1483 = vmatprep.subr.bf16.mxu0 0
  %1484 = vmatpush1.bf16.msra.mxu0 %v1083
  %1485 = vmatprep.subr.bf16.mxu0 0
  %1486 = vmatpush1.bf16.msra.mxu0 %v1084
  %1487 = vmatprep.subr.bf16.mxu0 0
  %1488 = vmatpush1.bf16.msra.mxu0 %v1085
  %1489 = vmatprep.subr.bf16.mxu0 0
  %1490 = vmatpush1.bf16.msra.mxu0 %v1086
  %1491 = vmatprep.mubr.bf16.mxu0 %v440
  %1492 = vmatmul.mubr.bf16.gmra.mrb[0].mxu0 %v439
  %v1493 = vpop.f32.mrb[0].mxu0
  %v1494 = vadd.f32 %v1445, %v1493
  %v1495 = vpop.f32.mrb[0].mxu0
  %v1496 = vpop.f32.mrb[0].mxu0
  %v1497 = vadd.f32 %v1448, %v1496
  %v1498 = vpop.f32.mrb[0].mxu0
  %1499 = vmatprep.mubr.bf16.mxu0 %v456
  %1500 = vmatmul.mubr.bf16.gmra.mrb[0].mxu0 %v455
  %v1501 = vpop.f32.mrb[0].mxu0
  %v1502 = vadd.f32 %v1453, %v1501
  %v1503 = vpop.f32.mrb[0].mxu0
  %v1504 = vpop.f32.mrb[0].mxu0
  %v1505 = vadd.f32 %v1456, %v1504
  %v1506 = vpop.f32.mrb[0].mxu0
  %1507 = vdwg.mxu0
  %1508 = vmatprep.subr.bf16.mxu0 0
  %1509 = vmatpush1.bf16.msra.mxu0 %v1087
  %1510 = vmatprep.subr.bf16.mxu0 0
  %1511 = vmatpush1.bf16.msra.mxu0 %v1088
  %1512 = vmatprep.subr.bf16.mxu0 0
  %1513 = vmatpush1.bf16.msra.mxu0 %v1089
  %1514 = vmatprep.subr.bf16.mxu0 0
  %1515 = vmatpush1.bf16.msra.mxu0 %v1090
  %1516 = vmatprep.subr.bf16.mxu0 0
  %1517 = vmatpush1.bf16.msra.mxu0 %v1091
  %1518 = vmatprep.subr.bf16.mxu0 0
  %1519 = vmatpush1.bf16.msra.mxu0 %v1092
  %1520 = vmatprep.subr.bf16.mxu0 0
  %1521 = vmatpush1.bf16.msra.mxu0 %v1093
  %1522 = vmatprep.subr.bf16.mxu0 0
  %1523 = vmatpush1.bf16.msra.mxu0 %v1094
  %1524 = vmatprep.subr.bf16.mxu0 0
  %1525 = vmatpush1.bf16.msra.mxu0 %v1095
  %1526 = vmatprep.subr.bf16.mxu0 0
  %1527 = vmatpush1.bf16.msra.mxu0 %v1096
  %1528 = vmatprep.subr.bf16.mxu0 0
  %1529 = vmatpush1.bf16.msra.mxu0 %v1097
  %1530 = vmatprep.subr.bf16.mxu0 0
  %1531 = vmatpush1.bf16.msra.mxu0 %v1098
  %1532 = vmatprep.subr.bf16.mxu0 0
  %1533 = vmatpush1.bf16.msra.mxu0 %v1099
  %1534 = vmatprep.subr.bf16.mxu0 0
  %1535 = vmatpush1.bf16.msra.mxu0 %v1100
  %1536 = vmatprep.subr.bf16.mxu0 0
  %1537 = vmatpush1.bf16.msra.mxu0 %v1101
  %1538 = vmatprep.subr.bf16.mxu0 0
  %1539 = vmatpush1.bf16.msra.mxu0 %v1102
  %1540 = vmatprep.mubr.bf16.mxu0 %v442
  %1541 = vmatmul.mubr.bf16.gmra.mrb[0].mxu0 %v441
  %v1542 = vpop.f32.mrb[0].mxu0
  %v1543 = vadd.f32 %v1494, %v1542
  %v1544 = vpop.f32.mrb[0].mxu0
  %v1545 = vpop.f32.mrb[0].mxu0
  %v1546 = vadd.f32 %v1497, %v1545
  %v1547 = vpop.f32.mrb[0].mxu0
  %1548 = vmatprep.mubr.bf16.mxu0 %v458
  %1549 = vmatmul.mubr.bf16.gmra.mrb[0].mxu0 %v457
  %v1550 = vpop.f32.mrb[0].mxu0
  %v1551 = vadd.f32 %v1502, %v1550
  %v1552 = vpop.f32.mrb[0].mxu0
  %v1553 = vpop.f32.mrb[0].mxu0
  %v1554 = vadd.f32 %v1505, %v1553
  %v1555 = vpop.f32.mrb[0].mxu0
  %1556 = vdwg.mxu0
  %1557 = vmatprep.subr.bf16.mxu0 0
  %1558 = vmatpush1.bf16.msra.mxu0 %v1103
  %1559 = vmatprep.subr.bf16.mxu0 0
  %1560 = vmatpush1.bf16.msra.mxu0 %v1104
  %1561 = vmatprep.subr.bf16.mxu0 0
  %1562 = vmatpush1.bf16.msra.mxu0 %v1105
  %1563 = vmatprep.subr.bf16.mxu0 0
  %1564 = vmatpush1.bf16.msra.mxu0 %v1106
  %1565 = vmatprep.subr.bf16.mxu0 0
  %1566 = vmatpush1.bf16.msra.mxu0 %v1107
  %1567 = vmatprep.subr.bf16.mxu0 0
  %1568 = vmatpush1.bf16.msra.mxu0 %v1108
  %1569 = vmatprep.subr.bf16.mxu0 0
  %1570 = vmatpush1.bf16.msra.mxu0 %v1109
  %1571 = vmatprep.subr.bf16.mxu0 0
  %1572 = vmatpush1.bf16.msra.mxu0 %v1110
  %1573 = vmatprep.subr.bf16.mxu0 0
  %1574 = vmatpush1.bf16.msra.mxu0 %v1111
  %1575 = vmatprep.subr.bf16.mxu0 0
  %1576 = vmatpush1.bf16.msra.mxu0 %v1112
  %1577 = vmatprep.subr.bf16.mxu0 0
  %1578 = vmatpush1.bf16.msra.mxu0 %v1113
  %1579 = vmatprep.subr.bf16.mxu0 0
  %1580 = vmatpush1.bf16.msra.mxu0 %v1114
  %1581 = vmatprep.subr.bf16.mxu0 0
  %1582 = vmatpush1.bf16.msra.mxu0 %v1115
  %1583 = vmatprep.subr.bf16.mxu0 0
  %1584 = vmatpush1.bf16.msra.mxu0 %v1116
  %1585 = vmatprep.subr.bf16.mxu0 0
  %1586 = vmatpush1.bf16.msra.mxu0 %v1117
  %1587 = vmatprep.subr.bf16.mxu0 0
  %1588 = vmatpush1.bf16.msra.mxu0 %v1118
  %1589 = vmatprep.mubr.bf16.mxu0 %v444
  %1590 = vmatmul.mubr.bf16.gmra.mrb[0].mxu0 %v443
  %v1591 = vpop.f32.mrb[0].mxu0
  %v1592 = vadd.f32 %v1543, %v1591
  %v1593 = vpop.f32.mrb[0].mxu0
  %v1594 = vpop.f32.mrb[0].mxu0
  %v1595 = vadd.f32 %v1546, %v1594
  %v1596 = vpop.f32.mrb[0].mxu0
  %1597 = vmatprep.mubr.bf16.mxu0 %v460
  %1598 = vmatmul.mubr.bf16.gmra.mrb[0].mxu0 %v459
  %v1599 = vpop.f32.mrb[0].mxu0
  %v1600 = vadd.f32 %v1551, %v1599
  %v1601 = vpop.f32.mrb[0].mxu0
  %v1602 = vpop.f32.mrb[0].mxu0
  %v1603 = vadd.f32 %v1554, %v1602
  %v1604 = vpop.f32.mrb[0].mxu0
  %1605 = vdwg.mxu0
  %1606 = vmatprep.subr.bf16.mxu0 0
  %1607 = vmatpush1.bf16.msra.mxu0 %v1119
  %1608 = vmatprep.subr.bf16.mxu0 0
  %1609 = vmatpush1.bf16.msra.mxu0 %v1120
  %1610 = vmatprep.subr.bf16.mxu0 0
  %1611 = vmatpush1.bf16.msra.mxu0 %v1121
  %1612 = vmatprep.subr.bf16.mxu0 0
  %1613 = vmatpush1.bf16.msra.mxu0 %v1122
  %1614 = vmatprep.subr.bf16.mxu0 0
  %1615 = vmatpush1.bf16.msra.mxu0 %v1123
  %1616 = vmatprep.subr.bf16.mxu0 0
  %1617 = vmatpush1.bf16.msra.mxu0 %v1124
  %1618 = vmatprep.subr.bf16.mxu0 0
  %1619 = vmatpush1.bf16.msra.mxu0 %v1125
  %1620 = vmatprep.subr.bf16.mxu0 0
  %1621 = vmatpush1.bf16.msra.mxu0 %v1126
  %1622 = vmatprep.subr.bf16.mxu0 0
  %1623 = vmatpush1.bf16.msra.mxu0 %v1127
  %1624 = vmatprep.subr.bf16.mxu0 0
  %1625 = vmatpush1.bf16.msra.mxu0 %v1128
  %1626 = vmatprep.subr.bf16.mxu0 0
  %1627 = vmatpush1.bf16.msra.mxu0 %v1129
  %1628 = vmatprep.subr.bf16.mxu0 0
  %1629 = vmatpush1.bf16.msra.mxu0 %v1130
  %1630 = vmatprep.subr.bf16.mxu0 0
  %1631 = vmatpush1.bf16.msra.mxu0 %v1131
  %1632 = vmatprep.subr.bf16.mxu0 0
  %1633 = vmatpush1.bf16.msra.mxu0 %v1132
  %1634 = vmatprep.subr.bf16.mxu0 0
  %1635 = vmatpush1.bf16.msra.mxu0 %v1133
  %1636 = vmatprep.subr.bf16.mxu0 0
  %1637 = vmatpush1.bf16.msra.mxu0 %v1134
  %1638 = vmatprep.mubr.bf16.mxu0 %v446
  %1639 = vmatmul.mubr.bf16.gmra.mrb[0].mxu0 %v445
  %v1640 = vpop.f32.mrb[0].mxu0
  %v1641 = vadd.f32 %v1592, %v1640
  %v1642 = vpop.f32.mrb[0].mxu0
  %v1643 = vpop.f32.mrb[0].mxu0
  %v1644 = vadd.f32 %v1595, %v1643
  %v1645 = vpop.f32.mrb[0].mxu0
  %1646 = vmatprep.mubr.bf16.mxu0 %v462
  %1647 = vmatmul.mubr.bf16.gmra.mrb[0].mxu0 %v461
  %v1648 = vpop.f32.mrb[0].mxu0
  %v1649 = vadd.f32 %v1600, %v1648
  %v1650 = vpop.f32.mrb[0].mxu0
  %v1651 = vpop.f32.mrb[0].mxu0
  %v1652 = vadd.f32 %v1603, %v1651
  %v1653 = vpop.f32.mrb[0].mxu0
  %1654 = vdwg.mxu0
  %vm1655 = vcmask 15360
  %1656 = vst.msk [vmem:[%s5] sm:$0xff] %vm1655, %v1641
  %1657 = vst.msk [vmem:[%s5 + $0x8] sm:$0xff] %vm1655, %v1644
  %1658 = vst.msk [vmem:[%s5 + $0x10] sm:$0xff] %vm1655, %v1649
  %1659 = vst.msk [vmem:[%s5 + $0x18] sm:$0xff] %vm1655, %v1652
  %v1660 = vld [vmem:[%s2] sm:$0xff]
  %v1661 = vld [vmem:[%s2 + $0x8] sm:$0xff]
  %v1662 = vld [vmem:[%s2 + $0x10] sm:$0xff]
  %v1663 = vld [vmem:[%s2 + $0x18] sm:$0xff]
  %v1664 = vld [vmem:[%s2 + $0x20] sm:$0xff]
  %v1665 = vld [vmem:[%s2 + $0x28] sm:$0xff]
  %v1666 = vld [vmem:[%s2 + $0x30] sm:$0xff]
  %v1667 = vld [vmem:[%s2 + $0x38] sm:$0xff]
  %v1668 = vld [vmem:[%s2 + $0x40] sm:$0xff]
  %v1669 = vld [vmem:[%s2 + $0x48] sm:$0xff]
  %v1670 = vld [vmem:[%s2 + $0x50] sm:$0xff]
  %v1671 = vld [vmem:[%s2 + $0x58] sm:$0xff]
  %v1672 = vld [vmem:[%s2 + $0x60] sm:$0xff]
  %v1673 = vld [vmem:[%s2 + $0x68] sm:$0xff]
  %v1674 = vld [vmem:[%s2 + $0x70] sm:$0xff]
  %v1675 = vld [vmem:[%s2 + $0x78] sm:$0xff]
  %v1676 = vld [vmem:[%s2 + $0x80] sm:$0xff]
  %v1677 = vld [vmem:[%s2 + $0x88] sm:$0xff]
  %v1678 = vld [vmem:[%s2 + $0x90] sm:$0xff]
  %v1679 = vld [vmem:[%s2 + $0x98] sm:$0xff]
  %v1680 = vld [vmem:[%s2 + $0xa0] sm:$0xff]
  %v1681 = vld [vmem:[%s2 + $0xa8] sm:$0xff]
  %v1682 = vld [vmem:[%s2 + $0xb0] sm:$0xff]
  %v1683 = vld [vmem:[%s2 + $0xb8] sm:$0xff]
  %v1684 = vld [vmem:[%s2 + $0xc0] sm:$0xff]
  %v1685 = vld [vmem:[%s2 + $0xc8] sm:$0xff]
  %v1686 = vld [vmem:[%s2 + $0xd0] sm:$0xff]
  %v1687 = vld [vmem:[%s2 + $0xd8] sm:$0xff]
  %v1688 = vld [vmem:[%s2 + $0xe0] sm:$0xff]
  %v1689 = vld [vmem:[%s2 + $0xe8] sm:$0xff]
  %v1690 = vld [vmem:[%s2 + $0xf0] sm:$0xff]
  %v1691 = vld [vmem:[%s2 + $0xf8] sm:$0xff]
  %v1692 = vld [vmem:[%s4] sm:$0xff]
  %v1693 = vld [vmem:[%s4 + $0x8] sm:$0xff]
  %v1694 = vld [vmem:[%s4 + $0x10] sm:$0xff]
  %v1695 = vld [vmem:[%s4 + $0x18] sm:$0xff]
  %1697 = vset.pattern.permute.xlu0 0
  %1698 = vperm.xlu0 %1697, %v1692
  %v1699 = vpop.permute.xlu0 %1698
  %1702 = vset.pattern.permute.xlu0 0
  %1703 = vperm.xlu0 %1702, %v1693
  %v1704 = vpop.permute.xlu0 %1703
  %1707 = vset.pattern.permute.xlu0 0
  %1708 = vperm.xlu0 %1707, %v1694
  %v1709 = vpop.permute.xlu0 %1708
  %1712 = vset.pattern.permute.xlu0 0
  %1713 = vperm.xlu0 %1712, %v1695
  %v1714 = vpop.permute.xlu0 %1713
  %v1748 = vunpack.c.l.b16 %v1660
  %v1749 = vunpack.c.h.b16 %v1660
  %v1750 = vunpack.c.l.b16 %v1661
  %v1751 = vunpack.c.h.b16 %v1661
  %v1752 = vunpack.c.l.b16 %v1662
  %v1753 = vunpack.c.h.b16 %v1662
  %v1754 = vunpack.c.l.b16 %v1663
  %v1755 = vunpack.c.h.b16 %v1663
  %v1756 = vunpack.c.l.b16 %v1664
  %v1757 = vunpack.c.h.b16 %v1664
  %v1758 = vunpack.c.l.b16 %v1665
  %v1759 = vunpack.c.h.b16 %v1665
  %v1760 = vunpack.c.l.b16 %v1666
  %v1761 = vunpack.c.h.b16 %v1666
  %v1762 = vunpack.c.l.b16 %v1667
  %v1763 = vunpack.c.h.b16 %v1667
  %v1764 = vunpack.c.l.b16 %v1668
  %v1765 = vunpack.c.h.b16 %v1668
  %v1766 = vunpack.c.l.b16 %v1669
  %v1767 = vunpack.c.h.b16 %v1669
  %v1768 = vunpack.c.l.b16 %v1670
  %v1769 = vunpack.c.h.b16 %v1670
  %v1770 = vunpack.c.l.b16 %v1671
  %v1771 = vunpack.c.h.b16 %v1671
  %v1772 = vunpack.c.l.b16 %v1672
  %v1773 = vunpack.c.h.b16 %v1672
  %v1774 = vunpack.c.l.b16 %v1673
  %v1775 = vunpack.c.h.b16 %v1673
  %v1776 = vunpack.c.l.b16 %v1674
  %v1777 = vunpack.c.h.b16 %v1674
  %v1778 = vunpack.c.l.b16 %v1675
  %v1779 = vunpack.c.h.b16 %v1675
  %v1780 = vunpack.c.l.b16 %v1676
  %v1781 = vunpack.c.h.b16 %v1676
  %v1782 = vunpack.c.l.b16 %v1677
  %v1783 = vunpack.c.h.b16 %v1677
  %v1784 = vunpack.c.l.b16 %v1678
  %v1785 = vunpack.c.h.b16 %v1678
  %v1786 = vunpack.c.l.b16 %v1679
  %v1787 = vunpack.c.h.b16 %v1679
  %v1788 = vunpack.c.l.b16 %v1680
  %v1789 = vunpack.c.h.b16 %v1680
  %v1790 = vunpack.c.l.b16 %v1681
  %v1791 = vunpack.c.h.b16 %v1681
  %v1792 = vunpack.c.l.b16 %v1682
  %v1793 = vunpack.c.h.b16 %v1682
  %v1794 = vunpack.c.l.b16 %v1683
  %v1795 = vunpack.c.h.b16 %v1683
  %v1796 = vunpack.c.l.b16 %v1684
  %v1797 = vunpack.c.h.b16 %v1684
  %v1798 = vunpack.c.l.b16 %v1685
  %v1799 = vunpack.c.h.b16 %v1685
  %v1800 = vunpack.c.l.b16 %v1686
  %v1801 = vunpack.c.h.b16 %v1686
  %v1802 = vunpack.c.l.b16 %v1687
  %v1803 = vunpack.c.h.b16 %v1687
  %v1804 = vunpack.c.l.b16 %v1688
  %v1805 = vunpack.c.h.b16 %v1688
  %v1806 = vunpack.c.l.b16 %v1689
  %v1807 = vunpack.c.h.b16 %v1689
  %v1808 = vunpack.c.l.b16 %v1690
  %v1809 = vunpack.c.h.b16 %v1690
  %v1810 = vunpack.c.l.b16 %v1691
  %v1811 = vunpack.c.h.b16 %v1691
  %v1812 = vpack.c.b16 %v1764, %v1748
  %v1813 = vpack.c.b16 %v1765, %v1749
  %v1814 = vpack.c.b16 %v1766, %v1750
  %v1815 = vpack.c.b16 %v1767, %v1751
  %v1816 = vpack.c.b16 %v1768, %v1752
  %v1817 = vpack.c.b16 %v1769, %v1753
  %v1818 = vpack.c.b16 %v1770, %v1754
  %v1819 = vpack.c.b16 %v1771, %v1755
  %v1820 = vpack.c.b16 %v1772, %v1756
  %v1821 = vpack.c.b16 %v1773, %v1757
  %v1822 = vpack.c.b16 %v1774, %v1758
  %v1823 = vpack.c.b16 %v1775, %v1759
  %v1824 = vpack.c.b16 %v1776, %v1760
  %v1825 = vpack.c.b16 %v1777, %v1761
  %v1826 = vpack.c.b16 %v1778, %v1762
  %v1827 = vpack.c.b16 %v1779, %v1763
  %v1828 = vpack.c.b16 %v1796, %v1780
  %v1829 = vpack.c.b16 %v1797, %v1781
  %v1830 = vpack.c.b16 %v1798, %v1782
  %v1831 = vpack.c.b16 %v1799, %v1783
  %v1832 = vpack.c.b16 %v1800, %v1784
  %v1833 = vpack.c.b16 %v1801, %v1785
  %v1834 = vpack.c.b16 %v1802, %v1786
  %v1835 = vpack.c.b16 %v1803, %v1787
  %v1836 = vpack.c.b16 %v1804, %v1788
  %v1837 = vpack.c.b16 %v1805, %v1789
  %v1838 = vpack.c.b16 %v1806, %v1790
  %v1839 = vpack.c.b16 %v1807, %v1791
  %v1840 = vpack.c.b16 %v1808, %v1792
  %v1841 = vpack.c.b16 %v1809, %v1793
  %v1842 = vpack.c.b16 %v1810, %v1794
  %v1843 = vpack.c.b16 %v1811, %v1795
  %1876 = vmatprep.subr.bf16.mxu0 0
  %1877 = vmatpush1.bf16.msra.mxu0 %v1007
  %1878 = vmatprep.subr.bf16.mxu0 0
  %1879 = vmatpush1.bf16.msra.mxu0 %v1008
  %1880 = vmatprep.subr.bf16.mxu0 0
  %1881 = vmatpush1.bf16.msra.mxu0 %v1009
  %1882 = vmatprep.subr.bf16.mxu0 0
  %1883 = vmatpush1.bf16.msra.mxu0 %v1010
  %1884 = vmatprep.subr.bf16.mxu0 0
  %1885 = vmatpush1.bf16.msra.mxu0 %v1011
  %1886 = vmatprep.subr.bf16.mxu0 0
  %1887 = vmatpush1.bf16.msra.mxu0 %v1012
  %1888 = vmatprep.subr.bf16.mxu0 0
  %1889 = vmatpush1.bf16.msra.mxu0 %v1013
  %1890 = vmatprep.subr.bf16.mxu0 0
  %1891 = vmatpush1.bf16.msra.mxu0 %v1014
  %1892 = vmatprep.subr.bf16.mxu0 0
  %1893 = vmatpush1.bf16.msra.mxu0 %v1015
  %1894 = vmatprep.subr.bf16.mxu0 0
  %1895 = vmatpush1.bf16.msra.mxu0 %v1016
  %1896 = vmatprep.subr.bf16.mxu0 0
  %1897 = vmatpush1.bf16.msra.mxu0 %v1017
  %1898 = vmatprep.subr.bf16.mxu0 0
  %1899 = vmatpush1.bf16.msra.mxu0 %v1018
  %1900 = vmatprep.subr.bf16.mxu0 0
  %1901 = vmatpush1.bf16.msra.mxu0 %v1019
  %1902 = vmatprep.subr.bf16.mxu0 0
  %1903 = vmatpush1.bf16.msra.mxu0 %v1020
  %1904 = vmatprep.subr.bf16.mxu0 0
  %1905 = vmatpush1.bf16.msra.mxu0 %v1021
  %1906 = vmatprep.subr.bf16.mxu0 0
  %1907 = vmatpush1.bf16.msra.mxu0 %v1022
  %1908 = vmatprep.mubr.bf16.mxu0 %v1813
  %1909 = vmatmul.mubr.bf16.gmra.mrb[0].mxu0 %v1812
  %v1910 = vpop.f32.mrb[0].mxu0
  %v1911 = vadd.f32 %v1699, %v1910
  %v1912 = vpop.f32.mrb[0].mxu0
  %v1913 = vpop.f32.mrb[0].mxu0
  %v1914 = vadd.f32 %v1704, %v1913
  %v1915 = vpop.f32.mrb[0].mxu0
  %1916 = vmatprep.mubr.bf16.mxu0 %v1829
  %1917 = vmatmul.mubr.bf16.gmra.mrb[0].mxu0 %v1828
  %v1918 = vpop.f32.mrb[0].mxu0
  %v1919 = vadd.f32 %v1709, %v1918
  %v1920 = vpop.f32.mrb[0].mxu0
  %v1921 = vpop.f32.mrb[0].mxu0
  %v1922 = vadd.f32 %v1714, %v1921
  %v1923 = vpop.f32.mrb[0].mxu0
  %1924 = vdwg.mxu0
  %1925 = vmatprep.subr.bf16.mxu0 0
  %1926 = vmatpush1.bf16.msra.mxu0 %v1023
  %1927 = vmatprep.subr.bf16.mxu0 0
  %1928 = vmatpush1.bf16.msra.mxu0 %v1024
  %1929 = vmatprep.subr.bf16.mxu0 0
  %1930 = vmatpush1.bf16.msra.mxu0 %v1025
  %1931 = vmatprep.subr.bf16.mxu0 0
  %1932 = vmatpush1.bf16.msra.mxu0 %v1026
  %1933 = vmatprep.subr.bf16.mxu0 0
  %1934 = vmatpush1.bf16.msra.mxu0 %v1027
  %1935 = vmatprep.subr.bf16.mxu0 0
  %1936 = vmatpush1.bf16.msra.mxu0 %v1028
  %1937 = vmatprep.subr.bf16.mxu0 0
  %1938 = vmatpush1.bf16.msra.mxu0 %v1029
  %1939 = vmatprep.subr.bf16.mxu0 0
  %1940 = vmatpush1.bf16.msra.mxu0 %v1030
  %1941 = vmatprep.subr.bf16.mxu0 0
  %1942 = vmatpush1.bf16.msra.mxu0 %v1031
  %1943 = vmatprep.subr.bf16.mxu0 0
  %1944 = vmatpush1.bf16.msra.mxu0 %v1032
  %1945 = vmatprep.subr.bf16.mxu0 0
  %1946 = vmatpush1.bf16.msra.mxu0 %v1033
  %1947 = vmatprep.subr.bf16.mxu0 0
  %1948 = vmatpush1.bf16.msra.mxu0 %v1034
  %1949 = vmatprep.subr.bf16.mxu0 0
  %1950 = vmatpush1.bf16.msra.mxu0 %v1035
  %1951 = vmatprep.subr.bf16.mxu0 0
  %1952 = vmatpush1.bf16.msra.mxu0 %v1036
  %1953 = vmatprep.subr.bf16.mxu0 0
  %1954 = vmatpush1.bf16.msra.mxu0 %v1037
  %1955 = vmatprep.subr.bf16.mxu0 0
  %1956 = vmatpush1.bf16.msra.mxu0 %v1038
  %1957 = vmatprep.mubr.bf16.mxu0 %v1815
  %1958 = vmatmul.mubr.bf16.gmra.mrb[0].mxu0 %v1814
  %v1959 = vpop.f32.mrb[0].mxu0
  %v1960 = vadd.f32 %v1911, %v1959
  %v1961 = vpop.f32.mrb[0].mxu0
  %v1962 = vpop.f32.mrb[0].mxu0
  %v1963 = vadd.f32 %v1914, %v1962
  %v1964 = vpop.f32.mrb[0].mxu0
  %1965 = vmatprep.mubr.bf16.mxu0 %v1831
  %1966 = vmatmul.mubr.bf16.gmra.mrb[0].mxu0 %v1830
  %v1967 = vpop.f32.mrb[0].mxu0
  %v1968 = vadd.f32 %v1919, %v1967
  %v1969 = vpop.f32.mrb[0].mxu0
  %v1970 = vpop.f32.mrb[0].mxu0
  %v1971 = vadd.f32 %v1922, %v1970
  %v1972 = vpop.f32.mrb[0].mxu0
  %1973 = vdwg.mxu0
  %1974 = vmatprep.subr.bf16.mxu0 0
  %1975 = vmatpush1.bf16.msra.mxu0 %v1039
  %1976 = vmatprep.subr.bf16.mxu0 0
  %1977 = vmatpush1.bf16.msra.mxu0 %v1040
  %1978 = vmatprep.subr.bf16.mxu0 0
  %1979 = vmatpush1.bf16.msra.mxu0 %v1041
  %1980 = vmatprep.subr.bf16.mxu0 0
  %1981 = vmatpush1.bf16.msra.mxu0 %v1042
  %1982 = vmatprep.subr.bf16.mxu0 0
  %1983 = vmatpush1.bf16.msra.mxu0 %v1043
  %1984 = vmatprep.subr.bf16.mxu0 0
  %1985 = vmatpush1.bf16.msra.mxu0 %v1044
  %1986 = vmatprep.subr.bf16.mxu0 0
  %1987 = vmatpush1.bf16.msra.mxu0 %v1045
  %1988 = vmatprep.subr.bf16.mxu0 0
  %1989 = vmatpush1.bf16.msra.mxu0 %v1046
  %1990 = vmatprep.subr.bf16.mxu0 0
  %1991 = vmatpush1.bf16.msra.mxu0 %v1047
  %1992 = vmatprep.subr.bf16.mxu0 0
  %1993 = vmatpush1.bf16.msra.mxu0 %v1048
  %1994 = vmatprep.subr.bf16.mxu0 0
  %1995 = vmatpush1.bf16.msra.mxu0 %v1049
  %1996 = vmatprep.subr.bf16.mxu0 0
  %1997 = vmatpush1.bf16.msra.mxu0 %v1050
  %1998 = vmatprep.subr.bf16.mxu0 0
  %1999 = vmatpush1.bf16.msra.mxu0 %v1051
  %2000 = vmatprep.subr.bf16.mxu0 0
  %2001 = vmatpush1.bf16.msra.mxu0 %v1052
  %2002 = vmatprep.subr.bf16.mxu0 0
  %2003 = vmatpush1.bf16.msra.mxu0 %v1053
  %2004 = vmatprep.subr.bf16.mxu0 0
  %2005 = vmatpush1.bf16.msra.mxu0 %v1054
  %2006 = vmatprep.mubr.bf16.mxu0 %v1817
  %2007 = vmatmul.mubr.bf16.gmra.mrb[0].mxu0 %v1816
  %v2008 = vpop.f32.mrb[0].mxu0
  %v2009 = vadd.f32 %v1960, %v2008
  %v2010 = vpop.f32.mrb[0].mxu0
  %v2011 = vpop.f32.mrb[0].mxu0
  %v2012 = vadd.f32 %v1963, %v2011
  %v2013 = vpop.f32.mrb[0].mxu0
  %2014 = vmatprep.mubr.bf16.mxu0 %v1833
  %2015 = vmatmul.mubr.bf16.gmra.mrb[0].mxu0 %v1832
  %v2016 = vpop.f32.mrb[0].mxu0
  %v2017 = vadd.f32 %v1968, %v2016
  %v2018 = vpop.f32.mrb[0].mxu0
  %v2019 = vpop.f32.mrb[0].mxu0
  %v2020 = vadd.f32 %v1971, %v2019
  %v2021 = vpop.f32.mrb[0].mxu0
  %2022 = vdwg.mxu0
  %2023 = vmatprep.subr.bf16.mxu0 0
  %2024 = vmatpush1.bf16.msra.mxu0 %v1055
  %2025 = vmatprep.subr.bf16.mxu0 0
  %2026 = vmatpush1.bf16.msra.mxu0 %v1056
  %2027 = vmatprep.subr.bf16.mxu0 0
  %2028 = vmatpush1.bf16.msra.mxu0 %v1057
  %2029 = vmatprep.subr.bf16.mxu0 0
  %2030 = vmatpush1.bf16.msra.mxu0 %v1058
  %2031 = vmatprep.subr.bf16.mxu0 0
  %2032 = vmatpush1.bf16.msra.mxu0 %v1059
  %2033 = vmatprep.subr.bf16.mxu0 0
  %2034 = vmatpush1.bf16.msra.mxu0 %v1060
  %2035 = vmatprep.subr.bf16.mxu0 0
  %2036 = vmatpush1.bf16.msra.mxu0 %v1061
  %2037 = vmatprep.subr.bf16.mxu0 0
  %2038 = vmatpush1.bf16.msra.mxu0 %v1062
  %2039 = vmatprep.subr.bf16.mxu0 0
  %2040 = vmatpush1.bf16.msra.mxu0 %v1063
  %2041 = vmatprep.subr.bf16.mxu0 0
  %2042 = vmatpush1.bf16.msra.mxu0 %v1064
  %2043 = vmatprep.subr.bf16.mxu0 0
  %2044 = vmatpush1.bf16.msra.mxu0 %v1065
  %2045 = vmatprep.subr.bf16.mxu0 0
  %2046 = vmatpush1.bf16.msra.mxu0 %v1066
  %2047 = vmatprep.subr.bf16.mxu0 0
  %2048 = vmatpush1.bf16.msra.mxu0 %v1067
  %2049 = vmatprep.subr.bf16.mxu0 0
  %2050 = vmatpush1.bf16.msra.mxu0 %v1068
  %2051 = vmatprep.subr.bf16.mxu0 0
  %2052 = vmatpush1.bf16.msra.mxu0 %v1069
  %2053 = vmatprep.subr.bf16.mxu0 0
  %2054 = vmatpush1.bf16.msra.mxu0 %v1070
  %2055 = vmatprep.mubr.bf16.mxu0 %v1819
  %2056 = vmatmul.mubr.bf16.gmra.mrb[0].mxu0 %v1818
  %v2057 = vpop.f32.mrb[0].mxu0
  %v2058 = vadd.f32 %v2009, %v2057
  %v2059 = vpop.f32.mrb[0].mxu0
  %v2060 = vpop.f32.mrb[0].mxu0
  %v2061 = vadd.f32 %v2012, %v2060
  %v2062 = vpop.f32.mrb[0].mxu0
  %2063 = vmatprep.mubr.bf16.mxu0 %v1835
  %2064 = vmatmul.mubr.bf16.gmra.mrb[0].mxu0 %v1834
  %v2065 = vpop.f32.mrb[0].mxu0
  %v2066 = vadd.f32 %v2017, %v2065
  %v2067 = vpop.f32.mrb[0].mxu0
  %v2068 = vpop.f32.mrb[0].mxu0
  %v2069 = vadd.f32 %v2020, %v2068
  %v2070 = vpop.f32.mrb[0].mxu0
  %2071 = vdwg.mxu0
  %2072 = vmatprep.subr.bf16.mxu0 0
  %2073 = vmatpush1.bf16.msra.mxu0 %v1071
  %2074 = vmatprep.subr.bf16.mxu0 0
  %2075 = vmatpush1.bf16.msra.mxu0 %v1072
  %2076 = vmatprep.subr.bf16.mxu0 0
  %2077 = vmatpush1.bf16.msra.mxu0 %v1073
  %2078 = vmatprep.subr.bf16.mxu0 0
  %2079 = vmatpush1.bf16.msra.mxu0 %v1074
  %2080 = vmatprep.subr.bf16.mxu0 0
  %2081 = vmatpush1.bf16.msra.mxu0 %v1075
  %2082 = vmatprep.subr.bf16.mxu0 0
  %2083 = vmatpush1.bf16.msra.mxu0 %v1076
  %2084 = vmatprep.subr.bf16.mxu0 0
  %2085 = vmatpush1.bf16.msra.mxu0 %v1077
  %2086 = vmatprep.subr.bf16.mxu0 0
  %2087 = vmatpush1.bf16.msra.mxu0 %v1078
  %2088 = vmatprep.subr.bf16.mxu0 0
  %2089 = vmatpush1.bf16.msra.mxu0 %v1079
  %2090 = vmatprep.subr.bf16.mxu0 0
  %2091 = vmatpush1.bf16.msra.mxu0 %v1080
  %2092 = vmatprep.subr.bf16.mxu0 0
  %2093 = vmatpush1.bf16.msra.mxu0 %v1081
  %2094 = vmatprep.subr.bf16.mxu0 0
  %2095 = vmatpush1.bf16.msra.mxu0 %v1082
  %2096 = vmatprep.subr.bf16.mxu0 0
  %2097 = vmatpush1.bf16.msra.mxu0 %v1083
  %2098 = vmatprep.subr.bf16.mxu0 0
  %2099 = vmatpush1.bf16.msra.mxu0 %v1084
  %2100 = vmatprep.subr.bf16.mxu0 0
  %2101 = vmatpush1.bf16.msra.mxu0 %v1085
  %2102 = vmatprep.subr.bf16.mxu0 0
  %2103 = vmatpush1.bf16.msra.mxu0 %v1086
  %2104 = vmatprep.mubr.bf16.mxu0 %v1821
  %2105 = vmatmul.mubr.bf16.gmra.mrb[0].mxu0 %v1820
  %v2106 = vpop.f32.mrb[0].mxu0
  %v2107 = vadd.f32 %v2058, %v2106
  %v2108 = vpop.f32.mrb[0].mxu0
  %v2109 = vpop.f32.mrb[0].mxu0
  %v2110 = vadd.f32 %v2061, %v2109
  %v2111 = vpop.f32.mrb[0].mxu0
  %2112 = vmatprep.mubr.bf16.mxu0 %v1837
  %2113 = vmatmul.mubr.bf16.gmra.mrb[0].mxu0 %v1836
  %v2114 = vpop.f32.mrb[0].mxu0
  %v2115 = vadd.f32 %v2066, %v2114
  %v2116 = vpop.f32.mrb[0].mxu0
  %v2117 = vpop.f32.mrb[0].mxu0
  %v2118 = vadd.f32 %v2069, %v2117
  %v2119 = vpop.f32.mrb[0].mxu0
  %2120 = vdwg.mxu0
  %2121 = vmatprep.subr.bf16.mxu0 0
  %2122 = vmatpush1.bf16.msra.mxu0 %v1087
  %2123 = vmatprep.subr.bf16.mxu0 0
  %2124 = vmatpush1.bf16.msra.mxu0 %v1088
  %2125 = vmatprep.subr.bf16.mxu0 0
  %2126 = vmatpush1.bf16.msra.mxu0 %v1089
  %2127 = vmatprep.subr.bf16.mxu0 0
  %2128 = vmatpush1.bf16.msra.mxu0 %v1090
  %2129 = vmatprep.subr.bf16.mxu0 0
  %2130 = vmatpush1.bf16.msra.mxu0 %v1091
  %2131 = vmatprep.subr.bf16.mxu0 0
  %2132 = vmatpush1.bf16.msra.mxu0 %v1092
  %2133 = vmatprep.subr.bf16.mxu0 0
  %2134 = vmatpush1.bf16.msra.mxu0 %v1093
  %2135 = vmatprep.subr.bf16.mxu0 0
  %2136 = vmatpush1.bf16.msra.mxu0 %v1094
  %2137 = vmatprep.subr.bf16.mxu0 0
  %2138 = vmatpush1.bf16.msra.mxu0 %v1095
  %2139 = vmatprep.subr.bf16.mxu0 0
  %2140 = vmatpush1.bf16.msra.mxu0 %v1096
  %2141 = vmatprep.subr.bf16.mxu0 0
  %2142 = vmatpush1.bf16.msra.mxu0 %v1097
  %2143 = vmatprep.subr.bf16.mxu0 0
  %2144 = vmatpush1.bf16.msra.mxu0 %v1098
  %2145 = vmatprep.subr.bf16.mxu0 0
  %2146 = vmatpush1.bf16.msra.mxu0 %v1099
  %2147 = vmatprep.subr.bf16.mxu0 0
  %2148 = vmatpush1.bf16.msra.mxu0 %v1100
  %2149 = vmatprep.subr.bf16.mxu0 0
  %2150 = vmatpush1.bf16.msra.mxu0 %v1101
  %2151 = vmatprep.subr.bf16.mxu0 0
  %2152 = vmatpush1.bf16.msra.mxu0 %v1102
  %2153 = vmatprep.mubr.bf16.mxu0 %v1823
  %2154 = vmatmul.mubr.bf16.gmra.mrb[0].mxu0 %v1822
  %v2155 = vpop.f32.mrb[0].mxu0
  %v2156 = vadd.f32 %v2107, %v2155
  %v2157 = vpop.f32.mrb[0].mxu0
  %v2158 = vpop.f32.mrb[0].mxu0
  %v2159 = vadd.f32 %v2110, %v2158
  %v2160 = vpop.f32.mrb[0].mxu0
  %2161 = vmatprep.mubr.bf16.mxu0 %v1839
  %2162 = vmatmul.mubr.bf16.gmra.mrb[0].mxu0 %v1838
  %v2163 = vpop.f32.mrb[0].mxu0
  %v2164 = vadd.f32 %v2115, %v2163
  %v2165 = vpop.f32.mrb[0].mxu0
  %v2166 = vpop.f32.mrb[0].mxu0
  %v2167 = vadd.f32 %v2118, %v2166
  %v2168 = vpop.f32.mrb[0].mxu0
  %2169 = vdwg.mxu0
  %2170 = vmatprep.subr.bf16.mxu0 0
  %2171 = vmatpush1.bf16.msra.mxu0 %v1103
  %2172 = vmatprep.subr.bf16.mxu0 0
  %2173 = vmatpush1.bf16.msra.mxu0 %v1104
  %2174 = vmatprep.subr.bf16.mxu0 0
  %2175 = vmatpush1.bf16.msra.mxu0 %v1105
  %2176 = vmatprep.subr.bf16.mxu0 0
  %2177 = vmatpush1.bf16.msra.mxu0 %v1106
  %2178 = vmatprep.subr.bf16.mxu0 0
  %2179 = vmatpush1.bf16.msra.mxu0 %v1107
  %2180 = vmatprep.subr.bf16.mxu0 0
  %2181 = vmatpush1.bf16.msra.mxu0 %v1108
  %2182 = vmatprep.subr.bf16.mxu0 0
  %2183 = vmatpush1.bf16.msra.mxu0 %v1109
  %2184 = vmatprep.subr.bf16.mxu0 0
  %2185 = vmatpush1.bf16.msra.mxu0 %v1110
  %2186 = vmatprep.subr.bf16.mxu0 0
  %2187 = vmatpush1.bf16.msra.mxu0 %v1111
  %2188 = vmatprep.subr.bf16.mxu0 0
  %2189 = vmatpush1.bf16.msra.mxu0 %v1112
  %2190 = vmatprep.subr.bf16.mxu0 0
  %2191 = vmatpush1.bf16.msra.mxu0 %v1113
  %2192 = vmatprep.subr.bf16.mxu0 0
  %2193 = vmatpush1.bf16.msra.mxu0 %v1114
  %2194 = vmatprep.subr.bf16.mxu0 0
  %2195 = vmatpush1.bf16.msra.mxu0 %v1115
  %2196 = vmatprep.subr.bf16.mxu0 0
  %2197 = vmatpush1.bf16.msra.mxu0 %v1116
  %2198 = vmatprep.subr.bf16.mxu0 0
  %2199 = vmatpush1.bf16.msra.mxu0 %v1117
  %2200 = vmatprep.subr.bf16.mxu0 0
  %2201 = vmatpush1.bf16.msra.mxu0 %v1118
  %2202 = vmatprep.mubr.bf16.mxu0 %v1825
  %2203 = vmatmul.mubr.bf16.gmra.mrb[0].mxu0 %v1824
  %v2204 = vpop.f32.mrb[0].mxu0
  %v2205 = vadd.f32 %v2156, %v2204
  %v2206 = vpop.f32.mrb[0].mxu0
  %v2207 = vpop.f32.mrb[0].mxu0
  %v2208 = vadd.f32 %v2159, %v2207
  %v2209 = vpop.f32.mrb[0].mxu0
  %2210 = vmatprep.mubr.bf16.mxu0 %v1841
  %2211 = vmatmul.mubr.bf16.gmra.mrb[0].mxu0 %v1840
  %v2212 = vpop.f32.mrb[0].mxu0
  %v2213 = vadd.f32 %v2164, %v2212
  %v2214 = vpop.f32.mrb[0].mxu0
  %v2215 = vpop.f32.mrb[0].mxu0
  %v2216 = vadd.f32 %v2167, %v2215
  %v2217 = vpop.f32.mrb[0].mxu0
  %2218 = vdwg.mxu0
  %2219 = vmatprep.subr.bf16.mxu0 0
  %2220 = vmatpush1.bf16.msra.mxu0 %v1119
  %2221 = vmatprep.subr.bf16.mxu0 0
  %2222 = vmatpush1.bf16.msra.mxu0 %v1120
  %2223 = vmatprep.subr.bf16.mxu0 0
  %2224 = vmatpush1.bf16.msra.mxu0 %v1121
  %2225 = vmatprep.subr.bf16.mxu0 0
  %2226 = vmatpush1.bf16.msra.mxu0 %v1122
  %2227 = vmatprep.subr.bf16.mxu0 0
  %2228 = vmatpush1.bf16.msra.mxu0 %v1123
  %2229 = vmatprep.subr.bf16.mxu0 0
  %2230 = vmatpush1.bf16.msra.mxu0 %v1124
  %2231 = vmatprep.subr.bf16.mxu0 0
  %2232 = vmatpush1.bf16.msra.mxu0 %v1125
  %2233 = vmatprep.subr.bf16.mxu0 0
  %2234 = vmatpush1.bf16.msra.mxu0 %v1126
  %2235 = vmatprep.subr.bf16.mxu0 0
  %2236 = vmatpush1.bf16.msra.mxu0 %v1127
  %2237 = vmatprep.subr.bf16.mxu0 0
  %2238 = vmatpush1.bf16.msra.mxu0 %v1128
  %2239 = vmatprep.subr.bf16.mxu0 0
  %2240 = vmatpush1.bf16.msra.mxu0 %v1129
  %2241 = vmatprep.subr.bf16.mxu0 0
  %2242 = vmatpush1.bf16.msra.mxu0 %v1130
  %2243 = vmatprep.subr.bf16.mxu0 0
  %2244 = vmatpush1.bf16.msra.mxu0 %v1131
  %2245 = vmatprep.subr.bf16.mxu0 0
  %2246 = vmatpush1.bf16.msra.mxu0 %v1132
  %2247 = vmatprep.subr.bf16.mxu0 0
  %2248 = vmatpush1.bf16.msra.mxu0 %v1133
  %2249 = vmatprep.subr.bf16.mxu0 0
  %2250 = vmatpush1.bf16.msra.mxu0 %v1134
  %2251 = vmatprep.mubr.bf16.mxu0 %v1827
  %2252 = vmatmul.mubr.bf16.gmra.mrb[0].mxu0 %v1826
  %v2253 = vpop.f32.mrb[0].mxu0
  %v2254 = vadd.f32 %v2205, %v2253
  %v2255 = vpop.f32.mrb[0].mxu0
  %v2256 = vpop.f32.mrb[0].mxu0
  %v2257 = vadd.f32 %v2208, %v2256
  %v2258 = vpop.f32.mrb[0].mxu0
  %2259 = vmatprep.mubr.bf16.mxu0 %v1843
  %2260 = vmatmul.mubr.bf16.gmra.mrb[0].mxu0 %v1842
  %v2261 = vpop.f32.mrb[0].mxu0
  %v2262 = vadd.f32 %v2213, %v2261
  %v2263 = vpop.f32.mrb[0].mxu0
  %v2264 = vpop.f32.mrb[0].mxu0
  %v2265 = vadd.f32 %v2216, %v2264
  %v2266 = vpop.f32.mrb[0].mxu0
  %2267 = vdwg.mxu0
  %v2268 = vmul.f32 %v2254, 1.442695
  %v2269 = vpow.pop %v2268
  %v2270 = vmul.f32 %v2257, 1.442695
  %v2271 = vpow.pop %v2270
  %v2272 = vmul.f32 %v2262, 1.442695
  %v2273 = vpow.pop %v2272
  %v2274 = vmul.f32 %v2265, 1.442695
  %v2275 = vpow.pop %v2274
  %2276 = vst.msk [vmem:[%s6] sm:$0xff] %vm1655, %v2269
  %2277 = vst.msk [vmem:[%s6 + $0x8] sm:$0xff] %vm1655, %v2271
  %2278 = vst.msk [vmem:[%s6 + $0x10] sm:$0xff] %vm1655, %v2273
  %2279 = vst.msk [vmem:[%s6 + $0x18] sm:$0xff] %vm1655, %v2275
  // Predicated region
  $region22: #{encoder_forward_pallas.11} parent=0 // pred_check
    _
  $region23: #{encoder_forward_pallas.11} parent=0 // pred_check_branch
    %2281 = sbr.rel (0) target = $region25
  $region24: #{encoder_forward_pallas.11} parent=0 // pred_region
    _
  $region25: #{encoder_forward_pallas.11} parent=0 // pred_fallthru
    _
  // Predicated region
  $region26: #{encoder_forward_pallas.11} parent=0 // pred_check
    _
  $region27: #{encoder_forward_pallas.11} parent=0 // pred_check_branch
    %2283 = sbr.rel (0) target = $region29
  $region28: #{encoder_forward_pallas.11} parent=0 // pred_region
    _
  $region29: #{encoder_forward_pallas.11} parent=0 // pred_fallthru
    _
  // Predicated region
  $region30: #{encoder_forward_pallas.11} parent=0 // pred_check
    _
  $region31: #{encoder_forward_pallas.11} parent=0 // pred_check_branch
    %2285 = sbr.rel (0) target = $region33
  $region32: #{encoder_forward_pallas.11} parent=0 // pred_region
    _
  $region33: #{encoder_forward_pallas.11} parent=0 // pred_fallthru
    _
  // Predicated region
  $region34: #{encoder_forward_pallas.11} parent=0 // pred_check
    _
  $region35: #{encoder_forward_pallas.11} parent=0 // pred_check_branch
    %2287 = sbr.rel (0) target = $region37
  $region36: #{encoder_forward_pallas.11} parent=0 // pred_region
    _
  $region37: #{encoder_forward_pallas.11} parent=0 // pred_fallthru
    _

</llo_original>
